<compile_context>
chip_gen: v6e
topology: v6e:2x2x1
jax: 0.10.0
libtpu: 0.0.40
codegen_flags: <defaults>
</compile_context>

<pallas_src>
import functools

import jax
import jax.numpy as jnp
from jax import lax
from jax.experimental import pallas as pl
from jax.experimental.pallas import tpu as pltpu

LEAKY_SLOPE = 0.1
BN_EPS = 1e-5


# ---------------------------------------------------------------------------
# Pallas kernels
# ---------------------------------------------------------------------------
def _matmul_kernel(x_ref, w_ref, o_ref, acc_ref):
    """Tiled matmul (conv-as-matmul): bf16 inputs, f32 VMEM accumulator."""
    k = pl.program_id(1)

    @pl.when(k == 0)
    def _():
        acc_ref[...] = jnp.zeros_like(acc_ref)

    acc_ref[...] += jnp.dot(x_ref[...], w_ref[...],
                            preferred_element_type=jnp.float32)

    @pl.when(k == pl.num_programs(1) - 1)
    def _():
        o_ref[...] = acc_ref[...]


def _bn_act_kernel(y_ref, s_ref, b_ref, o_ref, *, slope):
    """Per-channel affine (folded BatchNorm) + LeakyReLU, all f32."""
    v = y_ref[...] * s_ref[...] + b_ref[...]
    o_ref[...] = jnp.where(v >= 0, v, slope * v)


def _bn_add_act_kernel(y1_ref, s1_ref, b1_ref, y2_ref, s2_ref, b2_ref, o_ref,
                       *, slope):
    """Fused ResBlock merge: LeakyReLU(BN(backbone) + BN(shortcut))."""
    v = (y1_ref[...] * s1_ref[...] + b1_ref[...]
         + y2_ref[...] * s2_ref[...] + b2_ref[...])
    o_ref[...] = jnp.where(v >= 0, v, slope * v)


def _mlp_kernel(x_ref, w1_ref, b1_ref, w2_ref, b2_ref, o_ref, *, slope):
    """Fused Linear -> LeakyReLU -> Linear; hidden activation stays on-chip."""
    h = jnp.dot(x_ref[...], w1_ref[...], preferred_element_type=jnp.float32)
    h = h + b1_ref[...]
    h = jnp.where(h >= 0, h, slope * h)
    o_ref[...] = (jnp.dot(h.astype(w2_ref.dtype), w2_ref[...],
                          preferred_element_type=jnp.float32)
                  + b2_ref[...])


# ---------------------------------------------------------------------------
# Tiling helpers
# ---------------------------------------------------------------------------
def _round_up(x, m):
    return (x + m - 1) // m * m


def _pad_rows(a, rp):
    return a if a.shape[0] == rp else jnp.pad(a, ((0, rp - a.shape[0]), (0, 0)))


def _pad_cols(a, cp):
    return a if a.shape[1] == cp else jnp.pad(a, ((0, 0), (0, cp - a.shape[1])))


def _row_tiling(rows, max_tm=256):
    rp = _round_up(rows, 8)
    if rp > max_tm:
        tm = max_tm
        rp = _round_up(rp, tm)
    else:
        tm = rp
    return rp, tm


def _choose_tk(kp, max_tk=2048):
    """Largest 128-multiple tile that divides the padded K and fits max_tk."""
    nk = kp // 128
    best = 128
    for d in range(1, nk + 1):
        if nk % d == 0 and d * 128 <= max_tk:
            best = d * 128
    return best


# ---------------------------------------------------------------------------
# pallas_call wrappers
# ---------------------------------------------------------------------------
def conv_matmul(patches, w):
    """(rows, K) @ (K, Cout) -> (rows, Cout) f32, tiled over rows and K."""
    rows, kdim = patches.shape
    out_c = w.shape[1]

    kp = _round_up(kdim, 128)
    tk = _choose_tk(kp)
    rp, tm = _row_tiling(rows)

    xk = _pad_cols(_pad_rows(patches, rp), kp).astype(jnp.bfloat16)
    wk = _pad_rows(w, kp).astype(jnp.bfloat16)

    out = pl.pallas_call(
        _matmul_kernel,
        out_shape=jax.ShapeDtypeStruct((rp, out_c), jnp.float32),
        grid=(rp // tm, kp // tk),
        in_specs=[pl.BlockSpec((tm, tk), lambda i, k: (i, k)),
                  pl.BlockSpec((tk, out_c), lambda i, k: (k, 0))],
        out_specs=pl.BlockSpec((tm, out_c), lambda i, k: (i, 0)),
        scratch_shapes=[pltpu.VMEM((tm, out_c), jnp.float32)],
        compiler_params=pltpu.CompilerParams(
            dimension_semantics=("parallel", "arbitrary")),
    )(xk, wk)
    return out[:rows]


def bn_act(y, scale, bias, slope=LEAKY_SLOPE):
    rows, c = y.shape
    rp, tm = _row_tiling(rows)
    yp = _pad_rows(y, rp)
    out = pl.pallas_call(
        functools.partial(_bn_act_kernel, slope=slope),
        out_shape=jax.ShapeDtypeStruct((rp, c), jnp.float32),
        grid=(rp // tm,),
        in_specs=[pl.BlockSpec((tm, c), lambda i: (i, 0)),
                  pl.BlockSpec((1, c), lambda i: (0, 0)),
                  pl.BlockSpec((1, c), lambda i: (0, 0))],
        out_specs=pl.BlockSpec((tm, c), lambda i: (i, 0)),
        compiler_params=pltpu.CompilerParams(dimension_semantics=("parallel",)),
    )(yp, scale, bias)
    return out[:rows]


def bn_add_act(y1, s1, b1, y2, s2, b2, slope=LEAKY_SLOPE):
    rows, c = y1.shape
    rp, tm = _row_tiling(rows)
    y1p, y2p = _pad_rows(y1, rp), _pad_rows(y2, rp)
    out = pl.pallas_call(
        functools.partial(_bn_add_act_kernel, slope=slope),
        out_shape=jax.ShapeDtypeStruct((rp, c), jnp.float32),
        grid=(rp // tm,),
        in_specs=[pl.BlockSpec((tm, c), lambda i: (i, 0)),
                  pl.BlockSpec((1, c), lambda i: (0, 0)),
                  pl.BlockSpec((1, c), lambda i: (0, 0)),
                  pl.BlockSpec((tm, c), lambda i: (i, 0)),
                  pl.BlockSpec((1, c), lambda i: (0, 0)),
                  pl.BlockSpec((1, c), lambda i: (0, 0))],
        out_specs=pl.BlockSpec((tm, c), lambda i: (i, 0)),
        compiler_params=pltpu.CompilerParams(dimension_semantics=("parallel",)),
    )(y1p, s1, b1, y2p, s2, b2)
    return out[:rows]


def mlp_forward(x, w1, b1, w2, b2, slope=LEAKY_SLOPE):
    rows, din = x.shape
    dh, dout = w1.shape[1], w2.shape[1]
    rp, tm = _row_tiling(rows, max_tm=128)
    xp = _pad_rows(x, rp).astype(jnp.bfloat16)
    out = pl.pallas_call(
        functools.partial(_mlp_kernel, slope=slope),
        out_shape=jax.ShapeDtypeStruct((rp, dout), jnp.float32),
        grid=(rp // tm,),
        in_specs=[pl.BlockSpec((tm, din), lambda i: (i, 0)),
                  pl.BlockSpec((din, dh), lambda i: (0, 0)),
                  pl.BlockSpec((1, dh), lambda i: (0, 0)),
                  pl.BlockSpec((dh, dout), lambda i: (0, 0)),
                  pl.BlockSpec((1, dout), lambda i: (0, 0))],
        out_specs=pl.BlockSpec((tm, dout), lambda i: (i, 0)),
        compiler_params=pltpu.CompilerParams(dimension_semantics=("parallel",)),
    )(xp, w1.astype(jnp.bfloat16), b1.reshape(1, dh),
      w2.astype(jnp.bfloat16), b2.reshape(1, dout))
    return out[:rows]


# ---------------------------------------------------------------------------
# Glue: im2col, BatchNorm statistics, ResBlock / ResEncoder wiring
# ---------------------------------------------------------------------------
def im2col(x_nhwc, ksize, stride, padding):
    n, h, w, c = x_nhwc.shape
    xp = jnp.pad(x_nhwc, ((0, 0), (padding, padding), (padding, padding), (0, 0)))
    ho = (h + 2 * padding - ksize) // stride + 1
    wo = (w + 2 * padding - ksize) // stride + 1
    cols = []
    for dy in range(ksize):
        for dx in range(ksize):
            cols.append(xp[:, dy:dy + stride * ho:stride,
                           dx:dx + stride * wo:stride, :])
    patches = jnp.concatenate(cols, axis=-1)           # (N,Ho,Wo, k*k*C)
    return patches.reshape(n * ho * wo, ksize * ksize * c), (n, ho, wo)


def bn_scale_bias(y, gamma, beta, eps=BN_EPS):
    """Training-mode BatchNorm folded into per-channel scale/bias, shape (1,C)."""
    mean = jnp.mean(y, axis=0, keepdims=True)
    var = jnp.var(y, axis=0, keepdims=True)             # biased, like PyTorch fwd
    scale = gamma[None, :] * lax.rsqrt(var + eps)
    bias = beta[None, :] - mean * scale
    return scale, bias


def res_block(x_nhwc, p, stride):
    n0, h0, w0, cin = x_nhwc.shape

    # backbone conv1 (3x3, stride, pad 1) -> BN -> LeakyReLU
    patches1, (n, ho, wo) = im2col(x_nhwc, 3, stride, 1)
    y1 = conv_matmul(patches1, p["w1"])
    s1, b1 = bn_scale_bias(y1, p["bn1_g"], p["bn1_b"])
    a1 = bn_act(y1, s1, b1)

    # backbone conv2 (3x3, stride 1, pad 1) -> BN
    patches2, _ = im2col(a1.reshape(n, ho, wo, -1), 3, 1, 1)
    y2 = conv_matmul(patches2, p["w2"])
    s2, b2 = bn_scale_bias(y2, p["bn2_g"], p["bn2_b"])

    # shortcut conv (1x1, stride) -> BN
    xs = x_nhwc[:, ::stride, ::stride, :].reshape(n * ho * wo, cin)
    y3 = conv_matmul(xs, p["ws"])
    s3, b3 = bn_scale_bias(y3, p["bns_g"], p["bns_b"])

    # fused merge: LeakyReLU(BN(backbone) + BN(shortcut))
    out = bn_add_act(y2, s2, b2, y3, s3, b3)
    return out.reshape(n, ho, wo, -1)


def res_encoder_forward(params, x_nchw):
    x = jnp.transpose(x_nchw, (0, 2, 3, 1))             # NHWC, channels on lanes
    inter = res_block(x, params["pre"], stride=1)       # (N,16,16,64)
    h = res_block(inter, params["b1"], stride=2)        # (N, 8, 8,128)
    h = res_block(h, params["b2"], stride=2)            # (N, 4, 4,256)

    n, hh, ww, c = h.shape
    key_feats = jnp.mean(h.reshape(n, hh * ww, c), axis=1)   # AdaptiveAvgPool2d(1)

    m = params["mlp"]
    out = mlp_forward(key_feats, m["w1"], m["b1"], m["w2"], m["b2"])
    inter_nchw = jnp.transpose(inter, (0, 3, 1, 2))     # match PyTorch NCHW
    return key_feats, out, inter_nchw


# ---------------------------------------------------------------------------
# Pure-JAX reference (real convolutions) for a sanity check
# ---------------------------------------------------------------------------
def _ref_conv(x, w_hwio, stride, padding):
    return lax.conv_general_dilated(
        x, w_hwio, window_strides=(stride, stride),
        padding=[(padding, padding), (padding, padding)],
        dimension_numbers=("NHWC", "HWIO", "NHWC"))


def _ref_bn(y, gamma, beta, eps=BN_EPS):
    mean = jnp.mean(y, axis=(0, 1, 2))
    var = jnp.var(y, axis=(0, 1, 2))
    return (y - mean) * (gamma * lax.rsqrt(var + eps)) + beta


def _ref_leaky(y):
    return jnp.where(y >= 0, y, LEAKY_SLOPE * y)


def _ref_block(x, p, stride):
    cin = x.shape[-1]
    y1 = _ref_conv(x, p["w1"].reshape(3, 3, cin, -1), stride, 1)
    a1 = _ref_leaky(_ref_bn(y1, p["bn1_g"], p["bn1_b"]))
    cout = a1.shape[-1]
    y2 = _ref_bn(_ref_conv(a1, p["w2"].reshape(3, 3, cout, -1), 1, 1),
                 p["bn2_g"], p["bn2_b"])
    y3 = _ref_bn(_ref_conv(x, p["ws"].reshape(1, 1, cin, -1), stride, 0),
                 p["bns_g"], p["bns_b"])
    return _ref_leaky(y2 + y3)


def _reference(params, x_nchw):
    x = jnp.transpose(x_nchw, (0, 2, 3, 1))
    inter = _ref_block(x, params["pre"], 1)
    h = _ref_block(inter, params["b1"], 2)
    h = _ref_block(h, params["b2"], 2)
    key_feats = jnp.mean(h, axis=(1, 2))
    m = params["mlp"]
    hid = _ref_leaky(key_feats @ m["w1"] + m["b1"])
    out = hid @ m["w2"] + m["b2"]
    return key_feats, out, jnp.transpose(inter, (0, 3, 1, 2))


# ---------------------------------------------------------------------------
def make_block_params(key, cin, cout):
    ks = jax.random.split(key, 9)
    gn = lambda k, shape, std: std * jax.random.normal(k, shape, jnp.float32)
    return {
        "w1": gn(ks[0], (9 * cin, cout), (2.0 / (9 * cin)) ** 0.5),
        "w2": gn(ks[1], (9 * cout, cout), (2.0 / (9 * cout)) ** 0.5),
        "ws": gn(ks[2], (cin, cout), (2.0 / cin) ** 0.5),
        "bn1_g": 1.0 + gn(ks[3], (cout,), 0.1),
        "bn1_b": gn(ks[4], (cout,), 0.1),
        "bn2_g": 1.0 + gn(ks[5], (cout,), 0.1),
        "bn2_b": gn(ks[6], (cout,), 0.1),
        "bns_g": 1.0 + gn(ks[7], (cout,), 0.1),
        "bns_b": gn(ks[8], (cout,), 0.1),
    }


def make_mlp_params(key, din, dout):
    ks = jax.random.split(key, 4)
    std = (1.0 / din) ** 0.5
    return {
        "w1": std * jax.random.normal(ks[0], (din, dout), jnp.float32),
        "b1": 0.05 * jax.random.normal(ks[1], (dout,), jnp.float32),
        "w2": std * jax.random.normal(ks[2], (dout, dout), jnp.float32),
        "b2": 0.05 * jax.random.normal(ks[3], (dout,), jnp.float32),
    }


if __name__ == "__main__":
    # ResEncoder expects 3 input channels (Conv2d(3, 64, ...)); small spatial 16x16.
    N, C, H, W = 2, 3, 16, 16

    root = jax.random.PRNGKey(0)
    k_pre, k_b1, k_b2, k_mlp, k_x = jax.random.split(root, 5)

    params = {
        "pre": make_block_params(k_pre, 3, 64),
        "b1": make_block_params(k_b1, 64, 128),
        "b2": make_block_params(k_b2, 128, 256),
        "mlp": make_mlp_params(k_mlp, 256, 256),
    }
    x = jax.random.normal(k_x, (N, C, H, W), jnp.float32)

    fwd = jax.jit(res_encoder_forward)
    key_feats, out, inter = fwd(params, x)
    jax.block_until_ready((key_feats, out, inter))

    # shape / semantics checks (forward returns (key, out, inter))
    assert key_feats.shape == (N, 256)
    assert out.shape == (N, 256)
    assert inter.shape == (N, 64, H, W)

    ref_key, ref_out, ref_inter = _reference(params, x)
    assert jnp.allclose(inter, ref_inter, rtol=5e-2, atol=5e-2), "inter mismatch"
    assert jnp.allclose(key_feats, ref_key, rtol=5e-2, atol=5e-2), "key mismatch"
    assert jnp.allclose(out, ref_out, rtol=5e-2, atol=5e-2), "out mismatch"

    print("KERNEL_OK")
</pallas_src>

<mosaic_0001>
module attributes {stable_mosaic.version = 11 : i64} {
  func.func @_matmul_kernel(%arg0: i32, %arg1: i32, %arg2: memref<256x128xbf16, #tpu.memory_space<vmem>>, %arg3: memref<128x64xbf16, #tpu.memory_space<vmem>>, %arg4: memref<256x64xf32, #tpu.memory_space<vmem>>, %arg5: memref<256x64xf32, #tpu.memory_space<vmem>>) attributes {dimension_semantics = [#tpu.dimension_semantics<parallel>, #tpu.dimension_semantics<arbitrary>], iteration_bounds = array<i64: 2, 1>, scalar_prefetch = 0 : i64, scratch_operands = 1 : i64, tpu.core_type = #tpu.core_type<tc>, window_params = [{transform_indices = @transform_0, window_bounds = array<i64: 256, 128>}, {transform_indices = @transform_1, window_bounds = array<i64: 128, 64>}, {transform_indices = @transform_2, window_bounds = array<i64: 256, 64>}]} {
    %c0_i32 = arith.constant 0 : i32
    %0 = arith.cmpi eq, %arg1, %c0_i32 : i32
    %1 = arith.extui %0 : i1 to i32
    %c0_i32_0 = arith.constant 0 : i32
    %2 = arith.cmpi ne, %1, %c0_i32_0 : i32
    scf.if %2 {
      %cst_10 = arith.constant 0.000000e+00 : f32
      %12 = vector.broadcast %cst_10 : f32 to vector<256x64xf32>
      %c0_11 = arith.constant 0 : index
      %c0_12 = arith.constant 0 : index
      %13 = vector.load %arg5[%c0_11, %c0_12] : memref<256x64xf32, #tpu.memory_space<vmem>>, vector<256x64xf32>
      tpu.vector_store %arg5[%c0_11, %c0_12], %12 {strides = array<i32>} : memref<256x64xf32, #tpu.memory_space<vmem>>, vector<256x64xf32>,
    } else {
    }
    %c0 = arith.constant 0 : index
    %c0_1 = arith.constant 0 : index
    %3 = vector.load %arg5[%c0, %c0_1] : memref<256x64xf32, #tpu.memory_space<vmem>>, vector<256x64xf32>
    %c0_2 = arith.constant 0 : index
    %c0_3 = arith.constant 0 : index
    %4 = vector.load %arg2[%c0_2, %c0_3] : memref<256x128xbf16, #tpu.memory_space<vmem>>, vector<256x128xbf16>
    %c0_4 = arith.constant 0 : index
    %c0_5 = arith.constant 0 : index
    %5 = vector.load %arg3[%c0_4, %c0_5] : memref<128x64xbf16, #tpu.memory_space<vmem>>, vector<128x64xbf16>
    %cst = arith.constant dense<0.000000e+00> : vector<256x64xf32>
    %6 = tpu.matmul %4, %5, %cst {dimension_numbers = #tpu.dot_dimension_numbers<[1], [0], [0], [1], [0, 0, 1, 1], [], []>} : vector<256x128xbf16>, vector<128x64xbf16>, vector<256x64xf32> -> vector<256x64xf32>
    %7 = arith.addf %3, %6 : vector<256x64xf32>
    %c0_6 = arith.constant 0 : index
    %c0_7 = arith.constant 0 : index
    %8 = vector.load %arg5[%c0_6, %c0_7] : memref<256x64xf32, #tpu.memory_space<vmem>>, vector<256x64xf32>
    tpu.vector_store %arg5[%c0_6, %c0_7], %7 {strides = array<i32>} : memref<256x64xf32, #tpu.memory_space<vmem>>, vector<256x64xf32>,
    %c0_i32_8 = arith.constant 0 : i32
    %9 = arith.cmpi eq, %arg1, %c0_i32_8 : i32
    %10 = arith.extui %9 : i1 to i32
    %c0_i32_9 = arith.constant 0 : i32
    %11 = arith.cmpi ne, %10, %c0_i32_9 : i32
    scf.if %11 {
      %c0_10 = arith.constant 0 : index
      %c0_11 = arith.constant 0 : index
      %12 = vector.load %arg5[%c0_10, %c0_11] : memref<256x64xf32, #tpu.memory_space<vmem>>, vector<256x64xf32>
      %c0_12 = arith.constant 0 : index
      %c0_13 = arith.constant 0 : index
      %13 = vector.load %arg4[%c0_12, %c0_13] : memref<256x64xf32, #tpu.memory_space<vmem>>, vector<256x64xf32>
      tpu.vector_store %arg4[%c0_12, %c0_13], %12 {strides = array<i32>} : memref<256x64xf32, #tpu.memory_space<vmem>>, vector<256x64xf32>,
    } else {
    }
    return
  }
  func.func @transform_0(%arg0: i32, %arg1: i32) -> (i32, i32) {
    %c0_i32 = arith.constant 0 : i32
    return %arg0, %arg1 : i32, i32
  }
  func.func @transform_1(%arg0: i32, %arg1: i32) -> (i32, i32) {
    %c0_i32 = arith.constant 0 : i32
    %c0_i32_0 = arith.constant 0 : i32
    return %arg1, %c0_i32 : i32, i32
  }
  func.func @transform_2(%arg0: i32, %arg1: i32) -> (i32, i32) {
    %c0_i32 = arith.constant 0 : i32
    %c0_i32_0 = arith.constant 0 : i32
    return %arg0, %c0_i32 : i32, i32
  }
}

module attributes {stable_mosaic.version = 11 : i64} {
  func.func @_bn_act_kernel(%arg0: i32, %arg1: memref<256x64xf32, #tpu.memory_space<vmem>>, %arg2: memref<1x64xf32, #tpu.memory_space<vmem>>, %arg3: memref<1x64xf32, #tpu.memory_space<vmem>>, %arg4: memref<256x64xf32, #tpu.memory_space<vmem>>) attributes {dimension_semantics = [#tpu.dimension_semantics<parallel>], iteration_bounds = array<i64: 2>, scalar_prefetch = 0 : i64, scratch_operands = 0 : i64, tpu.core_type = #tpu.core_type<tc>, window_params = [{transform_indices = @transform_0, window_bounds = array<i64: 256, 64>}, {pipeline_mode = #tpu.pipeline_mode<synchronous>, transform_indices = @transform_1, window_bounds = array<i64: 1, 64>}, {pipeline_mode = #tpu.pipeline_mode<synchronous>, transform_indices = @transform_2, window_bounds = array<i64: 1, 64>}, {transform_indices = @transform_3, window_bounds = array<i64: 256, 64>}]} {
    %c0 = arith.constant 0 : index
    %c0_0 = arith.constant 0 : index
    %0 = vector.load %arg1[%c0, %c0_0] : memref<256x64xf32, #tpu.memory_space<vmem>>, vector<256x64xf32>
    %c0_1 = arith.constant 0 : index
    %c0_2 = arith.constant 0 : index
    %1 = vector.load %arg2[%c0_1, %c0_2] : memref<1x64xf32, #tpu.memory_space<vmem>>, vector<1x64xf32>
    %2 = vector.broadcast %1 : vector<1x64xf32> to vector<256x64xf32>
    %3 = arith.mulf %0, %2 : vector<256x64xf32>
    %c0_3 = arith.constant 0 : index
    %c0_4 = arith.constant 0 : index
    %4 = vector.load %arg3[%c0_3, %c0_4] : memref<1x64xf32, #tpu.memory_space<vmem>>, vector<1x64xf32>
    %5 = vector.broadcast %4 : vector<1x64xf32> to vector<256x64xf32>
    %6 = arith.addf %3, %5 : vector<256x64xf32>
    %cst = arith.constant 0.000000e+00 : f32
    %7 = vector.broadcast %cst : f32 to vector<256x64xf32>
    %8 = arith.cmpf oge, %6, %7 : vector<256x64xf32>
    %cst_5 = arith.constant 1.000000e-01 : f32
    %9 = vector.broadcast %cst_5 : f32 to vector<256x64xf32>
    %10 = arith.mulf %9, %6 : vector<256x64xf32>
    %11 = arith.select %8, %6, %10 : vector<256x64xi1>, vector<256x64xf32>
    %c0_6 = arith.constant 0 : index
    %c0_7 = arith.constant 0 : index
    %12 = vector.load %arg4[%c0_6, %c0_7] : memref<256x64xf32, #tpu.memory_space<vmem>>, vector<256x64xf32>
    tpu.vector_store %arg4[%c0_6, %c0_7], %11 {strides = array<i32>} : memref<256x64xf32, #tpu.memory_space<vmem>>, vector<256x64xf32>,
    return
  }
  func.func @transform_0(%arg0: i32) -> (i32, i32) {
    %c0_i32 = arith.constant 0 : i32
    %c0_i32_0 = arith.constant 0 : i32
    return %arg0, %c0_i32 : i32, i32
  }
  func.func @transform_1(%arg0: i32) -> (i32, i32) {
    %c0_i32 = arith.constant 0 : i32
    %c0_i32_0 = arith.constant 0 : i32
    %c0_i32_1 = arith.constant 0 : i32
    return %c0_i32, %c0_i32_0 : i32, i32
  }
  func.func @transform_2(%arg0: i32) -> (i32, i32) {
    %c0_i32 = arith.constant 0 : i32
    %c0_i32_0 = arith.constant 0 : i32
    %c0_i32_1 = arith.constant 0 : i32
    return %c0_i32, %c0_i32_0 : i32, i32
  }
  func.func @transform_3(%arg0: i32) -> (i32, i32) {
    %c0_i32 = arith.constant 0 : i32
    %c0_i32_0 = arith.constant 0 : i32
    return %arg0, %c0_i32 : i32, i32
  }
}

module attributes {stable_mosaic.version = 11 : i64} {
  func.func @_matmul_kernel(%arg0: i32, %arg1: i32, %arg2: memref<256x640xbf16, #tpu.memory_space<vmem>>, %arg3: memref<640x64xbf16, #tpu.memory_space<vmem>>, %arg4: memref<256x64xf32, #tpu.memory_space<vmem>>, %arg5: memref<256x64xf32, #tpu.memory_space<vmem>>) attributes {dimension_semantics = [#tpu.dimension_semantics<parallel>, #tpu.dimension_semantics<arbitrary>], iteration_bounds = array<i64: 2, 1>, scalar_prefetch = 0 : i64, scratch_operands = 1 : i64, tpu.core_type = #tpu.core_type<tc>, window_params = [{transform_indices = @transform_0, window_bounds = array<i64: 256, 640>}, {transform_indices = @transform_1, window_bounds = array<i64: 640, 64>}, {transform_indices = @transform_2, window_bounds = array<i64: 256, 64>}]} {
    %c0_i32 = arith.constant 0 : i32
    %0 = arith.cmpi eq, %arg1, %c0_i32 : i32
    %1 = arith.extui %0 : i1 to i32
    %c0_i32_0 = arith.constant 0 : i32
    %2 = arith.cmpi ne, %1, %c0_i32_0 : i32
    scf.if %2 {
      %cst_10 = arith.constant 0.000000e+00 : f32
      %12 = vector.broadcast %cst_10 : f32 to vector<256x64xf32>
      %c0_11 = arith.constant 0 : index
      %c0_12 = arith.constant 0 : index
      %13 = vector.load %arg5[%c0_11, %c0_12] : memref<256x64xf32, #tpu.memory_space<vmem>>, vector<256x64xf32>
      tpu.vector_store %arg5[%c0_11, %c0_12], %12 {strides = array<i32>} : memref<256x64xf32, #tpu.memory_space<vmem>>, vector<256x64xf32>,
    } else {
    }
    %c0 = arith.constant 0 : index
    %c0_1 = arith.constant 0 : index
    %3 = vector.load %arg5[%c0, %c0_1] : memref<256x64xf32, #tpu.memory_space<vmem>>, vector<256x64xf32>
    %c0_2 = arith.constant 0 : index
    %c0_3 = arith.constant 0 : index
    %4 = vector.load %arg2[%c0_2, %c0_3] : memref<256x640xbf16, #tpu.memory_space<vmem>>, vector<256x640xbf16>
    %c0_4 = arith.constant 0 : index
    %c0_5 = arith.constant 0 : index
    %5 = vector.load %arg3[%c0_4, %c0_5] : memref<640x64xbf16, #tpu.memory_space<vmem>>, vector<640x64xbf16>
    %cst = arith.constant dense<0.000000e+00> : vector<256x64xf32>
    %6 = tpu.matmul %4, %5, %cst {dimension_numbers = #tpu.dot_dimension_numbers<[1], [0], [0], [1], [0, 0, 1, 1], [], []>} : vector<256x640xbf16>, vector<640x64xbf16>, vector<256x64xf32> -> vector<256x64xf32>
    %7 = arith.addf %3, %6 : vector<256x64xf32>
    %c0_6 = arith.constant 0 : index
    %c0_7 = arith.constant 0 : index
    %8 = vector.load %arg5[%c0_6, %c0_7] : memref<256x64xf32, #tpu.memory_space<vmem>>, vector<256x64xf32>
    tpu.vector_store %arg5[%c0_6, %c0_7], %7 {strides = array<i32>} : memref<256x64xf32, #tpu.memory_space<vmem>>, vector<256x64xf32>,
    %c0_i32_8 = arith.constant 0 : i32
    %9 = arith.cmpi eq, %arg1, %c0_i32_8 : i32
    %10 = arith.extui %9 : i1 to i32
    %c0_i32_9 = arith.constant 0 : i32
    %11 = arith.cmpi ne, %10, %c0_i32_9 : i32
    scf.if %11 {
      %c0_10 = arith.constant 0 : index
      %c0_11 = arith.constant 0 : index
      %12 = vector.load %arg5[%c0_10, %c0_11] : memref<256x64xf32, #tpu.memory_space<vmem>>, vector<256x64xf32>
      %c0_12 = arith.constant 0 : index
      %c0_13 = arith.constant 0 : index
      %13 = vector.load %arg4[%c0_12, %c0_13] : memref<256x64xf32, #tpu.memory_space<vmem>>, vector<256x64xf32>
      tpu.vector_store %arg4[%c0_12, %c0_13], %12 {strides = array<i32>} : memref<256x64xf32, #tpu.memory_space<vmem>>, vector<256x64xf32>,
    } else {
    }
    return
  }
  func.func @transform_0(%arg0: i32, %arg1: i32) -> (i32, i32) {
    %c0_i32 = arith.constant 0 : i32
    return %arg0, %arg1 : i32, i32
  }
  func.func @transform_1(%arg0: i32, %arg1: i32) -> (i32, i32) {
    %c0_i32 = arith.constant 0 : i32
    %c0_i32_0 = arith.constant 0 : i32
    return %arg1, %c0_i32 : i32, i32
  }
  func.func @transform_2(%arg0: i32, %arg1: i32) -> (i32, i32) {
    %c0_i32 = arith.constant 0 : i32
    %c0_i32_0 = arith.constant 0 : i32
    return %arg0, %c0_i32 : i32, i32
  }
}

module attributes {stable_mosaic.version = 11 : i64} {
  func.func @_bn_add_act_kernel(%arg0: i32, %arg1: memref<256x64xf32, #tpu.memory_space<vmem>>, %arg2: memref<1x64xf32, #tpu.memory_space<vmem>>, %arg3: memref<1x64xf32, #tpu.memory_space<vmem>>, %arg4: memref<256x64xf32, #tpu.memory_space<vmem>>, %arg5: memref<1x64xf32, #tpu.memory_space<vmem>>, %arg6: memref<1x64xf32, #tpu.memory_space<vmem>>, %arg7: memref<256x64xf32, #tpu.memory_space<vmem>>) attributes {dimension_semantics = [#tpu.dimension_semantics<parallel>], iteration_bounds = array<i64: 2>, scalar_prefetch = 0 : i64, scratch_operands = 0 : i64, tpu.core_type = #tpu.core_type<tc>, window_params = [{transform_indices = @transform_0, window_bounds = array<i64: 256, 64>}, {pipeline_mode = #tpu.pipeline_mode<synchronous>, transform_indices = @transform_1, window_bounds = array<i64: 1, 64>}, {pipeline_mode = #tpu.pipeline_mode<synchronous>, transform_indices = @transform_2, window_bounds = array<i64: 1, 64>}, {transform_indices = @transform_3, window_bounds = array<i64: 256, 64>}, {pipeline_mode = #tpu.pipeline_mode<synchronous>, transform_indices = @transform_4, window_bounds = array<i64: 1, 64>}, {pipeline_mode = #tpu.pipeline_mode<synchronous>, transform_indices = @transform_5, window_bounds = array<i64: 1, 64>}, {transform_indices = @transform_6, window_bounds = array<i64: 256, 64>}]} {
    %c0 = arith.constant 0 : index
    %c0_0 = arith.constant 0 : index
    %0 = vector.load %arg1[%c0, %c0_0] : memref<256x64xf32, #tpu.memory_space<vmem>>, vector<256x64xf32>
    %c0_1 = arith.constant 0 : index
    %c0_2 = arith.constant 0 : index
    %1 = vector.load %arg2[%c0_1, %c0_2] : memref<1x64xf32, #tpu.memory_space<vmem>>, vector<1x64xf32>
    %2 = vector.broadcast %1 : vector<1x64xf32> to vector<256x64xf32>
    %3 = arith.mulf %0, %2 : vector<256x64xf32>
    %c0_3 = arith.constant 0 : index
    %c0_4 = arith.constant 0 : index
    %4 = vector.load %arg3[%c0_3, %c0_4] : memref<1x64xf32, #tpu.memory_space<vmem>>, vector<1x64xf32>
    %5 = vector.broadcast %4 : vector<1x64xf32> to vector<256x64xf32>
    %6 = arith.addf %3, %5 : vector<256x64xf32>
    %c0_5 = arith.constant 0 : index
    %c0_6 = arith.constant 0 : index
    %7 = vector.load %arg4[%c0_5, %c0_6] : memref<256x64xf32, #tpu.memory_space<vmem>>, vector<256x64xf32>
    %c0_7 = arith.constant 0 : index
    %c0_8 = arith.constant 0 : index
    %8 = vector.load %arg5[%c0_7, %c0_8] : memref<1x64xf32, #tpu.memory_space<vmem>>, vector<1x64xf32>
    %9 = vector.broadcast %8 : vector<1x64xf32> to vector<256x64xf32>
    %10 = arith.mulf %7, %9 : vector<256x64xf32>
    %11 = arith.addf %6, %10 : vector<256x64xf32>
    %c0_9 = arith.constant 0 : index
    %c0_10 = arith.constant 0 : index
    %12 = vector.load %arg6[%c0_9, %c0_10] : memref<1x64xf32, #tpu.memory_space<vmem>>, vector<1x64xf32>
    %13 = vector.broadcast %12 : vector<1x64xf32> to vector<256x64xf32>
    %14 = arith.addf %11, %13 : vector<256x64xf32>
    %cst = arith.constant 0.000000e+00 : f32
    %15 = vector.broadcast %cst : f32 to vector<256x64xf32>
    %16 = arith.cmpf oge, %14, %15 : vector<256x64xf32>
    %cst_11 = arith.constant 1.000000e-01 : f32
    %17 = vector.broadcast %cst_11 : f32 to vector<256x64xf32>
    %18 = arith.mulf %17, %14 : vector<256x64xf32>
    %19 = arith.select %16, %14, %18 : vector<256x64xi1>, vector<256x64xf32>
    %c0_12 = arith.constant 0 : index
    %c0_13 = arith.constant 0 : index
    %20 = vector.load %arg7[%c0_12, %c0_13] : memref<256x64xf32, #tpu.memory_space<vmem>>, vector<256x64xf32>
    tpu.vector_store %arg7[%c0_12, %c0_13], %19 {strides = array<i32>} : memref<256x64xf32, #tpu.memory_space<vmem>>, vector<256x64xf32>,
    return
  }
  func.func @transform_0(%arg0: i32) -> (i32, i32) {
    %c0_i32 = arith.constant 0 : i32
    %c0_i32_0 = arith.constant 0 : i32
    return %arg0, %c0_i32 : i32, i32
  }
  func.func @transform_1(%arg0: i32) -> (i32, i32) {
    %c0_i32 = arith.constant 0 : i32
    %c0_i32_0 = arith.constant 0 : i32
    %c0_i32_1 = arith.constant 0 : i32
    return %c0_i32, %c0_i32_0 : i32, i32
  }
  func.func @transform_2(%arg0: i32) -> (i32, i32) {
    %c0_i32 = arith.constant 0 : i32
    %c0_i32_0 = arith.constant 0 : i32
    %c0_i32_1 = arith.constant 0 : i32
    return %c0_i32, %c0_i32_0 : i32, i32
  }
  func.func @transform_3(%arg0: i32) -> (i32, i32) {
    %c0_i32 = arith.constant 0 : i32
    %c0_i32_0 = arith.constant 0 : i32
    return %arg0, %c0_i32 : i32, i32
  }
  func.func @transform_4(%arg0: i32) -> (i32, i32) {
    %c0_i32 = arith.constant 0 : i32
    %c0_i32_0 = arith.constant 0 : i32
    %c0_i32_1 = arith.constant 0 : i32
    return %c0_i32, %c0_i32_0 : i32, i32
  }
  func.func @transform_5(%arg0: i32) -> (i32, i32) {
    %c0_i32 = arith.constant 0 : i32
    %c0_i32_0 = arith.constant 0 : i32
    %c0_i32_1 = arith.constant 0 : i32
    return %c0_i32, %c0_i32_0 : i32, i32
  }
  func.func @transform_6(%arg0: i32) -> (i32, i32) {
    %c0_i32 = arith.constant 0 : i32
    %c0_i32_0 = arith.constant 0 : i32
    return %arg0, %c0_i32 : i32, i32
  }
}

module attributes {stable_mosaic.version = 11 : i64} {
  func.func @_matmul_kernel(%arg0: i32, %arg1: i32, %arg2: memref<128x128xbf16, #tpu.memory_space<vmem>>, %arg3: memref<128x128xbf16, #tpu.memory_space<vmem>>, %arg4: memref<128x128xf32, #tpu.memory_space<vmem>>, %arg5: memref<128x128xf32, #tpu.memory_space<vmem>>) attributes {dimension_semantics = [#tpu.dimension_semantics<parallel>, #tpu.dimension_semantics<arbitrary>], iteration_bounds = array<i64: 1, 1>, scalar_prefetch = 0 : i64, scratch_operands = 1 : i64, tpu.core_type = #tpu.core_type<tc>, window_params = [{transform_indices = @transform_0, window_bounds = array<i64: 128, 128>}, {transform_indices = @transform_1, window_bounds = array<i64: 128, 128>}, {transform_indices = @transform_2, window_bounds = array<i64: 128, 128>}]} {
    %c0_i32 = arith.constant 0 : i32
    %0 = arith.cmpi eq, %arg1, %c0_i32 : i32
    %1 = arith.extui %0 : i1 to i32
    %c0_i32_0 = arith.constant 0 : i32
    %2 = arith.cmpi ne, %1, %c0_i32_0 : i32
    scf.if %2 {
      %cst_10 = arith.constant 0.000000e+00 : f32
      %12 = vector.broadcast %cst_10 : f32 to vector<128x128xf32>
      %c0_11 = arith.constant 0 : index
      %c0_12 = arith.constant 0 : index
      %13 = vector.load %arg5[%c0_11, %c0_12] : memref<128x128xf32, #tpu.memory_space<vmem>>, vector<128x128xf32>
      tpu.vector_store %arg5[%c0_11, %c0_12], %12 {strides = array<i32>} : memref<128x128xf32, #tpu.memory_space<vmem>>, vector<128x128xf32>,
    } else {
    }
    %c0 = arith.constant 0 : index
    %c0_1 = arith.constant 0 : index
    %3 = vector.load %arg5[%c0, %c0_1] : memref<128x128xf32, #tpu.memory_space<vmem>>, vector<128x128xf32>
    %c0_2 = arith.constant 0 : index
    %c0_3 = arith.constant 0 : index
    %4 = vector.load %arg2[%c0_2, %c0_3] : memref<128x128xbf16, #tpu.memory_space<vmem>>, vector<128x128xbf16>
    %c0_4 = arith.constant 0 : index
    %c0_5 = arith.constant 0 : index
    %5 = vector.load %arg3[%c0_4, %c0_5] : memref<128x128xbf16, #tpu.memory_space<vmem>>, vector<128x128xbf16>
    %cst = arith.constant dense<0.000000e+00> : vector<128x128xf32>
    %6 = tpu.matmul %4, %5, %cst {dimension_numbers = #tpu.dot_dimension_numbers<[1], [0], [0], [1], [0, 0, 1, 1], [], []>} : vector<128x128xbf16>, vector<128x128xbf16>, vector<128x128xf32> -> vector<128x128xf32>
    %7 = arith.addf %3, %6 : vector<128x128xf32>
    %c0_6 = arith.constant 0 : index
    %c0_7 = arith.constant 0 : index
    %8 = vector.load %arg5[%c0_6, %c0_7] : memref<128x128xf32, #tpu.memory_space<vmem>>, vector<128x128xf32>
    tpu.vector_store %arg5[%c0_6, %c0_7], %7 {strides = array<i32>} : memref<128x128xf32, #tpu.memory_space<vmem>>, vector<128x128xf32>,
    %c0_i32_8 = arith.constant 0 : i32
    %9 = arith.cmpi eq, %arg1, %c0_i32_8 : i32
    %10 = arith.extui %9 : i1 to i32
    %c0_i32_9 = arith.constant 0 : i32
    %11 = arith.cmpi ne, %10, %c0_i32_9 : i32
    scf.if %11 {
      %c0_10 = arith.constant 0 : index
      %c0_11 = arith.constant 0 : index
      %12 = vector.load %arg5[%c0_10, %c0_11] : memref<128x128xf32, #tpu.memory_space<vmem>>, vector<128x128xf32>
      %c0_12 = arith.constant 0 : index
      %c0_13 = arith.constant 0 : index
      %13 = vector.load %arg4[%c0_12, %c0_13] : memref<128x128xf32, #tpu.memory_space<vmem>>, vector<128x128xf32>
      tpu.vector_store %arg4[%c0_12, %c0_13], %12 {strides = array<i32>} : memref<128x128xf32, #tpu.memory_space<vmem>>, vector<128x128xf32>,
    } else {
    }
    return
  }
  func.func @transform_0(%arg0: i32, %arg1: i32) -> (i32, i32) {
    %c0_i32 = arith.constant 0 : i32
    return %arg0, %arg1 : i32, i32
  }
  func.func @transform_1(%arg0: i32, %arg1: i32) -> (i32, i32) {
    %c0_i32 = arith.constant 0 : i32
    %c0_i32_0 = arith.constant 0 : i32
    return %arg1, %c0_i32 : i32, i32
  }
  func.func @transform_2(%arg0: i32, %arg1: i32) -> (i32, i32) {
    %c0_i32 = arith.constant 0 : i32
    %c0_i32_0 = arith.constant 0 : i32
    return %arg0, %c0_i32 : i32, i32
  }
}

module attributes {stable_mosaic.version = 11 : i64} {
  func.func @_bn_act_kernel(%arg0: i32, %arg1: memref<128x128xf32, #tpu.memory_space<vmem>>, %arg2: memref<1x128xf32, #tpu.memory_space<vmem>>, %arg3: memref<1x128xf32, #tpu.memory_space<vmem>>, %arg4: memref<128x128xf32, #tpu.memory_space<vmem>>) attributes {dimension_semantics = [#tpu.dimension_semantics<parallel>], iteration_bounds = array<i64: 1>, scalar_prefetch = 0 : i64, scratch_operands = 0 : i64, tpu.core_type = #tpu.core_type<tc>, window_params = [{transform_indices = @transform_0, window_bounds = array<i64: 128, 128>}, {pipeline_mode = #tpu.pipeline_mode<synchronous>, transform_indices = @transform_1, window_bounds = array<i64: 1, 128>}, {pipeline_mode = #tpu.pipeline_mode<synchronous>, transform_indices = @transform_2, window_bounds = array<i64: 1, 128>}, {transform_indices = @transform_3, window_bounds = array<i64: 128, 128>}]} {
    %c0 = arith.constant 0 : index
    %c0_0 = arith.constant 0 : index
    %0 = vector.load %arg1[%c0, %c0_0] : memref<128x128xf32, #tpu.memory_space<vmem>>, vector<128x128xf32>
    %c0_1 = arith.constant 0 : index
    %c0_2 = arith.constant 0 : index
    %1 = vector.load %arg2[%c0_1, %c0_2] : memref<1x128xf32, #tpu.memory_space<vmem>>, vector<1x128xf32>
    %2 = vector.broadcast %1 : vector<1x128xf32> to vector<128x128xf32>
    %3 = arith.mulf %0, %2 : vector<128x128xf32>
    %c0_3 = arith.constant 0 : index
    %c0_4 = arith.constant 0 : index
    %4 = vector.load %arg3[%c0_3, %c0_4] : memref<1x128xf32, #tpu.memory_space<vmem>>, vector<1x128xf32>
    %5 = vector.broadcast %4 : vector<1x128xf32> to vector<128x128xf32>
    %6 = arith.addf %3, %5 : vector<128x128xf32>
    %cst = arith.constant 0.000000e+00 : f32
    %7 = vector.broadcast %cst : f32 to vector<128x128xf32>
    %8 = arith.cmpf oge, %6, %7 : vector<128x128xf32>
    %cst_5 = arith.constant 1.000000e-01 : f32
    %9 = vector.broadcast %cst_5 : f32 to vector<128x128xf32>
    %10 = arith.mulf %9, %6 : vector<128x128xf32>
    %11 = arith.select %8, %6, %10 : vector<128x128xi1>, vector<128x128xf32>
    %c0_6 = arith.constant 0 : index
    %c0_7 = arith.constant 0 : index
    %12 = vector.load %arg4[%c0_6, %c0_7] : memref<128x128xf32, #tpu.memory_space<vmem>>, vector<128x128xf32>
    tpu.vector_store %arg4[%c0_6, %c0_7], %11 {strides = array<i32>} : memref<128x128xf32, #tpu.memory_space<vmem>>, vector<128x128xf32>,
    return
  }
  func.func @transform_0(%arg0: i32) -> (i32, i32) {
    %c0_i32 = arith.constant 0 : i32
    %c0_i32_0 = arith.constant 0 : i32
    return %arg0, %c0_i32 : i32, i32
  }
  func.func @transform_1(%arg0: i32) -> (i32, i32) {
    %c0_i32 = arith.constant 0 : i32
    %c0_i32_0 = arith.constant 0 : i32
    %c0_i32_1 = arith.constant 0 : i32
    return %c0_i32, %c0_i32_0 : i32, i32
  }
  func.func @transform_2(%arg0: i32) -> (i32, i32) {
    %c0_i32 = arith.constant 0 : i32
    %c0_i32_0 = arith.constant 0 : i32
    %c0_i32_1 = arith.constant 0 : i32
    return %c0_i32, %c0_i32_0 : i32, i32
  }
  func.func @transform_3(%arg0: i32) -> (i32, i32) {
    %c0_i32 = arith.constant 0 : i32
    %c0_i32_0 = arith.constant 0 : i32
    return %arg0, %c0_i32 : i32, i32
  }
}

module attributes {stable_mosaic.version = 11 : i64} {
  func.func @_matmul_kernel(%arg0: i32, %arg1: i32, %arg2: memref<128x640xbf16, #tpu.memory_space<vmem>>, %arg3: memref<640x128xbf16, #tpu.memory_space<vmem>>, %arg4: memref<128x128xf32, #tpu.memory_space<vmem>>, %arg5: memref<128x128xf32, #tpu.memory_space<vmem>>) attributes {dimension_semantics = [#tpu.dimension_semantics<parallel>, #tpu.dimension_semantics<arbitrary>], iteration_bounds = array<i64: 1, 1>, scalar_prefetch = 0 : i64, scratch_operands = 1 : i64, tpu.core_type = #tpu.core_type<tc>, window_params = [{transform_indices = @transform_0, window_bounds = array<i64: 128, 640>}, {transform_indices = @transform_1, window_bounds = array<i64: 640, 128>}, {transform_indices = @transform_2, window_bounds = array<i64: 128, 128>}]} {
    %c0_i32 = arith.constant 0 : i32
    %0 = arith.cmpi eq, %arg1, %c0_i32 : i32
    %1 = arith.extui %0 : i1 to i32
    %c0_i32_0 = arith.constant 0 : i32
    %2 = arith.cmpi ne, %1, %c0_i32_0 : i32
    scf.if %2 {
      %cst_10 = arith.constant 0.000000e+00 : f32
      %12 = vector.broadcast %cst_10 : f32 to vector<128x128xf32>
      %c0_11 = arith.constant 0 : index
      %c0_12 = arith.constant 0 : index
      %13 = vector.load %arg5[%c0_11, %c0_12] : memref<128x128xf32, #tpu.memory_space<vmem>>, vector<128x128xf32>
      tpu.vector_store %arg5[%c0_11, %c0_12], %12 {strides = array<i32>} : memref<128x128xf32, #tpu.memory_space<vmem>>, vector<128x128xf32>,
    } else {
    }
    %c0 = arith.constant 0 : index
    %c0_1 = arith.constant 0 : index
    %3 = vector.load %arg5[%c0, %c0_1] : memref<128x128xf32, #tpu.memory_space<vmem>>, vector<128x128xf32>
    %c0_2 = arith.constant 0 : index
    %c0_3 = arith.constant 0 : index
    %4 = vector.load %arg2[%c0_2, %c0_3] : memref<128x640xbf16, #tpu.memory_space<vmem>>, vector<128x640xbf16>
    %c0_4 = arith.constant 0 : index
    %c0_5 = arith.constant 0 : index
    %5 = vector.load %arg3[%c0_4, %c0_5] : memref<640x128xbf16, #tpu.memory_space<vmem>>, vector<640x128xbf16>
    %cst = arith.constant dense<0.000000e+00> : vector<128x128xf32>
    %6 = tpu.matmul %4, %5, %cst {dimension_numbers = #tpu.dot_dimension_numbers<[1], [0], [0], [1], [0, 0, 1, 1], [], []>} : vector<128x640xbf16>, vector<640x128xbf16>, vector<128x128xf32> -> vector<128x128xf32>
    %7 = arith.addf %3, %6 : vector<128x128xf32>
    %c0_6 = arith.constant 0 : index
    %c0_7 = arith.constant 0 : index
    %8 = vector.load %arg5[%c0_6, %c0_7] : memref<128x128xf32, #tpu.memory_space<vmem>>, vector<128x128xf32>
    tpu.vector_store %arg5[%c0_6, %c0_7], %7 {strides = array<i32>} : memref<128x128xf32, #tpu.memory_space<vmem>>, vector<128x128xf32>,
    %c0_i32_8 = arith.constant 0 : i32
    %9 = arith.cmpi eq, %arg1, %c0_i32_8 : i32
    %10 = arith.extui %9 : i1 to i32
    %c0_i32_9 = arith.constant 0 : i32
    %11 = arith.cmpi ne, %10, %c0_i32_9 : i32
    scf.if %11 {
      %c0_10 = arith.constant 0 : index
      %c0_11 = arith.constant 0 : index
      %12 = vector.load %arg5[%c0_10, %c0_11] : memref<128x128xf32, #tpu.memory_space<vmem>>, vector<128x128xf32>
      %c0_12 = arith.constant 0 : index
      %c0_13 = arith.constant 0 : index
      %13 = vector.load %arg4[%c0_12, %c0_13] : memref<128x128xf32, #tpu.memory_space<vmem>>, vector<128x128xf32>
      tpu.vector_store %arg4[%c0_12, %c0_13], %12 {strides = array<i32>} : memref<128x128xf32, #tpu.memory_space<vmem>>, vector<128x128xf32>,
    } else {
    }
    return
  }
  func.func @transform_0(%arg0: i32, %arg1: i32) -> (i32, i32) {
    %c0_i32 = arith.constant 0 : i32
    return %arg0, %arg1 : i32, i32
  }
  func.func @transform_1(%arg0: i32, %arg1: i32) -> (i32, i32) {
    %c0_i32 = arith.constant 0 : i32
    %c0_i32_0 = arith.constant 0 : i32
    return %arg1, %c0_i32 : i32, i32
  }
  func.func @transform_2(%arg0: i32, %arg1: i32) -> (i32, i32) {
    %c0_i32 = arith.constant 0 : i32
    %c0_i32_0 = arith.constant 0 : i32
    return %arg0, %c0_i32 : i32, i32
  }
}

module attributes {stable_mosaic.version = 11 : i64} {
  func.func @_matmul_kernel(%arg0: i32, %arg1: i32, %arg2: memref<128x1152xbf16, #tpu.memory_space<vmem>>, %arg3: memref<1152x128xbf16, #tpu.memory_space<vmem>>, %arg4: memref<128x128xf32, #tpu.memory_space<vmem>>, %arg5: memref<128x128xf32, #tpu.memory_space<vmem>>) attributes {dimension_semantics = [#tpu.dimension_semantics<parallel>, #tpu.dimension_semantics<arbitrary>], iteration_bounds = array<i64: 1, 1>, scalar_prefetch = 0 : i64, scratch_operands = 1 : i64, tpu.core_type = #tpu.core_type<tc>, window_params = [{transform_indices = @transform_0, window_bounds = array<i64: 128, 1152>}, {transform_indices = @transform_1, window_bounds = array<i64: 1152, 128>}, {transform_indices = @transform_2, window_bounds = array<i64: 128, 128>}]} {
    %c0_i32 = arith.constant 0 : i32
    %0 = arith.cmpi eq, %arg1, %c0_i32 : i32
    %1 = arith.extui %0 : i1 to i32
    %c0_i32_0 = arith.constant 0 : i32
    %2 = arith.cmpi ne, %1, %c0_i32_0 : i32
    scf.if %2 {
      %cst_10 = arith.constant 0.000000e+00 : f32
      %12 = vector.broadcast %cst_10 : f32 to vector<128x128xf32>
      %c0_11 = arith.constant 0 : index
      %c0_12 = arith.constant 0 : index
      %13 = vector.load %arg5[%c0_11, %c0_12] : memref<128x128xf32, #tpu.memory_space<vmem>>, vector<128x128xf32>
      tpu.vector_store %arg5[%c0_11, %c0_12], %12 {strides = array<i32>} : memref<128x128xf32, #tpu.memory_space<vmem>>, vector<128x128xf32>,
    } else {
    }
    %c0 = arith.constant 0 : index
    %c0_1 = arith.constant 0 : index
    %3 = vector.load %arg5[%c0, %c0_1] : memref<128x128xf32, #tpu.memory_space<vmem>>, vector<128x128xf32>
    %c0_2 = arith.constant 0 : index
    %c0_3 = arith.constant 0 : index
    %4 = vector.load %arg2[%c0_2, %c0_3] : memref<128x1152xbf16, #tpu.memory_space<vmem>>, vector<128x1152xbf16>
    %c0_4 = arith.constant 0 : index
    %c0_5 = arith.constant 0 : index
    %5 = vector.load %arg3[%c0_4, %c0_5] : memref<1152x128xbf16, #tpu.memory_space<vmem>>, vector<1152x128xbf16>
    %cst = arith.constant dense<0.000000e+00> : vector<128x128xf32>
    %6 = tpu.matmul %4, %5, %cst {dimension_numbers = #tpu.dot_dimension_numbers<[1], [0], [0], [1], [0, 0, 1, 1], [], []>} : vector<128x1152xbf16>, vector<1152x128xbf16>, vector<128x128xf32> -> vector<128x128xf32>
    %7 = arith.addf %3, %6 : vector<128x128xf32>
    %c0_6 = arith.constant 0 : index
    %c0_7 = arith.constant 0 : index
    %8 = vector.load %arg5[%c0_6, %c0_7] : memref<128x128xf32, #tpu.memory_space<vmem>>, vector<128x128xf32>
    tpu.vector_store %arg5[%c0_6, %c0_7], %7 {strides = array<i32>} : memref<128x128xf32, #tpu.memory_space<vmem>>, vector<128x128xf32>,
    %c0_i32_8 = arith.constant 0 : i32
    %9 = arith.cmpi eq, %arg1, %c0_i32_8 : i32
    %10 = arith.extui %9 : i1 to i32
    %c0_i32_9 = arith.constant 0 : i32
    %11 = arith.cmpi ne, %10, %c0_i32_9 : i32
    scf.if %11 {
      %c0_10 = arith.constant 0 : index
      %c0_11 = arith.constant 0 : index
      %12 = vector.load %arg5[%c0_10, %c0_11] : memref<128x128xf32, #tpu.memory_space<vmem>>, vector<128x128xf32>
      %c0_12 = arith.constant 0 : index
      %c0_13 = arith.constant 0 : index
      %13 = vector.load %arg4[%c0_12, %c0_13] : memref<128x128xf32, #tpu.memory_space<vmem>>, vector<128x128xf32>
      tpu.vector_store %arg4[%c0_12, %c0_13], %12 {strides = array<i32>} : memref<128x128xf32, #tpu.memory_space<vmem>>, vector<128x128xf32>,
    } else {
    }
    return
  }
  func.func @transform_0(%arg0: i32, %arg1: i32) -> (i32, i32) {
    %c0_i32 = arith.constant 0 : i32
    return %arg0, %arg1 : i32, i32
  }
  func.func @transform_1(%arg0: i32, %arg1: i32) -> (i32, i32) {
    %c0_i32 = arith.constant 0 : i32
    %c0_i32_0 = arith.constant 0 : i32
    return %arg1, %c0_i32 : i32, i32
  }
  func.func @transform_2(%arg0: i32, %arg1: i32) -> (i32, i32) {
    %c0_i32 = arith.constant 0 : i32
    %c0_i32_0 = arith.constant 0 : i32
    return %arg0, %c0_i32 : i32, i32
  }
}

module attributes {stable_mosaic.version = 11 : i64} {
  func.func @_bn_add_act_kernel(%arg0: i32, %arg1: memref<128x128xf32, #tpu.memory_space<vmem>>, %arg2: memref<1x128xf32, #tpu.memory_space<vmem>>, %arg3: memref<1x128xf32, #tpu.memory_space<vmem>>, %arg4: memref<128x128xf32, #tpu.memory_space<vmem>>, %arg5: memref<1x128xf32, #tpu.memory_space<vmem>>, %arg6: memref<1x128xf32, #tpu.memory_space<vmem>>, %arg7: memref<128x128xf32, #tpu.memory_space<vmem>>) attributes {dimension_semantics = [#tpu.dimension_semantics<parallel>], iteration_bounds = array<i64: 1>, scalar_prefetch = 0 : i64, scratch_operands = 0 : i64, tpu.core_type = #tpu.core_type<tc>, window_params = [{transform_indices = @transform_0, window_bounds = array<i64: 128, 128>}, {pipeline_mode = #tpu.pipeline_mode<synchronous>, transform_indices = @transform_1, window_bounds = array<i64: 1, 128>}, {pipeline_mode = #tpu.pipeline_mode<synchronous>, transform_indices = @transform_2, window_bounds = array<i64: 1, 128>}, {transform_indices = @transform_3, window_bounds = array<i64: 128, 128>}, {pipeline_mode = #tpu.pipeline_mode<synchronous>, transform_indices = @transform_4, window_bounds = array<i64: 1, 128>}, {pipeline_mode = #tpu.pipeline_mode<synchronous>, transform_indices = @transform_5, window_bounds = array<i64: 1, 128>}, {transform_indices = @transform_6, window_bounds = array<i64: 128, 128>}]} {
    %c0 = arith.constant 0 : index
    %c0_0 = arith.constant 0 : index
    %0 = vector.load %arg1[%c0, %c0_0] : memref<128x128xf32, #tpu.memory_space<vmem>>, vector<128x128xf32>
    %c0_1 = arith.constant 0 : index
    %c0_2 = arith.constant 0 : index
    %1 = vector.load %arg2[%c0_1, %c0_2] : memref<1x128xf32, #tpu.memory_space<vmem>>, vector<1x128xf32>
    %2 = vector.broadcast %1 : vector<1x128xf32> to vector<128x128xf32>
    %3 = arith.mulf %0, %2 : vector<128x128xf32>
    %c0_3 = arith.constant 0 : index
    %c0_4 = arith.constant 0 : index
    %4 = vector.load %arg3[%c0_3, %c0_4] : memref<1x128xf32, #tpu.memory_space<vmem>>, vector<1x128xf32>
    %5 = vector.broadcast %4 : vector<1x128xf32> to vector<128x128xf32>
    %6 = arith.addf %3, %5 : vector<128x128xf32>
    %c0_5 = arith.constant 0 : index
    %c0_6 = arith.constant 0 : index
    %7 = vector.load %arg4[%c0_5, %c0_6] : memref<128x128xf32, #tpu.memory_space<vmem>>, vector<128x128xf32>
    %c0_7 = arith.constant 0 : index
    %c0_8 = arith.constant 0 : index
    %8 = vector.load %arg5[%c0_7, %c0_8] : memref<1x128xf32, #tpu.memory_space<vmem>>, vector<1x128xf32>
    %9 = vector.broadcast %8 : vector<1x128xf32> to vector<128x128xf32>
    %10 = arith.mulf %7, %9 : vector<128x128xf32>
    %11 = arith.addf %6, %10 : vector<128x128xf32>
    %c0_9 = arith.constant 0 : index
    %c0_10 = arith.constant 0 : index
    %12 = vector.load %arg6[%c0_9, %c0_10] : memref<1x128xf32, #tpu.memory_space<vmem>>, vector<1x128xf32>
    %13 = vector.broadcast %12 : vector<1x128xf32> to vector<128x128xf32>
    %14 = arith.addf %11, %13 : vector<128x128xf32>
    %cst = arith.constant 0.000000e+00 : f32
    %15 = vector.broadcast %cst : f32 to vector<128x128xf32>
    %16 = arith.cmpf oge, %14, %15 : vector<128x128xf32>
    %cst_11 = arith.constant 1.000000e-01 : f32
    %17 = vector.broadcast %cst_11 : f32 to vector<128x128xf32>
    %18 = arith.mulf %17, %14 : vector<128x128xf32>
    %19 = arith.select %16, %14, %18 : vector<128x128xi1>, vector<128x128xf32>
    %c0_12 = arith.constant 0 : index
    %c0_13 = arith.constant 0 : index
    %20 = vector.load %arg7[%c0_12, %c0_13] : memref<128x128xf32, #tpu.memory_space<vmem>>, vector<128x128xf32>
    tpu.vector_store %arg7[%c0_12, %c0_13], %19 {strides = array<i32>} : memref<128x128xf32, #tpu.memory_space<vmem>>, vector<128x128xf32>,
    return
  }
  func.func @transform_0(%arg0: i32) -> (i32, i32) {
    %c0_i32 = arith.constant 0 : i32
    %c0_i32_0 = arith.constant 0 : i32
    return %arg0, %c0_i32 : i32, i32
  }
  func.func @transform_1(%arg0: i32) -> (i32, i32) {
    %c0_i32 = arith.constant 0 : i32
    %c0_i32_0 = arith.constant 0 : i32
    %c0_i32_1 = arith.constant 0 : i32
    return %c0_i32, %c0_i32_0 : i32, i32
  }
  func.func @transform_2(%arg0: i32) -> (i32, i32) {
    %c0_i32 = arith.constant 0 : i32
    %c0_i32_0 = arith.constant 0 : i32
    %c0_i32_1 = arith.constant 0 : i32
    return %c0_i32, %c0_i32_0 : i32, i32
  }
  func.func @transform_3(%arg0: i32) -> (i32, i32) {
    %c0_i32 = arith.constant 0 : i32
    %c0_i32_0 = arith.constant 0 : i32
    return %arg0, %c0_i32 : i32, i32
  }
  func.func @transform_4(%arg0: i32) -> (i32, i32) {
    %c0_i32 = arith.constant 0 : i32
    %c0_i32_0 = arith.constant 0 : i32
    %c0_i32_1 = arith.constant 0 : i32
    return %c0_i32, %c0_i32_0 : i32, i32
  }
  func.func @transform_5(%arg0: i32) -> (i32, i32) {
    %c0_i32 = arith.constant 0 : i32
    %c0_i32_0 = arith.constant 0 : i32
    %c0_i32_1 = arith.constant 0 : i32
    return %c0_i32, %c0_i32_0 : i32, i32
  }
  func.func @transform_6(%arg0: i32) -> (i32, i32) {
    %c0_i32 = arith.constant 0 : i32
    %c0_i32_0 = arith.constant 0 : i32
    return %arg0, %c0_i32 : i32, i32
  }
}

module attributes {stable_mosaic.version = 11 : i64} {
  func.func @_matmul_kernel(%arg0: i32, %arg1: i32, %arg2: memref<32x128xbf16, #tpu.memory_space<vmem>>, %arg3: memref<128x256xbf16, #tpu.memory_space<vmem>>, %arg4: memref<32x256xf32, #tpu.memory_space<vmem>>, %arg5: memref<32x256xf32, #tpu.memory_space<vmem>>) attributes {dimension_semantics = [#tpu.dimension_semantics<parallel>, #tpu.dimension_semantics<arbitrary>], iteration_bounds = array<i64: 1, 1>, scalar_prefetch = 0 : i64, scratch_operands = 1 : i64, tpu.core_type = #tpu.core_type<tc>, window_params = [{transform_indices = @transform_0, window_bounds = array<i64: 32, 128>}, {transform_indices = @transform_1, window_bounds = array<i64: 128, 256>}, {transform_indices = @transform_2, window_bounds = array<i64: 32, 256>}]} {
    %c0_i32 = arith.constant 0 : i32
    %0 = arith.cmpi eq, %arg1, %c0_i32 : i32
    %1 = arith.extui %0 : i1 to i32
    %c0_i32_0 = arith.constant 0 : i32
    %2 = arith.cmpi ne, %1, %c0_i32_0 : i32
    scf.if %2 {
      %cst_10 = arith.constant 0.000000e+00 : f32
      %12 = vector.broadcast %cst_10 : f32 to vector<32x256xf32>
      %c0_11 = arith.constant 0 : index
      %c0_12 = arith.constant 0 : index
      %13 = vector.load %arg5[%c0_11, %c0_12] : memref<32x256xf32, #tpu.memory_space<vmem>>, vector<32x256xf32>
      tpu.vector_store %arg5[%c0_11, %c0_12], %12 {strides = array<i32>} : memref<32x256xf32, #tpu.memory_space<vmem>>, vector<32x256xf32>,
    } else {
    }
    %c0 = arith.constant 0 : index
    %c0_1 = arith.constant 0 : index
    %3 = vector.load %arg5[%c0, %c0_1] : memref<32x256xf32, #tpu.memory_space<vmem>>, vector<32x256xf32>
    %c0_2 = arith.constant 0 : index
    %c0_3 = arith.constant 0 : index
    %4 = vector.load %arg2[%c0_2, %c0_3] : memref<32x128xbf16, #tpu.memory_space<vmem>>, vector<32x128xbf16>
    %c0_4 = arith.constant 0 : index
    %c0_5 = arith.constant 0 : index
    %5 = vector.load %arg3[%c0_4, %c0_5] : memref<128x256xbf16, #tpu.memory_space<vmem>>, vector<128x256xbf16>
    %cst = arith.constant dense<0.000000e+00> : vector<32x256xf32>
    %6 = tpu.matmul %4, %5, %cst {dimension_numbers = #tpu.dot_dimension_numbers<[1], [0], [0], [1], [0, 0, 1, 1], [], []>} : vector<32x128xbf16>, vector<128x256xbf16>, vector<32x256xf32> -> vector<32x256xf32>
    %7 = arith.addf %3, %6 : vector<32x256xf32>
    %c0_6 = arith.constant 0 : index
    %c0_7 = arith.constant 0 : index
    %8 = vector.load %arg5[%c0_6, %c0_7] : memref<32x256xf32, #tpu.memory_space<vmem>>, vector<32x256xf32>
    tpu.vector_store %arg5[%c0_6, %c0_7], %7 {strides = array<i32>} : memref<32x256xf32, #tpu.memory_space<vmem>>, vector<32x256xf32>,
    %c0_i32_8 = arith.constant 0 : i32
    %9 = arith.cmpi eq, %arg1, %c0_i32_8 : i32
    %10 = arith.extui %9 : i1 to i32
    %c0_i32_9 = arith.constant 0 : i32
    %11 = arith.cmpi ne, %10, %c0_i32_9 : i32
    scf.if %11 {
      %c0_10 = arith.constant 0 : index
      %c0_11 = arith.constant 0 : index
      %12 = vector.load %arg5[%c0_10, %c0_11] : memref<32x256xf32, #tpu.memory_space<vmem>>, vector<32x256xf32>
      %c0_12 = arith.constant 0 : index
      %c0_13 = arith.constant 0 : index
      %13 = vector.load %arg4[%c0_12, %c0_13] : memref<32x256xf32, #tpu.memory_space<vmem>>, vector<32x256xf32>
      tpu.vector_store %arg4[%c0_12, %c0_13], %12 {strides = array<i32>} : memref<32x256xf32, #tpu.memory_space<vmem>>, vector<32x256xf32>,
    } else {
    }
    return
  }
  func.func @transform_0(%arg0: i32, %arg1: i32) -> (i32, i32) {
    %c0_i32 = arith.constant 0 : i32
    return %arg0, %arg1 : i32, i32
  }
  func.func @transform_1(%arg0: i32, %arg1: i32) -> (i32, i32) {
    %c0_i32 = arith.constant 0 : i32
    %c0_i32_0 = arith.constant 0 : i32
    return %arg1, %c0_i32 : i32, i32
  }
  func.func @transform_2(%arg0: i32, %arg1: i32) -> (i32, i32) {
    %c0_i32 = arith.constant 0 : i32
    %c0_i32_0 = arith.constant 0 : i32
    return %arg0, %c0_i32 : i32, i32
  }
}

module attributes {stable_mosaic.version = 11 : i64} {
  func.func @_matmul_kernel(%arg0: i32, %arg1: i32, %arg2: memref<32x1152xbf16, #tpu.memory_space<vmem>>, %arg3: memref<1152x256xbf16, #tpu.memory_space<vmem>>, %arg4: memref<32x256xf32, #tpu.memory_space<vmem>>, %arg5: memref<32x256xf32, #tpu.memory_space<vmem>>) attributes {dimension_semantics = [#tpu.dimension_semantics<parallel>, #tpu.dimension_semantics<arbitrary>], iteration_bounds = array<i64: 1, 1>, scalar_prefetch = 0 : i64, scratch_operands = 1 : i64, tpu.core_type = #tpu.core_type<tc>, window_params = [{transform_indices = @transform_0, window_bounds = array<i64: 32, 1152>}, {transform_indices = @transform_1, window_bounds = array<i64: 1152, 256>}, {transform_indices = @transform_2, window_bounds = array<i64: 32, 256>}]} {
    %c0_i32 = arith.constant 0 : i32
    %0 = arith.cmpi eq, %arg1, %c0_i32 : i32
    %1 = arith.extui %0 : i1 to i32
    %c0_i32_0 = arith.constant 0 : i32
    %2 = arith.cmpi ne, %1, %c0_i32_0 : i32
    scf.if %2 {
      %cst_10 = arith.constant 0.000000e+00 : f32
      %12 = vector.broadcast %cst_10 : f32 to vector<32x256xf32>
      %c0_11 = arith.constant 0 : index
      %c0_12 = arith.constant 0 : index
      %13 = vector.load %arg5[%c0_11, %c0_12] : memref<32x256xf32, #tpu.memory_space<vmem>>, vector<32x256xf32>
      tpu.vector_store %arg5[%c0_11, %c0_12], %12 {strides = array<i32>} : memref<32x256xf32, #tpu.memory_space<vmem>>, vector<32x256xf32>,
    } else {
    }
    %c0 = arith.constant 0 : index
    %c0_1 = arith.constant 0 : index
    %3 = vector.load %arg5[%c0, %c0_1] : memref<32x256xf32, #tpu.memory_space<vmem>>, vector<32x256xf32>
    %c0_2 = arith.constant 0 : index
    %c0_3 = arith.constant 0 : index
    %4 = vector.load %arg2[%c0_2, %c0_3] : memref<32x1152xbf16, #tpu.memory_space<vmem>>, vector<32x1152xbf16>
    %c0_4 = arith.constant 0 : index
    %c0_5 = arith.constant 0 : index
    %5 = vector.load %arg3[%c0_4, %c0_5] : memref<1152x256xbf16, #tpu.memory_space<vmem>>, vector<1152x256xbf16>
    %cst = arith.constant dense<0.000000e+00> : vector<32x256xf32>
    %6 = tpu.matmul %4, %5, %cst {dimension_numbers = #tpu.dot_dimension_numbers<[1], [0], [0], [1], [0, 0, 1, 1], [], []>} : vector<32x1152xbf16>, vector<1152x256xbf16>, vector<32x256xf32> -> vector<32x256xf32>
    %7 = arith.addf %3, %6 : vector<32x256xf32>
    %c0_6 = arith.constant 0 : index
    %c0_7 = arith.constant 0 : index
    %8 = vector.load %arg5[%c0_6, %c0_7] : memref<32x256xf32, #tpu.memory_space<vmem>>, vector<32x256xf32>
    tpu.vector_store %arg5[%c0_6, %c0_7], %7 {strides = array<i32>} : memref<32x256xf32, #tpu.memory_space<vmem>>, vector<32x256xf32>,
    %c0_i32_8 = arith.constant 0 : i32
    %9 = arith.cmpi eq, %arg1, %c0_i32_8 : i32
    %10 = arith.extui %9 : i1 to i32
    %c0_i32_9 = arith.constant 0 : i32
    %11 = arith.cmpi ne, %10, %c0_i32_9 : i32
    scf.if %11 {
      %c0_10 = arith.constant 0 : index
      %c0_11 = arith.constant 0 : index
      %12 = vector.load %arg5[%c0_10, %c0_11] : memref<32x256xf32, #tpu.memory_space<vmem>>, vector<32x256xf32>
      %c0_12 = arith.constant 0 : index
      %c0_13 = arith.constant 0 : index
      %13 = vector.load %arg4[%c0_12, %c0_13] : memref<32x256xf32, #tpu.memory_space<vmem>>, vector<32x256xf32>
      tpu.vector_store %arg4[%c0_12, %c0_13], %12 {strides = array<i32>} : memref<32x256xf32, #tpu.memory_space<vmem>>, vector<32x256xf32>,
    } else {
    }
    return
  }
  func.func @transform_0(%arg0: i32, %arg1: i32) -> (i32, i32) {
    %c0_i32 = arith.constant 0 : i32
    return %arg0, %arg1 : i32, i32
  }
  func.func @transform_1(%arg0: i32, %arg1: i32) -> (i32, i32) {
    %c0_i32 = arith.constant 0 : i32
    %c0_i32_0 = arith.constant 0 : i32
    return %arg1, %c0_i32 : i32, i32
  }
  func.func @transform_2(%arg0: i32, %arg1: i32) -> (i32, i32) {
    %c0_i32 = arith.constant 0 : i32
    %c0_i32_0 = arith.constant 0 : i32
    return %arg0, %c0_i32 : i32, i32
  }
}

module attributes {stable_mosaic.version = 11 : i64} {
  func.func @_bn_act_kernel(%arg0: i32, %arg1: memref<32x256xf32, #tpu.memory_space<vmem>>, %arg2: memref<1x256xf32, #tpu.memory_space<vmem>>, %arg3: memref<1x256xf32, #tpu.memory_space<vmem>>, %arg4: memref<32x256xf32, #tpu.memory_space<vmem>>) attributes {dimension_semantics = [#tpu.dimension_semantics<parallel>], iteration_bounds = array<i64: 1>, scalar_prefetch = 0 : i64, scratch_operands = 0 : i64, tpu.core_type = #tpu.core_type<tc>, window_params = [{transform_indices = @transform_0, window_bounds = array<i64: 32, 256>}, {pipeline_mode = #tpu.pipeline_mode<synchronous>, transform_indices = @transform_1, window_bounds = array<i64: 1, 256>}, {pipeline_mode = #tpu.pipeline_mode<synchronous>, transform_indices = @transform_2, window_bounds = array<i64: 1, 256>}, {transform_indices = @transform_3, window_bounds = array<i64: 32, 256>}]} {
    %c0 = arith.constant 0 : index
    %c0_0 = arith.constant 0 : index
    %0 = vector.load %arg1[%c0, %c0_0] : memref<32x256xf32, #tpu.memory_space<vmem>>, vector<32x256xf32>
    %c0_1 = arith.constant 0 : index
    %c0_2 = arith.constant 0 : index
    %1 = vector.load %arg2[%c0_1, %c0_2] : memref<1x256xf32, #tpu.memory_space<vmem>>, vector<1x256xf32>
    %2 = vector.broadcast %1 : vector<1x256xf32> to vector<32x256xf32>
    %3 = arith.mulf %0, %2 : vector<32x256xf32>
    %c0_3 = arith.constant 0 : index
    %c0_4 = arith.constant 0 : index
    %4 = vector.load %arg3[%c0_3, %c0_4] : memref<1x256xf32, #tpu.memory_space<vmem>>, vector<1x256xf32>
    %5 = vector.broadcast %4 : vector<1x256xf32> to vector<32x256xf32>
    %6 = arith.addf %3, %5 : vector<32x256xf32>
    %cst = arith.constant 0.000000e+00 : f32
    %7 = vector.broadcast %cst : f32 to vector<32x256xf32>
    %8 = arith.cmpf oge, %6, %7 : vector<32x256xf32>
    %cst_5 = arith.constant 1.000000e-01 : f32
    %9 = vector.broadcast %cst_5 : f32 to vector<32x256xf32>
    %10 = arith.mulf %9, %6 : vector<32x256xf32>
    %11 = arith.select %8, %6, %10 : vector<32x256xi1>, vector<32x256xf32>
    %c0_6 = arith.constant 0 : index
    %c0_7 = arith.constant 0 : index
    %12 = vector.load %arg4[%c0_6, %c0_7] : memref<32x256xf32, #tpu.memory_space<vmem>>, vector<32x256xf32>
    tpu.vector_store %arg4[%c0_6, %c0_7], %11 {strides = array<i32>} : memref<32x256xf32, #tpu.memory_space<vmem>>, vector<32x256xf32>,
    return
  }
  func.func @transform_0(%arg0: i32) -> (i32, i32) {
    %c0_i32 = arith.constant 0 : i32
    %c0_i32_0 = arith.constant 0 : i32
    return %arg0, %c0_i32 : i32, i32
  }
  func.func @transform_1(%arg0: i32) -> (i32, i32) {
    %c0_i32 = arith.constant 0 : i32
    %c0_i32_0 = arith.constant 0 : i32
    %c0_i32_1 = arith.constant 0 : i32
    return %c0_i32, %c0_i32_0 : i32, i32
  }
  func.func @transform_2(%arg0: i32) -> (i32, i32) {
    %c0_i32 = arith.constant 0 : i32
    %c0_i32_0 = arith.constant 0 : i32
    %c0_i32_1 = arith.constant 0 : i32
    return %c0_i32, %c0_i32_0 : i32, i32
  }
  func.func @transform_3(%arg0: i32) -> (i32, i32) {
    %c0_i32 = arith.constant 0 : i32
    %c0_i32_0 = arith.constant 0 : i32
    return %arg0, %c0_i32 : i32, i32
  }
}

module attributes {stable_mosaic.version = 11 : i64} {
  func.func @_bn_add_act_kernel(%arg0: i32, %arg1: memref<32x256xf32, #tpu.memory_space<vmem>>, %arg2: memref<1x256xf32, #tpu.memory_space<vmem>>, %arg3: memref<1x256xf32, #tpu.memory_space<vmem>>, %arg4: memref<32x256xf32, #tpu.memory_space<vmem>>, %arg5: memref<1x256xf32, #tpu.memory_space<vmem>>, %arg6: memref<1x256xf32, #tpu.memory_space<vmem>>, %arg7: memref<32x256xf32, #tpu.memory_space<vmem>>) attributes {dimension_semantics = [#tpu.dimension_semantics<parallel>], iteration_bounds = array<i64: 1>, scalar_prefetch = 0 : i64, scratch_operands = 0 : i64, tpu.core_type = #tpu.core_type<tc>, window_params = [{transform_indices = @transform_0, window_bounds = array<i64: 32, 256>}, {pipeline_mode = #tpu.pipeline_mode<synchronous>, transform_indices = @transform_1, window_bounds = array<i64: 1, 256>}, {pipeline_mode = #tpu.pipeline_mode<synchronous>, transform_indices = @transform_2, window_bounds = array<i64: 1, 256>}, {transform_indices = @transform_3, window_bounds = array<i64: 32, 256>}, {pipeline_mode = #tpu.pipeline_mode<synchronous>, transform_indices = @transform_4, window_bounds = array<i64: 1, 256>}, {pipeline_mode = #tpu.pipeline_mode<synchronous>, transform_indices = @transform_5, window_bounds = array<i64: 1, 256>}, {transform_indices = @transform_6, window_bounds = array<i64: 32, 256>}]} {
    %c0 = arith.constant 0 : index
    %c0_0 = arith.constant 0 : index
    %0 = vector.load %arg1[%c0, %c0_0] : memref<32x256xf32, #tpu.memory_space<vmem>>, vector<32x256xf32>
    %c0_1 = arith.constant 0 : index
    %c0_2 = arith.constant 0 : index
    %1 = vector.load %arg2[%c0_1, %c0_2] : memref<1x256xf32, #tpu.memory_space<vmem>>, vector<1x256xf32>
    %2 = vector.broadcast %1 : vector<1x256xf32> to vector<32x256xf32>
    %3 = arith.mulf %0, %2 : vector<32x256xf32>
    %c0_3 = arith.constant 0 : index
    %c0_4 = arith.constant 0 : index
    %4 = vector.load %arg3[%c0_3, %c0_4] : memref<1x256xf32, #tpu.memory_space<vmem>>, vector<1x256xf32>
    %5 = vector.broadcast %4 : vector<1x256xf32> to vector<32x256xf32>
    %6 = arith.addf %3, %5 : vector<32x256xf32>
    %c0_5 = arith.constant 0 : index
    %c0_6 = arith.constant 0 : index
    %7 = vector.load %arg4[%c0_5, %c0_6] : memref<32x256xf32, #tpu.memory_space<vmem>>, vector<32x256xf32>
    %c0_7 = arith.constant 0 : index
    %c0_8 = arith.constant 0 : index
    %8 = vector.load %arg5[%c0_7, %c0_8] : memref<1x256xf32, #tpu.memory_space<vmem>>, vector<1x256xf32>
    %9 = vector.broadcast %8 : vector<1x256xf32> to vector<32x256xf32>
    %10 = arith.mulf %7, %9 : vector<32x256xf32>
    %11 = arith.addf %6, %10 : vector<32x256xf32>
    %c0_9 = arith.constant 0 : index
    %c0_10 = arith.constant 0 : index
    %12 = vector.load %arg6[%c0_9, %c0_10] : memref<1x256xf32, #tpu.memory_space<vmem>>, vector<1x256xf32>
    %13 = vector.broadcast %12 : vector<1x256xf32> to vector<32x256xf32>
    %14 = arith.addf %11, %13 : vector<32x256xf32>
    %cst = arith.constant 0.000000e+00 : f32
    %15 = vector.broadcast %cst : f32 to vector<32x256xf32>
    %16 = arith.cmpf oge, %14, %15 : vector<32x256xf32>
    %cst_11 = arith.constant 1.000000e-01 : f32
    %17 = vector.broadcast %cst_11 : f32 to vector<32x256xf32>
    %18 = arith.mulf %17, %14 : vector<32x256xf32>
    %19 = arith.select %16, %14, %18 : vector<32x256xi1>, vector<32x256xf32>
    %c0_12 = arith.constant 0 : index
    %c0_13 = arith.constant 0 : index
    %20 = vector.load %arg7[%c0_12, %c0_13] : memref<32x256xf32, #tpu.memory_space<vmem>>, vector<32x256xf32>
    tpu.vector_store %arg7[%c0_12, %c0_13], %19 {strides = array<i32>} : memref<32x256xf32, #tpu.memory_space<vmem>>, vector<32x256xf32>,
    return
  }
  func.func @transform_0(%arg0: i32) -> (i32, i32) {
    %c0_i32 = arith.constant 0 : i32
    %c0_i32_0 = arith.constant 0 : i32
    return %arg0, %c0_i32 : i32, i32
  }
  func.func @transform_1(%arg0: i32) -> (i32, i32) {
    %c0_i32 = arith.constant 0 : i32
    %c0_i32_0 = arith.constant 0 : i32
    %c0_i32_1 = arith.constant 0 : i32
    return %c0_i32, %c0_i32_0 : i32, i32
  }
  func.func @transform_2(%arg0: i32) -> (i32, i32) {
    %c0_i32 = arith.constant 0 : i32
    %c0_i32_0 = arith.constant 0 : i32
    %c0_i32_1 = arith.constant 0 : i32
    return %c0_i32, %c0_i32_0 : i32, i32
  }
  func.func @transform_3(%arg0: i32) -> (i32, i32) {
    %c0_i32 = arith.constant 0 : i32
    %c0_i32_0 = arith.constant 0 : i32
    return %arg0, %c0_i32 : i32, i32
  }
  func.func @transform_4(%arg0: i32) -> (i32, i32) {
    %c0_i32 = arith.constant 0 : i32
    %c0_i32_0 = arith.constant 0 : i32
    %c0_i32_1 = arith.constant 0 : i32
    return %c0_i32, %c0_i32_0 : i32, i32
  }
  func.func @transform_5(%arg0: i32) -> (i32, i32) {
    %c0_i32 = arith.constant 0 : i32
    %c0_i32_0 = arith.constant 0 : i32
    %c0_i32_1 = arith.constant 0 : i32
    return %c0_i32, %c0_i32_0 : i32, i32
  }
  func.func @transform_6(%arg0: i32) -> (i32, i32) {
    %c0_i32 = arith.constant 0 : i32
    %c0_i32_0 = arith.constant 0 : i32
    return %arg0, %c0_i32 : i32, i32
  }
}

module attributes {stable_mosaic.version = 11 : i64} {
  func.func @_matmul_kernel(%arg0: i32, %arg1: i32, %arg2: memref<32x1152xbf16, #tpu.memory_space<vmem>>, %arg3: memref<1152x256xbf16, #tpu.memory_space<vmem>>, %arg4: memref<32x256xf32, #tpu.memory_space<vmem>>, %arg5: memref<32x256xf32, #tpu.memory_space<vmem>>) attributes {dimension_semantics = [#tpu.dimension_semantics<parallel>, #tpu.dimension_semantics<arbitrary>], iteration_bounds = array<i64: 1, 2>, scalar_prefetch = 0 : i64, scratch_operands = 1 : i64, tpu.core_type = #tpu.core_type<tc>, window_params = [{transform_indices = @transform_0, window_bounds = array<i64: 32, 1152>}, {transform_indices = @transform_1, window_bounds = array<i64: 1152, 256>}, {transform_indices = @transform_2, window_bounds = array<i64: 32, 256>}]} {
    %c0_i32 = arith.constant 0 : i32
    %0 = arith.cmpi eq, %arg1, %c0_i32 : i32
    %1 = arith.extui %0 : i1 to i32
    %c0_i32_0 = arith.constant 0 : i32
    %2 = arith.cmpi ne, %1, %c0_i32_0 : i32
    scf.if %2 {
      %cst_9 = arith.constant 0.000000e+00 : f32
      %12 = vector.broadcast %cst_9 : f32 to vector<32x256xf32>
      %c0_10 = arith.constant 0 : index
      %c0_11 = arith.constant 0 : index
      %13 = vector.load %arg5[%c0_10, %c0_11] : memref<32x256xf32, #tpu.memory_space<vmem>>, vector<32x256xf32>
      tpu.vector_store %arg5[%c0_10, %c0_11], %12 {strides = array<i32>} : memref<32x256xf32, #tpu.memory_space<vmem>>, vector<32x256xf32>,
    } else {
    }
    %c0 = arith.constant 0 : index
    %c0_1 = arith.constant 0 : index
    %3 = vector.load %arg5[%c0, %c0_1] : memref<32x256xf32, #tpu.memory_space<vmem>>, vector<32x256xf32>
    %c0_2 = arith.constant 0 : index
    %c0_3 = arith.constant 0 : index
    %4 = vector.load %arg2[%c0_2, %c0_3] : memref<32x1152xbf16, #tpu.memory_space<vmem>>, vector<32x1152xbf16>
    %c0_4 = arith.constant 0 : index
    %c0_5 = arith.constant 0 : index
    %5 = vector.load %arg3[%c0_4, %c0_5] : memref<1152x256xbf16, #tpu.memory_space<vmem>>, vector<1152x256xbf16>
    %cst = arith.constant dense<0.000000e+00> : vector<32x256xf32>
    %6 = tpu.matmul %4, %5, %cst {dimension_numbers = #tpu.dot_dimension_numbers<[1], [0], [0], [1], [0, 0, 1, 1], [], []>} : vector<32x1152xbf16>, vector<1152x256xbf16>, vector<32x256xf32> -> vector<32x256xf32>
    %7 = arith.addf %3, %6 : vector<32x256xf32>
    %c0_6 = arith.constant 0 : index
    %c0_7 = arith.constant 0 : index
    %8 = vector.load %arg5[%c0_6, %c0_7] : memref<32x256xf32, #tpu.memory_space<vmem>>, vector<32x256xf32>
    tpu.vector_store %arg5[%c0_6, %c0_7], %7 {strides = array<i32>} : memref<32x256xf32, #tpu.memory_space<vmem>>, vector<32x256xf32>,
    %c1_i32 = arith.constant 1 : i32
    %9 = arith.cmpi eq, %arg1, %c1_i32 : i32
    %10 = arith.extui %9 : i1 to i32
    %c0_i32_8 = arith.constant 0 : i32
    %11 = arith.cmpi ne, %10, %c0_i32_8 : i32
    scf.if %11 {
      %c0_9 = arith.constant 0 : index
      %c0_10 = arith.constant 0 : index
      %12 = vector.load %arg5[%c0_9, %c0_10] : memref<32x256xf32, #tpu.memory_space<vmem>>, vector<32x256xf32>
      %c0_11 = arith.constant 0 : index
      %c0_12 = arith.constant 0 : index
      %13 = vector.load %arg4[%c0_11, %c0_12] : memref<32x256xf32, #tpu.memory_space<vmem>>, vector<32x256xf32>
      tpu.vector_store %arg4[%c0_11, %c0_12], %12 {strides = array<i32>} : memref<32x256xf32, #tpu.memory_space<vmem>>, vector<32x256xf32>,
    } else {
    }
    return
  }
  func.func @transform_0(%arg0: i32, %arg1: i32) -> (i32, i32) {
    %c0_i32 = arith.constant 0 : i32
    return %arg0, %arg1 : i32, i32
  }
  func.func @transform_1(%arg0: i32, %arg1: i32) -> (i32, i32) {
    %c0_i32 = arith.constant 0 : i32
    %c0_i32_0 = arith.constant 0 : i32
    return %arg1, %c0_i32 : i32, i32
  }
  func.func @transform_2(%arg0: i32, %arg1: i32) -> (i32, i32) {
    %c0_i32 = arith.constant 0 : i32
    %c0_i32_0 = arith.constant 0 : i32
    return %arg0, %c0_i32 : i32, i32
  }
}

module attributes {stable_mosaic.version = 11 : i64} {
  func.func @_mlp_kernel(%arg0: i32, %arg1: memref<8x256xbf16, #tpu.memory_space<vmem>>, %arg2: memref<256x256xbf16, #tpu.memory_space<vmem>>, %arg3: memref<1x256xf32, #tpu.memory_space<vmem>>, %arg4: memref<256x256xbf16, #tpu.memory_space<vmem>>, %arg5: memref<1x256xf32, #tpu.memory_space<vmem>>, %arg6: memref<8x256xf32, #tpu.memory_space<vmem>>) attributes {dimension_semantics = [#tpu.dimension_semantics<parallel>], iteration_bounds = array<i64: 1>, scalar_prefetch = 0 : i64, scratch_operands = 0 : i64, tpu.core_type = #tpu.core_type<tc>, window_params = [{transform_indices = @transform_0, window_bounds = array<i64: 8, 256>}, {pipeline_mode = #tpu.pipeline_mode<synchronous>, transform_indices = @transform_1, window_bounds = array<i64: 256, 256>}, {pipeline_mode = #tpu.pipeline_mode<synchronous>, transform_indices = @transform_2, window_bounds = array<i64: 1, 256>}, {pipeline_mode = #tpu.pipeline_mode<synchronous>, transform_indices = @transform_3, window_bounds = array<i64: 256, 256>}, {pipeline_mode = #tpu.pipeline_mode<synchronous>, transform_indices = @transform_4, window_bounds = array<i64: 1, 256>}, {transform_indices = @transform_5, window_bounds = array<i64: 8, 256>}]} {
    %c0 = arith.constant 0 : index
    %c0_0 = arith.constant 0 : index
    %0 = vector.load %arg1[%c0, %c0_0] : memref<8x256xbf16, #tpu.memory_space<vmem>>, vector<8x256xbf16>
    %c0_1 = arith.constant 0 : index
    %c0_2 = arith.constant 0 : index
    %1 = vector.load %arg2[%c0_1, %c0_2] : memref<256x256xbf16, #tpu.memory_space<vmem>>, vector<256x256xbf16>
    %cst = arith.constant dense<0.000000e+00> : vector<8x256xf32>
    %2 = tpu.matmul %0, %1, %cst {dimension_numbers = #tpu.dot_dimension_numbers<[1], [0], [0], [1], [0, 0, 1, 1], [], []>} : vector<8x256xbf16>, vector<256x256xbf16>, vector<8x256xf32> -> vector<8x256xf32>
    %c0_3 = arith.constant 0 : index
    %c0_4 = arith.constant 0 : index
    %3 = vector.load %arg3[%c0_3, %c0_4] : memref<1x256xf32, #tpu.memory_space<vmem>>, vector<1x256xf32>
    %4 = vector.broadcast %3 : vector<1x256xf32> to vector<8x256xf32>
    %5 = arith.addf %2, %4 : vector<8x256xf32>
    %cst_5 = arith.constant 0.000000e+00 : f32
    %6 = vector.broadcast %cst_5 : f32 to vector<8x256xf32>
    %7 = arith.cmpf oge, %5, %6 : vector<8x256xf32>
    %cst_6 = arith.constant 1.000000e-01 : f32
    %8 = vector.broadcast %cst_6 : f32 to vector<8x256xf32>
    %9 = arith.mulf %8, %5 : vector<8x256xf32>
    %10 = arith.select %7, %5, %9 : vector<8x256xi1>, vector<8x256xf32>
    %11 = arith.truncf %10 : vector<8x256xf32> to vector<8x256xbf16>
    %c0_7 = arith.constant 0 : index
    %c0_8 = arith.constant 0 : index
    %12 = vector.load %arg4[%c0_7, %c0_8] : memref<256x256xbf16, #tpu.memory_space<vmem>>, vector<256x256xbf16>
    %cst_9 = arith.constant dense<0.000000e+00> : vector<8x256xf32>
    %13 = tpu.matmul %11, %12, %cst_9 {dimension_numbers = #tpu.dot_dimension_numbers<[1], [0], [0], [1], [0, 0, 1, 1], [], []>} : vector<8x256xbf16>, vector<256x256xbf16>, vector<8x256xf32> -> vector<8x256xf32>
    %c0_10 = arith.constant 0 : index
    %c0_11 = arith.constant 0 : index
    %14 = vector.load %arg5[%c0_10, %c0_11] : memref<1x256xf32, #tpu.memory_space<vmem>>, vector<1x256xf32>
    %15 = vector.broadcast %14 : vector<1x256xf32> to vector<8x256xf32>
    %16 = arith.addf %13, %15 : vector<8x256xf32>
    %c0_12 = arith.constant 0 : index
    %c0_13 = arith.constant 0 : index
    %17 = vector.load %arg6[%c0_12, %c0_13] : memref<8x256xf32, #tpu.memory_space<vmem>>, vector<8x256xf32>
    tpu.vector_store %arg6[%c0_12, %c0_13], %16 {strides = array<i32>} : memref<8x256xf32, #tpu.memory_space<vmem>>, vector<8x256xf32>,
    return
  }
  func.func @transform_0(%arg0: i32) -> (i32, i32) {
    %c0_i32 = arith.constant 0 : i32
    %c0_i32_0 = arith.constant 0 : i32
    return %arg0, %c0_i32 : i32, i32
  }
  func.func @transform_1(%arg0: i32) -> (i32, i32) {
    %c0_i32 = arith.constant 0 : i32
    %c0_i32_0 = arith.constant 0 : i32
    %c0_i32_1 = arith.constant 0 : i32
    return %c0_i32, %c0_i32_0 : i32, i32
  }
  func.func @transform_2(%arg0: i32) -> (i32, i32) {
    %c0_i32 = arith.constant 0 : i32
    %c0_i32_0 = arith.constant 0 : i32
    %c0_i32_1 = arith.constant 0 : i32
    return %c0_i32, %c0_i32_0 : i32, i32
  }
  func.func @transform_3(%arg0: i32) -> (i32, i32) {
    %c0_i32 = arith.constant 0 : i32
    %c0_i32_0 = arith.constant 0 : i32
    %c0_i32_1 = arith.constant 0 : i32
    return %c0_i32, %c0_i32_0 : i32, i32
  }
  func.func @transform_4(%arg0: i32) -> (i32, i32) {
    %c0_i32 = arith.constant 0 : i32
    %c0_i32_0 = arith.constant 0 : i32
    %c0_i32_1 = arith.constant 0 : i32
    return %c0_i32, %c0_i32_0 : i32, i32
  }
  func.func @transform_5(%arg0: i32) -> (i32, i32) {
    %c0_i32 = arith.constant 0 : i32
    %c0_i32_0 = arith.constant 0 : i32
    return %arg0, %c0_i32 : i32, i32
  }
}

</mosaic_0001>

<llo_original>
// kernel: res_encoder_forward.16
$region0: #{res_encoder_forward.16}
  #allocation0 [shape = 'u32[]', space=smem, size = 0x4, offset = 0x4, fixed_abs, tag = 'smem constant byte address 0x4 - core index']
  #allocation1 [shape = 'u32[144,128]{1,0:T(1,128)}', space=vmem, size = 0x12000, scoped, tag = 'internal scratch']
  #allocation2 [shape = 'f32[256,64]{1,0:T(8,128)}', space=vmem, size = 0x20000, scoped, tag = 'scratch operand']
  %s0 = inlined_call_operand.vmem [shape: bf16[512,128], index: 0, kind: input, shape index: {}]
  %s1 = inlined_call_operand.vmem [shape: bf16[128,64], index: 1, kind: input, shape index: {}]
  %s2 = inlined_call_operand.vmem [shape: f32[512,64], index: 2, kind: output, shape index: {}]
  %s3 = sld [smem:[#allocation0]]
  $region49: #{res_encoder_forward.16} parent=0
    _
  %s5 = ssub.s32 1, %s3
  %s6 = scalar_select 0, %s5, %s3
  loop: start=0, step=1, limit=4
  $region2: #{res_encoder_forward.16} parent=0 // loop_pre_header
    _
  $region3: #{res_encoder_forward.16} parent=0 // loop_header
    %s8 = sphi 0, %s12
    %p9 = scmp.ge.s32.totalorder %s8, 4
    %s15 = sphi 0, %s27
    %s16 = sphi 0, %s23
    %s17 = sphi 0, %s15
    %s18 = sphi 0, %s16
    %s19 = sphi 0, %s17
    %s20 = sphi 0, %s18
    %s32 = sphi 0, %s34
    %s35 = sphi 0, %s32
    %s36 = sphi 0, %s35
    %s52 = sphi 0, %s36
    %s58 = sphi 0, %s60
    %s61 = sphi 0, %s58
    %s62 = sphi 0, %s61
    %s78 = sphi 0, %s62
    %s84 = sphi 0, %s86
    %s87 = sphi 0, %s84
    %s88 = sphi 0, %s87
    %s104 = sphi 0, %s88
  $region4: #{res_encoder_forward.16} parent=0 // loop_header_branch
    %11 = sbr.rel (%p9) target = $region8
  $region5: #{res_encoder_forward.16} parent=0 // loop_body
    %s13 = ssub.s32 %s8, 1
    %s14 = ssub.s32 %s8, 2
    %s21 = sadd.s32 1, %s16
    %p22 = scmp.ge.s32.totalorder %s21, 1
    %s23 = scalar_select %p22, 0, %s21
    %s24 = sadd.s32 1, %s15
    %s25 = scalar_select %p22, %s24, %s15
    %p26 = scmp.ge.s32.totalorder %s25, 2
    %s27 = scalar_select %p26, 0, %s25
    %s28 = ssub.s32 %s15, %s27
    %s29 = ssub.s32 %s16, %s23
    %s30 = sor.u32 %s28, %s29
    %p31 = scmp.eq.s32.totalorder %s30, 0
    %s33 = sadd.s32 %s32, 1
    %s34 = scalar_select %p31, %s32, %s33
    %p37 = pneg %p31
    %p38 = scmp.eq.s32.totalorder %s8, 1
    %p39 = por %p37, %p38
    %p40 = scmp.ne.s32.totalorder %s32, %s35
    %p41 = scmp.eq.s32.totalorder %s8, 0
    %p42 = por %p40, %p41
    %p43 = scmp.ne.s32.totalorder %s32, %s35
    %p44 = scmp.eq.s32.totalorder %s13, 1
    %p45 = por %p43, %p44
    %p46 = scmp.ne.s32.totalorder %s35, %s36
    %p47 = scmp.eq.s32.totalorder %s13, 0
    %p48 = por %p46, %p47
    %p49 = scmp.ne.s32.totalorder %s35, %s36
    %p50 = scmp.eq.s32.totalorder %s14, 1
    %p51 = por %p49, %p50
    %p53 = scmp.ne.s32.totalorder %s36, %s52
    %p54 = scmp.eq.s32.totalorder %s14, 0
    %p55 = por %p53, %p54
    %s56 = ssub.s32 %s16, %s23
    %p57 = scmp.eq.s32.totalorder %s56, 0
    %s59 = sadd.s32 %s58, 1
    %s60 = scalar_select %p57, %s58, %s59
    %p63 = pneg %p57
    %p64 = scmp.eq.s32.totalorder %s8, 1
    %p65 = por %p63, %p64
    %p66 = scmp.ne.s32.totalorder %s58, %s61
    %p67 = scmp.eq.s32.totalorder %s8, 0
    %p68 = por %p66, %p67
    %p69 = scmp.ne.s32.totalorder %s58, %s61
    %p70 = scmp.eq.s32.totalorder %s13, 1
    %p71 = por %p69, %p70
    %p72 = scmp.ne.s32.totalorder %s61, %s62
    %p73 = scmp.eq.s32.totalorder %s13, 0
    %p74 = por %p72, %p73
    %p75 = scmp.ne.s32.totalorder %s61, %s62
    %p76 = scmp.eq.s32.totalorder %s14, 1
    %p77 = por %p75, %p76
    %p79 = scmp.ne.s32.totalorder %s62, %s78
    %p80 = scmp.eq.s32.totalorder %s14, 0
    %p81 = por %p79, %p80
    %s82 = ssub.s32 %s15, %s27
    %p83 = scmp.eq.s32.totalorder %s82, 0
    %s85 = sadd.s32 %s84, 1
    %s86 = scalar_select %p83, %s84, %s85
    %p89 = pneg %p83
    %p90 = scmp.eq.s32.totalorder %s8, 1
    %p91 = por %p89, %p90
    %p92 = scmp.ne.s32.totalorder %s84, %s87
    %p93 = scmp.eq.s32.totalorder %s8, 0
    %p94 = por %p92, %p93
    %p95 = scmp.ne.s32.totalorder %s84, %s87
    %p96 = scmp.eq.s32.totalorder %s13, 1
    %p97 = por %p95, %p96
    %p98 = scmp.ne.s32.totalorder %s87, %s88
    %p99 = scmp.eq.s32.totalorder %s13, 0
    %p100 = por %p98, %p99
    %p101 = scmp.ne.s32.totalorder %s87, %s88
    %p102 = scmp.eq.s32.totalorder %s14, 1
    %p103 = por %p101, %p102
    %p105 = scmp.ne.s32.totalorder %s88, %s104
    %p106 = scmp.eq.s32.totalorder %s14, 0
    %p107 = por %p105, %p106
    %p108 = scmp.le.s32.totalorder 1, %s8
    %p109 = scmp.lt.s32.totalorder %s8, 3
    %p110 = pnand %p108, %p109
    %p111 = pneg %p110
    // Predicated region
    $region9: #{res_encoder_forward.16} parent=5 // pred_check
      _
    $region10: #{res_encoder_forward.16} parent=5 // pred_check_branch
      %113 = sbr.rel (%p110) target = $region12
    $region11: #{res_encoder_forward.16} parent=5 // pred_region
      %s114 = ssub.s32 %s8, 1
      // Predicated region
      $region13: #{res_encoder_forward.16} parent=11 // pred_check
        %p115 = pneg %p74
      $region14: #{res_encoder_forward.16} parent=11 // pred_check_branch
        %117 = sbr.rel (%p115) target = $region16
      $region15: #{res_encoder_forward.16} parent=11 // pred_region
        %s118 = smul.u32 16, %s18
        %p119 = scmp.lt.s32.totalorder %s118, 15
        %s120 = scalar_select %p119, %s118, 15
        %s121 = smul.addr %s120, 4
        %s122 = scalar_lea.vmem %s1, %s121
        %s123 = smul.u32 16, %s18
      $region16: #{res_encoder_forward.16} parent=11 // pred_fallthru
        _
    $region12: #{res_encoder_forward.16} parent=5 // pred_fallthru
      _
    %p124 = scmp.lt.s32.totalorder %s8, 2
    // Predicated region
    $region17: #{res_encoder_forward.16} parent=5 // pred_check
      %p125 = pneg %p124
    $region18: #{res_encoder_forward.16} parent=5 // pred_check_branch
      %127 = sbr.rel (%p125) target = $region20
    $region19: #{res_encoder_forward.16} parent=5 // pred_region
      // Predicated region
      $region21: #{res_encoder_forward.16} parent=19 // pred_check
        %p128 = pneg %p42
      $region22: #{res_encoder_forward.16} parent=19 // pred_check_branch
        %130 = sbr.rel (%p128) target = $region24
      $region23: #{res_encoder_forward.16} parent=19 // pred_region
        %s131 = smul.u32 32, %s15
        %p132 = scmp.lt.s32.totalorder %s131, 63
        %s133 = scalar_select %p132, %s131, 63
        %p134 = scmp.lt.s32.totalorder %s16, 0
        %s135 = scalar_select %p134, %s16, 0
        %s136 = sadd.s32 %s135, %s133
        %s137 = smul.addr %s136, 4
        %s138 = scalar_lea.vmem %s0, %s137
        %s139 = smul.u32 32, %s15
      $region24: #{res_encoder_forward.16} parent=19 // pred_fallthru
        _
    $region20: #{res_encoder_forward.16} parent=5 // pred_fallthru
      _
    %p140 = scmp.le.s32.totalorder 1, %s8
    %p141 = scmp.lt.s32.totalorder %s8, 3
    %p142 = pnand %p140, %p141
    %p143 = pneg %p142
    // Predicated region
    $region25: #{res_encoder_forward.16} parent=5 // pred_check
      _
    $region26: #{res_encoder_forward.16} parent=5 // pred_check_branch
      %145 = sbr.rel (%p142) target = $region28
    $region27: #{res_encoder_forward.16} parent=5 // pred_region
      %s146 = ssub.s32 %s8, 1
      %s147 = smul.u32 32, %s17
      %p148 = scmp.lt.s32.totalorder %s147, 63
      %s149 = scalar_select %p148, %s147, 63
      %p150 = scmp.lt.s32.totalorder %s18, 0
      %s151 = scalar_select %p150, %s18, 0
      %s152 = sadd.s32 %s151, %s149
      %s153 = smul.addr %s152, 4
      %s154 = scalar_lea.vmem %s0, %s153
      %p155 = pneg %p48
      %p156 = pneg %p45
      %s157 = smul.u32 16, %s18
      %p158 = scmp.lt.s32.totalorder %s157, 15
      %s159 = scalar_select %p158, %s157, 15
      %s160 = smul.addr %s159, 4
      %s161 = scalar_lea.vmem %s1, %s160
      %p162 = pneg %p74
      %p163 = pneg %p71
      %p164 = pneg %p100
      %p165 = pneg %p97
      %s166 = smul.u32 32, %s17
      %p167 = scmp.lt.s32.totalorder %s166, 63
      %s168 = scalar_select %p167, %s166, 63
      %s169 = smul.addr %s168, 8
      %s170 = scalar_lea.vmem %s2, %s169
      %s171 = smul.u32 32, %s17
      %p172 = scmp.lt.s32.totalorder %s171, 63
      %s173 = scalar_select %p172, %s171, 63
      %p174 = scmp.lt.s32.totalorder %s18, 0
      %s175 = scalar_select %p174, %s18, 0
      %s176 = sadd.s32 %s175, %s173
      %s177 = smul.addr %s176, 4
      %s178 = scalar_lea.vmem %s0, %s177
      %s179 = smul.u32 32, %s17
      %s180 = smul.u32 16, %s18
      %p181 = scmp.lt.s32.totalorder %s180, 15
      %s182 = scalar_select %p181, %s180, 15
      %s183 = smul.addr %s182, 4
      %s184 = scalar_lea.vmem %s1, %s183
      %s185 = smul.u32 16, %s18
      %s186 = smul.u32 32, %s17
      %p187 = scmp.lt.s32.totalorder %s186, 63
      %s188 = scalar_select %p187, %s186, 63
      %s189 = smul.addr %s188, 8
      %s190 = scalar_lea.vmem %s2, %s189
      %s191 = smul.u32 32, %s17
      %p193 = scmp.eq.s32.totalorder %s18, 0
      // Predicated region
      $region29: #{res_encoder_forward.16} parent=27 // pred_check
        %p194 = pneg %p193
      $region30: #{res_encoder_forward.16} parent=27 // pred_check_branch
        %196 = sbr.rel (%p194) target = $region32
      $region31: #{res_encoder_forward.16} parent=27 // pred_region
        %vm197 = vcmask 523264
        %198 = vst.msk [vmem:[#allocation2] sm:$0xff] %vm197, 0.0
        %199 = vst.msk [vmem:[#allocation2 + $0x8] sm:$0xff] %vm197, 0.0
        %200 = vst.msk [vmem:[#allocation2 + $0x10] sm:$0xff] %vm197, 0.0
        %201 = vst.msk [vmem:[#allocation2 + $0x18] sm:$0xff] %vm197, 0.0
        %202 = vst.msk [vmem:[#allocation2 + $0x20] sm:$0xff] %vm197, 0.0
        %203 = vst.msk [vmem:[#allocation2 + $0x28] sm:$0xff] %vm197, 0.0
        %204 = vst.msk [vmem:[#allocation2 + $0x30] sm:$0xff] %vm197, 0.0
        %205 = vst.msk [vmem:[#allocation2 + $0x38] sm:$0xff] %vm197, 0.0
        %206 = vst.msk [vmem:[#allocation2 + $0x40] sm:$0xff] %vm197, 0.0
        %207 = vst.msk [vmem:[#allocation2 + $0x48] sm:$0xff] %vm197, 0.0
        %208 = vst.msk [vmem:[#allocation2 + $0x50] sm:$0xff] %vm197, 0.0
        %209 = vst.msk [vmem:[#allocation2 + $0x58] sm:$0xff] %vm197, 0.0
        %210 = vst.msk [vmem:[#allocation2 + $0x60] sm:$0xff] %vm197, 0.0
        %211 = vst.msk [vmem:[#allocation2 + $0x68] sm:$0xff] %vm197, 0.0
        %212 = vst.msk [vmem:[#allocation2 + $0x70] sm:$0xff] %vm197, 0.0
        %213 = vst.msk [vmem:[#allocation2 + $0x78] sm:$0xff] %vm197, 0.0
        %214 = vst.msk [vmem:[#allocation2 + $0x80] sm:$0xff] %vm197, 0.0
        %215 = vst.msk [vmem:[#allocation2 + $0x88] sm:$0xff] %vm197, 0.0
        %216 = vst.msk [vmem:[#allocation2 + $0x90] sm:$0xff] %vm197, 0.0
        %217 = vst.msk [vmem:[#allocation2 + $0x98] sm:$0xff] %vm197, 0.0
        %218 = vst.msk [vmem:[#allocation2 + $0xa0] sm:$0xff] %vm197, 0.0
        %219 = vst.msk [vmem:[#allocation2 + $0xa8] sm:$0xff] %vm197, 0.0
        %220 = vst.msk [vmem:[#allocation2 + $0xb0] sm:$0xff] %vm197, 0.0
        %221 = vst.msk [vmem:[#allocation2 + $0xb8] sm:$0xff] %vm197, 0.0
        %222 = vst.msk [vmem:[#allocation2 + $0xc0] sm:$0xff] %vm197, 0.0
        %223 = vst.msk [vmem:[#allocation2 + $0xc8] sm:$0xff] %vm197, 0.0
        %224 = vst.msk [vmem:[#allocation2 + $0xd0] sm:$0xff] %vm197, 0.0
        %225 = vst.msk [vmem:[#allocation2 + $0xd8] sm:$0xff] %vm197, 0.0
        %226 = vst.msk [vmem:[#allocation2 + $0xe0] sm:$0xff] %vm197, 0.0
        %227 = vst.msk [vmem:[#allocation2 + $0xe8] sm:$0xff] %vm197, 0.0
        %228 = vst.msk [vmem:[#allocation2 + $0xf0] sm:$0xff] %vm197, 0.0
        %229 = vst.msk [vmem:[#allocation2 + $0xf8] sm:$0xff] %vm197, 0.0
      $region32: #{res_encoder_forward.16} parent=27 // pred_fallthru
        _
      %v230 = vld [vmem:[#allocation2] sm:$0xff]
      %v231 = vld [vmem:[#allocation2 + $0x8] sm:$0xff]
      %v232 = vld [vmem:[#allocation2 + $0x10] sm:$0xff]
      %v233 = vld [vmem:[#allocation2 + $0x18] sm:$0xff]
      %v234 = vld [vmem:[#allocation2 + $0x20] sm:$0xff]
      %v235 = vld [vmem:[#allocation2 + $0x28] sm:$0xff]
      %v236 = vld [vmem:[#allocation2 + $0x30] sm:$0xff]
      %v237 = vld [vmem:[#allocation2 + $0x38] sm:$0xff]
      %v238 = vld [vmem:[#allocation2 + $0x40] sm:$0xff]
      %v239 = vld [vmem:[#allocation2 + $0x48] sm:$0xff]
      %v240 = vld [vmem:[#allocation2 + $0x50] sm:$0xff]
      %v241 = vld [vmem:[#allocation2 + $0x58] sm:$0xff]
      %v242 = vld [vmem:[#allocation2 + $0x60] sm:$0xff]
      %v243 = vld [vmem:[#allocation2 + $0x68] sm:$0xff]
      %v244 = vld [vmem:[#allocation2 + $0x70] sm:$0xff]
      %v245 = vld [vmem:[#allocation2 + $0x78] sm:$0xff]
      %v246 = vld [vmem:[#allocation2 + $0x80] sm:$0xff]
      %v247 = vld [vmem:[#allocation2 + $0x88] sm:$0xff]
      %v248 = vld [vmem:[#allocation2 + $0x90] sm:$0xff]
      %v249 = vld [vmem:[#allocation2 + $0x98] sm:$0xff]
      %v250 = vld [vmem:[#allocation2 + $0xa0] sm:$0xff]
      %v251 = vld [vmem:[#allocation2 + $0xa8] sm:$0xff]
      %v252 = vld [vmem:[#allocation2 + $0xb0] sm:$0xff]
      %v253 = vld [vmem:[#allocation2 + $0xb8] sm:$0xff]
      %v254 = vld [vmem:[#allocation2 + $0xc0] sm:$0xff]
      %v255 = vld [vmem:[#allocation2 + $0xc8] sm:$0xff]
      %v256 = vld [vmem:[#allocation2 + $0xd0] sm:$0xff]
      %v257 = vld [vmem:[#allocation2 + $0xd8] sm:$0xff]
      %v258 = vld [vmem:[#allocation2 + $0xe0] sm:$0xff]
      %v259 = vld [vmem:[#allocation2 + $0xe8] sm:$0xff]
      %v260 = vld [vmem:[#allocation2 + $0xf0] sm:$0xff]
      %v261 = vld [vmem:[#allocation2 + $0xf8] sm:$0xff]
      %v262 = vld [vmem:[%s178] sm:$0xf]
      %v263 = vld [vmem:[%s178 + $0x4] sm:$0xf]
      %v264 = vld [vmem:[%s178 + $0x8] sm:$0xf]
      %v265 = vld [vmem:[%s178 + $0xc] sm:$0xf]
      %v266 = vld [vmem:[%s178 + $0x10] sm:$0xf]
      %v267 = vld [vmem:[%s178 + $0x14] sm:$0xf]
      %v268 = vld [vmem:[%s178 + $0x18] sm:$0xf]
      %v269 = vld [vmem:[%s178 + $0x1c] sm:$0xf]
      %v270 = vld [vmem:[%s178 + $0x20] sm:$0xf]
      %v271 = vld [vmem:[%s178 + $0x24] sm:$0xf]
      %v272 = vld [vmem:[%s178 + $0x28] sm:$0xf]
      %v273 = vld [vmem:[%s178 + $0x2c] sm:$0xf]
      %v274 = vld [vmem:[%s178 + $0x30] sm:$0xf]
      %v275 = vld [vmem:[%s178 + $0x34] sm:$0xf]
      %v276 = vld [vmem:[%s178 + $0x38] sm:$0xf]
      %v277 = vld [vmem:[%s178 + $0x3c] sm:$0xf]
      %v278 = vld [vmem:[%s178 + $0x40] sm:$0xf]
      %v279 = vld [vmem:[%s178 + $0x44] sm:$0xf]
      %v280 = vld [vmem:[%s178 + $0x48] sm:$0xf]
      %v281 = vld [vmem:[%s178 + $0x4c] sm:$0xf]
      %v282 = vld [vmem:[%s178 + $0x50] sm:$0xf]
      %v283 = vld [vmem:[%s178 + $0x54] sm:$0xf]
      %v284 = vld [vmem:[%s178 + $0x58] sm:$0xf]
      %v285 = vld [vmem:[%s178 + $0x5c] sm:$0xf]
      %v286 = vld [vmem:[%s178 + $0x60] sm:$0xf]
      %v287 = vld [vmem:[%s178 + $0x64] sm:$0xf]
      %v288 = vld [vmem:[%s178 + $0x68] sm:$0xf]
      %v289 = vld [vmem:[%s178 + $0x6c] sm:$0xf]
      %v290 = vld [vmem:[%s178 + $0x70] sm:$0xf]
      %v291 = vld [vmem:[%s178 + $0x74] sm:$0xf]
      %v292 = vld [vmem:[%s178 + $0x78] sm:$0xf]
      %v293 = vld [vmem:[%s178 + $0x7c] sm:$0xf]
      %v294 = vld [vmem:[%s184] sm:$0xf]
      %v295 = vld [vmem:[%s184 + $0x4] sm:$0xf]
      %v296 = vld [vmem:[%s184 + $0x8] sm:$0xf]
      %v297 = vld [vmem:[%s184 + $0xc] sm:$0xf]
      %v298 = vld [vmem:[%s184 + $0x10] sm:$0xf]
      %v299 = vld [vmem:[%s184 + $0x14] sm:$0xf]
      %v300 = vld [vmem:[%s184 + $0x18] sm:$0xf]
      %v301 = vld [vmem:[%s184 + $0x1c] sm:$0xf]
      %v302 = vld [vmem:[%s184 + $0x20] sm:$0xf]
      %v303 = vld [vmem:[%s184 + $0x24] sm:$0xf]
      %v304 = vld [vmem:[%s184 + $0x28] sm:$0xf]
      %v305 = vld [vmem:[%s184 + $0x2c] sm:$0xf]
      %v306 = vld [vmem:[%s184 + $0x30] sm:$0xf]
      %v307 = vld [vmem:[%s184 + $0x34] sm:$0xf]
      %v308 = vld [vmem:[%s184 + $0x38] sm:$0xf]
      %v309 = vld [vmem:[%s184 + $0x3c] sm:$0xf]
      %v342 = vunpack.c.l.b16 %v262
      %v343 = vunpack.c.l.b16 %v263
      %v344 = vunpack.c.l.b16 %v264
      %v345 = vunpack.c.l.b16 %v265
      %v346 = vunpack.c.l.b16 %v266
      %v347 = vunpack.c.l.b16 %v267
      %v348 = vunpack.c.l.b16 %v268
      %v349 = vunpack.c.l.b16 %v269
      %v350 = vunpack.c.l.b16 %v270
      %v351 = vunpack.c.l.b16 %v271
      %v352 = vunpack.c.l.b16 %v272
      %v353 = vunpack.c.l.b16 %v273
      %v354 = vunpack.c.l.b16 %v274
      %v355 = vunpack.c.l.b16 %v275
      %v356 = vunpack.c.l.b16 %v276
      %v357 = vunpack.c.l.b16 %v277
      %v358 = vunpack.c.l.b16 %v278
      %v359 = vunpack.c.l.b16 %v279
      %v360 = vunpack.c.l.b16 %v280
      %v361 = vunpack.c.l.b16 %v281
      %v362 = vunpack.c.l.b16 %v282
      %v363 = vunpack.c.l.b16 %v283
      %v364 = vunpack.c.l.b16 %v284
      %v365 = vunpack.c.l.b16 %v285
      %v366 = vunpack.c.l.b16 %v286
      %v367 = vunpack.c.l.b16 %v287
      %v368 = vunpack.c.l.b16 %v288
      %v369 = vunpack.c.l.b16 %v289
      %v370 = vunpack.c.l.b16 %v290
      %v371 = vunpack.c.l.b16 %v291
      %v372 = vunpack.c.l.b16 %v292
      %v373 = vunpack.c.l.b16 %v293
      %v374 = vpack.c.b16 %v343, %v342
      %v375 = vpack.c.b16 %v345, %v344
      %v376 = vpack.c.b16 %v347, %v346
      %v377 = vpack.c.b16 %v349, %v348
      %v378 = vpack.c.b16 %v351, %v350
      %v379 = vpack.c.b16 %v353, %v352
      %v380 = vpack.c.b16 %v355, %v354
      %v381 = vpack.c.b16 %v357, %v356
      %v382 = vpack.c.b16 %v359, %v358
      %v383 = vpack.c.b16 %v361, %v360
      %v384 = vpack.c.b16 %v363, %v362
      %v385 = vpack.c.b16 %v365, %v364
      %v386 = vpack.c.b16 %v367, %v366
      %v387 = vpack.c.b16 %v369, %v368
      %v388 = vpack.c.b16 %v371, %v370
      %v389 = vpack.c.b16 %v373, %v372
      %v422 = vunpack.c.l.b16 %v294
      %v423 = vunpack.c.l.b16 %v295
      %v424 = vunpack.c.l.b16 %v296
      %v425 = vunpack.c.l.b16 %v297
      %v426 = vunpack.c.l.b16 %v298
      %v427 = vunpack.c.l.b16 %v299
      %v428 = vunpack.c.l.b16 %v300
      %v429 = vunpack.c.l.b16 %v301
      %v430 = vunpack.c.l.b16 %v302
      %v431 = vunpack.c.l.b16 %v303
      %v432 = vunpack.c.l.b16 %v304
      %v433 = vunpack.c.l.b16 %v305
      %v434 = vunpack.c.l.b16 %v306
      %v435 = vunpack.c.l.b16 %v307
      %v436 = vunpack.c.l.b16 %v308
      %v437 = vunpack.c.l.b16 %v309
      %v438 = vpack.c.b16 %v423, %v422
      %v439 = vpack.c.b16 %v425, %v424
      %v440 = vpack.c.b16 %v427, %v426
      %v441 = vpack.c.b16 %v429, %v428
      %v442 = vpack.c.b16 %v431, %v430
      %v443 = vpack.c.b16 %v433, %v432
      %v444 = vpack.c.b16 %v435, %v434
      %v445 = vpack.c.b16 %v437, %v436
      %454 = vmatprep.subr.bf16.mxu0 0
      %455 = vmatpush1.bf16.msra.mxu0 %v445
      %456 = vmatprep.subr.bf16.mxu0 0
      %457 = vmatpush1.bf16.msra.mxu0 %v444
      %458 = vmatprep.subr.bf16.mxu0 0
      %459 = vmatpush1.bf16.msra.mxu0 %v443
      %460 = vmatprep.subr.bf16.mxu0 0
      %461 = vmatpush1.bf16.msra.mxu0 %v442
      %462 = vmatprep.subr.bf16.mxu0 0
      %463 = vmatpush1.bf16.msra.mxu0 %v441
      %464 = vmatprep.subr.bf16.mxu0 0
      %465 = vmatpush1.bf16.msra.mxu0 %v440
      %466 = vmatprep.subr.bf16.mxu0 0
      %467 = vmatpush1.bf16.msra.mxu0 %v439
      %468 = vmatprep.subr.bf16.mxu0 0
      %469 = vmatpush1.bf16.msra.mxu0 %v438
      %470 = vmatprep.subr.bf16.mxu0 0
      %471 = vmatpush2.bf16.msra.mxu0 0
      %472 = vmatprep.subr.bf16.mxu0 0
      %473 = vmatpush2.bf16.msra.mxu0 0
      %474 = vmatprep.subr.bf16.mxu0 0
      %475 = vmatpush2.bf16.msra.mxu0 0
      %476 = vmatprep.subr.bf16.mxu0 0
      %477 = vmatpush2.bf16.msra.mxu0 0
      %478 = vmatprep.subr.bf16.mxu0 0
      %479 = vmatpush2.bf16.msra.mxu0 0
      %480 = vmatprep.subr.bf16.mxu0 0
      %481 = vmatpush2.bf16.msra.mxu0 0
      %482 = vmatprep.subr.bf16.mxu0 0
      %483 = vmatpush2.bf16.msra.mxu0 0
      %484 = vmatprep.subr.bf16.mxu0 0
      %485 = vmatpush2.bf16.msra.mxu0 0
      %486 = vmatprep.mubr.bf16.mxu0 0
      %487 = vmatmul.mubr.bf16.gmra.mxu0 %v374
      %v488 = vpop.f32.mrf.mxu0
      %v489 = vadd.f32 0.0, %v488
      %v490 = vpop.f32.mrf.mxu0
      %v491 = vpop.f32.mrf.mxu0
      %v492 = vadd.f32 0.0, %v491
      %v493 = vpop.f32.mrf.mxu0
      %494 = vmatprep.mubr.bf16.mxu0 0
      %495 = vmatmul.mubr.bf16.gmra.mxu0 %v375
      %v496 = vpop.f32.mrf.mxu0
      %v497 = vadd.f32 0.0, %v496
      %v498 = vpop.f32.mrf.mxu0
      %v499 = vpop.f32.mrf.mxu0
      %v500 = vadd.f32 0.0, %v499
      %v501 = vpop.f32.mrf.mxu0
      %502 = vmatprep.mubr.bf16.mxu0 0
      %503 = vmatmul.mubr.bf16.gmra.mxu0 %v376
      %v504 = vpop.f32.mrf.mxu0
      %v505 = vadd.f32 0.0, %v504
      %v506 = vpop.f32.mrf.mxu0
      %v507 = vpop.f32.mrf.mxu0
      %v508 = vadd.f32 0.0, %v507
      %v509 = vpop.f32.mrf.mxu0
      %510 = vmatprep.mubr.bf16.mxu0 0
      %511 = vmatmul.mubr.bf16.gmra.mxu0 %v377
      %v512 = vpop.f32.mrf.mxu0
      %v513 = vadd.f32 0.0, %v512
      %v514 = vpop.f32.mrf.mxu0
      %v515 = vpop.f32.mrf.mxu0
      %v516 = vadd.f32 0.0, %v515
      %v517 = vpop.f32.mrf.mxu0
      %518 = vmatprep.mubr.bf16.mxu0 0
      %519 = vmatmul.mubr.bf16.gmra.mxu0 %v378
      %v520 = vpop.f32.mrf.mxu0
      %v521 = vadd.f32 0.0, %v520
      %v522 = vpop.f32.mrf.mxu0
      %v523 = vpop.f32.mrf.mxu0
      %v524 = vadd.f32 0.0, %v523
      %v525 = vpop.f32.mrf.mxu0
      %526 = vmatprep.mubr.bf16.mxu0 0
      %527 = vmatmul.mubr.bf16.gmra.mxu0 %v379
      %v528 = vpop.f32.mrf.mxu0
      %v529 = vadd.f32 0.0, %v528
      %v530 = vpop.f32.mrf.mxu0
      %v531 = vpop.f32.mrf.mxu0
      %v532 = vadd.f32 0.0, %v531
      %v533 = vpop.f32.mrf.mxu0
      %534 = vmatprep.mubr.bf16.mxu0 0
      %535 = vmatmul.mubr.bf16.gmra.mxu0 %v380
      %v536 = vpop.f32.mrf.mxu0
      %v537 = vadd.f32 0.0, %v536
      %v538 = vpop.f32.mrf.mxu0
      %v539 = vpop.f32.mrf.mxu0
      %v540 = vadd.f32 0.0, %v539
      %v541 = vpop.f32.mrf.mxu0
      %542 = vmatprep.mubr.bf16.mxu0 0
      %543 = vmatmul.mubr.bf16.gmra.mxu0 %v381
      %v544 = vpop.f32.mrf.mxu0
      %v545 = vadd.f32 0.0, %v544
      %v546 = vpop.f32.mrf.mxu0
      %v547 = vpop.f32.mrf.mxu0
      %v548 = vadd.f32 0.0, %v547
      %v549 = vpop.f32.mrf.mxu0
      %550 = vmatprep.mubr.bf16.mxu0 0
      %551 = vmatmul.mubr.bf16.gmra.mxu0 %v382
      %v552 = vpop.f32.mrf.mxu0
      %v553 = vadd.f32 0.0, %v552
      %v554 = vpop.f32.mrf.mxu0
      %v555 = vpop.f32.mrf.mxu0
      %v556 = vadd.f32 0.0, %v555
      %v557 = vpop.f32.mrf.mxu0
      %558 = vmatprep.mubr.bf16.mxu0 0
      %559 = vmatmul.mubr.bf16.gmra.mxu0 %v383
      %v560 = vpop.f32.mrf.mxu0
      %v561 = vadd.f32 0.0, %v560
      %v562 = vpop.f32.mrf.mxu0
      %v563 = vpop.f32.mrf.mxu0
      %v564 = vadd.f32 0.0, %v563
      %v565 = vpop.f32.mrf.mxu0
      %566 = vmatprep.mubr.bf16.mxu0 0
      %567 = vmatmul.mubr.bf16.gmra.mxu0 %v384
      %v568 = vpop.f32.mrf.mxu0
      %v569 = vadd.f32 0.0, %v568
      %v570 = vpop.f32.mrf.mxu0
      %v571 = vpop.f32.mrf.mxu0
      %v572 = vadd.f32 0.0, %v571
      %v573 = vpop.f32.mrf.mxu0
      %574 = vmatprep.mubr.bf16.mxu0 0
      %575 = vmatmul.mubr.bf16.gmra.mxu0 %v385
      %v576 = vpop.f32.mrf.mxu0
      %v577 = vadd.f32 0.0, %v576
      %v578 = vpop.f32.mrf.mxu0
      %v579 = vpop.f32.mrf.mxu0
      %v580 = vadd.f32 0.0, %v579
      %v581 = vpop.f32.mrf.mxu0
      %582 = vmatprep.mubr.bf16.mxu0 0
      %583 = vmatmul.mubr.bf16.gmra.mxu0 %v386
      %v584 = vpop.f32.mrf.mxu0
      %v585 = vadd.f32 0.0, %v584
      %v586 = vpop.f32.mrf.mxu0
      %v587 = vpop.f32.mrf.mxu0
      %v588 = vadd.f32 0.0, %v587
      %v589 = vpop.f32.mrf.mxu0
      %590 = vmatprep.mubr.bf16.mxu0 0
      %591 = vmatmul.mubr.bf16.gmra.mxu0 %v387
      %v592 = vpop.f32.mrf.mxu0
      %v593 = vadd.f32 0.0, %v592
      %v594 = vpop.f32.mrf.mxu0
      %v595 = vpop.f32.mrf.mxu0
      %v596 = vadd.f32 0.0, %v595
      %v597 = vpop.f32.mrf.mxu0
      %598 = vmatprep.mubr.bf16.mxu0 0
      %599 = vmatmul.mubr.bf16.gmra.mxu0 %v388
      %v600 = vpop.f32.mrf.mxu0
      %v601 = vadd.f32 0.0, %v600
      %v602 = vpop.f32.mrf.mxu0
      %v603 = vpop.f32.mrf.mxu0
      %v604 = vadd.f32 0.0, %v603
      %v605 = vpop.f32.mrf.mxu0
      %606 = vmatprep.mubr.bf16.mxu0 0
      %607 = vmatmul.mubr.bf16.gmra.mxu0 %v389
      %v608 = vpop.f32.mrf.mxu0
      %v609 = vadd.f32 0.0, %v608
      %v610 = vpop.f32.mrf.mxu0
      %v611 = vpop.f32.mrf.mxu0
      %v612 = vadd.f32 0.0, %v611
      %v613 = vpop.f32.mrf.mxu0
      %614 = vdwg.mxu0
      %v615 = vadd.f32 %v230, %v489
      %v616 = vadd.f32 %v231, %v492
      %v617 = vadd.f32 %v232, %v497
      %v618 = vadd.f32 %v233, %v500
      %v619 = vadd.f32 %v234, %v505
      %v620 = vadd.f32 %v235, %v508
      %v621 = vadd.f32 %v236, %v513
      %v622 = vadd.f32 %v237, %v516
      %v623 = vadd.f32 %v238, %v521
      %v624 = vadd.f32 %v239, %v524
      %v625 = vadd.f32 %v240, %v529
      %v626 = vadd.f32 %v241, %v532
      %v627 = vadd.f32 %v242, %v537
      %v628 = vadd.f32 %v243, %v540
      %v629 = vadd.f32 %v244, %v545
      %v630 = vadd.f32 %v245, %v548
      %v631 = vadd.f32 %v246, %v553
      %v632 = vadd.f32 %v247, %v556
      %v633 = vadd.f32 %v248, %v561
      %v634 = vadd.f32 %v249, %v564
      %v635 = vadd.f32 %v250, %v569
      %v636 = vadd.f32 %v251, %v572
      %v637 = vadd.f32 %v252, %v577
      %v638 = vadd.f32 %v253, %v580
      %v639 = vadd.f32 %v254, %v585
      %v640 = vadd.f32 %v255, %v588
      %v641 = vadd.f32 %v256, %v593
      %v642 = vadd.f32 %v257, %v596
      %v643 = vadd.f32 %v258, %v601
      %v644 = vadd.f32 %v259, %v604
      %v645 = vadd.f32 %v260, %v609
      %v646 = vadd.f32 %v261, %v612
      %vm647 = vcmask 523264
      %648 = vst.msk [vmem:[#allocation2] sm:$0xff] %vm647, %v615
      %649 = vst.msk [vmem:[#allocation2 + $0x8] sm:$0xff] %vm647, %v616
      %650 = vst.msk [vmem:[#allocation2 + $0x10] sm:$0xff] %vm647, %v617
      %651 = vst.msk [vmem:[#allocation2 + $0x18] sm:$0xff] %vm647, %v618
      %652 = vst.msk [vmem:[#allocation2 + $0x20] sm:$0xff] %vm647, %v619
      %653 = vst.msk [vmem:[#allocation2 + $0x28] sm:$0xff] %vm647, %v620
      %654 = vst.msk [vmem:[#allocation2 + $0x30] sm:$0xff] %vm647, %v621
      %655 = vst.msk [vmem:[#allocation2 + $0x38] sm:$0xff] %vm647, %v622
      %656 = vst.msk [vmem:[#allocation2 + $0x40] sm:$0xff] %vm647, %v623
      %657 = vst.msk [vmem:[#allocation2 + $0x48] sm:$0xff] %vm647, %v624
      %658 = vst.msk [vmem:[#allocation2 + $0x50] sm:$0xff] %vm647, %v625
      %659 = vst.msk [vmem:[#allocation2 + $0x58] sm:$0xff] %vm647, %v626
      %660 = vst.msk [vmem:[#allocation2 + $0x60] sm:$0xff] %vm647, %v627
      %661 = vst.msk [vmem:[#allocation2 + $0x68] sm:$0xff] %vm647, %v628
      %662 = vst.msk [vmem:[#allocation2 + $0x70] sm:$0xff] %vm647, %v629
      %663 = vst.msk [vmem:[#allocation2 + $0x78] sm:$0xff] %vm647, %v630
      %664 = vst.msk [vmem:[#allocation2 + $0x80] sm:$0xff] %vm647, %v631
      %665 = vst.msk [vmem:[#allocation2 + $0x88] sm:$0xff] %vm647, %v632
      %666 = vst.msk [vmem:[#allocation2 + $0x90] sm:$0xff] %vm647, %v633
      %667 = vst.msk [vmem:[#allocation2 + $0x98] sm:$0xff] %vm647, %v634
      %668 = vst.msk [vmem:[#allocation2 + $0xa0] sm:$0xff] %vm647, %v635
      %669 = vst.msk [vmem:[#allocation2 + $0xa8] sm:$0xff] %vm647, %v636
      %670 = vst.msk [vmem:[#allocation2 + $0xb0] sm:$0xff] %vm647, %v637
      %671 = vst.msk [vmem:[#allocation2 + $0xb8] sm:$0xff] %vm647, %v638
      %672 = vst.msk [vmem:[#allocation2 + $0xc0] sm:$0xff] %vm647, %v639
      %673 = vst.msk [vmem:[#allocation2 + $0xc8] sm:$0xff] %vm647, %v640
      %674 = vst.msk [vmem:[#allocation2 + $0xd0] sm:$0xff] %vm647, %v641
      %675 = vst.msk [vmem:[#allocation2 + $0xd8] sm:$0xff] %vm647, %v642
      %676 = vst.msk [vmem:[#allocation2 + $0xe0] sm:$0xff] %vm647, %v643
      %677 = vst.msk [vmem:[#allocation2 + $0xe8] sm:$0xff] %vm647, %v644
      %678 = vst.msk [vmem:[#allocation2 + $0xf0] sm:$0xff] %vm647, %v645
      %679 = vst.msk [vmem:[#allocation2 + $0xf8] sm:$0xff] %vm647, %v646
      // Predicated region
      $region33: #{res_encoder_forward.16} parent=27 // pred_check
        %p680 = pneg %p193
      $region34: #{res_encoder_forward.16} parent=27 // pred_check_branch
        %682 = sbr.rel (%p680) target = $region36
      $region35: #{res_encoder_forward.16} parent=27 // pred_region
        %v683 = vld [vmem:[#allocation2] sm:$0xff]
        %v684 = vld [vmem:[#allocation2 + $0x8] sm:$0xff]
        %v685 = vld [vmem:[#allocation2 + $0x10] sm:$0xff]
        %v686 = vld [vmem:[#allocation2 + $0x18] sm:$0xff]
        %v687 = vld [vmem:[#allocation2 + $0x20] sm:$0xff]
        %v688 = vld [vmem:[#allocation2 + $0x28] sm:$0xff]
        %v689 = vld [vmem:[#allocation2 + $0x30] sm:$0xff]
        %v690 = vld [vmem:[#allocation2 + $0x38] sm:$0xff]
        %v691 = vld [vmem:[#allocation2 + $0x40] sm:$0xff]
        %v692 = vld [vmem:[#allocation2 + $0x48] sm:$0xff]
        %v693 = vld [vmem:[#allocation2 + $0x50] sm:$0xff]
        %v694 = vld [vmem:[#allocation2 + $0x58] sm:$0xff]
        %v695 = vld [vmem:[#allocation2 + $0x60] sm:$0xff]
        %v696 = vld [vmem:[#allocation2 + $0x68] sm:$0xff]
        %v697 = vld [vmem:[#allocation2 + $0x70] sm:$0xff]
        %v698 = vld [vmem:[#allocation2 + $0x78] sm:$0xff]
        %v699 = vld [vmem:[#allocation2 + $0x80] sm:$0xff]
        %v700 = vld [vmem:[#allocation2 + $0x88] sm:$0xff]
        %v701 = vld [vmem:[#allocation2 + $0x90] sm:$0xff]
        %v702 = vld [vmem:[#allocation2 + $0x98] sm:$0xff]
        %v703 = vld [vmem:[#allocation2 + $0xa0] sm:$0xff]
        %v704 = vld [vmem:[#allocation2 + $0xa8] sm:$0xff]
        %v705 = vld [vmem:[#allocation2 + $0xb0] sm:$0xff]
        %v706 = vld [vmem:[#allocation2 + $0xb8] sm:$0xff]
        %v707 = vld [vmem:[#allocation2 + $0xc0] sm:$0xff]
        %v708 = vld [vmem:[#allocation2 + $0xc8] sm:$0xff]
        %v709 = vld [vmem:[#allocation2 + $0xd0] sm:$0xff]
        %v710 = vld [vmem:[#allocation2 + $0xd8] sm:$0xff]
        %v711 = vld [vmem:[#allocation2 + $0xe0] sm:$0xff]
        %v712 = vld [vmem:[#allocation2 + $0xe8] sm:$0xff]
        %v713 = vld [vmem:[#allocation2 + $0xf0] sm:$0xff]
        %v714 = vld [vmem:[#allocation2 + $0xf8] sm:$0xff]
        %715 = vst.msk [vmem:[%s190] sm:$0xff] %vm647, %v683
        %716 = vst.msk [vmem:[%s190 + $0x8] sm:$0xff] %vm647, %v684
        %717 = vst.msk [vmem:[%s190 + $0x10] sm:$0xff] %vm647, %v685
        %718 = vst.msk [vmem:[%s190 + $0x18] sm:$0xff] %vm647, %v686
        %719 = vst.msk [vmem:[%s190 + $0x20] sm:$0xff] %vm647, %v687
        %720 = vst.msk [vmem:[%s190 + $0x28] sm:$0xff] %vm647, %v688
        %721 = vst.msk [vmem:[%s190 + $0x30] sm:$0xff] %vm647, %v689
        %722 = vst.msk [vmem:[%s190 + $0x38] sm:$0xff] %vm647, %v690
        %723 = vst.msk [vmem:[%s190 + $0x40] sm:$0xff] %vm647, %v691
        %724 = vst.msk [vmem:[%s190 + $0x48] sm:$0xff] %vm647, %v692
        %725 = vst.msk [vmem:[%s190 + $0x50] sm:$0xff] %vm647, %v693
        %726 = vst.msk [vmem:[%s190 + $0x58] sm:$0xff] %vm647, %v694
        %727 = vst.msk [vmem:[%s190 + $0x60] sm:$0xff] %vm647, %v695
        %728 = vst.msk [vmem:[%s190 + $0x68] sm:$0xff] %vm647, %v696
        %729 = vst.msk [vmem:[%s190 + $0x70] sm:$0xff] %vm647, %v697
        %730 = vst.msk [vmem:[%s190 + $0x78] sm:$0xff] %vm647, %v698
        %731 = vst.msk [vmem:[%s190 + $0x80] sm:$0xff] %vm647, %v699
        %732 = vst.msk [vmem:[%s190 + $0x88] sm:$0xff] %vm647, %v700
        %733 = vst.msk [vmem:[%s190 + $0x90] sm:$0xff] %vm647, %v701
        %734 = vst.msk [vmem:[%s190 + $0x98] sm:$0xff] %vm647, %v702
        %735 = vst.msk [vmem:[%s190 + $0xa0] sm:$0xff] %vm647, %v703
        %736 = vst.msk [vmem:[%s190 + $0xa8] sm:$0xff] %vm647, %v704
        %737 = vst.msk [vmem:[%s190 + $0xb0] sm:$0xff] %vm647, %v705
        %738 = vst.msk [vmem:[%s190 + $0xb8] sm:$0xff] %vm647, %v706
        %739 = vst.msk [vmem:[%s190 + $0xc0] sm:$0xff] %vm647, %v707
        %740 = vst.msk [vmem:[%s190 + $0xc8] sm:$0xff] %vm647, %v708
        %741 = vst.msk [vmem:[%s190 + $0xd0] sm:$0xff] %vm647, %v709
        %742 = vst.msk [vmem:[%s190 + $0xd8] sm:$0xff] %vm647, %v710
        %743 = vst.msk [vmem:[%s190 + $0xe0] sm:$0xff] %vm647, %v711
        %744 = vst.msk [vmem:[%s190 + $0xe8] sm:$0xff] %vm647, %v712
        %745 = vst.msk [vmem:[%s190 + $0xf0] sm:$0xff] %vm647, %v713
        %746 = vst.msk [vmem:[%s190 + $0xf8] sm:$0xff] %vm647, %v714
      $region36: #{res_encoder_forward.16} parent=27 // pred_fallthru
        _
      %s747 = smul.u32 32, %s17
      %p748 = scmp.lt.s32.totalorder %s747, 63
      %s749 = scalar_select %p748, %s747, 63
      %s750 = smul.addr %s749, 8
      %s751 = scalar_lea.vmem %s2, %s750
      // Predicated region
      $region37: #{res_encoder_forward.16} parent=27 // pred_check
        %p752 = pneg %p97
      $region38: #{res_encoder_forward.16} parent=27 // pred_check_branch
        %754 = sbr.rel (%p752) target = $region40
      $region39: #{res_encoder_forward.16} parent=27 // pred_region
        %s755 = smul.u32 32, %s17
      $region40: #{res_encoder_forward.16} parent=27 // pred_fallthru
        _
    $region28: #{res_encoder_forward.16} parent=5 // pred_fallthru
      _
    %p756 = scmp.le.s32.totalorder 2, %s8
    // Predicated region
    $region41: #{res_encoder_forward.16} parent=5 // pred_check
      %p757 = pneg %p756
    $region42: #{res_encoder_forward.16} parent=5 // pred_check_branch
      %759 = sbr.rel (%p757) target = $region44
    $region43: #{res_encoder_forward.16} parent=5 // pred_region
      %s760 = ssub.s32 %s8, 2
      // Predicated region
      $region45: #{res_encoder_forward.16} parent=43 // pred_check
        %p761 = pneg %p103
      $region46: #{res_encoder_forward.16} parent=43 // pred_check_branch
        %763 = sbr.rel (%p761) target = $region48
      $region47: #{res_encoder_forward.16} parent=43 // pred_region
        %s764 = smul.u32 32, %s19
        %p765 = scmp.lt.s32.totalorder %s764, 63
        %s766 = scalar_select %p765, %s764, 63
        %s767 = smul.addr %s766, 8
        %s768 = scalar_lea.vmem %s2, %s767
      $region48: #{res_encoder_forward.16} parent=43 // pred_fallthru
        _
    $region44: #{res_encoder_forward.16} parent=5 // pred_fallthru
      _
  $region6: #{res_encoder_forward.16} parent=0 // loop_footer
    %s12 = sadd.s32 1, %s8
  $region7: #{res_encoder_forward.16} parent=0 // loop_footer_branch
    %7 = sbr.rel target = $region3
  $region8: #{res_encoder_forward.16} parent=0 // loop_exit
    _

// kernel: res_encoder_forward.17
$region0: #{res_encoder_forward.17}
  #allocation0 [shape = 'u32[]', space=smem, size = 0x4, offset = 0x4, fixed_abs, tag = 'smem constant byte address 0x4 - core index']
  #allocation1 [shape = 'u32[144,128]{1,0:T(1,128)}', space=vmem, size = 0x12000, scoped, tag = 'internal scratch']
  %s0 = inlined_call_operand.vmem [shape: f32[512,64], index: 0, kind: input, shape index: {}]
  %s1 = inlined_call_operand.vmem [shape: f32[1,64], index: 1, kind: input, shape index: {}]
  %s2 = inlined_call_operand.vmem [shape: f32[1,64], index: 2, kind: input, shape index: {}]
  %s3 = inlined_call_operand.vmem [shape: f32[512,64], index: 3, kind: output, shape index: {}]
  %s4 = sld [smem:[#allocation0]]
  $region45: #{res_encoder_forward.17} parent=0
    _
  %s6 = ssub.s32 1, %s4
  %s7 = scalar_select 0, %s6, %s4
  loop: start=0, step=1, limit=4
  $region2: #{res_encoder_forward.17} parent=0 // loop_pre_header
    _
  $region3: #{res_encoder_forward.17} parent=0 // loop_header
    %s9 = sphi 0, %s13
    %p10 = scmp.ge.s32.totalorder %s9, 4
    %s19 = sphi 0, %s21
    %s22 = sphi 0, %s19
    %s23 = sphi 0, %s22
    %s39 = sphi 0, %s23
    %s43 = sphi 0, %s43
    %s45 = sphi 0, %s43
    %s46 = sphi 0, %s45
    %s60 = sphi 0, %s46
    %s64 = sphi 0, %s64
    %s66 = sphi 0, %s64
    %s67 = sphi 0, %s66
    %s81 = sphi 0, %s67
    %s87 = sphi 0, %s89
    %s90 = sphi 0, %s87
    %s91 = sphi 0, %s90
    %s107 = sphi 0, %s91
  $region4: #{res_encoder_forward.17} parent=0 // loop_header_branch
    %12 = sbr.rel (%p10) target = $region8
  $region5: #{res_encoder_forward.17} parent=0 // loop_body
    %s14 = ssub.s32 %s9, 1
    %s15 = ssub.s32 %s9, 2
    %s16 = sadd.s32 %s9, 1
    %s17 = ssub.s32 %s9, %s16
    %p18 = scmp.eq.s32.totalorder %s17, 0
    %s20 = sadd.s32 %s19, 1
    %s21 = scalar_select %p18, %s19, %s20
    %p24 = pneg %p18
    %p25 = scmp.eq.s32.totalorder %s9, 1
    %p26 = por %p24, %p25
    %p27 = scmp.ne.s32.totalorder %s19, %s22
    %p28 = scmp.eq.s32.totalorder %s9, 0
    %p29 = por %p27, %p28
    %p30 = scmp.ne.s32.totalorder %s19, %s22
    %p31 = scmp.eq.s32.totalorder %s14, 1
    %p32 = por %p30, %p31
    %p33 = scmp.ne.s32.totalorder %s22, %s23
    %p34 = scmp.eq.s32.totalorder %s14, 0
    %p35 = por %p33, %p34
    %p36 = scmp.ne.s32.totalorder %s22, %s23
    %p37 = scmp.eq.s32.totalorder %s15, 1
    %p38 = por %p36, %p37
    %p40 = scmp.ne.s32.totalorder %s23, %s39
    %p41 = scmp.eq.s32.totalorder %s15, 0
    %p42 = por %p40, %p41
    %s44 = sadd.s32 %s43, 1
    %p47 = scmp.eq.s32.totalorder %s9, 1
    %p48 = scmp.ne.s32.totalorder %s43, %s45
    %p49 = scmp.eq.s32.totalorder %s9, 0
    %p50 = por %p48, %p49
    %p51 = scmp.ne.s32.totalorder %s43, %s45
    %p52 = scmp.eq.s32.totalorder %s14, 1
    %p53 = por %p51, %p52
    %p54 = scmp.ne.s32.totalorder %s45, %s46
    %p55 = scmp.eq.s32.totalorder %s14, 0
    %p56 = por %p54, %p55
    %p57 = scmp.ne.s32.totalorder %s45, %s46
    %p58 = scmp.eq.s32.totalorder %s15, 1
    %p59 = por %p57, %p58
    %p61 = scmp.ne.s32.totalorder %s46, %s60
    %p62 = scmp.eq.s32.totalorder %s15, 0
    %p63 = por %p61, %p62
    %s65 = sadd.s32 %s64, 1
    %p68 = scmp.eq.s32.totalorder %s9, 1
    %p69 = scmp.ne.s32.totalorder %s64, %s66
    %p70 = scmp.eq.s32.totalorder %s9, 0
    %p71 = por %p69, %p70
    %p72 = scmp.ne.s32.totalorder %s64, %s66
    %p73 = scmp.eq.s32.totalorder %s14, 1
    %p74 = por %p72, %p73
    %p75 = scmp.ne.s32.totalorder %s66, %s67
    %p76 = scmp.eq.s32.totalorder %s14, 0
    %p77 = por %p75, %p76
    %p78 = scmp.ne.s32.totalorder %s66, %s67
    %p79 = scmp.eq.s32.totalorder %s15, 1
    %p80 = por %p78, %p79
    %p82 = scmp.ne.s32.totalorder %s67, %s81
    %p83 = scmp.eq.s32.totalorder %s15, 0
    %p84 = por %p82, %p83
    %s85 = ssub.s32 %s9, %s16
    %p86 = scmp.eq.s32.totalorder %s85, 0
    %s88 = sadd.s32 %s87, 1
    %s89 = scalar_select %p86, %s87, %s88
    %p92 = pneg %p86
    %p93 = scmp.eq.s32.totalorder %s9, 1
    %p94 = por %p92, %p93
    %p95 = scmp.ne.s32.totalorder %s87, %s90
    %p96 = scmp.eq.s32.totalorder %s9, 0
    %p97 = por %p95, %p96
    %p98 = scmp.ne.s32.totalorder %s87, %s90
    %p99 = scmp.eq.s32.totalorder %s14, 1
    %p100 = por %p98, %p99
    %p101 = scmp.ne.s32.totalorder %s90, %s91
    %p102 = scmp.eq.s32.totalorder %s14, 0
    %p103 = por %p101, %p102
    %p104 = scmp.ne.s32.totalorder %s90, %s91
    %p105 = scmp.eq.s32.totalorder %s15, 1
    %p106 = por %p104, %p105
    %p108 = scmp.ne.s32.totalorder %s91, %s107
    %p109 = scmp.eq.s32.totalorder %s15, 0
    %p110 = por %p108, %p109
    %p111 = scmp.le.s32.totalorder 1, %s9
    %p112 = scmp.lt.s32.totalorder %s9, 3
    %p113 = pnand %p111, %p112
    %p114 = pneg %p113
    // Predicated region
    $region9: #{res_encoder_forward.17} parent=5 // pred_check
      _
    $region10: #{res_encoder_forward.17} parent=5 // pred_check_branch
      %116 = sbr.rel (%p113) target = $region12
    $region11: #{res_encoder_forward.17} parent=5 // pred_region
      %s117 = ssub.s32 %s9, 1
      // Predicated region
      $region13: #{res_encoder_forward.17} parent=11 // pred_check
        %p118 = pneg %p56
      $region14: #{res_encoder_forward.17} parent=11 // pred_check_branch
        %120 = sbr.rel (%p118) target = $region16
      $region15: #{res_encoder_forward.17} parent=11 // pred_region
        _
      $region16: #{res_encoder_forward.17} parent=11 // pred_fallthru
        _
      // Predicated region
      $region17: #{res_encoder_forward.17} parent=11 // pred_check
        %p121 = pneg %p77
      $region18: #{res_encoder_forward.17} parent=11 // pred_check_branch
        %123 = sbr.rel (%p121) target = $region20
      $region19: #{res_encoder_forward.17} parent=11 // pred_region
        _
      $region20: #{res_encoder_forward.17} parent=11 // pred_fallthru
        _
    $region12: #{res_encoder_forward.17} parent=5 // pred_fallthru
      _
    %p124 = scmp.lt.s32.totalorder %s9, 2
    // Predicated region
    $region21: #{res_encoder_forward.17} parent=5 // pred_check
      %p125 = pneg %p124
    $region22: #{res_encoder_forward.17} parent=5 // pred_check_branch
      %127 = sbr.rel (%p125) target = $region24
    $region23: #{res_encoder_forward.17} parent=5 // pred_region
      // Predicated region
      $region25: #{res_encoder_forward.17} parent=23 // pred_check
        %p128 = pneg %p29
      $region26: #{res_encoder_forward.17} parent=23 // pred_check_branch
        %130 = sbr.rel (%p128) target = $region28
      $region27: #{res_encoder_forward.17} parent=23 // pred_region
        %s131 = smul.u32 32, %s9
        %p132 = scmp.lt.s32.totalorder %s131, 63
        %s133 = scalar_select %p132, %s131, 63
        %s134 = smul.addr %s133, 8
        %s135 = scalar_lea.vmem %s0, %s134
        %s136 = smul.u32 32, %s9
      $region28: #{res_encoder_forward.17} parent=23 // pred_fallthru
        _
    $region24: #{res_encoder_forward.17} parent=5 // pred_fallthru
      _
    %p137 = scmp.le.s32.totalorder 1, %s9
    %p138 = scmp.lt.s32.totalorder %s9, 3
    %p139 = pnand %p137, %p138
    %p140 = pneg %p139
    // Predicated region
    $region29: #{res_encoder_forward.17} parent=5 // pred_check
      _
    $region30: #{res_encoder_forward.17} parent=5 // pred_check_branch
      %142 = sbr.rel (%p139) target = $region32
    $region31: #{res_encoder_forward.17} parent=5 // pred_region
      %s143 = ssub.s32 %s9, 1
      %s144 = smul.u32 32, %s14
      %p145 = scmp.lt.s32.totalorder %s144, 63
      %s146 = scalar_select %p145, %s144, 63
      %s147 = smul.addr %s146, 8
      %s148 = scalar_lea.vmem %s0, %s147
      %p149 = pneg %p35
      %p150 = pneg %p32
      %p151 = pneg %p56
      %p152 = pneg %p53
      %p153 = pneg %p77
      %p154 = pneg %p74
      %p155 = pneg %p103
      %p156 = pneg %p100
      %s157 = smul.u32 32, %s14
      %p158 = scmp.lt.s32.totalorder %s157, 63
      %s159 = scalar_select %p158, %s157, 63
      %s160 = smul.addr %s159, 8
      %s161 = scalar_lea.vmem %s3, %s160
      %s162 = smul.u32 32, %s14
      %p163 = scmp.lt.s32.totalorder %s162, 63
      %s164 = scalar_select %p163, %s162, 63
      %s165 = smul.addr %s164, 8
      %s166 = scalar_lea.vmem %s0, %s165
      %s167 = smul.u32 32, %s14
      %s168 = smul.u32 32, %s14
      %p169 = scmp.lt.s32.totalorder %s168, 63
      %s170 = scalar_select %p169, %s168, 63
      %s171 = smul.addr %s170, 8
      %s172 = scalar_lea.vmem %s3, %s171
      %s173 = smul.u32 32, %s14
      %v174 = vld [vmem:[%s166] sm:$0xff]
      %v175 = vld [vmem:[%s166 + $0x8] sm:$0xff]
      %v176 = vld [vmem:[%s166 + $0x10] sm:$0xff]
      %v177 = vld [vmem:[%s166 + $0x18] sm:$0xff]
      %v178 = vld [vmem:[%s166 + $0x20] sm:$0xff]
      %v179 = vld [vmem:[%s166 + $0x28] sm:$0xff]
      %v180 = vld [vmem:[%s166 + $0x30] sm:$0xff]
      %v181 = vld [vmem:[%s166 + $0x38] sm:$0xff]
      %v182 = vld [vmem:[%s166 + $0x40] sm:$0xff]
      %v183 = vld [vmem:[%s166 + $0x48] sm:$0xff]
      %v184 = vld [vmem:[%s166 + $0x50] sm:$0xff]
      %v185 = vld [vmem:[%s166 + $0x58] sm:$0xff]
      %v186 = vld [vmem:[%s166 + $0x60] sm:$0xff]
      %v187 = vld [vmem:[%s166 + $0x68] sm:$0xff]
      %v188 = vld [vmem:[%s166 + $0x70] sm:$0xff]
      %v189 = vld [vmem:[%s166 + $0x78] sm:$0xff]
      %v190 = vld [vmem:[%s166 + $0x80] sm:$0xff]
      %v191 = vld [vmem:[%s166 + $0x88] sm:$0xff]
      %v192 = vld [vmem:[%s166 + $0x90] sm:$0xff]
      %v193 = vld [vmem:[%s166 + $0x98] sm:$0xff]
      %v194 = vld [vmem:[%s166 + $0xa0] sm:$0xff]
      %v195 = vld [vmem:[%s166 + $0xa8] sm:$0xff]
      %v196 = vld [vmem:[%s166 + $0xb0] sm:$0xff]
      %v197 = vld [vmem:[%s166 + $0xb8] sm:$0xff]
      %v198 = vld [vmem:[%s166 + $0xc0] sm:$0xff]
      %v199 = vld [vmem:[%s166 + $0xc8] sm:$0xff]
      %v200 = vld [vmem:[%s166 + $0xd0] sm:$0xff]
      %v201 = vld [vmem:[%s166 + $0xd8] sm:$0xff]
      %v202 = vld [vmem:[%s166 + $0xe0] sm:$0xff]
      %v203 = vld [vmem:[%s166 + $0xe8] sm:$0xff]
      %v204 = vld [vmem:[%s166 + $0xf0] sm:$0xff]
      %v205 = vld [vmem:[%s166 + $0xf8] sm:$0xff]
      %v206 = vld [vmem:[%s1] sm:$0x1]
      %v208 = vlaneseq
      %v209 = vshrl.u32 %v208, 7
      %v210 = vsub.s32 0, %v209
      %v211 = vrot.slane %v206, %v210
      %v213 = vmul.f32 %v174, %v211
      %v214 = vmul.f32 %v175, %v211
      %v215 = vmul.f32 %v176, %v211
      %v216 = vmul.f32 %v177, %v211
      %v217 = vmul.f32 %v178, %v211
      %v218 = vmul.f32 %v179, %v211
      %v219 = vmul.f32 %v180, %v211
      %v220 = vmul.f32 %v181, %v211
      %v221 = vmul.f32 %v182, %v211
      %v222 = vmul.f32 %v183, %v211
      %v223 = vmul.f32 %v184, %v211
      %v224 = vmul.f32 %v185, %v211
      %v225 = vmul.f32 %v186, %v211
      %v226 = vmul.f32 %v187, %v211
      %v227 = vmul.f32 %v188, %v211
      %v228 = vmul.f32 %v189, %v211
      %v229 = vmul.f32 %v190, %v211
      %v230 = vmul.f32 %v191, %v211
      %v231 = vmul.f32 %v192, %v211
      %v232 = vmul.f32 %v193, %v211
      %v233 = vmul.f32 %v194, %v211
      %v234 = vmul.f32 %v195, %v211
      %v235 = vmul.f32 %v196, %v211
      %v236 = vmul.f32 %v197, %v211
      %v237 = vmul.f32 %v198, %v211
      %v238 = vmul.f32 %v199, %v211
      %v239 = vmul.f32 %v200, %v211
      %v240 = vmul.f32 %v201, %v211
      %v241 = vmul.f32 %v202, %v211
      %v242 = vmul.f32 %v203, %v211
      %v243 = vmul.f32 %v204, %v211
      %v244 = vmul.f32 %v205, %v211
      %v245 = vld [vmem:[%s2] sm:$0x1]
      %v247 = vlaneseq
      %v248 = vshrl.u32 %v247, 7
      %v249 = vsub.s32 0, %v248
      %v250 = vrot.slane %v245, %v249
      %v252 = vadd.f32 %v213, %v250
      %v253 = vadd.f32 %v214, %v250
      %v254 = vadd.f32 %v215, %v250
      %v255 = vadd.f32 %v216, %v250
      %v256 = vadd.f32 %v217, %v250
      %v257 = vadd.f32 %v218, %v250
      %v258 = vadd.f32 %v219, %v250
      %v259 = vadd.f32 %v220, %v250
      %v260 = vadd.f32 %v221, %v250
      %v261 = vadd.f32 %v222, %v250
      %v262 = vadd.f32 %v223, %v250
      %v263 = vadd.f32 %v224, %v250
      %v264 = vadd.f32 %v225, %v250
      %v265 = vadd.f32 %v226, %v250
      %v266 = vadd.f32 %v227, %v250
      %v267 = vadd.f32 %v228, %v250
      %v268 = vadd.f32 %v229, %v250
      %v269 = vadd.f32 %v230, %v250
      %v270 = vadd.f32 %v231, %v250
      %v271 = vadd.f32 %v232, %v250
      %v272 = vadd.f32 %v233, %v250
      %v273 = vadd.f32 %v234, %v250
      %v274 = vadd.f32 %v235, %v250
      %v275 = vadd.f32 %v236, %v250
      %v276 = vadd.f32 %v237, %v250
      %v277 = vadd.f32 %v238, %v250
      %v278 = vadd.f32 %v239, %v250
      %v279 = vadd.f32 %v240, %v250
      %v280 = vadd.f32 %v241, %v250
      %v281 = vadd.f32 %v242, %v250
      %v282 = vadd.f32 %v243, %v250
      %v283 = vadd.f32 %v244, %v250
      %vm284 = vcmp.ge.f32.partialorder %v252, 0.0
      %vm285 = vcmp.ge.f32.partialorder %v253, 0.0
      %vm286 = vcmp.ge.f32.partialorder %v254, 0.0
      %vm287 = vcmp.ge.f32.partialorder %v255, 0.0
      %vm288 = vcmp.ge.f32.partialorder %v256, 0.0
      %vm289 = vcmp.ge.f32.partialorder %v257, 0.0
      %vm290 = vcmp.ge.f32.partialorder %v258, 0.0
      %vm291 = vcmp.ge.f32.partialorder %v259, 0.0
      %vm292 = vcmp.ge.f32.partialorder %v260, 0.0
      %vm293 = vcmp.ge.f32.partialorder %v261, 0.0
      %vm294 = vcmp.ge.f32.partialorder %v262, 0.0
      %vm295 = vcmp.ge.f32.partialorder %v263, 0.0
      %vm296 = vcmp.ge.f32.partialorder %v264, 0.0
      %vm297 = vcmp.ge.f32.partialorder %v265, 0.0
      %vm298 = vcmp.ge.f32.partialorder %v266, 0.0
      %vm299 = vcmp.ge.f32.partialorder %v267, 0.0
      %vm300 = vcmp.ge.f32.partialorder %v268, 0.0
      %vm301 = vcmp.ge.f32.partialorder %v269, 0.0
      %vm302 = vcmp.ge.f32.partialorder %v270, 0.0
      %vm303 = vcmp.ge.f32.partialorder %v271, 0.0
      %vm304 = vcmp.ge.f32.partialorder %v272, 0.0
      %vm305 = vcmp.ge.f32.partialorder %v273, 0.0
      %vm306 = vcmp.ge.f32.partialorder %v274, 0.0
      %vm307 = vcmp.ge.f32.partialorder %v275, 0.0
      %vm308 = vcmp.ge.f32.partialorder %v276, 0.0
      %vm309 = vcmp.ge.f32.partialorder %v277, 0.0
      %vm310 = vcmp.ge.f32.partialorder %v278, 0.0
      %vm311 = vcmp.ge.f32.partialorder %v279, 0.0
      %vm312 = vcmp.ge.f32.partialorder %v280, 0.0
      %vm313 = vcmp.ge.f32.partialorder %v281, 0.0
      %vm314 = vcmp.ge.f32.partialorder %v282, 0.0
      %vm315 = vcmp.ge.f32.partialorder %v283, 0.0
      %v316 = vmul.f32 %v252, 0.1
      %v317 = vmul.f32 %v253, 0.1
      %v318 = vmul.f32 %v254, 0.1
      %v319 = vmul.f32 %v255, 0.1
      %v320 = vmul.f32 %v256, 0.1
      %v321 = vmul.f32 %v257, 0.1
      %v322 = vmul.f32 %v258, 0.1
      %v323 = vmul.f32 %v259, 0.1
      %v324 = vmul.f32 %v260, 0.1
      %v325 = vmul.f32 %v261, 0.1
      %v326 = vmul.f32 %v262, 0.1
      %v327 = vmul.f32 %v263, 0.1
      %v328 = vmul.f32 %v264, 0.1
      %v329 = vmul.f32 %v265, 0.1
      %v330 = vmul.f32 %v266, 0.1
      %v331 = vmul.f32 %v267, 0.1
      %v332 = vmul.f32 %v268, 0.1
      %v333 = vmul.f32 %v269, 0.1
      %v334 = vmul.f32 %v270, 0.1
      %v335 = vmul.f32 %v271, 0.1
      %v336 = vmul.f32 %v272, 0.1
      %v337 = vmul.f32 %v273, 0.1
      %v338 = vmul.f32 %v274, 0.1
      %v339 = vmul.f32 %v275, 0.1
      %v340 = vmul.f32 %v276, 0.1
      %v341 = vmul.f32 %v277, 0.1
      %v342 = vmul.f32 %v278, 0.1
      %v343 = vmul.f32 %v279, 0.1
      %v344 = vmul.f32 %v280, 0.1
      %v345 = vmul.f32 %v281, 0.1
      %v346 = vmul.f32 %v282, 0.1
      %v347 = vmul.f32 %v283, 0.1
      %v348 = vsel %vm284, %v252, %v316
      %v349 = vsel %vm285, %v253, %v317
      %v350 = vsel %vm286, %v254, %v318
      %v351 = vsel %vm287, %v255, %v319
      %v352 = vsel %vm288, %v256, %v320
      %v353 = vsel %vm289, %v257, %v321
      %v354 = vsel %vm290, %v258, %v322
      %v355 = vsel %vm291, %v259, %v323
      %v356 = vsel %vm292, %v260, %v324
      %v357 = vsel %vm293, %v261, %v325
      %v358 = vsel %vm294, %v262, %v326
      %v359 = vsel %vm295, %v263, %v327
      %v360 = vsel %vm296, %v264, %v328
      %v361 = vsel %vm297, %v265, %v329
      %v362 = vsel %vm298, %v266, %v330
      %v363 = vsel %vm299, %v267, %v331
      %v364 = vsel %vm300, %v268, %v332
      %v365 = vsel %vm301, %v269, %v333
      %v366 = vsel %vm302, %v270, %v334
      %v367 = vsel %vm303, %v271, %v335
      %v368 = vsel %vm304, %v272, %v336
      %v369 = vsel %vm305, %v273, %v337
      %v370 = vsel %vm306, %v274, %v338
      %v371 = vsel %vm307, %v275, %v339
      %v372 = vsel %vm308, %v276, %v340
      %v373 = vsel %vm309, %v277, %v341
      %v374 = vsel %vm310, %v278, %v342
      %v375 = vsel %vm311, %v279, %v343
      %v376 = vsel %vm312, %v280, %v344
      %v377 = vsel %vm313, %v281, %v345
      %v378 = vsel %vm314, %v282, %v346
      %v379 = vsel %vm315, %v283, %v347
      %vm380 = vcmask 523264
      %381 = vst.msk [vmem:[%s172] sm:$0xff] %vm380, %v348
      %382 = vst.msk [vmem:[%s172 + $0x8] sm:$0xff] %vm380, %v349
      %383 = vst.msk [vmem:[%s172 + $0x10] sm:$0xff] %vm380, %v350
      %384 = vst.msk [vmem:[%s172 + $0x18] sm:$0xff] %vm380, %v351
      %385 = vst.msk [vmem:[%s172 + $0x20] sm:$0xff] %vm380, %v352
      %386 = vst.msk [vmem:[%s172 + $0x28] sm:$0xff] %vm380, %v353
      %387 = vst.msk [vmem:[%s172 + $0x30] sm:$0xff] %vm380, %v354
      %388 = vst.msk [vmem:[%s172 + $0x38] sm:$0xff] %vm380, %v355
      %389 = vst.msk [vmem:[%s172 + $0x40] sm:$0xff] %vm380, %v356
      %390 = vst.msk [vmem:[%s172 + $0x48] sm:$0xff] %vm380, %v357
      %391 = vst.msk [vmem:[%s172 + $0x50] sm:$0xff] %vm380, %v358
      %392 = vst.msk [vmem:[%s172 + $0x58] sm:$0xff] %vm380, %v359
      %393 = vst.msk [vmem:[%s172 + $0x60] sm:$0xff] %vm380, %v360
      %394 = vst.msk [vmem:[%s172 + $0x68] sm:$0xff] %vm380, %v361
      %395 = vst.msk [vmem:[%s172 + $0x70] sm:$0xff] %vm380, %v362
      %396 = vst.msk [vmem:[%s172 + $0x78] sm:$0xff] %vm380, %v363
      %397 = vst.msk [vmem:[%s172 + $0x80] sm:$0xff] %vm380, %v364
      %398 = vst.msk [vmem:[%s172 + $0x88] sm:$0xff] %vm380, %v365
      %399 = vst.msk [vmem:[%s172 + $0x90] sm:$0xff] %vm380, %v366
      %400 = vst.msk [vmem:[%s172 + $0x98] sm:$0xff] %vm380, %v367
      %401 = vst.msk [vmem:[%s172 + $0xa0] sm:$0xff] %vm380, %v368
      %402 = vst.msk [vmem:[%s172 + $0xa8] sm:$0xff] %vm380, %v369
      %403 = vst.msk [vmem:[%s172 + $0xb0] sm:$0xff] %vm380, %v370
      %404 = vst.msk [vmem:[%s172 + $0xb8] sm:$0xff] %vm380, %v371
      %405 = vst.msk [vmem:[%s172 + $0xc0] sm:$0xff] %vm380, %v372
      %406 = vst.msk [vmem:[%s172 + $0xc8] sm:$0xff] %vm380, %v373
      %407 = vst.msk [vmem:[%s172 + $0xd0] sm:$0xff] %vm380, %v374
      %408 = vst.msk [vmem:[%s172 + $0xd8] sm:$0xff] %vm380, %v375
      %409 = vst.msk [vmem:[%s172 + $0xe0] sm:$0xff] %vm380, %v376
      %410 = vst.msk [vmem:[%s172 + $0xe8] sm:$0xff] %vm380, %v377
      %411 = vst.msk [vmem:[%s172 + $0xf0] sm:$0xff] %vm380, %v378
      %412 = vst.msk [vmem:[%s172 + $0xf8] sm:$0xff] %vm380, %v379
      %s413 = smul.u32 32, %s14
      %p414 = scmp.lt.s32.totalorder %s413, 63
      %s415 = scalar_select %p414, %s413, 63
      %s416 = smul.addr %s415, 8
      %s417 = scalar_lea.vmem %s3, %s416
      // Predicated region
      $region33: #{res_encoder_forward.17} parent=31 // pred_check
        %p418 = pneg %p100
      $region34: #{res_encoder_forward.17} parent=31 // pred_check_branch
        %420 = sbr.rel (%p418) target = $region36
      $region35: #{res_encoder_forward.17} parent=31 // pred_region
        %s421 = smul.u32 32, %s14
      $region36: #{res_encoder_forward.17} parent=31 // pred_fallthru
        _
    $region32: #{res_encoder_forward.17} parent=5 // pred_fallthru
      _
    %p422 = scmp.le.s32.totalorder 2, %s9
    // Predicated region
    $region37: #{res_encoder_forward.17} parent=5 // pred_check
      %p423 = pneg %p422
    $region38: #{res_encoder_forward.17} parent=5 // pred_check_branch
      %425 = sbr.rel (%p423) target = $region40
    $region39: #{res_encoder_forward.17} parent=5 // pred_region
      %s426 = ssub.s32 %s9, 2
      // Predicated region
      $region41: #{res_encoder_forward.17} parent=39 // pred_check
        %p427 = pneg %p106
      $region42: #{res_encoder_forward.17} parent=39 // pred_check_branch
        %429 = sbr.rel (%p427) target = $region44
      $region43: #{res_encoder_forward.17} parent=39 // pred_region
        %s430 = smul.u32 32, %s15
        %p431 = scmp.lt.s32.totalorder %s430, 63
        %s432 = scalar_select %p431, %s430, 63
        %s433 = smul.addr %s432, 8
        %s434 = scalar_lea.vmem %s3, %s433
      $region44: #{res_encoder_forward.17} parent=39 // pred_fallthru
        _
    $region40: #{res_encoder_forward.17} parent=5 // pred_fallthru
      _
  $region6: #{res_encoder_forward.17} parent=0 // loop_footer
    %s13 = sadd.s32 1, %s9
  $region7: #{res_encoder_forward.17} parent=0 // loop_footer_branch
    %8 = sbr.rel target = $region3
  $region8: #{res_encoder_forward.17} parent=0 // loop_exit
    _

// kernel: res_encoder_forward.20
$region0: #{res_encoder_forward.20}
  #allocation0 [shape = 'u32[]', space=smem, size = 0x4, offset = 0x4, fixed_abs, tag = 'smem constant byte address 0x4 - core index']
  #allocation1 [shape = 'u32[144,128]{1,0:T(1,128)}', space=vmem, size = 0x12000, scoped, tag = 'internal scratch']
  %s0 = inlined_call_operand.vmem [shape: f32[512,64], index: 0, kind: input, shape index: {}]
  %s1 = inlined_call_operand.vmem [shape: f32[1,64], index: 1, kind: input, shape index: {}]
  %s2 = inlined_call_operand.vmem [shape: f32[1,64], index: 2, kind: input, shape index: {}]
  %s3 = inlined_call_operand.vmem [shape: f32[512,64], index: 3, kind: input, shape index: {}]
  %s4 = inlined_call_operand.vmem [shape: f32[1,64], index: 4, kind: input, shape index: {}]
  %s5 = inlined_call_operand.vmem [shape: f32[1,64], index: 5, kind: input, shape index: {}]
  %s6 = inlined_call_operand.vmem [shape: f32[512,64], index: 6, kind: output, shape index: {}]
  %s7 = sld [smem:[#allocation0]]
  $region57: #{res_encoder_forward.20} parent=0
    _
  %s9 = ssub.s32 1, %s7
  %s10 = scalar_select 0, %s9, %s7
  loop: start=0, step=1, limit=4
  $region2: #{res_encoder_forward.20} parent=0 // loop_pre_header
    _
  $region3: #{res_encoder_forward.20} parent=0 // loop_header
    %s12 = sphi 0, %s16
    %p13 = scmp.ge.s32.totalorder %s12, 4
    %s22 = sphi 0, %s24
    %s25 = sphi 0, %s22
    %s26 = sphi 0, %s25
    %s42 = sphi 0, %s26
    %s46 = sphi 0, %s46
    %s48 = sphi 0, %s46
    %s49 = sphi 0, %s48
    %s63 = sphi 0, %s49
    %s67 = sphi 0, %s67
    %s69 = sphi 0, %s67
    %s70 = sphi 0, %s69
    %s84 = sphi 0, %s70
    %s90 = sphi 0, %s92
    %s93 = sphi 0, %s90
    %s94 = sphi 0, %s93
    %s110 = sphi 0, %s94
    %s114 = sphi 0, %s114
    %s116 = sphi 0, %s114
    %s117 = sphi 0, %s116
    %s131 = sphi 0, %s117
    %s135 = sphi 0, %s135
    %s137 = sphi 0, %s135
    %s138 = sphi 0, %s137
    %s152 = sphi 0, %s138
    %s158 = sphi 0, %s160
    %s161 = sphi 0, %s158
    %s162 = sphi 0, %s161
    %s178 = sphi 0, %s162
  $region4: #{res_encoder_forward.20} parent=0 // loop_header_branch
    %15 = sbr.rel (%p13) target = $region8
  $region5: #{res_encoder_forward.20} parent=0 // loop_body
    %s17 = ssub.s32 %s12, 1
    %s18 = ssub.s32 %s12, 2
    %s19 = sadd.s32 %s12, 1
    %s20 = ssub.s32 %s12, %s19
    %p21 = scmp.eq.s32.totalorder %s20, 0
    %s23 = sadd.s32 %s22, 1
    %s24 = scalar_select %p21, %s22, %s23
    %p27 = pneg %p21
    %p28 = scmp.eq.s32.totalorder %s12, 1
    %p29 = por %p27, %p28
    %p30 = scmp.ne.s32.totalorder %s22, %s25
    %p31 = scmp.eq.s32.totalorder %s12, 0
    %p32 = por %p30, %p31
    %p33 = scmp.ne.s32.totalorder %s22, %s25
    %p34 = scmp.eq.s32.totalorder %s17, 1
    %p35 = por %p33, %p34
    %p36 = scmp.ne.s32.totalorder %s25, %s26
    %p37 = scmp.eq.s32.totalorder %s17, 0
    %p38 = por %p36, %p37
    %p39 = scmp.ne.s32.totalorder %s25, %s26
    %p40 = scmp.eq.s32.totalorder %s18, 1
    %p41 = por %p39, %p40
    %p43 = scmp.ne.s32.totalorder %s26, %s42
    %p44 = scmp.eq.s32.totalorder %s18, 0
    %p45 = por %p43, %p44
    %s47 = sadd.s32 %s46, 1
    %p50 = scmp.eq.s32.totalorder %s12, 1
    %p51 = scmp.ne.s32.totalorder %s46, %s48
    %p52 = scmp.eq.s32.totalorder %s12, 0
    %p53 = por %p51, %p52
    %p54 = scmp.ne.s32.totalorder %s46, %s48
    %p55 = scmp.eq.s32.totalorder %s17, 1
    %p56 = por %p54, %p55
    %p57 = scmp.ne.s32.totalorder %s48, %s49
    %p58 = scmp.eq.s32.totalorder %s17, 0
    %p59 = por %p57, %p58
    %p60 = scmp.ne.s32.totalorder %s48, %s49
    %p61 = scmp.eq.s32.totalorder %s18, 1
    %p62 = por %p60, %p61
    %p64 = scmp.ne.s32.totalorder %s49, %s63
    %p65 = scmp.eq.s32.totalorder %s18, 0
    %p66 = por %p64, %p65
    %s68 = sadd.s32 %s67, 1
    %p71 = scmp.eq.s32.totalorder %s12, 1
    %p72 = scmp.ne.s32.totalorder %s67, %s69
    %p73 = scmp.eq.s32.totalorder %s12, 0
    %p74 = por %p72, %p73
    %p75 = scmp.ne.s32.totalorder %s67, %s69
    %p76 = scmp.eq.s32.totalorder %s17, 1
    %p77 = por %p75, %p76
    %p78 = scmp.ne.s32.totalorder %s69, %s70
    %p79 = scmp.eq.s32.totalorder %s17, 0
    %p80 = por %p78, %p79
    %p81 = scmp.ne.s32.totalorder %s69, %s70
    %p82 = scmp.eq.s32.totalorder %s18, 1
    %p83 = por %p81, %p82
    %p85 = scmp.ne.s32.totalorder %s70, %s84
    %p86 = scmp.eq.s32.totalorder %s18, 0
    %p87 = por %p85, %p86
    %s88 = ssub.s32 %s12, %s19
    %p89 = scmp.eq.s32.totalorder %s88, 0
    %s91 = sadd.s32 %s90, 1
    %s92 = scalar_select %p89, %s90, %s91
    %p95 = pneg %p89
    %p96 = scmp.eq.s32.totalorder %s12, 1
    %p97 = por %p95, %p96
    %p98 = scmp.ne.s32.totalorder %s90, %s93
    %p99 = scmp.eq.s32.totalorder %s12, 0
    %p100 = por %p98, %p99
    %p101 = scmp.ne.s32.totalorder %s90, %s93
    %p102 = scmp.eq.s32.totalorder %s17, 1
    %p103 = por %p101, %p102
    %p104 = scmp.ne.s32.totalorder %s93, %s94
    %p105 = scmp.eq.s32.totalorder %s17, 0
    %p106 = por %p104, %p105
    %p107 = scmp.ne.s32.totalorder %s93, %s94
    %p108 = scmp.eq.s32.totalorder %s18, 1
    %p109 = por %p107, %p108
    %p111 = scmp.ne.s32.totalorder %s94, %s110
    %p112 = scmp.eq.s32.totalorder %s18, 0
    %p113 = por %p111, %p112
    %s115 = sadd.s32 %s114, 1
    %p118 = scmp.eq.s32.totalorder %s12, 1
    %p119 = scmp.ne.s32.totalorder %s114, %s116
    %p120 = scmp.eq.s32.totalorder %s12, 0
    %p121 = por %p119, %p120
    %p122 = scmp.ne.s32.totalorder %s114, %s116
    %p123 = scmp.eq.s32.totalorder %s17, 1
    %p124 = por %p122, %p123
    %p125 = scmp.ne.s32.totalorder %s116, %s117
    %p126 = scmp.eq.s32.totalorder %s17, 0
    %p127 = por %p125, %p126
    %p128 = scmp.ne.s32.totalorder %s116, %s117
    %p129 = scmp.eq.s32.totalorder %s18, 1
    %p130 = por %p128, %p129
    %p132 = scmp.ne.s32.totalorder %s117, %s131
    %p133 = scmp.eq.s32.totalorder %s18, 0
    %p134 = por %p132, %p133
    %s136 = sadd.s32 %s135, 1
    %p139 = scmp.eq.s32.totalorder %s12, 1
    %p140 = scmp.ne.s32.totalorder %s135, %s137
    %p141 = scmp.eq.s32.totalorder %s12, 0
    %p142 = por %p140, %p141
    %p143 = scmp.ne.s32.totalorder %s135, %s137
    %p144 = scmp.eq.s32.totalorder %s17, 1
    %p145 = por %p143, %p144
    %p146 = scmp.ne.s32.totalorder %s137, %s138
    %p147 = scmp.eq.s32.totalorder %s17, 0
    %p148 = por %p146, %p147
    %p149 = scmp.ne.s32.totalorder %s137, %s138
    %p150 = scmp.eq.s32.totalorder %s18, 1
    %p151 = por %p149, %p150
    %p153 = scmp.ne.s32.totalorder %s138, %s152
    %p154 = scmp.eq.s32.totalorder %s18, 0
    %p155 = por %p153, %p154
    %s156 = ssub.s32 %s12, %s19
    %p157 = scmp.eq.s32.totalorder %s156, 0
    %s159 = sadd.s32 %s158, 1
    %s160 = scalar_select %p157, %s158, %s159
    %p163 = pneg %p157
    %p164 = scmp.eq.s32.totalorder %s12, 1
    %p165 = por %p163, %p164
    %p166 = scmp.ne.s32.totalorder %s158, %s161
    %p167 = scmp.eq.s32.totalorder %s12, 0
    %p168 = por %p166, %p167
    %p169 = scmp.ne.s32.totalorder %s158, %s161
    %p170 = scmp.eq.s32.totalorder %s17, 1
    %p171 = por %p169, %p170
    %p172 = scmp.ne.s32.totalorder %s161, %s162
    %p173 = scmp.eq.s32.totalorder %s17, 0
    %p174 = por %p172, %p173
    %p175 = scmp.ne.s32.totalorder %s161, %s162
    %p176 = scmp.eq.s32.totalorder %s18, 1
    %p177 = por %p175, %p176
    %p179 = scmp.ne.s32.totalorder %s162, %s178
    %p180 = scmp.eq.s32.totalorder %s18, 0
    %p181 = por %p179, %p180
    %p182 = scmp.le.s32.totalorder 1, %s12
    %p183 = scmp.lt.s32.totalorder %s12, 3
    %p184 = pnand %p182, %p183
    %p185 = pneg %p184
    // Predicated region
    $region9: #{res_encoder_forward.20} parent=5 // pred_check
      _
    $region10: #{res_encoder_forward.20} parent=5 // pred_check_branch
      %187 = sbr.rel (%p184) target = $region12
    $region11: #{res_encoder_forward.20} parent=5 // pred_region
      %s188 = ssub.s32 %s12, 1
      // Predicated region
      $region13: #{res_encoder_forward.20} parent=11 // pred_check
        %p189 = pneg %p59
      $region14: #{res_encoder_forward.20} parent=11 // pred_check_branch
        %191 = sbr.rel (%p189) target = $region16
      $region15: #{res_encoder_forward.20} parent=11 // pred_region
        _
      $region16: #{res_encoder_forward.20} parent=11 // pred_fallthru
        _
      // Predicated region
      $region17: #{res_encoder_forward.20} parent=11 // pred_check
        %p192 = pneg %p80
      $region18: #{res_encoder_forward.20} parent=11 // pred_check_branch
        %194 = sbr.rel (%p192) target = $region20
      $region19: #{res_encoder_forward.20} parent=11 // pred_region
        _
      $region20: #{res_encoder_forward.20} parent=11 // pred_fallthru
        _
      // Predicated region
      $region21: #{res_encoder_forward.20} parent=11 // pred_check
        %p195 = pneg %p127
      $region22: #{res_encoder_forward.20} parent=11 // pred_check_branch
        %197 = sbr.rel (%p195) target = $region24
      $region23: #{res_encoder_forward.20} parent=11 // pred_region
        _
      $region24: #{res_encoder_forward.20} parent=11 // pred_fallthru
        _
      // Predicated region
      $region25: #{res_encoder_forward.20} parent=11 // pred_check
        %p198 = pneg %p148
      $region26: #{res_encoder_forward.20} parent=11 // pred_check_branch
        %200 = sbr.rel (%p198) target = $region28
      $region27: #{res_encoder_forward.20} parent=11 // pred_region
        _
      $region28: #{res_encoder_forward.20} parent=11 // pred_fallthru
        _
    $region12: #{res_encoder_forward.20} parent=5 // pred_fallthru
      _
    %p201 = scmp.lt.s32.totalorder %s12, 2
    // Predicated region
    $region29: #{res_encoder_forward.20} parent=5 // pred_check
      %p202 = pneg %p201
    $region30: #{res_encoder_forward.20} parent=5 // pred_check_branch
      %204 = sbr.rel (%p202) target = $region32
    $region31: #{res_encoder_forward.20} parent=5 // pred_region
      // Predicated region
      $region33: #{res_encoder_forward.20} parent=31 // pred_check
        %p205 = pneg %p32
      $region34: #{res_encoder_forward.20} parent=31 // pred_check_branch
        %207 = sbr.rel (%p205) target = $region36
      $region35: #{res_encoder_forward.20} parent=31 // pred_region
        %s208 = smul.u32 32, %s12
        %p209 = scmp.lt.s32.totalorder %s208, 63
        %s210 = scalar_select %p209, %s208, 63
        %s211 = smul.addr %s210, 8
        %s212 = scalar_lea.vmem %s0, %s211
        %s213 = smul.u32 32, %s12
      $region36: #{res_encoder_forward.20} parent=31 // pred_fallthru
        _
      // Predicated region
      $region37: #{res_encoder_forward.20} parent=31 // pred_check
        %p214 = pneg %p100
      $region38: #{res_encoder_forward.20} parent=31 // pred_check_branch
        %216 = sbr.rel (%p214) target = $region40
      $region39: #{res_encoder_forward.20} parent=31 // pred_region
        %s217 = smul.u32 32, %s12
        %p218 = scmp.lt.s32.totalorder %s217, 63
        %s219 = scalar_select %p218, %s217, 63
        %s220 = smul.addr %s219, 8
        %s221 = scalar_lea.vmem %s3, %s220
        %s222 = smul.u32 32, %s12
      $region40: #{res_encoder_forward.20} parent=31 // pred_fallthru
        _
    $region32: #{res_encoder_forward.20} parent=5 // pred_fallthru
      _
    %p223 = scmp.le.s32.totalorder 1, %s12
    %p224 = scmp.lt.s32.totalorder %s12, 3
    %p225 = pnand %p223, %p224
    %p226 = pneg %p225
    // Predicated region
    $region41: #{res_encoder_forward.20} parent=5 // pred_check
      _
    $region42: #{res_encoder_forward.20} parent=5 // pred_check_branch
      %228 = sbr.rel (%p225) target = $region44
    $region43: #{res_encoder_forward.20} parent=5 // pred_region
      %s229 = ssub.s32 %s12, 1
      %s230 = smul.u32 32, %s17
      %p231 = scmp.lt.s32.totalorder %s230, 63
      %s232 = scalar_select %p231, %s230, 63
      %s233 = smul.addr %s232, 8
      %s234 = scalar_lea.vmem %s0, %s233
      %p235 = pneg %p38
      %p236 = pneg %p35
      %p237 = pneg %p59
      %p238 = pneg %p56
      %p239 = pneg %p80
      %p240 = pneg %p77
      %s241 = smul.u32 32, %s17
      %p242 = scmp.lt.s32.totalorder %s241, 63
      %s243 = scalar_select %p242, %s241, 63
      %s244 = smul.addr %s243, 8
      %s245 = scalar_lea.vmem %s3, %s244
      %p246 = pneg %p106
      %p247 = pneg %p103
      %p248 = pneg %p127
      %p249 = pneg %p124
      %p250 = pneg %p148
      %p251 = pneg %p145
      %p252 = pneg %p174
      %p253 = pneg %p171
      %s254 = smul.u32 32, %s17
      %p255 = scmp.lt.s32.totalorder %s254, 63
      %s256 = scalar_select %p255, %s254, 63
      %s257 = smul.addr %s256, 8
      %s258 = scalar_lea.vmem %s6, %s257
      %s259 = smul.u32 32, %s17
      %p260 = scmp.lt.s32.totalorder %s259, 63
      %s261 = scalar_select %p260, %s259, 63
      %s262 = smul.addr %s261, 8
      %s263 = scalar_lea.vmem %s0, %s262
      %s264 = smul.u32 32, %s17
      %s265 = smul.u32 32, %s17
      %p266 = scmp.lt.s32.totalorder %s265, 63
      %s267 = scalar_select %p266, %s265, 63
      %s268 = smul.addr %s267, 8
      %s269 = scalar_lea.vmem %s3, %s268
      %s270 = smul.u32 32, %s17
      %s271 = smul.u32 32, %s17
      %p272 = scmp.lt.s32.totalorder %s271, 63
      %s273 = scalar_select %p272, %s271, 63
      %s274 = smul.addr %s273, 8
      %s275 = scalar_lea.vmem %s6, %s274
      %s276 = smul.u32 32, %s17
      %v277 = vld [vmem:[%s263] sm:$0xff]
      %v278 = vld [vmem:[%s263 + $0x8] sm:$0xff]
      %v279 = vld [vmem:[%s263 + $0x10] sm:$0xff]
      %v280 = vld [vmem:[%s263 + $0x18] sm:$0xff]
      %v281 = vld [vmem:[%s263 + $0x20] sm:$0xff]
      %v282 = vld [vmem:[%s263 + $0x28] sm:$0xff]
      %v283 = vld [vmem:[%s263 + $0x30] sm:$0xff]
      %v284 = vld [vmem:[%s263 + $0x38] sm:$0xff]
      %v285 = vld [vmem:[%s263 + $0x40] sm:$0xff]
      %v286 = vld [vmem:[%s263 + $0x48] sm:$0xff]
      %v287 = vld [vmem:[%s263 + $0x50] sm:$0xff]
      %v288 = vld [vmem:[%s263 + $0x58] sm:$0xff]
      %v289 = vld [vmem:[%s263 + $0x60] sm:$0xff]
      %v290 = vld [vmem:[%s263 + $0x68] sm:$0xff]
      %v291 = vld [vmem:[%s263 + $0x70] sm:$0xff]
      %v292 = vld [vmem:[%s263 + $0x78] sm:$0xff]
      %v293 = vld [vmem:[%s263 + $0x80] sm:$0xff]
      %v294 = vld [vmem:[%s263 + $0x88] sm:$0xff]
      %v295 = vld [vmem:[%s263 + $0x90] sm:$0xff]
      %v296 = vld [vmem:[%s263 + $0x98] sm:$0xff]
      %v297 = vld [vmem:[%s263 + $0xa0] sm:$0xff]
      %v298 = vld [vmem:[%s263 + $0xa8] sm:$0xff]
      %v299 = vld [vmem:[%s263 + $0xb0] sm:$0xff]
      %v300 = vld [vmem:[%s263 + $0xb8] sm:$0xff]
      %v301 = vld [vmem:[%s263 + $0xc0] sm:$0xff]
      %v302 = vld [vmem:[%s263 + $0xc8] sm:$0xff]
      %v303 = vld [vmem:[%s263 + $0xd0] sm:$0xff]
      %v304 = vld [vmem:[%s263 + $0xd8] sm:$0xff]
      %v305 = vld [vmem:[%s263 + $0xe0] sm:$0xff]
      %v306 = vld [vmem:[%s263 + $0xe8] sm:$0xff]
      %v307 = vld [vmem:[%s263 + $0xf0] sm:$0xff]
      %v308 = vld [vmem:[%s263 + $0xf8] sm:$0xff]
      %v309 = vld [vmem:[%s1] sm:$0x1]
      %v311 = vlaneseq
      %v312 = vshrl.u32 %v311, 7
      %v313 = vsub.s32 0, %v312
      %v314 = vrot.slane %v309, %v313
      %v316 = vmul.f32 %v277, %v314
      %v317 = vmul.f32 %v278, %v314
      %v318 = vmul.f32 %v279, %v314
      %v319 = vmul.f32 %v280, %v314
      %v320 = vmul.f32 %v281, %v314
      %v321 = vmul.f32 %v282, %v314
      %v322 = vmul.f32 %v283, %v314
      %v323 = vmul.f32 %v284, %v314
      %v324 = vmul.f32 %v285, %v314
      %v325 = vmul.f32 %v286, %v314
      %v326 = vmul.f32 %v287, %v314
      %v327 = vmul.f32 %v288, %v314
      %v328 = vmul.f32 %v289, %v314
      %v329 = vmul.f32 %v290, %v314
      %v330 = vmul.f32 %v291, %v314
      %v331 = vmul.f32 %v292, %v314
      %v332 = vmul.f32 %v293, %v314
      %v333 = vmul.f32 %v294, %v314
      %v334 = vmul.f32 %v295, %v314
      %v335 = vmul.f32 %v296, %v314
      %v336 = vmul.f32 %v297, %v314
      %v337 = vmul.f32 %v298, %v314
      %v338 = vmul.f32 %v299, %v314
      %v339 = vmul.f32 %v300, %v314
      %v340 = vmul.f32 %v301, %v314
      %v341 = vmul.f32 %v302, %v314
      %v342 = vmul.f32 %v303, %v314
      %v343 = vmul.f32 %v304, %v314
      %v344 = vmul.f32 %v305, %v314
      %v345 = vmul.f32 %v306, %v314
      %v346 = vmul.f32 %v307, %v314
      %v347 = vmul.f32 %v308, %v314
      %v348 = vld [vmem:[%s2] sm:$0x1]
      %v350 = vlaneseq
      %v351 = vshrl.u32 %v350, 7
      %v352 = vsub.s32 0, %v351
      %v353 = vrot.slane %v348, %v352
      %v355 = vadd.f32 %v316, %v353
      %v356 = vadd.f32 %v317, %v353
      %v357 = vadd.f32 %v318, %v353
      %v358 = vadd.f32 %v319, %v353
      %v359 = vadd.f32 %v320, %v353
      %v360 = vadd.f32 %v321, %v353
      %v361 = vadd.f32 %v322, %v353
      %v362 = vadd.f32 %v323, %v353
      %v363 = vadd.f32 %v324, %v353
      %v364 = vadd.f32 %v325, %v353
      %v365 = vadd.f32 %v326, %v353
      %v366 = vadd.f32 %v327, %v353
      %v367 = vadd.f32 %v328, %v353
      %v368 = vadd.f32 %v329, %v353
      %v369 = vadd.f32 %v330, %v353
      %v370 = vadd.f32 %v331, %v353
      %v371 = vadd.f32 %v332, %v353
      %v372 = vadd.f32 %v333, %v353
      %v373 = vadd.f32 %v334, %v353
      %v374 = vadd.f32 %v335, %v353
      %v375 = vadd.f32 %v336, %v353
      %v376 = vadd.f32 %v337, %v353
      %v377 = vadd.f32 %v338, %v353
      %v378 = vadd.f32 %v339, %v353
      %v379 = vadd.f32 %v340, %v353
      %v380 = vadd.f32 %v341, %v353
      %v381 = vadd.f32 %v342, %v353
      %v382 = vadd.f32 %v343, %v353
      %v383 = vadd.f32 %v344, %v353
      %v384 = vadd.f32 %v345, %v353
      %v385 = vadd.f32 %v346, %v353
      %v386 = vadd.f32 %v347, %v353
      %v387 = vld [vmem:[%s269] sm:$0xff]
      %v388 = vld [vmem:[%s269 + $0x8] sm:$0xff]
      %v389 = vld [vmem:[%s269 + $0x10] sm:$0xff]
      %v390 = vld [vmem:[%s269 + $0x18] sm:$0xff]
      %v391 = vld [vmem:[%s269 + $0x20] sm:$0xff]
      %v392 = vld [vmem:[%s269 + $0x28] sm:$0xff]
      %v393 = vld [vmem:[%s269 + $0x30] sm:$0xff]
      %v394 = vld [vmem:[%s269 + $0x38] sm:$0xff]
      %v395 = vld [vmem:[%s269 + $0x40] sm:$0xff]
      %v396 = vld [vmem:[%s269 + $0x48] sm:$0xff]
      %v397 = vld [vmem:[%s269 + $0x50] sm:$0xff]
      %v398 = vld [vmem:[%s269 + $0x58] sm:$0xff]
      %v399 = vld [vmem:[%s269 + $0x60] sm:$0xff]
      %v400 = vld [vmem:[%s269 + $0x68] sm:$0xff]
      %v401 = vld [vmem:[%s269 + $0x70] sm:$0xff]
      %v402 = vld [vmem:[%s269 + $0x78] sm:$0xff]
      %v403 = vld [vmem:[%s269 + $0x80] sm:$0xff]
      %v404 = vld [vmem:[%s269 + $0x88] sm:$0xff]
      %v405 = vld [vmem:[%s269 + $0x90] sm:$0xff]
      %v406 = vld [vmem:[%s269 + $0x98] sm:$0xff]
      %v407 = vld [vmem:[%s269 + $0xa0] sm:$0xff]
      %v408 = vld [vmem:[%s269 + $0xa8] sm:$0xff]
      %v409 = vld [vmem:[%s269 + $0xb0] sm:$0xff]
      %v410 = vld [vmem:[%s269 + $0xb8] sm:$0xff]
      %v411 = vld [vmem:[%s269 + $0xc0] sm:$0xff]
      %v412 = vld [vmem:[%s269 + $0xc8] sm:$0xff]
      %v413 = vld [vmem:[%s269 + $0xd0] sm:$0xff]
      %v414 = vld [vmem:[%s269 + $0xd8] sm:$0xff]
      %v415 = vld [vmem:[%s269 + $0xe0] sm:$0xff]
      %v416 = vld [vmem:[%s269 + $0xe8] sm:$0xff]
      %v417 = vld [vmem:[%s269 + $0xf0] sm:$0xff]
      %v418 = vld [vmem:[%s269 + $0xf8] sm:$0xff]
      %v419 = vld [vmem:[%s4] sm:$0x1]
      %v421 = vlaneseq
      %v422 = vshrl.u32 %v421, 7
      %v423 = vsub.s32 0, %v422
      %v424 = vrot.slane %v419, %v423
      %v426 = vmul.f32 %v387, %v424
      %v427 = vmul.f32 %v388, %v424
      %v428 = vmul.f32 %v389, %v424
      %v429 = vmul.f32 %v390, %v424
      %v430 = vmul.f32 %v391, %v424
      %v431 = vmul.f32 %v392, %v424
      %v432 = vmul.f32 %v393, %v424
      %v433 = vmul.f32 %v394, %v424
      %v434 = vmul.f32 %v395, %v424
      %v435 = vmul.f32 %v396, %v424
      %v436 = vmul.f32 %v397, %v424
      %v437 = vmul.f32 %v398, %v424
      %v438 = vmul.f32 %v399, %v424
      %v439 = vmul.f32 %v400, %v424
      %v440 = vmul.f32 %v401, %v424
      %v441 = vmul.f32 %v402, %v424
      %v442 = vmul.f32 %v403, %v424
      %v443 = vmul.f32 %v404, %v424
      %v444 = vmul.f32 %v405, %v424
      %v445 = vmul.f32 %v406, %v424
      %v446 = vmul.f32 %v407, %v424
      %v447 = vmul.f32 %v408, %v424
      %v448 = vmul.f32 %v409, %v424
      %v449 = vmul.f32 %v410, %v424
      %v450 = vmul.f32 %v411, %v424
      %v451 = vmul.f32 %v412, %v424
      %v452 = vmul.f32 %v413, %v424
      %v453 = vmul.f32 %v414, %v424
      %v454 = vmul.f32 %v415, %v424
      %v455 = vmul.f32 %v416, %v424
      %v456 = vmul.f32 %v417, %v424
      %v457 = vmul.f32 %v418, %v424
      %v458 = vadd.f32 %v355, %v426
      %v459 = vadd.f32 %v356, %v427
      %v460 = vadd.f32 %v357, %v428
      %v461 = vadd.f32 %v358, %v429
      %v462 = vadd.f32 %v359, %v430
      %v463 = vadd.f32 %v360, %v431
      %v464 = vadd.f32 %v361, %v432
      %v465 = vadd.f32 %v362, %v433
      %v466 = vadd.f32 %v363, %v434
      %v467 = vadd.f32 %v364, %v435
      %v468 = vadd.f32 %v365, %v436
      %v469 = vadd.f32 %v366, %v437
      %v470 = vadd.f32 %v367, %v438
      %v471 = vadd.f32 %v368, %v439
      %v472 = vadd.f32 %v369, %v440
      %v473 = vadd.f32 %v370, %v441
      %v474 = vadd.f32 %v371, %v442
      %v475 = vadd.f32 %v372, %v443
      %v476 = vadd.f32 %v373, %v444
      %v477 = vadd.f32 %v374, %v445
      %v478 = vadd.f32 %v375, %v446
      %v479 = vadd.f32 %v376, %v447
      %v480 = vadd.f32 %v377, %v448
      %v481 = vadd.f32 %v378, %v449
      %v482 = vadd.f32 %v379, %v450
      %v483 = vadd.f32 %v380, %v451
      %v484 = vadd.f32 %v381, %v452
      %v485 = vadd.f32 %v382, %v453
      %v486 = vadd.f32 %v383, %v454
      %v487 = vadd.f32 %v384, %v455
      %v488 = vadd.f32 %v385, %v456
      %v489 = vadd.f32 %v386, %v457
      %v490 = vld [vmem:[%s5] sm:$0x1]
      %v492 = vlaneseq
      %v493 = vshrl.u32 %v492, 7
      %v494 = vsub.s32 0, %v493
      %v495 = vrot.slane %v490, %v494
      %v497 = vadd.f32 %v458, %v495
      %v498 = vadd.f32 %v459, %v495
      %v499 = vadd.f32 %v460, %v495
      %v500 = vadd.f32 %v461, %v495
      %v501 = vadd.f32 %v462, %v495
      %v502 = vadd.f32 %v463, %v495
      %v503 = vadd.f32 %v464, %v495
      %v504 = vadd.f32 %v465, %v495
      %v505 = vadd.f32 %v466, %v495
      %v506 = vadd.f32 %v467, %v495
      %v507 = vadd.f32 %v468, %v495
      %v508 = vadd.f32 %v469, %v495
      %v509 = vadd.f32 %v470, %v495
      %v510 = vadd.f32 %v471, %v495
      %v511 = vadd.f32 %v472, %v495
      %v512 = vadd.f32 %v473, %v495
      %v513 = vadd.f32 %v474, %v495
      %v514 = vadd.f32 %v475, %v495
      %v515 = vadd.f32 %v476, %v495
      %v516 = vadd.f32 %v477, %v495
      %v517 = vadd.f32 %v478, %v495
      %v518 = vadd.f32 %v479, %v495
      %v519 = vadd.f32 %v480, %v495
      %v520 = vadd.f32 %v481, %v495
      %v521 = vadd.f32 %v482, %v495
      %v522 = vadd.f32 %v483, %v495
      %v523 = vadd.f32 %v484, %v495
      %v524 = vadd.f32 %v485, %v495
      %v525 = vadd.f32 %v486, %v495
      %v526 = vadd.f32 %v487, %v495
      %v527 = vadd.f32 %v488, %v495
      %v528 = vadd.f32 %v489, %v495
      %vm529 = vcmp.ge.f32.partialorder %v497, 0.0
      %vm530 = vcmp.ge.f32.partialorder %v498, 0.0
      %vm531 = vcmp.ge.f32.partialorder %v499, 0.0
      %vm532 = vcmp.ge.f32.partialorder %v500, 0.0
      %vm533 = vcmp.ge.f32.partialorder %v501, 0.0
      %vm534 = vcmp.ge.f32.partialorder %v502, 0.0
      %vm535 = vcmp.ge.f32.partialorder %v503, 0.0
      %vm536 = vcmp.ge.f32.partialorder %v504, 0.0
      %vm537 = vcmp.ge.f32.partialorder %v505, 0.0
      %vm538 = vcmp.ge.f32.partialorder %v506, 0.0
      %vm539 = vcmp.ge.f32.partialorder %v507, 0.0
      %vm540 = vcmp.ge.f32.partialorder %v508, 0.0
      %vm541 = vcmp.ge.f32.partialorder %v509, 0.0
      %vm542 = vcmp.ge.f32.partialorder %v510, 0.0
      %vm543 = vcmp.ge.f32.partialorder %v511, 0.0
      %vm544 = vcmp.ge.f32.partialorder %v512, 0.0
      %vm545 = vcmp.ge.f32.partialorder %v513, 0.0
      %vm546 = vcmp.ge.f32.partialorder %v514, 0.0
      %vm547 = vcmp.ge.f32.partialorder %v515, 0.0
      %vm548 = vcmp.ge.f32.partialorder %v516, 0.0
      %vm549 = vcmp.ge.f32.partialorder %v517, 0.0
      %vm550 = vcmp.ge.f32.partialorder %v518, 0.0
      %vm551 = vcmp.ge.f32.partialorder %v519, 0.0
      %vm552 = vcmp.ge.f32.partialorder %v520, 0.0
      %vm553 = vcmp.ge.f32.partialorder %v521, 0.0
      %vm554 = vcmp.ge.f32.partialorder %v522, 0.0
      %vm555 = vcmp.ge.f32.partialorder %v523, 0.0
      %vm556 = vcmp.ge.f32.partialorder %v524, 0.0
      %vm557 = vcmp.ge.f32.partialorder %v525, 0.0
      %vm558 = vcmp.ge.f32.partialorder %v526, 0.0
      %vm559 = vcmp.ge.f32.partialorder %v527, 0.0
      %vm560 = vcmp.ge.f32.partialorder %v528, 0.0
      %v561 = vmul.f32 %v497, 0.1
      %v562 = vmul.f32 %v498, 0.1
      %v563 = vmul.f32 %v499, 0.1
      %v564 = vmul.f32 %v500, 0.1
      %v565 = vmul.f32 %v501, 0.1
      %v566 = vmul.f32 %v502, 0.1
      %v567 = vmul.f32 %v503, 0.1
      %v568 = vmul.f32 %v504, 0.1
      %v569 = vmul.f32 %v505, 0.1
      %v570 = vmul.f32 %v506, 0.1
      %v571 = vmul.f32 %v507, 0.1
      %v572 = vmul.f32 %v508, 0.1
      %v573 = vmul.f32 %v509, 0.1
      %v574 = vmul.f32 %v510, 0.1
      %v575 = vmul.f32 %v511, 0.1
      %v576 = vmul.f32 %v512, 0.1
      %v577 = vmul.f32 %v513, 0.1
      %v578 = vmul.f32 %v514, 0.1
      %v579 = vmul.f32 %v515, 0.1
      %v580 = vmul.f32 %v516, 0.1
      %v581 = vmul.f32 %v517, 0.1
      %v582 = vmul.f32 %v518, 0.1
      %v583 = vmul.f32 %v519, 0.1
      %v584 = vmul.f32 %v520, 0.1
      %v585 = vmul.f32 %v521, 0.1
      %v586 = vmul.f32 %v522, 0.1
      %v587 = vmul.f32 %v523, 0.1
      %v588 = vmul.f32 %v524, 0.1
      %v589 = vmul.f32 %v525, 0.1
      %v590 = vmul.f32 %v526, 0.1
      %v591 = vmul.f32 %v527, 0.1
      %v592 = vmul.f32 %v528, 0.1
      %v593 = vsel %vm529, %v497, %v561
      %v594 = vsel %vm530, %v498, %v562
      %v595 = vsel %vm531, %v499, %v563
      %v596 = vsel %vm532, %v500, %v564
      %v597 = vsel %vm533, %v501, %v565
      %v598 = vsel %vm534, %v502, %v566
      %v599 = vsel %vm535, %v503, %v567
      %v600 = vsel %vm536, %v504, %v568
      %v601 = vsel %vm537, %v505, %v569
      %v602 = vsel %vm538, %v506, %v570
      %v603 = vsel %vm539, %v507, %v571
      %v604 = vsel %vm540, %v508, %v572
      %v605 = vsel %vm541, %v509, %v573
      %v606 = vsel %vm542, %v510, %v574
      %v607 = vsel %vm543, %v511, %v575
      %v608 = vsel %vm544, %v512, %v576
      %v609 = vsel %vm545, %v513, %v577
      %v610 = vsel %vm546, %v514, %v578
      %v611 = vsel %vm547, %v515, %v579
      %v612 = vsel %vm548, %v516, %v580
      %v613 = vsel %vm549, %v517, %v581
      %v614 = vsel %vm550, %v518, %v582
      %v615 = vsel %vm551, %v519, %v583
      %v616 = vsel %vm552, %v520, %v584
      %v617 = vsel %vm553, %v521, %v585
      %v618 = vsel %vm554, %v522, %v586
      %v619 = vsel %vm555, %v523, %v587
      %v620 = vsel %vm556, %v524, %v588
      %v621 = vsel %vm557, %v525, %v589
      %v622 = vsel %vm558, %v526, %v590
      %v623 = vsel %vm559, %v527, %v591
      %v624 = vsel %vm560, %v528, %v592
      %vm625 = vcmask 523264
      %626 = vst.msk [vmem:[%s275] sm:$0xff] %vm625, %v593
      %627 = vst.msk [vmem:[%s275 + $0x8] sm:$0xff] %vm625, %v594
      %628 = vst.msk [vmem:[%s275 + $0x10] sm:$0xff] %vm625, %v595
      %629 = vst.msk [vmem:[%s275 + $0x18] sm:$0xff] %vm625, %v596
      %630 = vst.msk [vmem:[%s275 + $0x20] sm:$0xff] %vm625, %v597
      %631 = vst.msk [vmem:[%s275 + $0x28] sm:$0xff] %vm625, %v598
      %632 = vst.msk [vmem:[%s275 + $0x30] sm:$0xff] %vm625, %v599
      %633 = vst.msk [vmem:[%s275 + $0x38] sm:$0xff] %vm625, %v600
      %634 = vst.msk [vmem:[%s275 + $0x40] sm:$0xff] %vm625, %v601
      %635 = vst.msk [vmem:[%s275 + $0x48] sm:$0xff] %vm625, %v602
      %636 = vst.msk [vmem:[%s275 + $0x50] sm:$0xff] %vm625, %v603
      %637 = vst.msk [vmem:[%s275 + $0x58] sm:$0xff] %vm625, %v604
      %638 = vst.msk [vmem:[%s275 + $0x60] sm:$0xff] %vm625, %v605
      %639 = vst.msk [vmem:[%s275 + $0x68] sm:$0xff] %vm625, %v606
      %640 = vst.msk [vmem:[%s275 + $0x70] sm:$0xff] %vm625, %v607
      %641 = vst.msk [vmem:[%s275 + $0x78] sm:$0xff] %vm625, %v608
      %642 = vst.msk [vmem:[%s275 + $0x80] sm:$0xff] %vm625, %v609
      %643 = vst.msk [vmem:[%s275 + $0x88] sm:$0xff] %vm625, %v610
      %644 = vst.msk [vmem:[%s275 + $0x90] sm:$0xff] %vm625, %v611
      %645 = vst.msk [vmem:[%s275 + $0x98] sm:$0xff] %vm625, %v612
      %646 = vst.msk [vmem:[%s275 + $0xa0] sm:$0xff] %vm625, %v613
      %647 = vst.msk [vmem:[%s275 + $0xa8] sm:$0xff] %vm625, %v614
      %648 = vst.msk [vmem:[%s275 + $0xb0] sm:$0xff] %vm625, %v615
      %649 = vst.msk [vmem:[%s275 + $0xb8] sm:$0xff] %vm625, %v616
      %650 = vst.msk [vmem:[%s275 + $0xc0] sm:$0xff] %vm625, %v617
      %651 = vst.msk [vmem:[%s275 + $0xc8] sm:$0xff] %vm625, %v618
      %652 = vst.msk [vmem:[%s275 + $0xd0] sm:$0xff] %vm625, %v619
      %653 = vst.msk [vmem:[%s275 + $0xd8] sm:$0xff] %vm625, %v620
      %654 = vst.msk [vmem:[%s275 + $0xe0] sm:$0xff] %vm625, %v621
      %655 = vst.msk [vmem:[%s275 + $0xe8] sm:$0xff] %vm625, %v622
      %656 = vst.msk [vmem:[%s275 + $0xf0] sm:$0xff] %vm625, %v623
      %657 = vst.msk [vmem:[%s275 + $0xf8] sm:$0xff] %vm625, %v624
      %s658 = smul.u32 32, %s17
      %p659 = scmp.lt.s32.totalorder %s658, 63
      %s660 = scalar_select %p659, %s658, 63
      %s661 = smul.addr %s660, 8
      %s662 = scalar_lea.vmem %s6, %s661
      // Predicated region
      $region45: #{res_encoder_forward.20} parent=43 // pred_check
        %p663 = pneg %p171
      $region46: #{res_encoder_forward.20} parent=43 // pred_check_branch
        %665 = sbr.rel (%p663) target = $region48
      $region47: #{res_encoder_forward.20} parent=43 // pred_region
        %s666 = smul.u32 32, %s17
      $region48: #{res_encoder_forward.20} parent=43 // pred_fallthru
        _
    $region44: #{res_encoder_forward.20} parent=5 // pred_fallthru
      _
    %p667 = scmp.le.s32.totalorder 2, %s12
    // Predicated region
    $region49: #{res_encoder_forward.20} parent=5 // pred_check
      %p668 = pneg %p667
    $region50: #{res_encoder_forward.20} parent=5 // pred_check_branch
      %670 = sbr.rel (%p668) target = $region52
    $region51: #{res_encoder_forward.20} parent=5 // pred_region
      %s671 = ssub.s32 %s12, 2
      // Predicated region
      $region53: #{res_encoder_forward.20} parent=51 // pred_check
        %p672 = pneg %p177
      $region54: #{res_encoder_forward.20} parent=51 // pred_check_branch
        %674 = sbr.rel (%p672) target = $region56
      $region55: #{res_encoder_forward.20} parent=51 // pred_region
        %s675 = smul.u32 32, %s18
        %p676 = scmp.lt.s32.totalorder %s675, 63
        %s677 = scalar_select %p676, %s675, 63
        %s678 = smul.addr %s677, 8
        %s679 = scalar_lea.vmem %s6, %s678
      $region56: #{res_encoder_forward.20} parent=51 // pred_fallthru
        _
    $region52: #{res_encoder_forward.20} parent=5 // pred_fallthru
      _
  $region6: #{res_encoder_forward.20} parent=0 // loop_footer
    %s16 = sadd.s32 1, %s12
  $region7: #{res_encoder_forward.20} parent=0 // loop_footer_branch
    %11 = sbr.rel target = $region3
  $region8: #{res_encoder_forward.20} parent=0 // loop_exit
    _

// kernel: res_encoder_forward.24
$region0: #{res_encoder_forward.24}
  #allocation0 [shape = 'u32[]', space=smem, size = 0x4, offset = 0x4, fixed_abs, tag = 'smem constant byte address 0x4 - core index']
  #allocation1 [shape = 'u32[144,128]{1,0:T(1,128)}', space=vmem, size = 0x12000, scoped, tag = 'internal scratch']
  #allocation2 [shape = 'f32[128,128]{1,0:T(8,128)}', space=vmem, size = 0x10000, scoped, tag = 'scratch operand']
  %s0 = inlined_call_operand.vmem [shape: bf16[128,128], index: 0, kind: input, shape index: {}]
  %s1 = inlined_call_operand.vmem [shape: bf16[128,128], index: 1, kind: input, shape index: {}]
  %s2 = inlined_call_operand.vmem [shape: f32[128,128], index: 2, kind: output, shape index: {}]
  %s3 = sld [smem:[#allocation0]]
  $region26: #{res_encoder_forward.24} parent=0
    _
  %s5 = ssub.s32 1, %s3
  %s6 = scalar_select 0, %s5, %s3
  // Predicated region
  $region2: #{res_encoder_forward.24} parent=0 // pred_check
    _
  $region3: #{res_encoder_forward.24} parent=0 // pred_check_branch
    %8 = sbr.rel (0) target = $region5
  $region4: #{res_encoder_forward.24} parent=0 // pred_region
    _
  $region5: #{res_encoder_forward.24} parent=0 // pred_fallthru
    _
  // Predicated region
  $region6: #{res_encoder_forward.24} parent=0 // pred_check
    _
  $region7: #{res_encoder_forward.24} parent=0 // pred_check_branch
    %10 = sbr.rel (0) target = $region9
  $region8: #{res_encoder_forward.24} parent=0 // pred_region
    _
  $region9: #{res_encoder_forward.24} parent=0 // pred_fallthru
    _
  %p12 = scmp.eq.s32.totalorder 0, 0
  // Predicated region
  $region10: #{res_encoder_forward.24} parent=0 // pred_check
    %p13 = pneg %p12
  $region11: #{res_encoder_forward.24} parent=0 // pred_check_branch
    %15 = sbr.rel (%p13) target = $region13
  $region12: #{res_encoder_forward.24} parent=0 // pred_region
    %16 = vst [vmem:[#allocation2] sm:$0xff] 0.0
    %17 = vst [vmem:[#allocation2 + $0x8] sm:$0xff] 0.0
    %18 = vst [vmem:[#allocation2 + $0x10] sm:$0xff] 0.0
    %19 = vst [vmem:[#allocation2 + $0x18] sm:$0xff] 0.0
    %20 = vst [vmem:[#allocation2 + $0x20] sm:$0xff] 0.0
    %21 = vst [vmem:[#allocation2 + $0x28] sm:$0xff] 0.0
    %22 = vst [vmem:[#allocation2 + $0x30] sm:$0xff] 0.0
    %23 = vst [vmem:[#allocation2 + $0x38] sm:$0xff] 0.0
    %24 = vst [vmem:[#allocation2 + $0x40] sm:$0xff] 0.0
    %25 = vst [vmem:[#allocation2 + $0x48] sm:$0xff] 0.0
    %26 = vst [vmem:[#allocation2 + $0x50] sm:$0xff] 0.0
    %27 = vst [vmem:[#allocation2 + $0x58] sm:$0xff] 0.0
    %28 = vst [vmem:[#allocation2 + $0x60] sm:$0xff] 0.0
    %29 = vst [vmem:[#allocation2 + $0x68] sm:$0xff] 0.0
    %30 = vst [vmem:[#allocation2 + $0x70] sm:$0xff] 0.0
    %31 = vst [vmem:[#allocation2 + $0x78] sm:$0xff] 0.0
  $region13: #{res_encoder_forward.24} parent=0 // pred_fallthru
    _
  %v32 = vld [vmem:[#allocation2] sm:$0xff]
  %v33 = vld [vmem:[#allocation2 + $0x8] sm:$0xff]
  %v34 = vld [vmem:[#allocation2 + $0x10] sm:$0xff]
  %v35 = vld [vmem:[#allocation2 + $0x18] sm:$0xff]
  %v36 = vld [vmem:[#allocation2 + $0x20] sm:$0xff]
  %v37 = vld [vmem:[#allocation2 + $0x28] sm:$0xff]
  %v38 = vld [vmem:[#allocation2 + $0x30] sm:$0xff]
  %v39 = vld [vmem:[#allocation2 + $0x38] sm:$0xff]
  %v40 = vld [vmem:[#allocation2 + $0x40] sm:$0xff]
  %v41 = vld [vmem:[#allocation2 + $0x48] sm:$0xff]
  %v42 = vld [vmem:[#allocation2 + $0x50] sm:$0xff]
  %v43 = vld [vmem:[#allocation2 + $0x58] sm:$0xff]
  %v44 = vld [vmem:[#allocation2 + $0x60] sm:$0xff]
  %v45 = vld [vmem:[#allocation2 + $0x68] sm:$0xff]
  %v46 = vld [vmem:[#allocation2 + $0x70] sm:$0xff]
  %v47 = vld [vmem:[#allocation2 + $0x78] sm:$0xff]
  %v48 = vld [vmem:[%s0] sm:$0xf]
  %v49 = vld [vmem:[%s0 + $0x4] sm:$0xf]
  %v50 = vld [vmem:[%s0 + $0x8] sm:$0xf]
  %v51 = vld [vmem:[%s0 + $0xc] sm:$0xf]
  %v52 = vld [vmem:[%s0 + $0x10] sm:$0xf]
  %v53 = vld [vmem:[%s0 + $0x14] sm:$0xf]
  %v54 = vld [vmem:[%s0 + $0x18] sm:$0xf]
  %v55 = vld [vmem:[%s0 + $0x1c] sm:$0xf]
  %v56 = vld [vmem:[%s0 + $0x20] sm:$0xf]
  %v57 = vld [vmem:[%s0 + $0x24] sm:$0xf]
  %v58 = vld [vmem:[%s0 + $0x28] sm:$0xf]
  %v59 = vld [vmem:[%s0 + $0x2c] sm:$0xf]
  %v60 = vld [vmem:[%s0 + $0x30] sm:$0xf]
  %v61 = vld [vmem:[%s0 + $0x34] sm:$0xf]
  %v62 = vld [vmem:[%s0 + $0x38] sm:$0xf]
  %v63 = vld [vmem:[%s0 + $0x3c] sm:$0xf]
  %v64 = vld [vmem:[%s1] sm:$0xf]
  %v65 = vld [vmem:[%s1 + $0x4] sm:$0xf]
  %v66 = vld [vmem:[%s1 + $0x8] sm:$0xf]
  %v67 = vld [vmem:[%s1 + $0xc] sm:$0xf]
  %v68 = vld [vmem:[%s1 + $0x10] sm:$0xf]
  %v69 = vld [vmem:[%s1 + $0x14] sm:$0xf]
  %v70 = vld [vmem:[%s1 + $0x18] sm:$0xf]
  %v71 = vld [vmem:[%s1 + $0x1c] sm:$0xf]
  %v72 = vld [vmem:[%s1 + $0x20] sm:$0xf]
  %v73 = vld [vmem:[%s1 + $0x24] sm:$0xf]
  %v74 = vld [vmem:[%s1 + $0x28] sm:$0xf]
  %v75 = vld [vmem:[%s1 + $0x2c] sm:$0xf]
  %v76 = vld [vmem:[%s1 + $0x30] sm:$0xf]
  %v77 = vld [vmem:[%s1 + $0x34] sm:$0xf]
  %v78 = vld [vmem:[%s1 + $0x38] sm:$0xf]
  %v79 = vld [vmem:[%s1 + $0x3c] sm:$0xf]
  %v96 = vunpack.c.l.b16 %v48
  %v97 = vunpack.c.l.b16 %v49
  %v98 = vunpack.c.l.b16 %v50
  %v99 = vunpack.c.l.b16 %v51
  %v100 = vunpack.c.l.b16 %v52
  %v101 = vunpack.c.l.b16 %v53
  %v102 = vunpack.c.l.b16 %v54
  %v103 = vunpack.c.l.b16 %v55
  %v104 = vunpack.c.l.b16 %v56
  %v105 = vunpack.c.l.b16 %v57
  %v106 = vunpack.c.l.b16 %v58
  %v107 = vunpack.c.l.b16 %v59
  %v108 = vunpack.c.l.b16 %v60
  %v109 = vunpack.c.l.b16 %v61
  %v110 = vunpack.c.l.b16 %v62
  %v111 = vunpack.c.l.b16 %v63
  %v112 = vpack.c.b16 %v97, %v96
  %v113 = vpack.c.b16 %v99, %v98
  %v114 = vpack.c.b16 %v101, %v100
  %v115 = vpack.c.b16 %v103, %v102
  %v116 = vpack.c.b16 %v105, %v104
  %v117 = vpack.c.b16 %v107, %v106
  %v118 = vpack.c.b16 %v109, %v108
  %v119 = vpack.c.b16 %v111, %v110
  %v144 = vunpack.c.l.b16 %v64
  %v145 = vunpack.c.l.b16 %v65
  %v146 = vunpack.c.l.b16 %v66
  %v147 = vunpack.c.l.b16 %v67
  %v148 = vunpack.c.l.b16 %v68
  %v149 = vunpack.c.l.b16 %v69
  %v150 = vunpack.c.l.b16 %v70
  %v151 = vunpack.c.l.b16 %v71
  %v152 = vunpack.c.l.b16 %v72
  %v153 = vunpack.c.l.b16 %v73
  %v154 = vunpack.c.l.b16 %v74
  %v155 = vunpack.c.l.b16 %v75
  %v156 = vunpack.c.l.b16 %v76
  %v157 = vunpack.c.l.b16 %v77
  %v158 = vunpack.c.l.b16 %v78
  %v159 = vunpack.c.l.b16 %v79
  %v160 = vpack.c.b16 %v145, %v144
  %v161 = vpack.c.b16 %v147, %v146
  %v162 = vpack.c.b16 %v149, %v148
  %v163 = vpack.c.b16 %v151, %v150
  %v164 = vpack.c.b16 %v153, %v152
  %v165 = vpack.c.b16 %v155, %v154
  %v166 = vpack.c.b16 %v157, %v156
  %v167 = vpack.c.b16 %v159, %v158
  %176 = vmatprep.subr.bf16.mxu0 0
  %177 = vmatpush1.bf16.msra.mxu0 %v167
  %178 = vmatprep.subr.bf16.mxu0 0
  %179 = vmatpush1.bf16.msra.mxu0 %v166
  %180 = vmatprep.subr.bf16.mxu0 0
  %181 = vmatpush1.bf16.msra.mxu0 %v165
  %182 = vmatprep.subr.bf16.mxu0 0
  %183 = vmatpush1.bf16.msra.mxu0 %v164
  %184 = vmatprep.subr.bf16.mxu0 0
  %185 = vmatpush1.bf16.msra.mxu0 %v163
  %186 = vmatprep.subr.bf16.mxu0 0
  %187 = vmatpush1.bf16.msra.mxu0 %v162
  %188 = vmatprep.subr.bf16.mxu0 0
  %189 = vmatpush1.bf16.msra.mxu0 %v161
  %190 = vmatprep.subr.bf16.mxu0 0
  %191 = vmatpush1.bf16.msra.mxu0 %v160
  %192 = vmatprep.subr.bf16.mxu0 0
  %193 = vmatpush2.bf16.msra.mxu0 0
  %194 = vmatprep.subr.bf16.mxu0 0
  %195 = vmatpush2.bf16.msra.mxu0 0
  %196 = vmatprep.subr.bf16.mxu0 0
  %197 = vmatpush2.bf16.msra.mxu0 0
  %198 = vmatprep.subr.bf16.mxu0 0
  %199 = vmatpush2.bf16.msra.mxu0 0
  %200 = vmatprep.subr.bf16.mxu0 0
  %201 = vmatpush2.bf16.msra.mxu0 0
  %202 = vmatprep.subr.bf16.mxu0 0
  %203 = vmatpush2.bf16.msra.mxu0 0
  %204 = vmatprep.subr.bf16.mxu0 0
  %205 = vmatpush2.bf16.msra.mxu0 0
  %206 = vmatprep.subr.bf16.mxu0 0
  %207 = vmatpush2.bf16.msra.mxu0 0
  %208 = vmatprep.mubr.bf16.mxu0 0
  %209 = vmatmul.mubr.bf16.gmra.mxu0 %v112
  %v210 = vpop.f32.mrf.mxu0
  %v211 = vadd.f32 0.0, %v210
  %v212 = vpop.f32.mrf.mxu0
  %v213 = vpop.f32.mrf.mxu0
  %v214 = vadd.f32 0.0, %v213
  %v215 = vpop.f32.mrf.mxu0
  %216 = vmatprep.mubr.bf16.mxu0 0
  %217 = vmatmul.mubr.bf16.gmra.mxu0 %v113
  %v218 = vpop.f32.mrf.mxu0
  %v219 = vadd.f32 0.0, %v218
  %v220 = vpop.f32.mrf.mxu0
  %v221 = vpop.f32.mrf.mxu0
  %v222 = vadd.f32 0.0, %v221
  %v223 = vpop.f32.mrf.mxu0
  %224 = vmatprep.mubr.bf16.mxu0 0
  %225 = vmatmul.mubr.bf16.gmra.mxu0 %v114
  %v226 = vpop.f32.mrf.mxu0
  %v227 = vadd.f32 0.0, %v226
  %v228 = vpop.f32.mrf.mxu0
  %v229 = vpop.f32.mrf.mxu0
  %v230 = vadd.f32 0.0, %v229
  %v231 = vpop.f32.mrf.mxu0
  %232 = vmatprep.mubr.bf16.mxu0 0
  %233 = vmatmul.mubr.bf16.gmra.mxu0 %v115
  %v234 = vpop.f32.mrf.mxu0
  %v235 = vadd.f32 0.0, %v234
  %v236 = vpop.f32.mrf.mxu0
  %v237 = vpop.f32.mrf.mxu0
  %v238 = vadd.f32 0.0, %v237
  %v239 = vpop.f32.mrf.mxu0
  %240 = vmatprep.mubr.bf16.mxu0 0
  %241 = vmatmul.mubr.bf16.gmra.mxu0 %v116
  %v242 = vpop.f32.mrf.mxu0
  %v243 = vadd.f32 0.0, %v242
  %v244 = vpop.f32.mrf.mxu0
  %v245 = vpop.f32.mrf.mxu0
  %v246 = vadd.f32 0.0, %v245
  %v247 = vpop.f32.mrf.mxu0
  %248 = vmatprep.mubr.bf16.mxu0 0
  %249 = vmatmul.mubr.bf16.gmra.mxu0 %v117
  %v250 = vpop.f32.mrf.mxu0
  %v251 = vadd.f32 0.0, %v250
  %v252 = vpop.f32.mrf.mxu0
  %v253 = vpop.f32.mrf.mxu0
  %v254 = vadd.f32 0.0, %v253
  %v255 = vpop.f32.mrf.mxu0
  %256 = vmatprep.mubr.bf16.mxu0 0
  %257 = vmatmul.mubr.bf16.gmra.mxu0 %v118
  %v258 = vpop.f32.mrf.mxu0
  %v259 = vadd.f32 0.0, %v258
  %v260 = vpop.f32.mrf.mxu0
  %v261 = vpop.f32.mrf.mxu0
  %v262 = vadd.f32 0.0, %v261
  %v263 = vpop.f32.mrf.mxu0
  %264 = vmatprep.mubr.bf16.mxu0 0
  %265 = vmatmul.mubr.bf16.gmra.mxu0 %v119
  %v266 = vpop.f32.mrf.mxu0
  %v267 = vadd.f32 0.0, %v266
  %v268 = vpop.f32.mrf.mxu0
  %v269 = vpop.f32.mrf.mxu0
  %v270 = vadd.f32 0.0, %v269
  %v271 = vpop.f32.mrf.mxu0
  %272 = vdwg.mxu0
  %v273 = vadd.f32 %v32, %v211
  %v274 = vadd.f32 %v33, %v214
  %v275 = vadd.f32 %v34, %v219
  %v276 = vadd.f32 %v35, %v222
  %v277 = vadd.f32 %v36, %v227
  %v278 = vadd.f32 %v37, %v230
  %v279 = vadd.f32 %v38, %v235
  %v280 = vadd.f32 %v39, %v238
  %v281 = vadd.f32 %v40, %v243
  %v282 = vadd.f32 %v41, %v246
  %v283 = vadd.f32 %v42, %v251
  %v284 = vadd.f32 %v43, %v254
  %v285 = vadd.f32 %v44, %v259
  %v286 = vadd.f32 %v45, %v262
  %v287 = vadd.f32 %v46, %v267
  %v288 = vadd.f32 %v47, %v270
  %289 = vst [vmem:[#allocation2] sm:$0xff] %v273
  %290 = vst [vmem:[#allocation2 + $0x8] sm:$0xff] %v274
  %291 = vst [vmem:[#allocation2 + $0x10] sm:$0xff] %v275
  %292 = vst [vmem:[#allocation2 + $0x18] sm:$0xff] %v276
  %293 = vst [vmem:[#allocation2 + $0x20] sm:$0xff] %v277
  %294 = vst [vmem:[#allocation2 + $0x28] sm:$0xff] %v278
  %295 = vst [vmem:[#allocation2 + $0x30] sm:$0xff] %v279
  %296 = vst [vmem:[#allocation2 + $0x38] sm:$0xff] %v280
  %297 = vst [vmem:[#allocation2 + $0x40] sm:$0xff] %v281
  %298 = vst [vmem:[#allocation2 + $0x48] sm:$0xff] %v282
  %299 = vst [vmem:[#allocation2 + $0x50] sm:$0xff] %v283
  %300 = vst [vmem:[#allocation2 + $0x58] sm:$0xff] %v284
  %301 = vst [vmem:[#allocation2 + $0x60] sm:$0xff] %v285
  %302 = vst [vmem:[#allocation2 + $0x68] sm:$0xff] %v286
  %303 = vst [vmem:[#allocation2 + $0x70] sm:$0xff] %v287
  %304 = vst [vmem:[#allocation2 + $0x78] sm:$0xff] %v288
  // Predicated region
  $region14: #{res_encoder_forward.24} parent=0 // pred_check
    %p305 = pneg %p12
  $region15: #{res_encoder_forward.24} parent=0 // pred_check_branch
    %307 = sbr.rel (%p305) target = $region17
  $region16: #{res_encoder_forward.24} parent=0 // pred_region
    %v308 = vld [vmem:[#allocation2] sm:$0xff]
    %v309 = vld [vmem:[#allocation2 + $0x8] sm:$0xff]
    %v310 = vld [vmem:[#allocation2 + $0x10] sm:$0xff]
    %v311 = vld [vmem:[#allocation2 + $0x18] sm:$0xff]
    %v312 = vld [vmem:[#allocation2 + $0x20] sm:$0xff]
    %v313 = vld [vmem:[#allocation2 + $0x28] sm:$0xff]
    %v314 = vld [vmem:[#allocation2 + $0x30] sm:$0xff]
    %v315 = vld [vmem:[#allocation2 + $0x38] sm:$0xff]
    %v316 = vld [vmem:[#allocation2 + $0x40] sm:$0xff]
    %v317 = vld [vmem:[#allocation2 + $0x48] sm:$0xff]
    %v318 = vld [vmem:[#allocation2 + $0x50] sm:$0xff]
    %v319 = vld [vmem:[#allocation2 + $0x58] sm:$0xff]
    %v320 = vld [vmem:[#allocation2 + $0x60] sm:$0xff]
    %v321 = vld [vmem:[#allocation2 + $0x68] sm:$0xff]
    %v322 = vld [vmem:[#allocation2 + $0x70] sm:$0xff]
    %v323 = vld [vmem:[#allocation2 + $0x78] sm:$0xff]
    %324 = vst [vmem:[%s2] sm:$0xff] %v308
    %325 = vst [vmem:[%s2 + $0x8] sm:$0xff] %v309
    %326 = vst [vmem:[%s2 + $0x10] sm:$0xff] %v310
    %327 = vst [vmem:[%s2 + $0x18] sm:$0xff] %v311
    %328 = vst [vmem:[%s2 + $0x20] sm:$0xff] %v312
    %329 = vst [vmem:[%s2 + $0x28] sm:$0xff] %v313
    %330 = vst [vmem:[%s2 + $0x30] sm:$0xff] %v314
    %331 = vst [vmem:[%s2 + $0x38] sm:$0xff] %v315
    %332 = vst [vmem:[%s2 + $0x40] sm:$0xff] %v316
    %333 = vst [vmem:[%s2 + $0x48] sm:$0xff] %v317
    %334 = vst [vmem:[%s2 + $0x50] sm:$0xff] %v318
    %335 = vst [vmem:[%s2 + $0x58] sm:$0xff] %v319
    %336 = vst [vmem:[%s2 + $0x60] sm:$0xff] %v320
    %337 = vst [vmem:[%s2 + $0x68] sm:$0xff] %v321
    %338 = vst [vmem:[%s2 + $0x70] sm:$0xff] %v322
    %339 = vst [vmem:[%s2 + $0x78] sm:$0xff] %v323
  $region17: #{res_encoder_forward.24} parent=0 // pred_fallthru
    _
  // Predicated region
  $region18: #{res_encoder_forward.24} parent=0 // pred_check
    _
  $region19: #{res_encoder_forward.24} parent=0 // pred_check_branch
    %341 = sbr.rel (0) target = $region21
  $region20: #{res_encoder_forward.24} parent=0 // pred_region
    _
  $region21: #{res_encoder_forward.24} parent=0 // pred_fallthru
    _
  // Predicated region
  $region22: #{res_encoder_forward.24} parent=0 // pred_check
    _
  $region23: #{res_encoder_forward.24} parent=0 // pred_check_branch
    %343 = sbr.rel (0) target = $region25
  $region24: #{res_encoder_forward.24} parent=0 // pred_region
    _
  $region25: #{res_encoder_forward.24} parent=0 // pred_fallthru
    _

// kernel: res_encoder_forward.18
$region0: #{res_encoder_forward.18}
  #allocation0 [shape = 'u32[]', space=smem, size = 0x4, offset = 0x4, fixed_abs, tag = 'smem constant byte address 0x4 - core index']
  #allocation1 [shape = 'u32[144,128]{1,0:T(1,128)}', space=vmem, size = 0x12000, scoped, tag = 'internal scratch']
  #allocation2 [shape = 'f32[256,64]{1,0:T(8,128)}', space=vmem, size = 0x20000, scoped, tag = 'scratch operand']
  %s0 = inlined_call_operand.vmem [shape: bf16[512,640], index: 0, kind: input, shape index: {}]
  %s1 = inlined_call_operand.vmem [shape: bf16[640,64], index: 1, kind: input, shape index: {}]
  %s2 = inlined_call_operand.vmem [shape: f32[512,64], index: 2, kind: output, shape index: {}]
  %s3 = sld [smem:[#allocation0]]
  $region49: #{res_encoder_forward.18} parent=0
    _
  %s5 = ssub.s32 1, %s3
  %s6 = scalar_select 0, %s5, %s3
  loop: start=0, step=1, limit=4
  $region2: #{res_encoder_forward.18} parent=0 // loop_pre_header
    _
  $region3: #{res_encoder_forward.18} parent=0 // loop_header
    %s8 = sphi 0, %s12
    %p9 = scmp.ge.s32.totalorder %s8, 4
    %s15 = sphi 0, %s27
    %s16 = sphi 0, %s23
    %s17 = sphi 0, %s15
    %s18 = sphi 0, %s16
    %s19 = sphi 0, %s17
    %s20 = sphi 0, %s18
    %s32 = sphi 0, %s34
    %s35 = sphi 0, %s32
    %s36 = sphi 0, %s35
    %s52 = sphi 0, %s36
    %s58 = sphi 0, %s60
    %s61 = sphi 0, %s58
    %s62 = sphi 0, %s61
    %s78 = sphi 0, %s62
    %s84 = sphi 0, %s86
    %s87 = sphi 0, %s84
    %s88 = sphi 0, %s87
    %s104 = sphi 0, %s88
  $region4: #{res_encoder_forward.18} parent=0 // loop_header_branch
    %11 = sbr.rel (%p9) target = $region8
  $region5: #{res_encoder_forward.18} parent=0 // loop_body
    %s13 = ssub.s32 %s8, 1
    %s14 = ssub.s32 %s8, 2
    %s21 = sadd.s32 1, %s16
    %p22 = scmp.ge.s32.totalorder %s21, 1
    %s23 = scalar_select %p22, 0, %s21
    %s24 = sadd.s32 1, %s15
    %s25 = scalar_select %p22, %s24, %s15
    %p26 = scmp.ge.s32.totalorder %s25, 2
    %s27 = scalar_select %p26, 0, %s25
    %s28 = ssub.s32 %s15, %s27
    %s29 = ssub.s32 %s16, %s23
    %s30 = sor.u32 %s28, %s29
    %p31 = scmp.eq.s32.totalorder %s30, 0
    %s33 = sadd.s32 %s32, 1
    %s34 = scalar_select %p31, %s32, %s33
    %p37 = pneg %p31
    %p38 = scmp.eq.s32.totalorder %s8, 1
    %p39 = por %p37, %p38
    %p40 = scmp.ne.s32.totalorder %s32, %s35
    %p41 = scmp.eq.s32.totalorder %s8, 0
    %p42 = por %p40, %p41
    %p43 = scmp.ne.s32.totalorder %s32, %s35
    %p44 = scmp.eq.s32.totalorder %s13, 1
    %p45 = por %p43, %p44
    %p46 = scmp.ne.s32.totalorder %s35, %s36
    %p47 = scmp.eq.s32.totalorder %s13, 0
    %p48 = por %p46, %p47
    %p49 = scmp.ne.s32.totalorder %s35, %s36
    %p50 = scmp.eq.s32.totalorder %s14, 1
    %p51 = por %p49, %p50
    %p53 = scmp.ne.s32.totalorder %s36, %s52
    %p54 = scmp.eq.s32.totalorder %s14, 0
    %p55 = por %p53, %p54
    %s56 = ssub.s32 %s16, %s23
    %p57 = scmp.eq.s32.totalorder %s56, 0
    %s59 = sadd.s32 %s58, 1
    %s60 = scalar_select %p57, %s58, %s59
    %p63 = pneg %p57
    %p64 = scmp.eq.s32.totalorder %s8, 1
    %p65 = por %p63, %p64
    %p66 = scmp.ne.s32.totalorder %s58, %s61
    %p67 = scmp.eq.s32.totalorder %s8, 0
    %p68 = por %p66, %p67
    %p69 = scmp.ne.s32.totalorder %s58, %s61
    %p70 = scmp.eq.s32.totalorder %s13, 1
    %p71 = por %p69, %p70
    %p72 = scmp.ne.s32.totalorder %s61, %s62
    %p73 = scmp.eq.s32.totalorder %s13, 0
    %p74 = por %p72, %p73
    %p75 = scmp.ne.s32.totalorder %s61, %s62
    %p76 = scmp.eq.s32.totalorder %s14, 1
    %p77 = por %p75, %p76
    %p79 = scmp.ne.s32.totalorder %s62, %s78
    %p80 = scmp.eq.s32.totalorder %s14, 0
    %p81 = por %p79, %p80
    %s82 = ssub.s32 %s15, %s27
    %p83 = scmp.eq.s32.totalorder %s82, 0
    %s85 = sadd.s32 %s84, 1
    %s86 = scalar_select %p83, %s84, %s85
    %p89 = pneg %p83
    %p90 = scmp.eq.s32.totalorder %s8, 1
    %p91 = por %p89, %p90
    %p92 = scmp.ne.s32.totalorder %s84, %s87
    %p93 = scmp.eq.s32.totalorder %s8, 0
    %p94 = por %p92, %p93
    %p95 = scmp.ne.s32.totalorder %s84, %s87
    %p96 = scmp.eq.s32.totalorder %s13, 1
    %p97 = por %p95, %p96
    %p98 = scmp.ne.s32.totalorder %s87, %s88
    %p99 = scmp.eq.s32.totalorder %s13, 0
    %p100 = por %p98, %p99
    %p101 = scmp.ne.s32.totalorder %s87, %s88
    %p102 = scmp.eq.s32.totalorder %s14, 1
    %p103 = por %p101, %p102
    %p105 = scmp.ne.s32.totalorder %s88, %s104
    %p106 = scmp.eq.s32.totalorder %s14, 0
    %p107 = por %p105, %p106
    %p108 = scmp.le.s32.totalorder 1, %s8
    %p109 = scmp.lt.s32.totalorder %s8, 3
    %p110 = pnand %p108, %p109
    %p111 = pneg %p110
    // Predicated region
    $region9: #{res_encoder_forward.18} parent=5 // pred_check
      _
    $region10: #{res_encoder_forward.18} parent=5 // pred_check_branch
      %113 = sbr.rel (%p110) target = $region12
    $region11: #{res_encoder_forward.18} parent=5 // pred_region
      %s114 = ssub.s32 %s8, 1
      // Predicated region
      $region13: #{res_encoder_forward.18} parent=11 // pred_check
        %p115 = pneg %p74
      $region14: #{res_encoder_forward.18} parent=11 // pred_check_branch
        %117 = sbr.rel (%p115) target = $region16
      $region15: #{res_encoder_forward.18} parent=11 // pred_region
        %s118 = smul.u32 80, %s18
        %p119 = scmp.lt.s32.totalorder %s118, 79
        %s120 = scalar_select %p119, %s118, 79
        %s121 = smul.addr %s120, 4
        %s122 = scalar_lea.vmem %s1, %s121
        %s123 = smul.u32 80, %s18
      $region16: #{res_encoder_forward.18} parent=11 // pred_fallthru
        _
    $region12: #{res_encoder_forward.18} parent=5 // pred_fallthru
      _
    %p124 = scmp.lt.s32.totalorder %s8, 2
    // Predicated region
    $region17: #{res_encoder_forward.18} parent=5 // pred_check
      %p125 = pneg %p124
    $region18: #{res_encoder_forward.18} parent=5 // pred_check_branch
      %127 = sbr.rel (%p125) target = $region20
    $region19: #{res_encoder_forward.18} parent=5 // pred_region
      // Predicated region
      $region21: #{res_encoder_forward.18} parent=19 // pred_check
        %p128 = pneg %p42
      $region22: #{res_encoder_forward.18} parent=19 // pred_check_branch
        %130 = sbr.rel (%p128) target = $region24
      $region23: #{res_encoder_forward.18} parent=19 // pred_region
        %s131 = smul.u32 32, %s15
        %s132 = smul.u32 5, %s16
        %p133 = scmp.lt.s32.totalorder %s131, 63
        %s134 = scalar_select %p133, %s131, 63
        %p135 = scmp.lt.s32.totalorder %s132, 4
        %s136 = scalar_select %p135, %s132, 4
        %s137 = smul.addr %s134, 5
        %s138 = sadd.s32 %s136, %s137
        %s139 = smul.addr %s138, 4
        %s140 = scalar_lea.vmem %s0, %s139
        %s141 = smul.u32 32, %s15
        %s142 = smul.u32 5, %s16
      $region24: #{res_encoder_forward.18} parent=19 // pred_fallthru
        _
    $region20: #{res_encoder_forward.18} parent=5 // pred_fallthru
      _
    %p143 = scmp.le.s32.totalorder 1, %s8
    %p144 = scmp.lt.s32.totalorder %s8, 3
    %p145 = pnand %p143, %p144
    %p146 = pneg %p145
    // Predicated region
    $region25: #{res_encoder_forward.18} parent=5 // pred_check
      _
    $region26: #{res_encoder_forward.18} parent=5 // pred_check_branch
      %148 = sbr.rel (%p145) target = $region28
    $region27: #{res_encoder_forward.18} parent=5 // pred_region
      %s149 = ssub.s32 %s8, 1
      %s150 = smul.u32 32, %s17
      %s151 = smul.u32 5, %s18
      %p152 = scmp.lt.s32.totalorder %s150, 63
      %s153 = scalar_select %p152, %s150, 63
      %p154 = scmp.lt.s32.totalorder %s151, 4
      %s155 = scalar_select %p154, %s151, 4
      %s156 = smul.addr %s153, 5
      %s157 = sadd.s32 %s155, %s156
      %s158 = smul.addr %s157, 4
      %s159 = scalar_lea.vmem %s0, %s158
      %p160 = pneg %p48
      %p161 = pneg %p45
      %s162 = smul.u32 80, %s18
      %p163 = scmp.lt.s32.totalorder %s162, 79
      %s164 = scalar_select %p163, %s162, 79
      %s165 = smul.addr %s164, 4
      %s166 = scalar_lea.vmem %s1, %s165
      %p167 = pneg %p74
      %p168 = pneg %p71
      %p169 = pneg %p100
      %p170 = pneg %p97
      %s171 = smul.u32 32, %s17
      %p172 = scmp.lt.s32.totalorder %s171, 63
      %s173 = scalar_select %p172, %s171, 63
      %s174 = smul.addr %s173, 8
      %s175 = scalar_lea.vmem %s2, %s174
      %s176 = smul.u32 32, %s17
      %s177 = smul.u32 5, %s18
      %p178 = scmp.lt.s32.totalorder %s176, 63
      %s179 = scalar_select %p178, %s176, 63
      %p180 = scmp.lt.s32.totalorder %s177, 4
      %s181 = scalar_select %p180, %s177, 4
      %s182 = smul.addr %s179, 5
      %s183 = sadd.s32 %s181, %s182
      %s184 = smul.addr %s183, 4
      %s185 = scalar_lea.vmem %s0, %s184
      %s186 = smul.u32 32, %s17
      %s187 = smul.u32 5, %s18
      %s188 = smul.u32 80, %s18
      %p189 = scmp.lt.s32.totalorder %s188, 79
      %s190 = scalar_select %p189, %s188, 79
      %s191 = smul.addr %s190, 4
      %s192 = scalar_lea.vmem %s1, %s191
      %s193 = smul.u32 80, %s18
      %s194 = smul.u32 32, %s17
      %p195 = scmp.lt.s32.totalorder %s194, 63
      %s196 = scalar_select %p195, %s194, 63
      %s197 = smul.addr %s196, 8
      %s198 = scalar_lea.vmem %s2, %s197
      %s199 = smul.u32 32, %s17
      %p201 = scmp.eq.s32.totalorder %s18, 0
      // Predicated region
      $region29: #{res_encoder_forward.18} parent=27 // pred_check
        %p202 = pneg %p201
      $region30: #{res_encoder_forward.18} parent=27 // pred_check_branch
        %204 = sbr.rel (%p202) target = $region32
      $region31: #{res_encoder_forward.18} parent=27 // pred_region
        %vm205 = vcmask 523264
        %206 = vst.msk [vmem:[#allocation2] sm:$0xff] %vm205, 0.0
        %207 = vst.msk [vmem:[#allocation2 + $0x8] sm:$0xff] %vm205, 0.0
        %208 = vst.msk [vmem:[#allocation2 + $0x10] sm:$0xff] %vm205, 0.0
        %209 = vst.msk [vmem:[#allocation2 + $0x18] sm:$0xff] %vm205, 0.0
        %210 = vst.msk [vmem:[#allocation2 + $0x20] sm:$0xff] %vm205, 0.0
        %211 = vst.msk [vmem:[#allocation2 + $0x28] sm:$0xff] %vm205, 0.0
        %212 = vst.msk [vmem:[#allocation2 + $0x30] sm:$0xff] %vm205, 0.0
        %213 = vst.msk [vmem:[#allocation2 + $0x38] sm:$0xff] %vm205, 0.0
        %214 = vst.msk [vmem:[#allocation2 + $0x40] sm:$0xff] %vm205, 0.0
        %215 = vst.msk [vmem:[#allocation2 + $0x48] sm:$0xff] %vm205, 0.0
        %216 = vst.msk [vmem:[#allocation2 + $0x50] sm:$0xff] %vm205, 0.0
        %217 = vst.msk [vmem:[#allocation2 + $0x58] sm:$0xff] %vm205, 0.0
        %218 = vst.msk [vmem:[#allocation2 + $0x60] sm:$0xff] %vm205, 0.0
        %219 = vst.msk [vmem:[#allocation2 + $0x68] sm:$0xff] %vm205, 0.0
        %220 = vst.msk [vmem:[#allocation2 + $0x70] sm:$0xff] %vm205, 0.0
        %221 = vst.msk [vmem:[#allocation2 + $0x78] sm:$0xff] %vm205, 0.0
        %222 = vst.msk [vmem:[#allocation2 + $0x80] sm:$0xff] %vm205, 0.0
        %223 = vst.msk [vmem:[#allocation2 + $0x88] sm:$0xff] %vm205, 0.0
        %224 = vst.msk [vmem:[#allocation2 + $0x90] sm:$0xff] %vm205, 0.0
        %225 = vst.msk [vmem:[#allocation2 + $0x98] sm:$0xff] %vm205, 0.0
        %226 = vst.msk [vmem:[#allocation2 + $0xa0] sm:$0xff] %vm205, 0.0
        %227 = vst.msk [vmem:[#allocation2 + $0xa8] sm:$0xff] %vm205, 0.0
        %228 = vst.msk [vmem:[#allocation2 + $0xb0] sm:$0xff] %vm205, 0.0
        %229 = vst.msk [vmem:[#allocation2 + $0xb8] sm:$0xff] %vm205, 0.0
        %230 = vst.msk [vmem:[#allocation2 + $0xc0] sm:$0xff] %vm205, 0.0
        %231 = vst.msk [vmem:[#allocation2 + $0xc8] sm:$0xff] %vm205, 0.0
        %232 = vst.msk [vmem:[#allocation2 + $0xd0] sm:$0xff] %vm205, 0.0
        %233 = vst.msk [vmem:[#allocation2 + $0xd8] sm:$0xff] %vm205, 0.0
        %234 = vst.msk [vmem:[#allocation2 + $0xe0] sm:$0xff] %vm205, 0.0
        %235 = vst.msk [vmem:[#allocation2 + $0xe8] sm:$0xff] %vm205, 0.0
        %236 = vst.msk [vmem:[#allocation2 + $0xf0] sm:$0xff] %vm205, 0.0
        %237 = vst.msk [vmem:[#allocation2 + $0xf8] sm:$0xff] %vm205, 0.0
      $region32: #{res_encoder_forward.18} parent=27 // pred_fallthru
        _
      %v238 = vld [vmem:[#allocation2] sm:$0xff]
      %v239 = vld [vmem:[#allocation2 + $0x8] sm:$0xff]
      %v240 = vld [vmem:[#allocation2 + $0x10] sm:$0xff]
      %v241 = vld [vmem:[#allocation2 + $0x18] sm:$0xff]
      %v242 = vld [vmem:[#allocation2 + $0x20] sm:$0xff]
      %v243 = vld [vmem:[#allocation2 + $0x28] sm:$0xff]
      %v244 = vld [vmem:[#allocation2 + $0x30] sm:$0xff]
      %v245 = vld [vmem:[#allocation2 + $0x38] sm:$0xff]
      %v246 = vld [vmem:[#allocation2 + $0x40] sm:$0xff]
      %v247 = vld [vmem:[#allocation2 + $0x48] sm:$0xff]
      %v248 = vld [vmem:[#allocation2 + $0x50] sm:$0xff]
      %v249 = vld [vmem:[#allocation2 + $0x58] sm:$0xff]
      %v250 = vld [vmem:[#allocation2 + $0x60] sm:$0xff]
      %v251 = vld [vmem:[#allocation2 + $0x68] sm:$0xff]
      %v252 = vld [vmem:[#allocation2 + $0x70] sm:$0xff]
      %v253 = vld [vmem:[#allocation2 + $0x78] sm:$0xff]
      %v254 = vld [vmem:[#allocation2 + $0x80] sm:$0xff]
      %v255 = vld [vmem:[#allocation2 + $0x88] sm:$0xff]
      %v256 = vld [vmem:[#allocation2 + $0x90] sm:$0xff]
      %v257 = vld [vmem:[#allocation2 + $0x98] sm:$0xff]
      %v258 = vld [vmem:[#allocation2 + $0xa0] sm:$0xff]
      %v259 = vld [vmem:[#allocation2 + $0xa8] sm:$0xff]
      %v260 = vld [vmem:[#allocation2 + $0xb0] sm:$0xff]
      %v261 = vld [vmem:[#allocation2 + $0xb8] sm:$0xff]
      %v262 = vld [vmem:[#allocation2 + $0xc0] sm:$0xff]
      %v263 = vld [vmem:[#allocation2 + $0xc8] sm:$0xff]
      %v264 = vld [vmem:[#allocation2 + $0xd0] sm:$0xff]
      %v265 = vld [vmem:[#allocation2 + $0xd8] sm:$0xff]
      %v266 = vld [vmem:[#allocation2 + $0xe0] sm:$0xff]
      %v267 = vld [vmem:[#allocation2 + $0xe8] sm:$0xff]
      %v268 = vld [vmem:[#allocation2 + $0xf0] sm:$0xff]
      %v269 = vld [vmem:[#allocation2 + $0xf8] sm:$0xff]
      %v270 = vld [vmem:[%s185] sm:$0xff]
      %v271 = vld [vmem:[%s185 + $0x8] sm:$0xff]
      %v272 = vld [vmem:[%s185 + $0x10] sm:$0xf]
      %v273 = vld [vmem:[%s185 + $0x14] sm:$0xff]
      %v274 = vld [vmem:[%s185 + $0x1c] sm:$0xff]
      %v275 = vld [vmem:[%s185 + $0x24] sm:$0xf]
      %v276 = vld [vmem:[%s185 + $0x28] sm:$0xff]
      %v277 = vld [vmem:[%s185 + $0x30] sm:$0xff]
      %v278 = vld [vmem:[%s185 + $0x38] sm:$0xf]
      %v279 = vld [vmem:[%s185 + $0x3c] sm:$0xff]
      %v280 = vld [vmem:[%s185 + $0x44] sm:$0xff]
      %v281 = vld [vmem:[%s185 + $0x4c] sm:$0xf]
      %v282 = vld [vmem:[%s185 + $0x50] sm:$0xff]
      %v283 = vld [vmem:[%s185 + $0x58] sm:$0xff]
      %v284 = vld [vmem:[%s185 + $0x60] sm:$0xf]
      %v285 = vld [vmem:[%s185 + $0x64] sm:$0xff]
      %v286 = vld [vmem:[%s185 + $0x6c] sm:$0xff]
      %v287 = vld [vmem:[%s185 + $0x74] sm:$0xf]
      %v288 = vld [vmem:[%s185 + $0x78] sm:$0xff]
      %v289 = vld [vmem:[%s185 + $0x80] sm:$0xff]
      %v290 = vld [vmem:[%s185 + $0x88] sm:$0xf]
      %v291 = vld [vmem:[%s185 + $0x8c] sm:$0xff]
      %v292 = vld [vmem:[%s185 + $0x94] sm:$0xff]
      %v293 = vld [vmem:[%s185 + $0x9c] sm:$0xf]
      %v294 = vld [vmem:[%s185 + $0xa0] sm:$0xff]
      %v295 = vld [vmem:[%s185 + $0xa8] sm:$0xff]
      %v296 = vld [vmem:[%s185 + $0xb0] sm:$0xf]
      %v297 = vld [vmem:[%s185 + $0xb4] sm:$0xff]
      %v298 = vld [vmem:[%s185 + $0xbc] sm:$0xff]
      %v299 = vld [vmem:[%s185 + $0xc4] sm:$0xf]
      %v300 = vld [vmem:[%s185 + $0xc8] sm:$0xff]
      %v301 = vld [vmem:[%s185 + $0xd0] sm:$0xff]
      %v302 = vld [vmem:[%s185 + $0xd8] sm:$0xf]
      %v303 = vld [vmem:[%s185 + $0xdc] sm:$0xff]
      %v304 = vld [vmem:[%s185 + $0xe4] sm:$0xff]
      %v305 = vld [vmem:[%s185 + $0xec] sm:$0xf]
      %v306 = vld [vmem:[%s185 + $0xf0] sm:$0xff]
      %v307 = vld [vmem:[%s185 + $0xf8] sm:$0xff]
      %v308 = vld [vmem:[%s185 + $0x100] sm:$0xf]
      %v309 = vld [vmem:[%s185 + $0x104] sm:$0xff]
      %v310 = vld [vmem:[%s185 + $0x10c] sm:$0xff]
      %v311 = vld [vmem:[%s185 + $0x114] sm:$0xf]
      %v312 = vld [vmem:[%s185 + $0x118] sm:$0xff]
      %v313 = vld [vmem:[%s185 + $0x120] sm:$0xff]
      %v314 = vld [vmem:[%s185 + $0x128] sm:$0xf]
      %v315 = vld [vmem:[%s185 + $0x12c] sm:$0xff]
      %v316 = vld [vmem:[%s185 + $0x134] sm:$0xff]
      %v317 = vld [vmem:[%s185 + $0x13c] sm:$0xf]
      %v318 = vld [vmem:[%s185 + $0x140] sm:$0xff]
      %v319 = vld [vmem:[%s185 + $0x148] sm:$0xff]
      %v320 = vld [vmem:[%s185 + $0x150] sm:$0xf]
      %v321 = vld [vmem:[%s185 + $0x154] sm:$0xff]
      %v322 = vld [vmem:[%s185 + $0x15c] sm:$0xff]
      %v323 = vld [vmem:[%s185 + $0x164] sm:$0xf]
      %v324 = vld [vmem:[%s185 + $0x168] sm:$0xff]
      %v325 = vld [vmem:[%s185 + $0x170] sm:$0xff]
      %v326 = vld [vmem:[%s185 + $0x178] sm:$0xf]
      %v327 = vld [vmem:[%s185 + $0x17c] sm:$0xff]
      %v328 = vld [vmem:[%s185 + $0x184] sm:$0xff]
      %v329 = vld [vmem:[%s185 + $0x18c] sm:$0xf]
      %v330 = vld [vmem:[%s185 + $0x190] sm:$0xff]
      %v331 = vld [vmem:[%s185 + $0x198] sm:$0xff]
      %v332 = vld [vmem:[%s185 + $0x1a0] sm:$0xf]
      %v333 = vld [vmem:[%s185 + $0x1a4] sm:$0xff]
      %v334 = vld [vmem:[%s185 + $0x1ac] sm:$0xff]
      %v335 = vld [vmem:[%s185 + $0x1b4] sm:$0xf]
      %v336 = vld [vmem:[%s185 + $0x1b8] sm:$0xff]
      %v337 = vld [vmem:[%s185 + $0x1c0] sm:$0xff]
      %v338 = vld [vmem:[%s185 + $0x1c8] sm:$0xf]
      %v339 = vld [vmem:[%s185 + $0x1cc] sm:$0xff]
      %v340 = vld [vmem:[%s185 + $0x1d4] sm:$0xff]
      %v341 = vld [vmem:[%s185 + $0x1dc] sm:$0xf]
      %v342 = vld [vmem:[%s185 + $0x1e0] sm:$0xff]
      %v343 = vld [vmem:[%s185 + $0x1e8] sm:$0xff]
      %v344 = vld [vmem:[%s185 + $0x1f0] sm:$0xf]
      %v345 = vld [vmem:[%s185 + $0x1f4] sm:$0xff]
      %v346 = vld [vmem:[%s185 + $0x1fc] sm:$0xff]
      %v347 = vld [vmem:[%s185 + $0x204] sm:$0xf]
      %v348 = vld [vmem:[%s185 + $0x208] sm:$0xff]
      %v349 = vld [vmem:[%s185 + $0x210] sm:$0xff]
      %v350 = vld [vmem:[%s185 + $0x218] sm:$0xf]
      %v351 = vld [vmem:[%s185 + $0x21c] sm:$0xff]
      %v352 = vld [vmem:[%s185 + $0x224] sm:$0xff]
      %v353 = vld [vmem:[%s185 + $0x22c] sm:$0xf]
      %v354 = vld [vmem:[%s185 + $0x230] sm:$0xff]
      %v355 = vld [vmem:[%s185 + $0x238] sm:$0xff]
      %v356 = vld [vmem:[%s185 + $0x240] sm:$0xf]
      %v357 = vld [vmem:[%s185 + $0x244] sm:$0xff]
      %v358 = vld [vmem:[%s185 + $0x24c] sm:$0xff]
      %v359 = vld [vmem:[%s185 + $0x254] sm:$0xf]
      %v360 = vld [vmem:[%s185 + $0x258] sm:$0xff]
      %v361 = vld [vmem:[%s185 + $0x260] sm:$0xff]
      %v362 = vld [vmem:[%s185 + $0x268] sm:$0xf]
      %v363 = vld [vmem:[%s185 + $0x26c] sm:$0xff]
      %v364 = vld [vmem:[%s185 + $0x274] sm:$0xff]
      %v365 = vld [vmem:[%s185 + $0x27c] sm:$0xf]
      %v366 = vld [vmem:[%s192] sm:$0xf]
      %v367 = vld [vmem:[%s192 + $0x4] sm:$0xf]
      %v368 = vld [vmem:[%s192 + $0x8] sm:$0xf]
      %v369 = vld [vmem:[%s192 + $0xc] sm:$0xf]
      %v370 = vld [vmem:[%s192 + $0x10] sm:$0xf]
      %v371 = vld [vmem:[%s192 + $0x14] sm:$0xf]
      %v372 = vld [vmem:[%s192 + $0x18] sm:$0xf]
      %v373 = vld [vmem:[%s192 + $0x1c] sm:$0xf]
      %v374 = vld [vmem:[%s192 + $0x20] sm:$0xf]
      %v375 = vld [vmem:[%s192 + $0x24] sm:$0xf]
      %v376 = vld [vmem:[%s192 + $0x28] sm:$0xf]
      %v377 = vld [vmem:[%s192 + $0x2c] sm:$0xf]
      %v378 = vld [vmem:[%s192 + $0x30] sm:$0xf]
      %v379 = vld [vmem:[%s192 + $0x34] sm:$0xf]
      %v380 = vld [vmem:[%s192 + $0x38] sm:$0xf]
      %v381 = vld [vmem:[%s192 + $0x3c] sm:$0xf]
      %v382 = vld [vmem:[%s192 + $0x40] sm:$0xf]
      %v383 = vld [vmem:[%s192 + $0x44] sm:$0xf]
      %v384 = vld [vmem:[%s192 + $0x48] sm:$0xf]
      %v385 = vld [vmem:[%s192 + $0x4c] sm:$0xf]
      %v386 = vld [vmem:[%s192 + $0x50] sm:$0xf]
      %v387 = vld [vmem:[%s192 + $0x54] sm:$0xf]
      %v388 = vld [vmem:[%s192 + $0x58] sm:$0xf]
      %v389 = vld [vmem:[%s192 + $0x5c] sm:$0xf]
      %v390 = vld [vmem:[%s192 + $0x60] sm:$0xf]
      %v391 = vld [vmem:[%s192 + $0x64] sm:$0xf]
      %v392 = vld [vmem:[%s192 + $0x68] sm:$0xf]
      %v393 = vld [vmem:[%s192 + $0x6c] sm:$0xf]
      %v394 = vld [vmem:[%s192 + $0x70] sm:$0xf]
      %v395 = vld [vmem:[%s192 + $0x74] sm:$0xf]
      %v396 = vld [vmem:[%s192 + $0x78] sm:$0xf]
      %v397 = vld [vmem:[%s192 + $0x7c] sm:$0xf]
      %v398 = vld [vmem:[%s192 + $0x80] sm:$0xf]
      %v399 = vld [vmem:[%s192 + $0x84] sm:$0xf]
      %v400 = vld [vmem:[%s192 + $0x88] sm:$0xf]
      %v401 = vld [vmem:[%s192 + $0x8c] sm:$0xf]
      %v402 = vld [vmem:[%s192 + $0x90] sm:$0xf]
      %v403 = vld [vmem:[%s192 + $0x94] sm:$0xf]
      %v404 = vld [vmem:[%s192 + $0x98] sm:$0xf]
      %v405 = vld [vmem:[%s192 + $0x9c] sm:$0xf]
      %v406 = vld [vmem:[%s192 + $0xa0] sm:$0xf]
      %v407 = vld [vmem:[%s192 + $0xa4] sm:$0xf]
      %v408 = vld [vmem:[%s192 + $0xa8] sm:$0xf]
      %v409 = vld [vmem:[%s192 + $0xac] sm:$0xf]
      %v410 = vld [vmem:[%s192 + $0xb0] sm:$0xf]
      %v411 = vld [vmem:[%s192 + $0xb4] sm:$0xf]
      %v412 = vld [vmem:[%s192 + $0xb8] sm:$0xf]
      %v413 = vld [vmem:[%s192 + $0xbc] sm:$0xf]
      %v414 = vld [vmem:[%s192 + $0xc0] sm:$0xf]
      %v415 = vld [vmem:[%s192 + $0xc4] sm:$0xf]
      %v416 = vld [vmem:[%s192 + $0xc8] sm:$0xf]
      %v417 = vld [vmem:[%s192 + $0xcc] sm:$0xf]
      %v418 = vld [vmem:[%s192 + $0xd0] sm:$0xf]
      %v419 = vld [vmem:[%s192 + $0xd4] sm:$0xf]
      %v420 = vld [vmem:[%s192 + $0xd8] sm:$0xf]
      %v421 = vld [vmem:[%s192 + $0xdc] sm:$0xf]
      %v422 = vld [vmem:[%s192 + $0xe0] sm:$0xf]
      %v423 = vld [vmem:[%s192 + $0xe4] sm:$0xf]
      %v424 = vld [vmem:[%s192 + $0xe8] sm:$0xf]
      %v425 = vld [vmem:[%s192 + $0xec] sm:$0xf]
      %v426 = vld [vmem:[%s192 + $0xf0] sm:$0xf]
      %v427 = vld [vmem:[%s192 + $0xf4] sm:$0xf]
      %v428 = vld [vmem:[%s192 + $0xf8] sm:$0xf]
      %v429 = vld [vmem:[%s192 + $0xfc] sm:$0xf]
      %v430 = vld [vmem:[%s192 + $0x100] sm:$0xf]
      %v431 = vld [vmem:[%s192 + $0x104] sm:$0xf]
      %v432 = vld [vmem:[%s192 + $0x108] sm:$0xf]
      %v433 = vld [vmem:[%s192 + $0x10c] sm:$0xf]
      %v434 = vld [vmem:[%s192 + $0x110] sm:$0xf]
      %v435 = vld [vmem:[%s192 + $0x114] sm:$0xf]
      %v436 = vld [vmem:[%s192 + $0x118] sm:$0xf]
      %v437 = vld [vmem:[%s192 + $0x11c] sm:$0xf]
      %v438 = vld [vmem:[%s192 + $0x120] sm:$0xf]
      %v439 = vld [vmem:[%s192 + $0x124] sm:$0xf]
      %v440 = vld [vmem:[%s192 + $0x128] sm:$0xf]
      %v441 = vld [vmem:[%s192 + $0x12c] sm:$0xf]
      %v442 = vld [vmem:[%s192 + $0x130] sm:$0xf]
      %v443 = vld [vmem:[%s192 + $0x134] sm:$0xf]
      %v444 = vld [vmem:[%s192 + $0x138] sm:$0xf]
      %v445 = vld [vmem:[%s192 + $0x13c] sm:$0xf]
      %v542 = vunpack.c.l.b16 %v270
      %v543 = vunpack.c.h.b16 %v270
      %v544 = vunpack.c.l.b16 %v271
      %v545 = vunpack.c.h.b16 %v271
      %v546 = vunpack.c.l.b16 %v272
      %v547 = vunpack.c.l.b16 %v273
      %v548 = vunpack.c.h.b16 %v273
      %v549 = vunpack.c.l.b16 %v274
      %v550 = vunpack.c.h.b16 %v274
      %v551 = vunpack.c.l.b16 %v275
      %v552 = vunpack.c.l.b16 %v276
      %v553 = vunpack.c.h.b16 %v276
      %v554 = vunpack.c.l.b16 %v277
      %v555 = vunpack.c.h.b16 %v277
      %v556 = vunpack.c.l.b16 %v278
      %v557 = vunpack.c.l.b16 %v279
      %v558 = vunpack.c.h.b16 %v279
      %v559 = vunpack.c.l.b16 %v280
      %v560 = vunpack.c.h.b16 %v280
      %v561 = vunpack.c.l.b16 %v281
      %v562 = vunpack.c.l.b16 %v282
      %v563 = vunpack.c.h.b16 %v282
      %v564 = vunpack.c.l.b16 %v283
      %v565 = vunpack.c.h.b16 %v283
      %v566 = vunpack.c.l.b16 %v284
      %v567 = vunpack.c.l.b16 %v285
      %v568 = vunpack.c.h.b16 %v285
      %v569 = vunpack.c.l.b16 %v286
      %v570 = vunpack.c.h.b16 %v286
      %v571 = vunpack.c.l.b16 %v287
      %v572 = vunpack.c.l.b16 %v288
      %v573 = vunpack.c.h.b16 %v288
      %v574 = vunpack.c.l.b16 %v289
      %v575 = vunpack.c.h.b16 %v289
      %v576 = vunpack.c.l.b16 %v290
      %v577 = vunpack.c.l.b16 %v291
      %v578 = vunpack.c.h.b16 %v291
      %v579 = vunpack.c.l.b16 %v292
      %v580 = vunpack.c.h.b16 %v292
      %v581 = vunpack.c.l.b16 %v293
      %v582 = vunpack.c.l.b16 %v294
      %v583 = vunpack.c.h.b16 %v294
      %v584 = vunpack.c.l.b16 %v295
      %v585 = vunpack.c.h.b16 %v295
      %v586 = vunpack.c.l.b16 %v296
      %v587 = vunpack.c.l.b16 %v297
      %v588 = vunpack.c.h.b16 %v297
      %v589 = vunpack.c.l.b16 %v298
      %v590 = vunpack.c.h.b16 %v298
      %v591 = vunpack.c.l.b16 %v299
      %v592 = vunpack.c.l.b16 %v300
      %v593 = vunpack.c.h.b16 %v300
      %v594 = vunpack.c.l.b16 %v301
      %v595 = vunpack.c.h.b16 %v301
      %v596 = vunpack.c.l.b16 %v302
      %v597 = vunpack.c.l.b16 %v303
      %v598 = vunpack.c.h.b16 %v303
      %v599 = vunpack.c.l.b16 %v304
      %v600 = vunpack.c.h.b16 %v304
      %v601 = vunpack.c.l.b16 %v305
      %v602 = vunpack.c.l.b16 %v306
      %v603 = vunpack.c.h.b16 %v306
      %v604 = vunpack.c.l.b16 %v307
      %v605 = vunpack.c.h.b16 %v307
      %v606 = vunpack.c.l.b16 %v308
      %v607 = vunpack.c.l.b16 %v309
      %v608 = vunpack.c.h.b16 %v309
      %v609 = vunpack.c.l.b16 %v310
      %v610 = vunpack.c.h.b16 %v310
      %v611 = vunpack.c.l.b16 %v311
      %v612 = vunpack.c.l.b16 %v312
      %v613 = vunpack.c.h.b16 %v312
      %v614 = vunpack.c.l.b16 %v313
      %v615 = vunpack.c.h.b16 %v313
      %v616 = vunpack.c.l.b16 %v314
      %v617 = vunpack.c.l.b16 %v315
      %v618 = vunpack.c.h.b16 %v315
      %v619 = vunpack.c.l.b16 %v316
      %v620 = vunpack.c.h.b16 %v316
      %v621 = vunpack.c.l.b16 %v317
      %v622 = vunpack.c.l.b16 %v318
      %v623 = vunpack.c.h.b16 %v318
      %v624 = vunpack.c.l.b16 %v319
      %v625 = vunpack.c.h.b16 %v319
      %v626 = vunpack.c.l.b16 %v320
      %v627 = vunpack.c.l.b16 %v321
      %v628 = vunpack.c.h.b16 %v321
      %v629 = vunpack.c.l.b16 %v322
      %v630 = vunpack.c.h.b16 %v322
      %v631 = vunpack.c.l.b16 %v323
      %v632 = vunpack.c.l.b16 %v324
      %v633 = vunpack.c.h.b16 %v324
      %v634 = vunpack.c.l.b16 %v325
      %v635 = vunpack.c.h.b16 %v325
      %v636 = vunpack.c.l.b16 %v326
      %v637 = vunpack.c.l.b16 %v327
      %v638 = vunpack.c.h.b16 %v327
      %v639 = vunpack.c.l.b16 %v328
      %v640 = vunpack.c.h.b16 %v328
      %v641 = vunpack.c.l.b16 %v329
      %v642 = vunpack.c.l.b16 %v330
      %v643 = vunpack.c.h.b16 %v330
      %v644 = vunpack.c.l.b16 %v331
      %v645 = vunpack.c.h.b16 %v331
      %v646 = vunpack.c.l.b16 %v332
      %v647 = vunpack.c.l.b16 %v333
      %v648 = vunpack.c.h.b16 %v333
      %v649 = vunpack.c.l.b16 %v334
      %v650 = vunpack.c.h.b16 %v334
      %v651 = vunpack.c.l.b16 %v335
      %v652 = vunpack.c.l.b16 %v336
      %v653 = vunpack.c.h.b16 %v336
      %v654 = vunpack.c.l.b16 %v337
      %v655 = vunpack.c.h.b16 %v337
      %v656 = vunpack.c.l.b16 %v338
      %v657 = vunpack.c.l.b16 %v339
      %v658 = vunpack.c.h.b16 %v339
      %v659 = vunpack.c.l.b16 %v340
      %v660 = vunpack.c.h.b16 %v340
      %v661 = vunpack.c.l.b16 %v341
      %v662 = vunpack.c.l.b16 %v342
      %v663 = vunpack.c.h.b16 %v342
      %v664 = vunpack.c.l.b16 %v343
      %v665 = vunpack.c.h.b16 %v343
      %v666 = vunpack.c.l.b16 %v344
      %v667 = vunpack.c.l.b16 %v345
      %v668 = vunpack.c.h.b16 %v345
      %v669 = vunpack.c.l.b16 %v346
      %v670 = vunpack.c.h.b16 %v346
      %v671 = vunpack.c.l.b16 %v347
      %v672 = vunpack.c.l.b16 %v348
      %v673 = vunpack.c.h.b16 %v348
      %v674 = vunpack.c.l.b16 %v349
      %v675 = vunpack.c.h.b16 %v349
      %v676 = vunpack.c.l.b16 %v350
      %v677 = vunpack.c.l.b16 %v351
      %v678 = vunpack.c.h.b16 %v351
      %v679 = vunpack.c.l.b16 %v352
      %v680 = vunpack.c.h.b16 %v352
      %v681 = vunpack.c.l.b16 %v353
      %v682 = vunpack.c.l.b16 %v354
      %v683 = vunpack.c.h.b16 %v354
      %v684 = vunpack.c.l.b16 %v355
      %v685 = vunpack.c.h.b16 %v355
      %v686 = vunpack.c.l.b16 %v356
      %v687 = vunpack.c.l.b16 %v357
      %v688 = vunpack.c.h.b16 %v357
      %v689 = vunpack.c.l.b16 %v358
      %v690 = vunpack.c.h.b16 %v358
      %v691 = vunpack.c.l.b16 %v359
      %v692 = vunpack.c.l.b16 %v360
      %v693 = vunpack.c.h.b16 %v360
      %v694 = vunpack.c.l.b16 %v361
      %v695 = vunpack.c.h.b16 %v361
      %v696 = vunpack.c.l.b16 %v362
      %v697 = vunpack.c.l.b16 %v363
      %v698 = vunpack.c.h.b16 %v363
      %v699 = vunpack.c.l.b16 %v364
      %v700 = vunpack.c.h.b16 %v364
      %v701 = vunpack.c.l.b16 %v365
      %v702 = vpack.c.b16 %v547, %v542
      %v703 = vpack.c.b16 %v548, %v543
      %v704 = vpack.c.b16 %v549, %v544
      %v705 = vpack.c.b16 %v550, %v545
      %v706 = vpack.c.b16 %v551, %v546
      %v707 = vpack.c.b16 %v557, %v552
      %v708 = vpack.c.b16 %v558, %v553
      %v709 = vpack.c.b16 %v559, %v554
      %v710 = vpack.c.b16 %v560, %v555
      %v711 = vpack.c.b16 %v561, %v556
      %v712 = vpack.c.b16 %v567, %v562
      %v713 = vpack.c.b16 %v568, %v563
      %v714 = vpack.c.b16 %v569, %v564
      %v715 = vpack.c.b16 %v570, %v565
      %v716 = vpack.c.b16 %v571, %v566
      %v717 = vpack.c.b16 %v577, %v572
      %v718 = vpack.c.b16 %v578, %v573
      %v719 = vpack.c.b16 %v579, %v574
      %v720 = vpack.c.b16 %v580, %v575
      %v721 = vpack.c.b16 %v581, %v576
      %v722 = vpack.c.b16 %v587, %v582
      %v723 = vpack.c.b16 %v588, %v583
      %v724 = vpack.c.b16 %v589, %v584
      %v725 = vpack.c.b16 %v590, %v585
      %v726 = vpack.c.b16 %v591, %v586
      %v727 = vpack.c.b16 %v597, %v592
      %v728 = vpack.c.b16 %v598, %v593
      %v729 = vpack.c.b16 %v599, %v594
      %v730 = vpack.c.b16 %v600, %v595
      %v731 = vpack.c.b16 %v601, %v596
      %v732 = vpack.c.b16 %v607, %v602
      %v733 = vpack.c.b16 %v608, %v603
      %v734 = vpack.c.b16 %v609, %v604
      %v735 = vpack.c.b16 %v610, %v605
      %v736 = vpack.c.b16 %v611, %v606
      %v737 = vpack.c.b16 %v617, %v612
      %v738 = vpack.c.b16 %v618, %v613
      %v739 = vpack.c.b16 %v619, %v614
      %v740 = vpack.c.b16 %v620, %v615
      %v741 = vpack.c.b16 %v621, %v616
      %v742 = vpack.c.b16 %v627, %v622
      %v743 = vpack.c.b16 %v628, %v623
      %v744 = vpack.c.b16 %v629, %v624
      %v745 = vpack.c.b16 %v630, %v625
      %v746 = vpack.c.b16 %v631, %v626
      %v747 = vpack.c.b16 %v637, %v632
      %v748 = vpack.c.b16 %v638, %v633
      %v749 = vpack.c.b16 %v639, %v634
      %v750 = vpack.c.b16 %v640, %v635
      %v751 = vpack.c.b16 %v641, %v636
      %v752 = vpack.c.b16 %v647, %v642
      %v753 = vpack.c.b16 %v648, %v643
      %v754 = vpack.c.b16 %v649, %v644
      %v755 = vpack.c.b16 %v650, %v645
      %v756 = vpack.c.b16 %v651, %v646
      %v757 = vpack.c.b16 %v657, %v652
      %v758 = vpack.c.b16 %v658, %v653
      %v759 = vpack.c.b16 %v659, %v654
      %v760 = vpack.c.b16 %v660, %v655
      %v761 = vpack.c.b16 %v661, %v656
      %v762 = vpack.c.b16 %v667, %v662
      %v763 = vpack.c.b16 %v668, %v663
      %v764 = vpack.c.b16 %v669, %v664
      %v765 = vpack.c.b16 %v670, %v665
      %v766 = vpack.c.b16 %v671, %v666
      %v767 = vpack.c.b16 %v677, %v672
      %v768 = vpack.c.b16 %v678, %v673
      %v769 = vpack.c.b16 %v679, %v674
      %v770 = vpack.c.b16 %v680, %v675
      %v771 = vpack.c.b16 %v681, %v676
      %v772 = vpack.c.b16 %v687, %v682
      %v773 = vpack.c.b16 %v688, %v683
      %v774 = vpack.c.b16 %v689, %v684
      %v775 = vpack.c.b16 %v690, %v685
      %v776 = vpack.c.b16 %v691, %v686
      %v777 = vpack.c.b16 %v697, %v692
      %v778 = vpack.c.b16 %v698, %v693
      %v779 = vpack.c.b16 %v699, %v694
      %v780 = vpack.c.b16 %v700, %v695
      %v781 = vpack.c.b16 %v701, %v696
      %v942 = vunpack.c.l.b16 %v366
      %v943 = vunpack.c.l.b16 %v367
      %v944 = vunpack.c.l.b16 %v368
      %v945 = vunpack.c.l.b16 %v369
      %v946 = vunpack.c.l.b16 %v370
      %v947 = vunpack.c.l.b16 %v371
      %v948 = vunpack.c.l.b16 %v372
      %v949 = vunpack.c.l.b16 %v373
      %v950 = vunpack.c.l.b16 %v374
      %v951 = vunpack.c.l.b16 %v375
      %v952 = vunpack.c.l.b16 %v376
      %v953 = vunpack.c.l.b16 %v377
      %v954 = vunpack.c.l.b16 %v378
      %v955 = vunpack.c.l.b16 %v379
      %v956 = vunpack.c.l.b16 %v380
      %v957 = vunpack.c.l.b16 %v381
      %v958 = vunpack.c.l.b16 %v382
      %v959 = vunpack.c.l.b16 %v383
      %v960 = vunpack.c.l.b16 %v384
      %v961 = vunpack.c.l.b16 %v385
      %v962 = vunpack.c.l.b16 %v386
      %v963 = vunpack.c.l.b16 %v387
      %v964 = vunpack.c.l.b16 %v388
      %v965 = vunpack.c.l.b16 %v389
      %v966 = vunpack.c.l.b16 %v390
      %v967 = vunpack.c.l.b16 %v391
      %v968 = vunpack.c.l.b16 %v392
      %v969 = vunpack.c.l.b16 %v393
      %v970 = vunpack.c.l.b16 %v394
      %v971 = vunpack.c.l.b16 %v395
      %v972 = vunpack.c.l.b16 %v396
      %v973 = vunpack.c.l.b16 %v397
      %v974 = vunpack.c.l.b16 %v398
      %v975 = vunpack.c.l.b16 %v399
      %v976 = vunpack.c.l.b16 %v400
      %v977 = vunpack.c.l.b16 %v401
      %v978 = vunpack.c.l.b16 %v402
      %v979 = vunpack.c.l.b16 %v403
      %v980 = vunpack.c.l.b16 %v404
      %v981 = vunpack.c.l.b16 %v405
      %v982 = vunpack.c.l.b16 %v406
      %v983 = vunpack.c.l.b16 %v407
      %v984 = vunpack.c.l.b16 %v408
      %v985 = vunpack.c.l.b16 %v409
      %v986 = vunpack.c.l.b16 %v410
      %v987 = vunpack.c.l.b16 %v411
      %v988 = vunpack.c.l.b16 %v412
      %v989 = vunpack.c.l.b16 %v413
      %v990 = vunpack.c.l.b16 %v414
      %v991 = vunpack.c.l.b16 %v415
      %v992 = vunpack.c.l.b16 %v416
      %v993 = vunpack.c.l.b16 %v417
      %v994 = vunpack.c.l.b16 %v418
      %v995 = vunpack.c.l.b16 %v419
      %v996 = vunpack.c.l.b16 %v420
      %v997 = vunpack.c.l.b16 %v421
      %v998 = vunpack.c.l.b16 %v422
      %v999 = vunpack.c.l.b16 %v423
      %v1000 = vunpack.c.l.b16 %v424
      %v1001 = vunpack.c.l.b16 %v425
      %v1002 = vunpack.c.l.b16 %v426
      %v1003 = vunpack.c.l.b16 %v427
      %v1004 = vunpack.c.l.b16 %v428
      %v1005 = vunpack.c.l.b16 %v429
      %v1006 = vunpack.c.l.b16 %v430
      %v1007 = vunpack.c.l.b16 %v431
      %v1008 = vunpack.c.l.b16 %v432
      %v1009 = vunpack.c.l.b16 %v433
      %v1010 = vunpack.c.l.b16 %v434
      %v1011 = vunpack.c.l.b16 %v435
      %v1012 = vunpack.c.l.b16 %v436
      %v1013 = vunpack.c.l.b16 %v437
      %v1014 = vunpack.c.l.b16 %v438
      %v1015 = vunpack.c.l.b16 %v439
      %v1016 = vunpack.c.l.b16 %v440
      %v1017 = vunpack.c.l.b16 %v441
      %v1018 = vunpack.c.l.b16 %v442
      %v1019 = vunpack.c.l.b16 %v443
      %v1020 = vunpack.c.l.b16 %v444
      %v1021 = vunpack.c.l.b16 %v445
      %v1022 = vpack.c.b16 %v943, %v942
      %v1023 = vpack.c.b16 %v945, %v944
      %v1024 = vpack.c.b16 %v947, %v946
      %v1025 = vpack.c.b16 %v949, %v948
      %v1026 = vpack.c.b16 %v951, %v950
      %v1027 = vpack.c.b16 %v953, %v952
      %v1028 = vpack.c.b16 %v955, %v954
      %v1029 = vpack.c.b16 %v957, %v956
      %v1030 = vpack.c.b16 %v959, %v958
      %v1031 = vpack.c.b16 %v961, %v960
      %v1032 = vpack.c.b16 %v963, %v962
      %v1033 = vpack.c.b16 %v965, %v964
      %v1034 = vpack.c.b16 %v967, %v966
      %v1035 = vpack.c.b16 %v969, %v968
      %v1036 = vpack.c.b16 %v971, %v970
      %v1037 = vpack.c.b16 %v973, %v972
      %v1038 = vpack.c.b16 %v975, %v974
      %v1039 = vpack.c.b16 %v977, %v976
      %v1040 = vpack.c.b16 %v979, %v978
      %v1041 = vpack.c.b16 %v981, %v980
      %v1042 = vpack.c.b16 %v983, %v982
      %v1043 = vpack.c.b16 %v985, %v984
      %v1044 = vpack.c.b16 %v987, %v986
      %v1045 = vpack.c.b16 %v989, %v988
      %v1046 = vpack.c.b16 %v991, %v990
      %v1047 = vpack.c.b16 %v993, %v992
      %v1048 = vpack.c.b16 %v995, %v994
      %v1049 = vpack.c.b16 %v997, %v996
      %v1050 = vpack.c.b16 %v999, %v998
      %v1051 = vpack.c.b16 %v1001, %v1000
      %v1052 = vpack.c.b16 %v1003, %v1002
      %v1053 = vpack.c.b16 %v1005, %v1004
      %v1054 = vpack.c.b16 %v1007, %v1006
      %v1055 = vpack.c.b16 %v1009, %v1008
      %v1056 = vpack.c.b16 %v1011, %v1010
      %v1057 = vpack.c.b16 %v1013, %v1012
      %v1058 = vpack.c.b16 %v1015, %v1014
      %v1059 = vpack.c.b16 %v1017, %v1016
      %v1060 = vpack.c.b16 %v1019, %v1018
      %v1061 = vpack.c.b16 %v1021, %v1020
      %1102 = vmatprep.subr.bf16.mxu0 0
      %1103 = vmatpush1.bf16.msra.mxu0 %v1029
      %1104 = vmatprep.subr.bf16.mxu0 0
      %1105 = vmatpush1.bf16.msra.mxu0 %v1028
      %1106 = vmatprep.subr.bf16.mxu0 0
      %1107 = vmatpush1.bf16.msra.mxu0 %v1027
      %1108 = vmatprep.subr.bf16.mxu0 0
      %1109 = vmatpush1.bf16.msra.mxu0 %v1026
      %1110 = vmatprep.subr.bf16.mxu0 0
      %1111 = vmatpush1.bf16.msra.mxu0 %v1025
      %1112 = vmatprep.subr.bf16.mxu0 0
      %1113 = vmatpush1.bf16.msra.mxu0 %v1024
      %1114 = vmatprep.subr.bf16.mxu0 0
      %1115 = vmatpush1.bf16.msra.mxu0 %v1023
      %1116 = vmatprep.subr.bf16.mxu0 0
      %1117 = vmatpush1.bf16.msra.mxu0 %v1022
      %1118 = vmatprep.subr.bf16.mxu0 0
      %1119 = vmatpush2.bf16.msra.mxu0 %v1037
      %1120 = vmatprep.subr.bf16.mxu0 0
      %1121 = vmatpush2.bf16.msra.mxu0 %v1036
      %1122 = vmatprep.subr.bf16.mxu0 0
      %1123 = vmatpush2.bf16.msra.mxu0 %v1035
      %1124 = vmatprep.subr.bf16.mxu0 0
      %1125 = vmatpush2.bf16.msra.mxu0 %v1034
      %1126 = vmatprep.subr.bf16.mxu0 0
      %1127 = vmatpush2.bf16.msra.mxu0 %v1033
      %1128 = vmatprep.subr.bf16.mxu0 0
      %1129 = vmatpush2.bf16.msra.mxu0 %v1032
      %1130 = vmatprep.subr.bf16.mxu0 0
      %1131 = vmatpush2.bf16.msra.mxu0 %v1031
      %1132 = vmatprep.subr.bf16.mxu0 0
      %1133 = vmatpush2.bf16.msra.mxu0 %v1030
      %1134 = vmatprep.mubr.bf16.mxu0 %v703
      %1135 = vmatmul.mubr.bf16.gmra.mxu0 %v702
      %v1136 = vpop.f32.mrf.mxu0
      %v1137 = vadd.f32 0.0, %v1136
      %v1138 = vpop.f32.mrf.mxu0
      %v1139 = vpop.f32.mrf.mxu0
      %v1140 = vadd.f32 0.0, %v1139
      %v1141 = vpop.f32.mrf.mxu0
      %1142 = vmatprep.mubr.bf16.mxu0 %v708
      %1143 = vmatmul.mubr.bf16.gmra.mxu0 %v707
      %v1144 = vpop.f32.mrf.mxu0
      %v1145 = vadd.f32 0.0, %v1144
      %v1146 = vpop.f32.mrf.mxu0
      %v1147 = vpop.f32.mrf.mxu0
      %v1148 = vadd.f32 0.0, %v1147
      %v1149 = vpop.f32.mrf.mxu0
      %1150 = vmatprep.mubr.bf16.mxu0 %v713
      %1151 = vmatmul.mubr.bf16.gmra.mxu0 %v712
      %v1152 = vpop.f32.mrf.mxu0
      %v1153 = vadd.f32 0.0, %v1152
      %v1154 = vpop.f32.mrf.mxu0
      %v1155 = vpop.f32.mrf.mxu0
      %v1156 = vadd.f32 0.0, %v1155
      %v1157 = vpop.f32.mrf.mxu0
      %1158 = vmatprep.mubr.bf16.mxu0 %v718
      %1159 = vmatmul.mubr.bf16.gmra.mxu0 %v717
      %v1160 = vpop.f32.mrf.mxu0
      %v1161 = vadd.f32 0.0, %v1160
      %v1162 = vpop.f32.mrf.mxu0
      %v1163 = vpop.f32.mrf.mxu0
      %v1164 = vadd.f32 0.0, %v1163
      %v1165 = vpop.f32.mrf.mxu0
      %1166 = vmatprep.mubr.bf16.mxu0 %v723
      %1167 = vmatmul.mubr.bf16.gmra.mxu0 %v722
      %v1168 = vpop.f32.mrf.mxu0
      %v1169 = vadd.f32 0.0, %v1168
      %v1170 = vpop.f32.mrf.mxu0
      %v1171 = vpop.f32.mrf.mxu0
      %v1172 = vadd.f32 0.0, %v1171
      %v1173 = vpop.f32.mrf.mxu0
      %1174 = vmatprep.mubr.bf16.mxu0 %v728
      %1175 = vmatmul.mubr.bf16.gmra.mxu0 %v727
      %v1176 = vpop.f32.mrf.mxu0
      %v1177 = vadd.f32 0.0, %v1176
      %v1178 = vpop.f32.mrf.mxu0
      %v1179 = vpop.f32.mrf.mxu0
      %v1180 = vadd.f32 0.0, %v1179
      %v1181 = vpop.f32.mrf.mxu0
      %1182 = vmatprep.mubr.bf16.mxu0 %v733
      %1183 = vmatmul.mubr.bf16.gmra.mxu0 %v732
      %v1184 = vpop.f32.mrf.mxu0
      %v1185 = vadd.f32 0.0, %v1184
      %v1186 = vpop.f32.mrf.mxu0
      %v1187 = vpop.f32.mrf.mxu0
      %v1188 = vadd.f32 0.0, %v1187
      %v1189 = vpop.f32.mrf.mxu0
      %1190 = vmatprep.mubr.bf16.mxu0 %v738
      %1191 = vmatmul.mubr.bf16.gmra.mxu0 %v737
      %v1192 = vpop.f32.mrf.mxu0
      %v1193 = vadd.f32 0.0, %v1192
      %v1194 = vpop.f32.mrf.mxu0
      %v1195 = vpop.f32.mrf.mxu0
      %v1196 = vadd.f32 0.0, %v1195
      %v1197 = vpop.f32.mrf.mxu0
      %1198 = vmatprep.mubr.bf16.mxu0 %v743
      %1199 = vmatmul.mubr.bf16.gmra.mxu0 %v742
      %v1200 = vpop.f32.mrf.mxu0
      %v1201 = vadd.f32 0.0, %v1200
      %v1202 = vpop.f32.mrf.mxu0
      %v1203 = vpop.f32.mrf.mxu0
      %v1204 = vadd.f32 0.0, %v1203
      %v1205 = vpop.f32.mrf.mxu0
      %1206 = vmatprep.mubr.bf16.mxu0 %v748
      %1207 = vmatmul.mubr.bf16.gmra.mxu0 %v747
      %v1208 = vpop.f32.mrf.mxu0
      %v1209 = vadd.f32 0.0, %v1208
      %v1210 = vpop.f32.mrf.mxu0
      %v1211 = vpop.f32.mrf.mxu0
      %v1212 = vadd.f32 0.0, %v1211
      %v1213 = vpop.f32.mrf.mxu0
      %1214 = vmatprep.mubr.bf16.mxu0 %v753
      %1215 = vmatmul.mubr.bf16.gmra.mxu0 %v752
      %v1216 = vpop.f32.mrf.mxu0
      %v1217 = vadd.f32 0.0, %v1216
      %v1218 = vpop.f32.mrf.mxu0
      %v1219 = vpop.f32.mrf.mxu0
      %v1220 = vadd.f32 0.0, %v1219
      %v1221 = vpop.f32.mrf.mxu0
      %1222 = vmatprep.mubr.bf16.mxu0 %v758
      %1223 = vmatmul.mubr.bf16.gmra.mxu0 %v757
      %v1224 = vpop.f32.mrf.mxu0
      %v1225 = vadd.f32 0.0, %v1224
      %v1226 = vpop.f32.mrf.mxu0
      %v1227 = vpop.f32.mrf.mxu0
      %v1228 = vadd.f32 0.0, %v1227
      %v1229 = vpop.f32.mrf.mxu0
      %1230 = vmatprep.mubr.bf16.mxu0 %v763
      %1231 = vmatmul.mubr.bf16.gmra.mxu0 %v762
      %v1232 = vpop.f32.mrf.mxu0
      %v1233 = vadd.f32 0.0, %v1232
      %v1234 = vpop.f32.mrf.mxu0
      %v1235 = vpop.f32.mrf.mxu0
      %v1236 = vadd.f32 0.0, %v1235
      %v1237 = vpop.f32.mrf.mxu0
      %1238 = vmatprep.mubr.bf16.mxu0 %v768
      %1239 = vmatmul.mubr.bf16.gmra.mxu0 %v767
      %v1240 = vpop.f32.mrf.mxu0
      %v1241 = vadd.f32 0.0, %v1240
      %v1242 = vpop.f32.mrf.mxu0
      %v1243 = vpop.f32.mrf.mxu0
      %v1244 = vadd.f32 0.0, %v1243
      %v1245 = vpop.f32.mrf.mxu0
      %1246 = vmatprep.mubr.bf16.mxu0 %v773
      %1247 = vmatmul.mubr.bf16.gmra.mxu0 %v772
      %v1248 = vpop.f32.mrf.mxu0
      %v1249 = vadd.f32 0.0, %v1248
      %v1250 = vpop.f32.mrf.mxu0
      %v1251 = vpop.f32.mrf.mxu0
      %v1252 = vadd.f32 0.0, %v1251
      %v1253 = vpop.f32.mrf.mxu0
      %1254 = vmatprep.mubr.bf16.mxu0 %v778
      %1255 = vmatmul.mubr.bf16.gmra.mxu0 %v777
      %v1256 = vpop.f32.mrf.mxu0
      %v1257 = vadd.f32 0.0, %v1256
      %v1258 = vpop.f32.mrf.mxu0
      %v1259 = vpop.f32.mrf.mxu0
      %v1260 = vadd.f32 0.0, %v1259
      %v1261 = vpop.f32.mrf.mxu0
      %1262 = vdwg.mxu0
      %1263 = vmatprep.subr.bf16.mxu0 0
      %1264 = vmatpush1.bf16.msra.mxu0 %v1045
      %1265 = vmatprep.subr.bf16.mxu0 0
      %1266 = vmatpush1.bf16.msra.mxu0 %v1044
      %1267 = vmatprep.subr.bf16.mxu0 0
      %1268 = vmatpush1.bf16.msra.mxu0 %v1043
      %1269 = vmatprep.subr.bf16.mxu0 0
      %1270 = vmatpush1.bf16.msra.mxu0 %v1042
      %1271 = vmatprep.subr.bf16.mxu0 0
      %1272 = vmatpush1.bf16.msra.mxu0 %v1041
      %1273 = vmatprep.subr.bf16.mxu0 0
      %1274 = vmatpush1.bf16.msra.mxu0 %v1040
      %1275 = vmatprep.subr.bf16.mxu0 0
      %1276 = vmatpush1.bf16.msra.mxu0 %v1039
      %1277 = vmatprep.subr.bf16.mxu0 0
      %1278 = vmatpush1.bf16.msra.mxu0 %v1038
      %1279 = vmatprep.subr.bf16.mxu0 0
      %1280 = vmatpush2.bf16.msra.mxu0 %v1053
      %1281 = vmatprep.subr.bf16.mxu0 0
      %1282 = vmatpush2.bf16.msra.mxu0 %v1052
      %1283 = vmatprep.subr.bf16.mxu0 0
      %1284 = vmatpush2.bf16.msra.mxu0 %v1051
      %1285 = vmatprep.subr.bf16.mxu0 0
      %1286 = vmatpush2.bf16.msra.mxu0 %v1050
      %1287 = vmatprep.subr.bf16.mxu0 0
      %1288 = vmatpush2.bf16.msra.mxu0 %v1049
      %1289 = vmatprep.subr.bf16.mxu0 0
      %1290 = vmatpush2.bf16.msra.mxu0 %v1048
      %1291 = vmatprep.subr.bf16.mxu0 0
      %1292 = vmatpush2.bf16.msra.mxu0 %v1047
      %1293 = vmatprep.subr.bf16.mxu0 0
      %1294 = vmatpush2.bf16.msra.mxu0 %v1046
      %1295 = vmatprep.mubr.bf16.mxu0 %v705
      %1296 = vmatmul.mubr.bf16.gmra.mxu0 %v704
      %v1297 = vpop.f32.mrf.mxu0
      %v1298 = vadd.f32 %v1137, %v1297
      %v1299 = vpop.f32.mrf.mxu0
      %v1300 = vpop.f32.mrf.mxu0
      %v1301 = vadd.f32 %v1140, %v1300
      %v1302 = vpop.f32.mrf.mxu0
      %1303 = vmatprep.mubr.bf16.mxu0 %v710
      %1304 = vmatmul.mubr.bf16.gmra.mxu0 %v709
      %v1305 = vpop.f32.mrf.mxu0
      %v1306 = vadd.f32 %v1145, %v1305
      %v1307 = vpop.f32.mrf.mxu0
      %v1308 = vpop.f32.mrf.mxu0
      %v1309 = vadd.f32 %v1148, %v1308
      %v1310 = vpop.f32.mrf.mxu0
      %1311 = vmatprep.mubr.bf16.mxu0 %v715
      %1312 = vmatmul.mubr.bf16.gmra.mxu0 %v714
      %v1313 = vpop.f32.mrf.mxu0
      %v1314 = vadd.f32 %v1153, %v1313
      %v1315 = vpop.f32.mrf.mxu0
      %v1316 = vpop.f32.mrf.mxu0
      %v1317 = vadd.f32 %v1156, %v1316
      %v1318 = vpop.f32.mrf.mxu0
      %1319 = vmatprep.mubr.bf16.mxu0 %v720
      %1320 = vmatmul.mubr.bf16.gmra.mxu0 %v719
      %v1321 = vpop.f32.mrf.mxu0
      %v1322 = vadd.f32 %v1161, %v1321
      %v1323 = vpop.f32.mrf.mxu0
      %v1324 = vpop.f32.mrf.mxu0
      %v1325 = vadd.f32 %v1164, %v1324
      %v1326 = vpop.f32.mrf.mxu0
      %1327 = vmatprep.mubr.bf16.mxu0 %v725
      %1328 = vmatmul.mubr.bf16.gmra.mxu0 %v724
      %v1329 = vpop.f32.mrf.mxu0
      %v1330 = vadd.f32 %v1169, %v1329
      %v1331 = vpop.f32.mrf.mxu0
      %v1332 = vpop.f32.mrf.mxu0
      %v1333 = vadd.f32 %v1172, %v1332
      %v1334 = vpop.f32.mrf.mxu0
      %1335 = vmatprep.mubr.bf16.mxu0 %v730
      %1336 = vmatmul.mubr.bf16.gmra.mxu0 %v729
      %v1337 = vpop.f32.mrf.mxu0
      %v1338 = vadd.f32 %v1177, %v1337
      %v1339 = vpop.f32.mrf.mxu0
      %v1340 = vpop.f32.mrf.mxu0
      %v1341 = vadd.f32 %v1180, %v1340
      %v1342 = vpop.f32.mrf.mxu0
      %1343 = vmatprep.mubr.bf16.mxu0 %v735
      %1344 = vmatmul.mubr.bf16.gmra.mxu0 %v734
      %v1345 = vpop.f32.mrf.mxu0
      %v1346 = vadd.f32 %v1185, %v1345
      %v1347 = vpop.f32.mrf.mxu0
      %v1348 = vpop.f32.mrf.mxu0
      %v1349 = vadd.f32 %v1188, %v1348
      %v1350 = vpop.f32.mrf.mxu0
      %1351 = vmatprep.mubr.bf16.mxu0 %v740
      %1352 = vmatmul.mubr.bf16.gmra.mxu0 %v739
      %v1353 = vpop.f32.mrf.mxu0
      %v1354 = vadd.f32 %v1193, %v1353
      %v1355 = vpop.f32.mrf.mxu0
      %v1356 = vpop.f32.mrf.mxu0
      %v1357 = vadd.f32 %v1196, %v1356
      %v1358 = vpop.f32.mrf.mxu0
      %1359 = vmatprep.mubr.bf16.mxu0 %v745
      %1360 = vmatmul.mubr.bf16.gmra.mxu0 %v744
      %v1361 = vpop.f32.mrf.mxu0
      %v1362 = vadd.f32 %v1201, %v1361
      %v1363 = vpop.f32.mrf.mxu0
      %v1364 = vpop.f32.mrf.mxu0
      %v1365 = vadd.f32 %v1204, %v1364
      %v1366 = vpop.f32.mrf.mxu0
      %1367 = vmatprep.mubr.bf16.mxu0 %v750
      %1368 = vmatmul.mubr.bf16.gmra.mxu0 %v749
      %v1369 = vpop.f32.mrf.mxu0
      %v1370 = vadd.f32 %v1209, %v1369
      %v1371 = vpop.f32.mrf.mxu0
      %v1372 = vpop.f32.mrf.mxu0
      %v1373 = vadd.f32 %v1212, %v1372
      %v1374 = vpop.f32.mrf.mxu0
      %1375 = vmatprep.mubr.bf16.mxu0 %v755
      %1376 = vmatmul.mubr.bf16.gmra.mxu0 %v754
      %v1377 = vpop.f32.mrf.mxu0
      %v1378 = vadd.f32 %v1217, %v1377
      %v1379 = vpop.f32.mrf.mxu0
      %v1380 = vpop.f32.mrf.mxu0
      %v1381 = vadd.f32 %v1220, %v1380
      %v1382 = vpop.f32.mrf.mxu0
      %1383 = vmatprep.mubr.bf16.mxu0 %v760
      %1384 = vmatmul.mubr.bf16.gmra.mxu0 %v759
      %v1385 = vpop.f32.mrf.mxu0
      %v1386 = vadd.f32 %v1225, %v1385
      %v1387 = vpop.f32.mrf.mxu0
      %v1388 = vpop.f32.mrf.mxu0
      %v1389 = vadd.f32 %v1228, %v1388
      %v1390 = vpop.f32.mrf.mxu0
      %1391 = vmatprep.mubr.bf16.mxu0 %v765
      %1392 = vmatmul.mubr.bf16.gmra.mxu0 %v764
      %v1393 = vpop.f32.mrf.mxu0
      %v1394 = vadd.f32 %v1233, %v1393
      %v1395 = vpop.f32.mrf.mxu0
      %v1396 = vpop.f32.mrf.mxu0
      %v1397 = vadd.f32 %v1236, %v1396
      %v1398 = vpop.f32.mrf.mxu0
      %1399 = vmatprep.mubr.bf16.mxu0 %v770
      %1400 = vmatmul.mubr.bf16.gmra.mxu0 %v769
      %v1401 = vpop.f32.mrf.mxu0
      %v1402 = vadd.f32 %v1241, %v1401
      %v1403 = vpop.f32.mrf.mxu0
      %v1404 = vpop.f32.mrf.mxu0
      %v1405 = vadd.f32 %v1244, %v1404
      %v1406 = vpop.f32.mrf.mxu0
      %1407 = vmatprep.mubr.bf16.mxu0 %v775
      %1408 = vmatmul.mubr.bf16.gmra.mxu0 %v774
      %v1409 = vpop.f32.mrf.mxu0
      %v1410 = vadd.f32 %v1249, %v1409
      %v1411 = vpop.f32.mrf.mxu0
      %v1412 = vpop.f32.mrf.mxu0
      %v1413 = vadd.f32 %v1252, %v1412
      %v1414 = vpop.f32.mrf.mxu0
      %1415 = vmatprep.mubr.bf16.mxu0 %v780
      %1416 = vmatmul.mubr.bf16.gmra.mxu0 %v779
      %v1417 = vpop.f32.mrf.mxu0
      %v1418 = vadd.f32 %v1257, %v1417
      %v1419 = vpop.f32.mrf.mxu0
      %v1420 = vpop.f32.mrf.mxu0
      %v1421 = vadd.f32 %v1260, %v1420
      %v1422 = vpop.f32.mrf.mxu0
      %1423 = vdwg.mxu0
      %1424 = vmatprep.subr.bf16.mxu0 0
      %1425 = vmatpush1.bf16.msra.mxu0 %v1061
      %1426 = vmatprep.subr.bf16.mxu0 0
      %1427 = vmatpush1.bf16.msra.mxu0 %v1060
      %1428 = vmatprep.subr.bf16.mxu0 0
      %1429 = vmatpush1.bf16.msra.mxu0 %v1059
      %1430 = vmatprep.subr.bf16.mxu0 0
      %1431 = vmatpush1.bf16.msra.mxu0 %v1058
      %1432 = vmatprep.subr.bf16.mxu0 0
      %1433 = vmatpush1.bf16.msra.mxu0 %v1057
      %1434 = vmatprep.subr.bf16.mxu0 0
      %1435 = vmatpush1.bf16.msra.mxu0 %v1056
      %1436 = vmatprep.subr.bf16.mxu0 0
      %1437 = vmatpush1.bf16.msra.mxu0 %v1055
      %1438 = vmatprep.subr.bf16.mxu0 0
      %1439 = vmatpush1.bf16.msra.mxu0 %v1054
      %1440 = vmatprep.subr.bf16.mxu0 0
      %1441 = vmatpush2.bf16.msra.mxu0 0
      %1442 = vmatprep.subr.bf16.mxu0 0
      %1443 = vmatpush2.bf16.msra.mxu0 0
      %1444 = vmatprep.subr.bf16.mxu0 0
      %1445 = vmatpush2.bf16.msra.mxu0 0
      %1446 = vmatprep.subr.bf16.mxu0 0
      %1447 = vmatpush2.bf16.msra.mxu0 0
      %1448 = vmatprep.subr.bf16.mxu0 0
      %1449 = vmatpush2.bf16.msra.mxu0 0
      %1450 = vmatprep.subr.bf16.mxu0 0
      %1451 = vmatpush2.bf16.msra.mxu0 0
      %1452 = vmatprep.subr.bf16.mxu0 0
      %1453 = vmatpush2.bf16.msra.mxu0 0
      %1454 = vmatprep.subr.bf16.mxu0 0
      %1455 = vmatpush2.bf16.msra.mxu0 0
      %1456 = vmatprep.mubr.bf16.mxu0 0
      %1457 = vmatmul.mubr.bf16.gmra.mxu0 %v706
      %v1458 = vpop.f32.mrf.mxu0
      %v1459 = vadd.f32 %v1298, %v1458
      %v1460 = vpop.f32.mrf.mxu0
      %v1461 = vpop.f32.mrf.mxu0
      %v1462 = vadd.f32 %v1301, %v1461
      %v1463 = vpop.f32.mrf.mxu0
      %1464 = vmatprep.mubr.bf16.mxu0 0
      %1465 = vmatmul.mubr.bf16.gmra.mxu0 %v711
      %v1466 = vpop.f32.mrf.mxu0
      %v1467 = vadd.f32 %v1306, %v1466
      %v1468 = vpop.f32.mrf.mxu0
      %v1469 = vpop.f32.mrf.mxu0
      %v1470 = vadd.f32 %v1309, %v1469
      %v1471 = vpop.f32.mrf.mxu0
      %1472 = vmatprep.mubr.bf16.mxu0 0
      %1473 = vmatmul.mubr.bf16.gmra.mxu0 %v716
      %v1474 = vpop.f32.mrf.mxu0
      %v1475 = vadd.f32 %v1314, %v1474
      %v1476 = vpop.f32.mrf.mxu0
      %v1477 = vpop.f32.mrf.mxu0
      %v1478 = vadd.f32 %v1317, %v1477
      %v1479 = vpop.f32.mrf.mxu0
      %1480 = vmatprep.mubr.bf16.mxu0 0
      %1481 = vmatmul.mubr.bf16.gmra.mxu0 %v721
      %v1482 = vpop.f32.mrf.mxu0
      %v1483 = vadd.f32 %v1322, %v1482
      %v1484 = vpop.f32.mrf.mxu0
      %v1485 = vpop.f32.mrf.mxu0
      %v1486 = vadd.f32 %v1325, %v1485
      %v1487 = vpop.f32.mrf.mxu0
      %1488 = vmatprep.mubr.bf16.mxu0 0
      %1489 = vmatmul.mubr.bf16.gmra.mxu0 %v726
      %v1490 = vpop.f32.mrf.mxu0
      %v1491 = vadd.f32 %v1330, %v1490
      %v1492 = vpop.f32.mrf.mxu0
      %v1493 = vpop.f32.mrf.mxu0
      %v1494 = vadd.f32 %v1333, %v1493
      %v1495 = vpop.f32.mrf.mxu0
      %1496 = vmatprep.mubr.bf16.mxu0 0
      %1497 = vmatmul.mubr.bf16.gmra.mxu0 %v731
      %v1498 = vpop.f32.mrf.mxu0
      %v1499 = vadd.f32 %v1338, %v1498
      %v1500 = vpop.f32.mrf.mxu0
      %v1501 = vpop.f32.mrf.mxu0
      %v1502 = vadd.f32 %v1341, %v1501
      %v1503 = vpop.f32.mrf.mxu0
      %1504 = vmatprep.mubr.bf16.mxu0 0
      %1505 = vmatmul.mubr.bf16.gmra.mxu0 %v736
      %v1506 = vpop.f32.mrf.mxu0
      %v1507 = vadd.f32 %v1346, %v1506
      %v1508 = vpop.f32.mrf.mxu0
      %v1509 = vpop.f32.mrf.mxu0
      %v1510 = vadd.f32 %v1349, %v1509
      %v1511 = vpop.f32.mrf.mxu0
      %1512 = vmatprep.mubr.bf16.mxu0 0
      %1513 = vmatmul.mubr.bf16.gmra.mxu0 %v741
      %v1514 = vpop.f32.mrf.mxu0
      %v1515 = vadd.f32 %v1354, %v1514
      %v1516 = vpop.f32.mrf.mxu0
      %v1517 = vpop.f32.mrf.mxu0
      %v1518 = vadd.f32 %v1357, %v1517
      %v1519 = vpop.f32.mrf.mxu0
      %1520 = vmatprep.mubr.bf16.mxu0 0
      %1521 = vmatmul.mubr.bf16.gmra.mxu0 %v746
      %v1522 = vpop.f32.mrf.mxu0
      %v1523 = vadd.f32 %v1362, %v1522
      %v1524 = vpop.f32.mrf.mxu0
      %v1525 = vpop.f32.mrf.mxu0
      %v1526 = vadd.f32 %v1365, %v1525
      %v1527 = vpop.f32.mrf.mxu0
      %1528 = vmatprep.mubr.bf16.mxu0 0
      %1529 = vmatmul.mubr.bf16.gmra.mxu0 %v751
      %v1530 = vpop.f32.mrf.mxu0
      %v1531 = vadd.f32 %v1370, %v1530
      %v1532 = vpop.f32.mrf.mxu0
      %v1533 = vpop.f32.mrf.mxu0
      %v1534 = vadd.f32 %v1373, %v1533
      %v1535 = vpop.f32.mrf.mxu0
      %1536 = vmatprep.mubr.bf16.mxu0 0
      %1537 = vmatmul.mubr.bf16.gmra.mxu0 %v756
      %v1538 = vpop.f32.mrf.mxu0
      %v1539 = vadd.f32 %v1378, %v1538
      %v1540 = vpop.f32.mrf.mxu0
      %v1541 = vpop.f32.mrf.mxu0
      %v1542 = vadd.f32 %v1381, %v1541
      %v1543 = vpop.f32.mrf.mxu0
      %1544 = vmatprep.mubr.bf16.mxu0 0
      %1545 = vmatmul.mubr.bf16.gmra.mxu0 %v761
      %v1546 = vpop.f32.mrf.mxu0
      %v1547 = vadd.f32 %v1386, %v1546
      %v1548 = vpop.f32.mrf.mxu0
      %v1549 = vpop.f32.mrf.mxu0
      %v1550 = vadd.f32 %v1389, %v1549
      %v1551 = vpop.f32.mrf.mxu0
      %1552 = vmatprep.mubr.bf16.mxu0 0
      %1553 = vmatmul.mubr.bf16.gmra.mxu0 %v766
      %v1554 = vpop.f32.mrf.mxu0
      %v1555 = vadd.f32 %v1394, %v1554
      %v1556 = vpop.f32.mrf.mxu0
      %v1557 = vpop.f32.mrf.mxu0
      %v1558 = vadd.f32 %v1397, %v1557
      %v1559 = vpop.f32.mrf.mxu0
      %1560 = vmatprep.mubr.bf16.mxu0 0
      %1561 = vmatmul.mubr.bf16.gmra.mxu0 %v771
      %v1562 = vpop.f32.mrf.mxu0
      %v1563 = vadd.f32 %v1402, %v1562
      %v1564 = vpop.f32.mrf.mxu0
      %v1565 = vpop.f32.mrf.mxu0
      %v1566 = vadd.f32 %v1405, %v1565
      %v1567 = vpop.f32.mrf.mxu0
      %1568 = vmatprep.mubr.bf16.mxu0 0
      %1569 = vmatmul.mubr.bf16.gmra.mxu0 %v776
      %v1570 = vpop.f32.mrf.mxu0
      %v1571 = vadd.f32 %v1410, %v1570
      %v1572 = vpop.f32.mrf.mxu0
      %v1573 = vpop.f32.mrf.mxu0
      %v1574 = vadd.f32 %v1413, %v1573
      %v1575 = vpop.f32.mrf.mxu0
      %1576 = vmatprep.mubr.bf16.mxu0 0
      %1577 = vmatmul.mubr.bf16.gmra.mxu0 %v781
      %v1578 = vpop.f32.mrf.mxu0
      %v1579 = vadd.f32 %v1418, %v1578
      %v1580 = vpop.f32.mrf.mxu0
      %v1581 = vpop.f32.mrf.mxu0
      %v1582 = vadd.f32 %v1421, %v1581
      %v1583 = vpop.f32.mrf.mxu0
      %1584 = vdwg.mxu0
      %v1585 = vadd.f32 %v238, %v1459
      %v1586 = vadd.f32 %v239, %v1462
      %v1587 = vadd.f32 %v240, %v1467
      %v1588 = vadd.f32 %v241, %v1470
      %v1589 = vadd.f32 %v242, %v1475
      %v1590 = vadd.f32 %v243, %v1478
      %v1591 = vadd.f32 %v244, %v1483
      %v1592 = vadd.f32 %v245, %v1486
      %v1593 = vadd.f32 %v246, %v1491
      %v1594 = vadd.f32 %v247, %v1494
      %v1595 = vadd.f32 %v248, %v1499
      %v1596 = vadd.f32 %v249, %v1502
      %v1597 = vadd.f32 %v250, %v1507
      %v1598 = vadd.f32 %v251, %v1510
      %v1599 = vadd.f32 %v252, %v1515
      %v1600 = vadd.f32 %v253, %v1518
      %v1601 = vadd.f32 %v254, %v1523
      %v1602 = vadd.f32 %v255, %v1526
      %v1603 = vadd.f32 %v256, %v1531
      %v1604 = vadd.f32 %v257, %v1534
      %v1605 = vadd.f32 %v258, %v1539
      %v1606 = vadd.f32 %v259, %v1542
      %v1607 = vadd.f32 %v260, %v1547
      %v1608 = vadd.f32 %v261, %v1550
      %v1609 = vadd.f32 %v262, %v1555
      %v1610 = vadd.f32 %v263, %v1558
      %v1611 = vadd.f32 %v264, %v1563
      %v1612 = vadd.f32 %v265, %v1566
      %v1613 = vadd.f32 %v266, %v1571
      %v1614 = vadd.f32 %v267, %v1574
      %v1615 = vadd.f32 %v268, %v1579
      %v1616 = vadd.f32 %v269, %v1582
      %vm1617 = vcmask 523264
      %1618 = vst.msk [vmem:[#allocation2] sm:$0xff] %vm1617, %v1585
      %1619 = vst.msk [vmem:[#allocation2 + $0x8] sm:$0xff] %vm1617, %v1586
      %1620 = vst.msk [vmem:[#allocation2 + $0x10] sm:$0xff] %vm1617, %v1587
      %1621 = vst.msk [vmem:[#allocation2 + $0x18] sm:$0xff] %vm1617, %v1588
      %1622 = vst.msk [vmem:[#allocation2 + $0x20] sm:$0xff] %vm1617, %v1589
      %1623 = vst.msk [vmem:[#allocation2 + $0x28] sm:$0xff] %vm1617, %v1590
      %1624 = vst.msk [vmem:[#allocation2 + $0x30] sm:$0xff] %vm1617, %v1591
      %1625 = vst.msk [vmem:[#allocation2 + $0x38] sm:$0xff] %vm1617, %v1592
      %1626 = vst.msk [vmem:[#allocation2 + $0x40] sm:$0xff] %vm1617, %v1593
      %1627 = vst.msk [vmem:[#allocation2 + $0x48] sm:$0xff] %vm1617, %v1594
      %1628 = vst.msk [vmem:[#allocation2 + $0x50] sm:$0xff] %vm1617, %v1595
      %1629 = vst.msk [vmem:[#allocation2 + $0x58] sm:$0xff] %vm1617, %v1596
      %1630 = vst.msk [vmem:[#allocation2 + $0x60] sm:$0xff] %vm1617, %v1597
      %1631 = vst.msk [vmem:[#allocation2 + $0x68] sm:$0xff] %vm1617, %v1598
      %1632 = vst.msk [vmem:[#allocation2 + $0x70] sm:$0xff] %vm1617, %v1599
      %1633 = vst.msk [vmem:[#allocation2 + $0x78] sm:$0xff] %vm1617, %v1600
      %1634 = vst.msk [vmem:[#allocation2 + $0x80] sm:$0xff] %vm1617, %v1601
      %1635 = vst.msk [vmem:[#allocation2 + $0x88] sm:$0xff] %vm1617, %v1602
      %1636 = vst.msk [vmem:[#allocation2 + $0x90] sm:$0xff] %vm1617, %v1603
      %1637 = vst.msk [vmem:[#allocation2 + $0x98] sm:$0xff] %vm1617, %v1604
      %1638 = vst.msk [vmem:[#allocation2 + $0xa0] sm:$0xff] %vm1617, %v1605
      %1639 = vst.msk [vmem:[#allocation2 + $0xa8] sm:$0xff] %vm1617, %v1606
      %1640 = vst.msk [vmem:[#allocation2 + $0xb0] sm:$0xff] %vm1617, %v1607
      %1641 = vst.msk [vmem:[#allocation2 + $0xb8] sm:$0xff] %vm1617, %v1608
      %1642 = vst.msk [vmem:[#allocation2 + $0xc0] sm:$0xff] %vm1617, %v1609
      %1643 = vst.msk [vmem:[#allocation2 + $0xc8] sm:$0xff] %vm1617, %v1610
      %1644 = vst.msk [vmem:[#allocation2 + $0xd0] sm:$0xff] %vm1617, %v1611
      %1645 = vst.msk [vmem:[#allocation2 + $0xd8] sm:$0xff] %vm1617, %v1612
      %1646 = vst.msk [vmem:[#allocation2 + $0xe0] sm:$0xff] %vm1617, %v1613
      %1647 = vst.msk [vmem:[#allocation2 + $0xe8] sm:$0xff] %vm1617, %v1614
      %1648 = vst.msk [vmem:[#allocation2 + $0xf0] sm:$0xff] %vm1617, %v1615
      %1649 = vst.msk [vmem:[#allocation2 + $0xf8] sm:$0xff] %vm1617, %v1616
      // Predicated region
      $region33: #{res_encoder_forward.18} parent=27 // pred_check
        %p1650 = pneg %p201
      $region34: #{res_encoder_forward.18} parent=27 // pred_check_branch
        %1652 = sbr.rel (%p1650) target = $region36
      $region35: #{res_encoder_forward.18} parent=27 // pred_region
        %v1653 = vld [vmem:[#allocation2] sm:$0xff]
        %v1654 = vld [vmem:[#allocation2 + $0x8] sm:$0xff]
        %v1655 = vld [vmem:[#allocation2 + $0x10] sm:$0xff]
        %v1656 = vld [vmem:[#allocation2 + $0x18] sm:$0xff]
        %v1657 = vld [vmem:[#allocation2 + $0x20] sm:$0xff]
        %v1658 = vld [vmem:[#allocation2 + $0x28] sm:$0xff]
        %v1659 = vld [vmem:[#allocation2 + $0x30] sm:$0xff]
        %v1660 = vld [vmem:[#allocation2 + $0x38] sm:$0xff]
        %v1661 = vld [vmem:[#allocation2 + $0x40] sm:$0xff]
        %v1662 = vld [vmem:[#allocation2 + $0x48] sm:$0xff]
        %v1663 = vld [vmem:[#allocation2 + $0x50] sm:$0xff]
        %v1664 = vld [vmem:[#allocation2 + $0x58] sm:$0xff]
        %v1665 = vld [vmem:[#allocation2 + $0x60] sm:$0xff]
        %v1666 = vld [vmem:[#allocation2 + $0x68] sm:$0xff]
        %v1667 = vld [vmem:[#allocation2 + $0x70] sm:$0xff]
        %v1668 = vld [vmem:[#allocation2 + $0x78] sm:$0xff]
        %v1669 = vld [vmem:[#allocation2 + $0x80] sm:$0xff]
        %v1670 = vld [vmem:[#allocation2 + $0x88] sm:$0xff]
        %v1671 = vld [vmem:[#allocation2 + $0x90] sm:$0xff]
        %v1672 = vld [vmem:[#allocation2 + $0x98] sm:$0xff]
        %v1673 = vld [vmem:[#allocation2 + $0xa0] sm:$0xff]
        %v1674 = vld [vmem:[#allocation2 + $0xa8] sm:$0xff]
        %v1675 = vld [vmem:[#allocation2 + $0xb0] sm:$0xff]
        %v1676 = vld [vmem:[#allocation2 + $0xb8] sm:$0xff]
        %v1677 = vld [vmem:[#allocation2 + $0xc0] sm:$0xff]
        %v1678 = vld [vmem:[#allocation2 + $0xc8] sm:$0xff]
        %v1679 = vld [vmem:[#allocation2 + $0xd0] sm:$0xff]
        %v1680 = vld [vmem:[#allocation2 + $0xd8] sm:$0xff]
        %v1681 = vld [vmem:[#allocation2 + $0xe0] sm:$0xff]
        %v1682 = vld [vmem:[#allocation2 + $0xe8] sm:$0xff]
        %v1683 = vld [vmem:[#allocation2 + $0xf0] sm:$0xff]
        %v1684 = vld [vmem:[#allocation2 + $0xf8] sm:$0xff]
        %1685 = vst.msk [vmem:[%s198] sm:$0xff] %vm1617, %v1653
        %1686 = vst.msk [vmem:[%s198 + $0x8] sm:$0xff] %vm1617, %v1654
        %1687 = vst.msk [vmem:[%s198 + $0x10] sm:$0xff] %vm1617, %v1655
        %1688 = vst.msk [vmem:[%s198 + $0x18] sm:$0xff] %vm1617, %v1656
        %1689 = vst.msk [vmem:[%s198 + $0x20] sm:$0xff] %vm1617, %v1657
        %1690 = vst.msk [vmem:[%s198 + $0x28] sm:$0xff] %vm1617, %v1658
        %1691 = vst.msk [vmem:[%s198 + $0x30] sm:$0xff] %vm1617, %v1659
        %1692 = vst.msk [vmem:[%s198 + $0x38] sm:$0xff] %vm1617, %v1660
        %1693 = vst.msk [vmem:[%s198 + $0x40] sm:$0xff] %vm1617, %v1661
        %1694 = vst.msk [vmem:[%s198 + $0x48] sm:$0xff] %vm1617, %v1662
        %1695 = vst.msk [vmem:[%s198 + $0x50] sm:$0xff] %vm1617, %v1663
        %1696 = vst.msk [vmem:[%s198 + $0x58] sm:$0xff] %vm1617, %v1664
        %1697 = vst.msk [vmem:[%s198 + $0x60] sm:$0xff] %vm1617, %v1665
        %1698 = vst.msk [vmem:[%s198 + $0x68] sm:$0xff] %vm1617, %v1666
        %1699 = vst.msk [vmem:[%s198 + $0x70] sm:$0xff] %vm1617, %v1667
        %1700 = vst.msk [vmem:[%s198 + $0x78] sm:$0xff] %vm1617, %v1668
        %1701 = vst.msk [vmem:[%s198 + $0x80] sm:$0xff] %vm1617, %v1669
        %1702 = vst.msk [vmem:[%s198 + $0x88] sm:$0xff] %vm1617, %v1670
        %1703 = vst.msk [vmem:[%s198 + $0x90] sm:$0xff] %vm1617, %v1671
        %1704 = vst.msk [vmem:[%s198 + $0x98] sm:$0xff] %vm1617, %v1672
        %1705 = vst.msk [vmem:[%s198 + $0xa0] sm:$0xff] %vm1617, %v1673
        %1706 = vst.msk [vmem:[%s198 + $0xa8] sm:$0xff] %vm1617, %v1674
        %1707 = vst.msk [vmem:[%s198 + $0xb0] sm:$0xff] %vm1617, %v1675
        %1708 = vst.msk [vmem:[%s198 + $0xb8] sm:$0xff] %vm1617, %v1676
        %1709 = vst.msk [vmem:[%s198 + $0xc0] sm:$0xff] %vm1617, %v1677
        %1710 = vst.msk [vmem:[%s198 + $0xc8] sm:$0xff] %vm1617, %v1678
        %1711 = vst.msk [vmem:[%s198 + $0xd0] sm:$0xff] %vm1617, %v1679
        %1712 = vst.msk [vmem:[%s198 + $0xd8] sm:$0xff] %vm1617, %v1680
        %1713 = vst.msk [vmem:[%s198 + $0xe0] sm:$0xff] %vm1617, %v1681
        %1714 = vst.msk [vmem:[%s198 + $0xe8] sm:$0xff] %vm1617, %v1682
        %1715 = vst.msk [vmem:[%s198 + $0xf0] sm:$0xff] %vm1617, %v1683
        %1716 = vst.msk [vmem:[%s198 + $0xf8] sm:$0xff] %vm1617, %v1684
      $region36: #{res_encoder_forward.18} parent=27 // pred_fallthru
        _
      %s1717 = smul.u32 32, %s17
      %p1718 = scmp.lt.s32.totalorder %s1717, 63
      %s1719 = scalar_select %p1718, %s1717, 63
      %s1720 = smul.addr %s1719, 8
      %s1721 = scalar_lea.vmem %s2, %s1720
      // Predicated region
      $region37: #{res_encoder_forward.18} parent=27 // pred_check
        %p1722 = pneg %p97
      $region38: #{res_encoder_forward.18} parent=27 // pred_check_branch
        %1724 = sbr.rel (%p1722) target = $region40
      $region39: #{res_encoder_forward.18} parent=27 // pred_region
        %s1725 = smul.u32 32, %s17
      $region40: #{res_encoder_forward.18} parent=27 // pred_fallthru
        _
    $region28: #{res_encoder_forward.18} parent=5 // pred_fallthru
      _
    %p1726 = scmp.le.s32.totalorder 2, %s8
    // Predicated region
    $region41: #{res_encoder_forward.18} parent=5 // pred_check
      %p1727 = pneg %p1726
    $region42: #{res_encoder_forward.18} parent=5 // pred_check_branch
      %1729 = sbr.rel (%p1727) target = $region44
    $region43: #{res_encoder_forward.18} parent=5 // pred_region
      %s1730 = ssub.s32 %s8, 2
      // Predicated region
      $region45: #{res_encoder_forward.18} parent=43 // pred_check
        %p1731 = pneg %p103
      $region46: #{res_encoder_forward.18} parent=43 // pred_check_branch
        %1733 = sbr.rel (%p1731) target = $region48
      $region47: #{res_encoder_forward.18} parent=43 // pred_region
        %s1734 = smul.u32 32, %s19
        %p1735 = scmp.lt.s32.totalorder %s1734, 63
        %s1736 = scalar_select %p1735, %s1734, 63
        %s1737 = smul.addr %s1736, 8
        %s1738 = scalar_lea.vmem %s2, %s1737
      $region48: #{res_encoder_forward.18} parent=43 // pred_fallthru
        _
    $region44: #{res_encoder_forward.18} parent=5 // pred_fallthru
      _
  $region6: #{res_encoder_forward.18} parent=0 // loop_footer
    %s12 = sadd.s32 1, %s8
  $region7: #{res_encoder_forward.18} parent=0 // loop_footer_branch
    %7 = sbr.rel target = $region3
  $region8: #{res_encoder_forward.18} parent=0 // loop_exit
    _

// kernel: res_encoder_forward.22
$region0: #{res_encoder_forward.22}
  #allocation0 [shape = 'u32[]', space=smem, size = 0x4, offset = 0x4, fixed_abs, tag = 'smem constant byte address 0x4 - core index']
  #allocation1 [shape = 'u32[144,128]{1,0:T(1,128)}', space=vmem, size = 0x12000, scoped, tag = 'internal scratch']
  %s0 = inlined_call_operand.vmem [shape: f32[128,128], index: 0, kind: input, shape index: {}]
  %s1 = inlined_call_operand.vmem [shape: f32[1,128], index: 1, kind: input, shape index: {}]
  %s2 = inlined_call_operand.vmem [shape: f32[1,128], index: 2, kind: input, shape index: {}]
  %s3 = inlined_call_operand.vmem [shape: f32[128,128], index: 3, kind: output, shape index: {}]
  %s4 = sld [smem:[#allocation0]]
  $region22: #{res_encoder_forward.22} parent=0
    _
  %s6 = ssub.s32 1, %s4
  %s7 = scalar_select 0, %s6, %s4
  // Predicated region
  $region2: #{res_encoder_forward.22} parent=0 // pred_check
    _
  $region3: #{res_encoder_forward.22} parent=0 // pred_check_branch
    %9 = sbr.rel (0) target = $region5
  $region4: #{res_encoder_forward.22} parent=0 // pred_region
    _
  $region5: #{res_encoder_forward.22} parent=0 // pred_fallthru
    _
  // Predicated region
  $region6: #{res_encoder_forward.22} parent=0 // pred_check
    _
  $region7: #{res_encoder_forward.22} parent=0 // pred_check_branch
    %11 = sbr.rel (0) target = $region9
  $region8: #{res_encoder_forward.22} parent=0 // pred_region
    _
  $region9: #{res_encoder_forward.22} parent=0 // pred_fallthru
    _
  // Predicated region
  $region10: #{res_encoder_forward.22} parent=0 // pred_check
    _
  $region11: #{res_encoder_forward.22} parent=0 // pred_check_branch
    %13 = sbr.rel (0) target = $region13
  $region12: #{res_encoder_forward.22} parent=0 // pred_region
    _
  $region13: #{res_encoder_forward.22} parent=0 // pred_fallthru
    _
  %v14 = vld [vmem:[%s0] sm:$0xff]
  %v15 = vld [vmem:[%s0 + $0x8] sm:$0xff]
  %v16 = vld [vmem:[%s0 + $0x10] sm:$0xff]
  %v17 = vld [vmem:[%s0 + $0x18] sm:$0xff]
  %v18 = vld [vmem:[%s0 + $0x20] sm:$0xff]
  %v19 = vld [vmem:[%s0 + $0x28] sm:$0xff]
  %v20 = vld [vmem:[%s0 + $0x30] sm:$0xff]
  %v21 = vld [vmem:[%s0 + $0x38] sm:$0xff]
  %v22 = vld [vmem:[%s0 + $0x40] sm:$0xff]
  %v23 = vld [vmem:[%s0 + $0x48] sm:$0xff]
  %v24 = vld [vmem:[%s0 + $0x50] sm:$0xff]
  %v25 = vld [vmem:[%s0 + $0x58] sm:$0xff]
  %v26 = vld [vmem:[%s0 + $0x60] sm:$0xff]
  %v27 = vld [vmem:[%s0 + $0x68] sm:$0xff]
  %v28 = vld [vmem:[%s0 + $0x70] sm:$0xff]
  %v29 = vld [vmem:[%s0 + $0x78] sm:$0xff]
  %v30 = vld [vmem:[%s1] sm:$0x1]
  %v32 = vlaneseq
  %v33 = vshrl.u32 %v32, 7
  %v34 = vsub.s32 0, %v33
  %v35 = vrot.slane %v30, %v34
  %v37 = vmul.f32 %v14, %v35
  %v38 = vmul.f32 %v15, %v35
  %v39 = vmul.f32 %v16, %v35
  %v40 = vmul.f32 %v17, %v35
  %v41 = vmul.f32 %v18, %v35
  %v42 = vmul.f32 %v19, %v35
  %v43 = vmul.f32 %v20, %v35
  %v44 = vmul.f32 %v21, %v35
  %v45 = vmul.f32 %v22, %v35
  %v46 = vmul.f32 %v23, %v35
  %v47 = vmul.f32 %v24, %v35
  %v48 = vmul.f32 %v25, %v35
  %v49 = vmul.f32 %v26, %v35
  %v50 = vmul.f32 %v27, %v35
  %v51 = vmul.f32 %v28, %v35
  %v52 = vmul.f32 %v29, %v35
  %v53 = vld [vmem:[%s2] sm:$0x1]
  %v55 = vlaneseq
  %v56 = vshrl.u32 %v55, 7
  %v57 = vsub.s32 0, %v56
  %v58 = vrot.slane %v53, %v57
  %v60 = vadd.f32 %v37, %v58
  %v61 = vadd.f32 %v38, %v58
  %v62 = vadd.f32 %v39, %v58
  %v63 = vadd.f32 %v40, %v58
  %v64 = vadd.f32 %v41, %v58
  %v65 = vadd.f32 %v42, %v58
  %v66 = vadd.f32 %v43, %v58
  %v67 = vadd.f32 %v44, %v58
  %v68 = vadd.f32 %v45, %v58
  %v69 = vadd.f32 %v46, %v58
  %v70 = vadd.f32 %v47, %v58
  %v71 = vadd.f32 %v48, %v58
  %v72 = vadd.f32 %v49, %v58
  %v73 = vadd.f32 %v50, %v58
  %v74 = vadd.f32 %v51, %v58
  %v75 = vadd.f32 %v52, %v58
  %vm76 = vcmp.ge.f32.partialorder %v60, 0.0
  %vm77 = vcmp.ge.f32.partialorder %v61, 0.0
  %vm78 = vcmp.ge.f32.partialorder %v62, 0.0
  %vm79 = vcmp.ge.f32.partialorder %v63, 0.0
  %vm80 = vcmp.ge.f32.partialorder %v64, 0.0
  %vm81 = vcmp.ge.f32.partialorder %v65, 0.0
  %vm82 = vcmp.ge.f32.partialorder %v66, 0.0
  %vm83 = vcmp.ge.f32.partialorder %v67, 0.0
  %vm84 = vcmp.ge.f32.partialorder %v68, 0.0
  %vm85 = vcmp.ge.f32.partialorder %v69, 0.0
  %vm86 = vcmp.ge.f32.partialorder %v70, 0.0
  %vm87 = vcmp.ge.f32.partialorder %v71, 0.0
  %vm88 = vcmp.ge.f32.partialorder %v72, 0.0
  %vm89 = vcmp.ge.f32.partialorder %v73, 0.0
  %vm90 = vcmp.ge.f32.partialorder %v74, 0.0
  %vm91 = vcmp.ge.f32.partialorder %v75, 0.0
  %v92 = vmul.f32 %v60, 0.1
  %v93 = vmul.f32 %v61, 0.1
  %v94 = vmul.f32 %v62, 0.1
  %v95 = vmul.f32 %v63, 0.1
  %v96 = vmul.f32 %v64, 0.1
  %v97 = vmul.f32 %v65, 0.1
  %v98 = vmul.f32 %v66, 0.1
  %v99 = vmul.f32 %v67, 0.1
  %v100 = vmul.f32 %v68, 0.1
  %v101 = vmul.f32 %v69, 0.1
  %v102 = vmul.f32 %v70, 0.1
  %v103 = vmul.f32 %v71, 0.1
  %v104 = vmul.f32 %v72, 0.1
  %v105 = vmul.f32 %v73, 0.1
  %v106 = vmul.f32 %v74, 0.1
  %v107 = vmul.f32 %v75, 0.1
  %v108 = vsel %vm76, %v60, %v92
  %v109 = vsel %vm77, %v61, %v93
  %v110 = vsel %vm78, %v62, %v94
  %v111 = vsel %vm79, %v63, %v95
  %v112 = vsel %vm80, %v64, %v96
  %v113 = vsel %vm81, %v65, %v97
  %v114 = vsel %vm82, %v66, %v98
  %v115 = vsel %vm83, %v67, %v99
  %v116 = vsel %vm84, %v68, %v100
  %v117 = vsel %vm85, %v69, %v101
  %v118 = vsel %vm86, %v70, %v102
  %v119 = vsel %vm87, %v71, %v103
  %v120 = vsel %vm88, %v72, %v104
  %v121 = vsel %vm89, %v73, %v105
  %v122 = vsel %vm90, %v74, %v106
  %v123 = vsel %vm91, %v75, %v107
  %124 = vst [vmem:[%s3] sm:$0xff] %v108
  %125 = vst [vmem:[%s3 + $0x8] sm:$0xff] %v109
  %126 = vst [vmem:[%s3 + $0x10] sm:$0xff] %v110
  %127 = vst [vmem:[%s3 + $0x18] sm:$0xff] %v111
  %128 = vst [vmem:[%s3 + $0x20] sm:$0xff] %v112
  %129 = vst [vmem:[%s3 + $0x28] sm:$0xff] %v113
  %130 = vst [vmem:[%s3 + $0x30] sm:$0xff] %v114
  %131 = vst [vmem:[%s3 + $0x38] sm:$0xff] %v115
  %132 = vst [vmem:[%s3 + $0x40] sm:$0xff] %v116
  %133 = vst [vmem:[%s3 + $0x48] sm:$0xff] %v117
  %134 = vst [vmem:[%s3 + $0x50] sm:$0xff] %v118
  %135 = vst [vmem:[%s3 + $0x58] sm:$0xff] %v119
  %136 = vst [vmem:[%s3 + $0x60] sm:$0xff] %v120
  %137 = vst [vmem:[%s3 + $0x68] sm:$0xff] %v121
  %138 = vst [vmem:[%s3 + $0x70] sm:$0xff] %v122
  %139 = vst [vmem:[%s3 + $0x78] sm:$0xff] %v123
  // Predicated region
  $region14: #{res_encoder_forward.22} parent=0 // pred_check
    _
  $region15: #{res_encoder_forward.22} parent=0 // pred_check_branch
    %141 = sbr.rel (0) target = $region17
  $region16: #{res_encoder_forward.22} parent=0 // pred_region
    _
  $region17: #{res_encoder_forward.22} parent=0 // pred_fallthru
    _
  // Predicated region
  $region18: #{res_encoder_forward.22} parent=0 // pred_check
    _
  $region19: #{res_encoder_forward.22} parent=0 // pred_check_branch
    %143 = sbr.rel (0) target = $region21
  $region20: #{res_encoder_forward.22} parent=0 // pred_region
    _
  $region21: #{res_encoder_forward.22} parent=0 // pred_fallthru
    _

// kernel: res_encoder_forward.21
$region0: #{res_encoder_forward.21}
  #allocation0 [shape = 'u32[]', space=smem, size = 0x4, offset = 0x4, fixed_abs, tag = 'smem constant byte address 0x4 - core index']
  #allocation1 [shape = 'u32[144,128]{1,0:T(1,128)}', space=vmem, size = 0x12000, scoped, tag = 'internal scratch']
  #allocation2 [shape = 'f32[128,128]{1,0:T(8,128)}', space=vmem, size = 0x10000, scoped, tag = 'scratch operand']
  %s0 = inlined_call_operand.vmem [shape: bf16[128,640], index: 0, kind: input, shape index: {}]
  %s1 = inlined_call_operand.vmem [shape: bf16[640,128], index: 1, kind: input, shape index: {}]
  %s2 = inlined_call_operand.vmem [shape: f32[128,128], index: 2, kind: output, shape index: {}]
  %s3 = sld [smem:[#allocation0]]
  $region26: #{res_encoder_forward.21} parent=0
    _
  %s5 = ssub.s32 1, %s3
  %s6 = scalar_select 0, %s5, %s3
  // Predicated region
  $region2: #{res_encoder_forward.21} parent=0 // pred_check
    _
  $region3: #{res_encoder_forward.21} parent=0 // pred_check_branch
    %8 = sbr.rel (0) target = $region5
  $region4: #{res_encoder_forward.21} parent=0 // pred_region
    _
  $region5: #{res_encoder_forward.21} parent=0 // pred_fallthru
    _
  // Predicated region
  $region6: #{res_encoder_forward.21} parent=0 // pred_check
    _
  $region7: #{res_encoder_forward.21} parent=0 // pred_check_branch
    %10 = sbr.rel (0) target = $region9
  $region8: #{res_encoder_forward.21} parent=0 // pred_region
    _
  $region9: #{res_encoder_forward.21} parent=0 // pred_fallthru
    _
  %p12 = scmp.eq.s32.totalorder 0, 0
  // Predicated region
  $region10: #{res_encoder_forward.21} parent=0 // pred_check
    %p13 = pneg %p12
  $region11: #{res_encoder_forward.21} parent=0 // pred_check_branch
    %15 = sbr.rel (%p13) target = $region13
  $region12: #{res_encoder_forward.21} parent=0 // pred_region
    %16 = vst [vmem:[#allocation2] sm:$0xff] 0.0
    %17 = vst [vmem:[#allocation2 + $0x8] sm:$0xff] 0.0
    %18 = vst [vmem:[#allocation2 + $0x10] sm:$0xff] 0.0
    %19 = vst [vmem:[#allocation2 + $0x18] sm:$0xff] 0.0
    %20 = vst [vmem:[#allocation2 + $0x20] sm:$0xff] 0.0
    %21 = vst [vmem:[#allocation2 + $0x28] sm:$0xff] 0.0
    %22 = vst [vmem:[#allocation2 + $0x30] sm:$0xff] 0.0
    %23 = vst [vmem:[#allocation2 + $0x38] sm:$0xff] 0.0
    %24 = vst [vmem:[#allocation2 + $0x40] sm:$0xff] 0.0
    %25 = vst [vmem:[#allocation2 + $0x48] sm:$0xff] 0.0
    %26 = vst [vmem:[#allocation2 + $0x50] sm:$0xff] 0.0
    %27 = vst [vmem:[#allocation2 + $0x58] sm:$0xff] 0.0
    %28 = vst [vmem:[#allocation2 + $0x60] sm:$0xff] 0.0
    %29 = vst [vmem:[#allocation2 + $0x68] sm:$0xff] 0.0
    %30 = vst [vmem:[#allocation2 + $0x70] sm:$0xff] 0.0
    %31 = vst [vmem:[#allocation2 + $0x78] sm:$0xff] 0.0
  $region13: #{res_encoder_forward.21} parent=0 // pred_fallthru
    _
  %v32 = vld [vmem:[#allocation2] sm:$0xff]
  %v33 = vld [vmem:[#allocation2 + $0x8] sm:$0xff]
  %v34 = vld [vmem:[#allocation2 + $0x10] sm:$0xff]
  %v35 = vld [vmem:[#allocation2 + $0x18] sm:$0xff]
  %v36 = vld [vmem:[#allocation2 + $0x20] sm:$0xff]
  %v37 = vld [vmem:[#allocation2 + $0x28] sm:$0xff]
  %v38 = vld [vmem:[#allocation2 + $0x30] sm:$0xff]
  %v39 = vld [vmem:[#allocation2 + $0x38] sm:$0xff]
  %v40 = vld [vmem:[#allocation2 + $0x40] sm:$0xff]
  %v41 = vld [vmem:[#allocation2 + $0x48] sm:$0xff]
  %v42 = vld [vmem:[#allocation2 + $0x50] sm:$0xff]
  %v43 = vld [vmem:[#allocation2 + $0x58] sm:$0xff]
  %v44 = vld [vmem:[#allocation2 + $0x60] sm:$0xff]
  %v45 = vld [vmem:[#allocation2 + $0x68] sm:$0xff]
  %v46 = vld [vmem:[#allocation2 + $0x70] sm:$0xff]
  %v47 = vld [vmem:[#allocation2 + $0x78] sm:$0xff]
  %v48 = vld [vmem:[%s0] sm:$0xff]
  %v49 = vld [vmem:[%s0 + $0x8] sm:$0xff]
  %v50 = vld [vmem:[%s0 + $0x10] sm:$0xf]
  %v51 = vld [vmem:[%s0 + $0x14] sm:$0xff]
  %v52 = vld [vmem:[%s0 + $0x1c] sm:$0xff]
  %v53 = vld [vmem:[%s0 + $0x24] sm:$0xf]
  %v54 = vld [vmem:[%s0 + $0x28] sm:$0xff]
  %v55 = vld [vmem:[%s0 + $0x30] sm:$0xff]
  %v56 = vld [vmem:[%s0 + $0x38] sm:$0xf]
  %v57 = vld [vmem:[%s0 + $0x3c] sm:$0xff]
  %v58 = vld [vmem:[%s0 + $0x44] sm:$0xff]
  %v59 = vld [vmem:[%s0 + $0x4c] sm:$0xf]
  %v60 = vld [vmem:[%s0 + $0x50] sm:$0xff]
  %v61 = vld [vmem:[%s0 + $0x58] sm:$0xff]
  %v62 = vld [vmem:[%s0 + $0x60] sm:$0xf]
  %v63 = vld [vmem:[%s0 + $0x64] sm:$0xff]
  %v64 = vld [vmem:[%s0 + $0x6c] sm:$0xff]
  %v65 = vld [vmem:[%s0 + $0x74] sm:$0xf]
  %v66 = vld [vmem:[%s0 + $0x78] sm:$0xff]
  %v67 = vld [vmem:[%s0 + $0x80] sm:$0xff]
  %v68 = vld [vmem:[%s0 + $0x88] sm:$0xf]
  %v69 = vld [vmem:[%s0 + $0x8c] sm:$0xff]
  %v70 = vld [vmem:[%s0 + $0x94] sm:$0xff]
  %v71 = vld [vmem:[%s0 + $0x9c] sm:$0xf]
  %v72 = vld [vmem:[%s0 + $0xa0] sm:$0xff]
  %v73 = vld [vmem:[%s0 + $0xa8] sm:$0xff]
  %v74 = vld [vmem:[%s0 + $0xb0] sm:$0xf]
  %v75 = vld [vmem:[%s0 + $0xb4] sm:$0xff]
  %v76 = vld [vmem:[%s0 + $0xbc] sm:$0xff]
  %v77 = vld [vmem:[%s0 + $0xc4] sm:$0xf]
  %v78 = vld [vmem:[%s0 + $0xc8] sm:$0xff]
  %v79 = vld [vmem:[%s0 + $0xd0] sm:$0xff]
  %v80 = vld [vmem:[%s0 + $0xd8] sm:$0xf]
  %v81 = vld [vmem:[%s0 + $0xdc] sm:$0xff]
  %v82 = vld [vmem:[%s0 + $0xe4] sm:$0xff]
  %v83 = vld [vmem:[%s0 + $0xec] sm:$0xf]
  %v84 = vld [vmem:[%s0 + $0xf0] sm:$0xff]
  %v85 = vld [vmem:[%s0 + $0xf8] sm:$0xff]
  %v86 = vld [vmem:[%s0 + $0x100] sm:$0xf]
  %v87 = vld [vmem:[%s0 + $0x104] sm:$0xff]
  %v88 = vld [vmem:[%s0 + $0x10c] sm:$0xff]
  %v89 = vld [vmem:[%s0 + $0x114] sm:$0xf]
  %v90 = vld [vmem:[%s0 + $0x118] sm:$0xff]
  %v91 = vld [vmem:[%s0 + $0x120] sm:$0xff]
  %v92 = vld [vmem:[%s0 + $0x128] sm:$0xf]
  %v93 = vld [vmem:[%s0 + $0x12c] sm:$0xff]
  %v94 = vld [vmem:[%s0 + $0x134] sm:$0xff]
  %v95 = vld [vmem:[%s0 + $0x13c] sm:$0xf]
  %v96 = vld [vmem:[%s1] sm:$0xf]
  %v97 = vld [vmem:[%s1 + $0x4] sm:$0xf]
  %v98 = vld [vmem:[%s1 + $0x8] sm:$0xf]
  %v99 = vld [vmem:[%s1 + $0xc] sm:$0xf]
  %v100 = vld [vmem:[%s1 + $0x10] sm:$0xf]
  %v101 = vld [vmem:[%s1 + $0x14] sm:$0xf]
  %v102 = vld [vmem:[%s1 + $0x18] sm:$0xf]
  %v103 = vld [vmem:[%s1 + $0x1c] sm:$0xf]
  %v104 = vld [vmem:[%s1 + $0x20] sm:$0xf]
  %v105 = vld [vmem:[%s1 + $0x24] sm:$0xf]
  %v106 = vld [vmem:[%s1 + $0x28] sm:$0xf]
  %v107 = vld [vmem:[%s1 + $0x2c] sm:$0xf]
  %v108 = vld [vmem:[%s1 + $0x30] sm:$0xf]
  %v109 = vld [vmem:[%s1 + $0x34] sm:$0xf]
  %v110 = vld [vmem:[%s1 + $0x38] sm:$0xf]
  %v111 = vld [vmem:[%s1 + $0x3c] sm:$0xf]
  %v112 = vld [vmem:[%s1 + $0x40] sm:$0xf]
  %v113 = vld [vmem:[%s1 + $0x44] sm:$0xf]
  %v114 = vld [vmem:[%s1 + $0x48] sm:$0xf]
  %v115 = vld [vmem:[%s1 + $0x4c] sm:$0xf]
  %v116 = vld [vmem:[%s1 + $0x50] sm:$0xf]
  %v117 = vld [vmem:[%s1 + $0x54] sm:$0xf]
  %v118 = vld [vmem:[%s1 + $0x58] sm:$0xf]
  %v119 = vld [vmem:[%s1 + $0x5c] sm:$0xf]
  %v120 = vld [vmem:[%s1 + $0x60] sm:$0xf]
  %v121 = vld [vmem:[%s1 + $0x64] sm:$0xf]
  %v122 = vld [vmem:[%s1 + $0x68] sm:$0xf]
  %v123 = vld [vmem:[%s1 + $0x6c] sm:$0xf]
  %v124 = vld [vmem:[%s1 + $0x70] sm:$0xf]
  %v125 = vld [vmem:[%s1 + $0x74] sm:$0xf]
  %v126 = vld [vmem:[%s1 + $0x78] sm:$0xf]
  %v127 = vld [vmem:[%s1 + $0x7c] sm:$0xf]
  %v128 = vld [vmem:[%s1 + $0x80] sm:$0xf]
  %v129 = vld [vmem:[%s1 + $0x84] sm:$0xf]
  %v130 = vld [vmem:[%s1 + $0x88] sm:$0xf]
  %v131 = vld [vmem:[%s1 + $0x8c] sm:$0xf]
  %v132 = vld [vmem:[%s1 + $0x90] sm:$0xf]
  %v133 = vld [vmem:[%s1 + $0x94] sm:$0xf]
  %v134 = vld [vmem:[%s1 + $0x98] sm:$0xf]
  %v135 = vld [vmem:[%s1 + $0x9c] sm:$0xf]
  %v136 = vld [vmem:[%s1 + $0xa0] sm:$0xf]
  %v137 = vld [vmem:[%s1 + $0xa4] sm:$0xf]
  %v138 = vld [vmem:[%s1 + $0xa8] sm:$0xf]
  %v139 = vld [vmem:[%s1 + $0xac] sm:$0xf]
  %v140 = vld [vmem:[%s1 + $0xb0] sm:$0xf]
  %v141 = vld [vmem:[%s1 + $0xb4] sm:$0xf]
  %v142 = vld [vmem:[%s1 + $0xb8] sm:$0xf]
  %v143 = vld [vmem:[%s1 + $0xbc] sm:$0xf]
  %v144 = vld [vmem:[%s1 + $0xc0] sm:$0xf]
  %v145 = vld [vmem:[%s1 + $0xc4] sm:$0xf]
  %v146 = vld [vmem:[%s1 + $0xc8] sm:$0xf]
  %v147 = vld [vmem:[%s1 + $0xcc] sm:$0xf]
  %v148 = vld [vmem:[%s1 + $0xd0] sm:$0xf]
  %v149 = vld [vmem:[%s1 + $0xd4] sm:$0xf]
  %v150 = vld [vmem:[%s1 + $0xd8] sm:$0xf]
  %v151 = vld [vmem:[%s1 + $0xdc] sm:$0xf]
  %v152 = vld [vmem:[%s1 + $0xe0] sm:$0xf]
  %v153 = vld [vmem:[%s1 + $0xe4] sm:$0xf]
  %v154 = vld [vmem:[%s1 + $0xe8] sm:$0xf]
  %v155 = vld [vmem:[%s1 + $0xec] sm:$0xf]
  %v156 = vld [vmem:[%s1 + $0xf0] sm:$0xf]
  %v157 = vld [vmem:[%s1 + $0xf4] sm:$0xf]
  %v158 = vld [vmem:[%s1 + $0xf8] sm:$0xf]
  %v159 = vld [vmem:[%s1 + $0xfc] sm:$0xf]
  %v160 = vld [vmem:[%s1 + $0x100] sm:$0xf]
  %v161 = vld [vmem:[%s1 + $0x104] sm:$0xf]
  %v162 = vld [vmem:[%s1 + $0x108] sm:$0xf]
  %v163 = vld [vmem:[%s1 + $0x10c] sm:$0xf]
  %v164 = vld [vmem:[%s1 + $0x110] sm:$0xf]
  %v165 = vld [vmem:[%s1 + $0x114] sm:$0xf]
  %v166 = vld [vmem:[%s1 + $0x118] sm:$0xf]
  %v167 = vld [vmem:[%s1 + $0x11c] sm:$0xf]
  %v168 = vld [vmem:[%s1 + $0x120] sm:$0xf]
  %v169 = vld [vmem:[%s1 + $0x124] sm:$0xf]
  %v170 = vld [vmem:[%s1 + $0x128] sm:$0xf]
  %v171 = vld [vmem:[%s1 + $0x12c] sm:$0xf]
  %v172 = vld [vmem:[%s1 + $0x130] sm:$0xf]
  %v173 = vld [vmem:[%s1 + $0x134] sm:$0xf]
  %v174 = vld [vmem:[%s1 + $0x138] sm:$0xf]
  %v175 = vld [vmem:[%s1 + $0x13c] sm:$0xf]
  %v224 = vunpack.c.l.b16 %v48
  %v225 = vunpack.c.h.b16 %v48
  %v226 = vunpack.c.l.b16 %v49
  %v227 = vunpack.c.h.b16 %v49
  %v228 = vunpack.c.l.b16 %v50
  %v229 = vunpack.c.l.b16 %v51
  %v230 = vunpack.c.h.b16 %v51
  %v231 = vunpack.c.l.b16 %v52
  %v232 = vunpack.c.h.b16 %v52
  %v233 = vunpack.c.l.b16 %v53
  %v234 = vunpack.c.l.b16 %v54
  %v235 = vunpack.c.h.b16 %v54
  %v236 = vunpack.c.l.b16 %v55
  %v237 = vunpack.c.h.b16 %v55
  %v238 = vunpack.c.l.b16 %v56
  %v239 = vunpack.c.l.b16 %v57
  %v240 = vunpack.c.h.b16 %v57
  %v241 = vunpack.c.l.b16 %v58
  %v242 = vunpack.c.h.b16 %v58
  %v243 = vunpack.c.l.b16 %v59
  %v244 = vunpack.c.l.b16 %v60
  %v245 = vunpack.c.h.b16 %v60
  %v246 = vunpack.c.l.b16 %v61
  %v247 = vunpack.c.h.b16 %v61
  %v248 = vunpack.c.l.b16 %v62
  %v249 = vunpack.c.l.b16 %v63
  %v250 = vunpack.c.h.b16 %v63
  %v251 = vunpack.c.l.b16 %v64
  %v252 = vunpack.c.h.b16 %v64
  %v253 = vunpack.c.l.b16 %v65
  %v254 = vunpack.c.l.b16 %v66
  %v255 = vunpack.c.h.b16 %v66
  %v256 = vunpack.c.l.b16 %v67
  %v257 = vunpack.c.h.b16 %v67
  %v258 = vunpack.c.l.b16 %v68
  %v259 = vunpack.c.l.b16 %v69
  %v260 = vunpack.c.h.b16 %v69
  %v261 = vunpack.c.l.b16 %v70
  %v262 = vunpack.c.h.b16 %v70
  %v263 = vunpack.c.l.b16 %v71
  %v264 = vunpack.c.l.b16 %v72
  %v265 = vunpack.c.h.b16 %v72
  %v266 = vunpack.c.l.b16 %v73
  %v267 = vunpack.c.h.b16 %v73
  %v268 = vunpack.c.l.b16 %v74
  %v269 = vunpack.c.l.b16 %v75
  %v270 = vunpack.c.h.b16 %v75
  %v271 = vunpack.c.l.b16 %v76
  %v272 = vunpack.c.h.b16 %v76
  %v273 = vunpack.c.l.b16 %v77
  %v274 = vunpack.c.l.b16 %v78
  %v275 = vunpack.c.h.b16 %v78
  %v276 = vunpack.c.l.b16 %v79
  %v277 = vunpack.c.h.b16 %v79
  %v278 = vunpack.c.l.b16 %v80
  %v279 = vunpack.c.l.b16 %v81
  %v280 = vunpack.c.h.b16 %v81
  %v281 = vunpack.c.l.b16 %v82
  %v282 = vunpack.c.h.b16 %v82
  %v283 = vunpack.c.l.b16 %v83
  %v284 = vunpack.c.l.b16 %v84
  %v285 = vunpack.c.h.b16 %v84
  %v286 = vunpack.c.l.b16 %v85
  %v287 = vunpack.c.h.b16 %v85
  %v288 = vunpack.c.l.b16 %v86
  %v289 = vunpack.c.l.b16 %v87
  %v290 = vunpack.c.h.b16 %v87
  %v291 = vunpack.c.l.b16 %v88
  %v292 = vunpack.c.h.b16 %v88
  %v293 = vunpack.c.l.b16 %v89
  %v294 = vunpack.c.l.b16 %v90
  %v295 = vunpack.c.h.b16 %v90
  %v296 = vunpack.c.l.b16 %v91
  %v297 = vunpack.c.h.b16 %v91
  %v298 = vunpack.c.l.b16 %v92
  %v299 = vunpack.c.l.b16 %v93
  %v300 = vunpack.c.h.b16 %v93
  %v301 = vunpack.c.l.b16 %v94
  %v302 = vunpack.c.h.b16 %v94
  %v303 = vunpack.c.l.b16 %v95
  %v304 = vpack.c.b16 %v229, %v224
  %v305 = vpack.c.b16 %v230, %v225
  %v306 = vpack.c.b16 %v231, %v226
  %v307 = vpack.c.b16 %v232, %v227
  %v308 = vpack.c.b16 %v233, %v228
  %v309 = vpack.c.b16 %v239, %v234
  %v310 = vpack.c.b16 %v240, %v235
  %v311 = vpack.c.b16 %v241, %v236
  %v312 = vpack.c.b16 %v242, %v237
  %v313 = vpack.c.b16 %v243, %v238
  %v314 = vpack.c.b16 %v249, %v244
  %v315 = vpack.c.b16 %v250, %v245
  %v316 = vpack.c.b16 %v251, %v246
  %v317 = vpack.c.b16 %v252, %v247
  %v318 = vpack.c.b16 %v253, %v248
  %v319 = vpack.c.b16 %v259, %v254
  %v320 = vpack.c.b16 %v260, %v255
  %v321 = vpack.c.b16 %v261, %v256
  %v322 = vpack.c.b16 %v262, %v257
  %v323 = vpack.c.b16 %v263, %v258
  %v324 = vpack.c.b16 %v269, %v264
  %v325 = vpack.c.b16 %v270, %v265
  %v326 = vpack.c.b16 %v271, %v266
  %v327 = vpack.c.b16 %v272, %v267
  %v328 = vpack.c.b16 %v273, %v268
  %v329 = vpack.c.b16 %v279, %v274
  %v330 = vpack.c.b16 %v280, %v275
  %v331 = vpack.c.b16 %v281, %v276
  %v332 = vpack.c.b16 %v282, %v277
  %v333 = vpack.c.b16 %v283, %v278
  %v334 = vpack.c.b16 %v289, %v284
  %v335 = vpack.c.b16 %v290, %v285
  %v336 = vpack.c.b16 %v291, %v286
  %v337 = vpack.c.b16 %v292, %v287
  %v338 = vpack.c.b16 %v293, %v288
  %v339 = vpack.c.b16 %v299, %v294
  %v340 = vpack.c.b16 %v300, %v295
  %v341 = vpack.c.b16 %v301, %v296
  %v342 = vpack.c.b16 %v302, %v297
  %v343 = vpack.c.b16 %v303, %v298
  %v464 = vunpack.c.l.b16 %v96
  %v465 = vunpack.c.l.b16 %v97
  %v466 = vunpack.c.l.b16 %v98
  %v467 = vunpack.c.l.b16 %v99
  %v468 = vunpack.c.l.b16 %v100
  %v469 = vunpack.c.l.b16 %v101
  %v470 = vunpack.c.l.b16 %v102
  %v471 = vunpack.c.l.b16 %v103
  %v472 = vunpack.c.l.b16 %v104
  %v473 = vunpack.c.l.b16 %v105
  %v474 = vunpack.c.l.b16 %v106
  %v475 = vunpack.c.l.b16 %v107
  %v476 = vunpack.c.l.b16 %v108
  %v477 = vunpack.c.l.b16 %v109
  %v478 = vunpack.c.l.b16 %v110
  %v479 = vunpack.c.l.b16 %v111
  %v480 = vunpack.c.l.b16 %v112
  %v481 = vunpack.c.l.b16 %v113
  %v482 = vunpack.c.l.b16 %v114
  %v483 = vunpack.c.l.b16 %v115
  %v484 = vunpack.c.l.b16 %v116
  %v485 = vunpack.c.l.b16 %v117
  %v486 = vunpack.c.l.b16 %v118
  %v487 = vunpack.c.l.b16 %v119
  %v488 = vunpack.c.l.b16 %v120
  %v489 = vunpack.c.l.b16 %v121
  %v490 = vunpack.c.l.b16 %v122
  %v491 = vunpack.c.l.b16 %v123
  %v492 = vunpack.c.l.b16 %v124
  %v493 = vunpack.c.l.b16 %v125
  %v494 = vunpack.c.l.b16 %v126
  %v495 = vunpack.c.l.b16 %v127
  %v496 = vunpack.c.l.b16 %v128
  %v497 = vunpack.c.l.b16 %v129
  %v498 = vunpack.c.l.b16 %v130
  %v499 = vunpack.c.l.b16 %v131
  %v500 = vunpack.c.l.b16 %v132
  %v501 = vunpack.c.l.b16 %v133
  %v502 = vunpack.c.l.b16 %v134
  %v503 = vunpack.c.l.b16 %v135
  %v504 = vunpack.c.l.b16 %v136
  %v505 = vunpack.c.l.b16 %v137
  %v506 = vunpack.c.l.b16 %v138
  %v507 = vunpack.c.l.b16 %v139
  %v508 = vunpack.c.l.b16 %v140
  %v509 = vunpack.c.l.b16 %v141
  %v510 = vunpack.c.l.b16 %v142
  %v511 = vunpack.c.l.b16 %v143
  %v512 = vunpack.c.l.b16 %v144
  %v513 = vunpack.c.l.b16 %v145
  %v514 = vunpack.c.l.b16 %v146
  %v515 = vunpack.c.l.b16 %v147
  %v516 = vunpack.c.l.b16 %v148
  %v517 = vunpack.c.l.b16 %v149
  %v518 = vunpack.c.l.b16 %v150
  %v519 = vunpack.c.l.b16 %v151
  %v520 = vunpack.c.l.b16 %v152
  %v521 = vunpack.c.l.b16 %v153
  %v522 = vunpack.c.l.b16 %v154
  %v523 = vunpack.c.l.b16 %v155
  %v524 = vunpack.c.l.b16 %v156
  %v525 = vunpack.c.l.b16 %v157
  %v526 = vunpack.c.l.b16 %v158
  %v527 = vunpack.c.l.b16 %v159
  %v528 = vunpack.c.l.b16 %v160
  %v529 = vunpack.c.l.b16 %v161
  %v530 = vunpack.c.l.b16 %v162
  %v531 = vunpack.c.l.b16 %v163
  %v532 = vunpack.c.l.b16 %v164
  %v533 = vunpack.c.l.b16 %v165
  %v534 = vunpack.c.l.b16 %v166
  %v535 = vunpack.c.l.b16 %v167
  %v536 = vunpack.c.l.b16 %v168
  %v537 = vunpack.c.l.b16 %v169
  %v538 = vunpack.c.l.b16 %v170
  %v539 = vunpack.c.l.b16 %v171
  %v540 = vunpack.c.l.b16 %v172
  %v541 = vunpack.c.l.b16 %v173
  %v542 = vunpack.c.l.b16 %v174
  %v543 = vunpack.c.l.b16 %v175
  %v544 = vpack.c.b16 %v465, %v464
  %v545 = vpack.c.b16 %v467, %v466
  %v546 = vpack.c.b16 %v469, %v468
  %v547 = vpack.c.b16 %v471, %v470
  %v548 = vpack.c.b16 %v473, %v472
  %v549 = vpack.c.b16 %v475, %v474
  %v550 = vpack.c.b16 %v477, %v476
  %v551 = vpack.c.b16 %v479, %v478
  %v552 = vpack.c.b16 %v481, %v480
  %v553 = vpack.c.b16 %v483, %v482
  %v554 = vpack.c.b16 %v485, %v484
  %v555 = vpack.c.b16 %v487, %v486
  %v556 = vpack.c.b16 %v489, %v488
  %v557 = vpack.c.b16 %v491, %v490
  %v558 = vpack.c.b16 %v493, %v492
  %v559 = vpack.c.b16 %v495, %v494
  %v560 = vpack.c.b16 %v497, %v496
  %v561 = vpack.c.b16 %v499, %v498
  %v562 = vpack.c.b16 %v501, %v500
  %v563 = vpack.c.b16 %v503, %v502
  %v564 = vpack.c.b16 %v505, %v504
  %v565 = vpack.c.b16 %v507, %v506
  %v566 = vpack.c.b16 %v509, %v508
  %v567 = vpack.c.b16 %v511, %v510
  %v568 = vpack.c.b16 %v513, %v512
  %v569 = vpack.c.b16 %v515, %v514
  %v570 = vpack.c.b16 %v517, %v516
  %v571 = vpack.c.b16 %v519, %v518
  %v572 = vpack.c.b16 %v521, %v520
  %v573 = vpack.c.b16 %v523, %v522
  %v574 = vpack.c.b16 %v525, %v524
  %v575 = vpack.c.b16 %v527, %v526
  %v576 = vpack.c.b16 %v529, %v528
  %v577 = vpack.c.b16 %v531, %v530
  %v578 = vpack.c.b16 %v533, %v532
  %v579 = vpack.c.b16 %v535, %v534
  %v580 = vpack.c.b16 %v537, %v536
  %v581 = vpack.c.b16 %v539, %v538
  %v582 = vpack.c.b16 %v541, %v540
  %v583 = vpack.c.b16 %v543, %v542
  %624 = vmatprep.subr.bf16.mxu0 0
  %625 = vmatpush1.bf16.msra.mxu0 %v551
  %626 = vmatprep.subr.bf16.mxu0 0
  %627 = vmatpush1.bf16.msra.mxu0 %v550
  %628 = vmatprep.subr.bf16.mxu0 0
  %629 = vmatpush1.bf16.msra.mxu0 %v549
  %630 = vmatprep.subr.bf16.mxu0 0
  %631 = vmatpush1.bf16.msra.mxu0 %v548
  %632 = vmatprep.subr.bf16.mxu0 0
  %633 = vmatpush1.bf16.msra.mxu0 %v547
  %634 = vmatprep.subr.bf16.mxu0 0
  %635 = vmatpush1.bf16.msra.mxu0 %v546
  %636 = vmatprep.subr.bf16.mxu0 0
  %637 = vmatpush1.bf16.msra.mxu0 %v545
  %638 = vmatprep.subr.bf16.mxu0 0
  %639 = vmatpush1.bf16.msra.mxu0 %v544
  %640 = vmatprep.subr.bf16.mxu0 0
  %641 = vmatpush2.bf16.msra.mxu0 %v559
  %642 = vmatprep.subr.bf16.mxu0 0
  %643 = vmatpush2.bf16.msra.mxu0 %v558
  %644 = vmatprep.subr.bf16.mxu0 0
  %645 = vmatpush2.bf16.msra.mxu0 %v557
  %646 = vmatprep.subr.bf16.mxu0 0
  %647 = vmatpush2.bf16.msra.mxu0 %v556
  %648 = vmatprep.subr.bf16.mxu0 0
  %649 = vmatpush2.bf16.msra.mxu0 %v555
  %650 = vmatprep.subr.bf16.mxu0 0
  %651 = vmatpush2.bf16.msra.mxu0 %v554
  %652 = vmatprep.subr.bf16.mxu0 0
  %653 = vmatpush2.bf16.msra.mxu0 %v553
  %654 = vmatprep.subr.bf16.mxu0 0
  %655 = vmatpush2.bf16.msra.mxu0 %v552
  %656 = vmatprep.mubr.bf16.mxu0 %v305
  %657 = vmatmul.mubr.bf16.gmra.mxu0 %v304
  %v658 = vpop.f32.mrf.mxu0
  %v659 = vadd.f32 0.0, %v658
  %v660 = vpop.f32.mrf.mxu0
  %v661 = vpop.f32.mrf.mxu0
  %v662 = vadd.f32 0.0, %v661
  %v663 = vpop.f32.mrf.mxu0
  %664 = vmatprep.mubr.bf16.mxu0 %v310
  %665 = vmatmul.mubr.bf16.gmra.mxu0 %v309
  %v666 = vpop.f32.mrf.mxu0
  %v667 = vadd.f32 0.0, %v666
  %v668 = vpop.f32.mrf.mxu0
  %v669 = vpop.f32.mrf.mxu0
  %v670 = vadd.f32 0.0, %v669
  %v671 = vpop.f32.mrf.mxu0
  %672 = vmatprep.mubr.bf16.mxu0 %v315
  %673 = vmatmul.mubr.bf16.gmra.mxu0 %v314
  %v674 = vpop.f32.mrf.mxu0
  %v675 = vadd.f32 0.0, %v674
  %v676 = vpop.f32.mrf.mxu0
  %v677 = vpop.f32.mrf.mxu0
  %v678 = vadd.f32 0.0, %v677
  %v679 = vpop.f32.mrf.mxu0
  %680 = vmatprep.mubr.bf16.mxu0 %v320
  %681 = vmatmul.mubr.bf16.gmra.mxu0 %v319
  %v682 = vpop.f32.mrf.mxu0
  %v683 = vadd.f32 0.0, %v682
  %v684 = vpop.f32.mrf.mxu0
  %v685 = vpop.f32.mrf.mxu0
  %v686 = vadd.f32 0.0, %v685
  %v687 = vpop.f32.mrf.mxu0
  %688 = vmatprep.mubr.bf16.mxu0 %v325
  %689 = vmatmul.mubr.bf16.gmra.mxu0 %v324
  %v690 = vpop.f32.mrf.mxu0
  %v691 = vadd.f32 0.0, %v690
  %v692 = vpop.f32.mrf.mxu0
  %v693 = vpop.f32.mrf.mxu0
  %v694 = vadd.f32 0.0, %v693
  %v695 = vpop.f32.mrf.mxu0
  %696 = vmatprep.mubr.bf16.mxu0 %v330
  %697 = vmatmul.mubr.bf16.gmra.mxu0 %v329
  %v698 = vpop.f32.mrf.mxu0
  %v699 = vadd.f32 0.0, %v698
  %v700 = vpop.f32.mrf.mxu0
  %v701 = vpop.f32.mrf.mxu0
  %v702 = vadd.f32 0.0, %v701
  %v703 = vpop.f32.mrf.mxu0
  %704 = vmatprep.mubr.bf16.mxu0 %v335
  %705 = vmatmul.mubr.bf16.gmra.mxu0 %v334
  %v706 = vpop.f32.mrf.mxu0
  %v707 = vadd.f32 0.0, %v706
  %v708 = vpop.f32.mrf.mxu0
  %v709 = vpop.f32.mrf.mxu0
  %v710 = vadd.f32 0.0, %v709
  %v711 = vpop.f32.mrf.mxu0
  %712 = vmatprep.mubr.bf16.mxu0 %v340
  %713 = vmatmul.mubr.bf16.gmra.mxu0 %v339
  %v714 = vpop.f32.mrf.mxu0
  %v715 = vadd.f32 0.0, %v714
  %v716 = vpop.f32.mrf.mxu0
  %v717 = vpop.f32.mrf.mxu0
  %v718 = vadd.f32 0.0, %v717
  %v719 = vpop.f32.mrf.mxu0
  %720 = vdwg.mxu0
  %721 = vmatprep.subr.bf16.mxu0 0
  %722 = vmatpush1.bf16.msra.mxu0 %v567
  %723 = vmatprep.subr.bf16.mxu0 0
  %724 = vmatpush1.bf16.msra.mxu0 %v566
  %725 = vmatprep.subr.bf16.mxu0 0
  %726 = vmatpush1.bf16.msra.mxu0 %v565
  %727 = vmatprep.subr.bf16.mxu0 0
  %728 = vmatpush1.bf16.msra.mxu0 %v564
  %729 = vmatprep.subr.bf16.mxu0 0
  %730 = vmatpush1.bf16.msra.mxu0 %v563
  %731 = vmatprep.subr.bf16.mxu0 0
  %732 = vmatpush1.bf16.msra.mxu0 %v562
  %733 = vmatprep.subr.bf16.mxu0 0
  %734 = vmatpush1.bf16.msra.mxu0 %v561
  %735 = vmatprep.subr.bf16.mxu0 0
  %736 = vmatpush1.bf16.msra.mxu0 %v560
  %737 = vmatprep.subr.bf16.mxu0 0
  %738 = vmatpush2.bf16.msra.mxu0 %v575
  %739 = vmatprep.subr.bf16.mxu0 0
  %740 = vmatpush2.bf16.msra.mxu0 %v574
  %741 = vmatprep.subr.bf16.mxu0 0
  %742 = vmatpush2.bf16.msra.mxu0 %v573
  %743 = vmatprep.subr.bf16.mxu0 0
  %744 = vmatpush2.bf16.msra.mxu0 %v572
  %745 = vmatprep.subr.bf16.mxu0 0
  %746 = vmatpush2.bf16.msra.mxu0 %v571
  %747 = vmatprep.subr.bf16.mxu0 0
  %748 = vmatpush2.bf16.msra.mxu0 %v570
  %749 = vmatprep.subr.bf16.mxu0 0
  %750 = vmatpush2.bf16.msra.mxu0 %v569
  %751 = vmatprep.subr.bf16.mxu0 0
  %752 = vmatpush2.bf16.msra.mxu0 %v568
  %753 = vmatprep.mubr.bf16.mxu0 %v307
  %754 = vmatmul.mubr.bf16.gmra.mxu0 %v306
  %v755 = vpop.f32.mrf.mxu0
  %v756 = vadd.f32 %v659, %v755
  %v757 = vpop.f32.mrf.mxu0
  %v758 = vpop.f32.mrf.mxu0
  %v759 = vadd.f32 %v662, %v758
  %v760 = vpop.f32.mrf.mxu0
  %761 = vmatprep.mubr.bf16.mxu0 %v312
  %762 = vmatmul.mubr.bf16.gmra.mxu0 %v311
  %v763 = vpop.f32.mrf.mxu0
  %v764 = vadd.f32 %v667, %v763
  %v765 = vpop.f32.mrf.mxu0
  %v766 = vpop.f32.mrf.mxu0
  %v767 = vadd.f32 %v670, %v766
  %v768 = vpop.f32.mrf.mxu0
  %769 = vmatprep.mubr.bf16.mxu0 %v317
  %770 = vmatmul.mubr.bf16.gmra.mxu0 %v316
  %v771 = vpop.f32.mrf.mxu0
  %v772 = vadd.f32 %v675, %v771
  %v773 = vpop.f32.mrf.mxu0
  %v774 = vpop.f32.mrf.mxu0
  %v775 = vadd.f32 %v678, %v774
  %v776 = vpop.f32.mrf.mxu0
  %777 = vmatprep.mubr.bf16.mxu0 %v322
  %778 = vmatmul.mubr.bf16.gmra.mxu0 %v321
  %v779 = vpop.f32.mrf.mxu0
  %v780 = vadd.f32 %v683, %v779
  %v781 = vpop.f32.mrf.mxu0
  %v782 = vpop.f32.mrf.mxu0
  %v783 = vadd.f32 %v686, %v782
  %v784 = vpop.f32.mrf.mxu0
  %785 = vmatprep.mubr.bf16.mxu0 %v327
  %786 = vmatmul.mubr.bf16.gmra.mxu0 %v326
  %v787 = vpop.f32.mrf.mxu0
  %v788 = vadd.f32 %v691, %v787
  %v789 = vpop.f32.mrf.mxu0
  %v790 = vpop.f32.mrf.mxu0
  %v791 = vadd.f32 %v694, %v790
  %v792 = vpop.f32.mrf.mxu0
  %793 = vmatprep.mubr.bf16.mxu0 %v332
  %794 = vmatmul.mubr.bf16.gmra.mxu0 %v331
  %v795 = vpop.f32.mrf.mxu0
  %v796 = vadd.f32 %v699, %v795
  %v797 = vpop.f32.mrf.mxu0
  %v798 = vpop.f32.mrf.mxu0
  %v799 = vadd.f32 %v702, %v798
  %v800 = vpop.f32.mrf.mxu0
  %801 = vmatprep.mubr.bf16.mxu0 %v337
  %802 = vmatmul.mubr.bf16.gmra.mxu0 %v336
  %v803 = vpop.f32.mrf.mxu0
  %v804 = vadd.f32 %v707, %v803
  %v805 = vpop.f32.mrf.mxu0
  %v806 = vpop.f32.mrf.mxu0
  %v807 = vadd.f32 %v710, %v806
  %v808 = vpop.f32.mrf.mxu0
  %809 = vmatprep.mubr.bf16.mxu0 %v342
  %810 = vmatmul.mubr.bf16.gmra.mxu0 %v341
  %v811 = vpop.f32.mrf.mxu0
  %v812 = vadd.f32 %v715, %v811
  %v813 = vpop.f32.mrf.mxu0
  %v814 = vpop.f32.mrf.mxu0
  %v815 = vadd.f32 %v718, %v814
  %v816 = vpop.f32.mrf.mxu0
  %817 = vdwg.mxu0
  %818 = vmatprep.subr.bf16.mxu0 0
  %819 = vmatpush1.bf16.msra.mxu0 %v583
  %820 = vmatprep.subr.bf16.mxu0 0
  %821 = vmatpush1.bf16.msra.mxu0 %v582
  %822 = vmatprep.subr.bf16.mxu0 0
  %823 = vmatpush1.bf16.msra.mxu0 %v581
  %824 = vmatprep.subr.bf16.mxu0 0
  %825 = vmatpush1.bf16.msra.mxu0 %v580
  %826 = vmatprep.subr.bf16.mxu0 0
  %827 = vmatpush1.bf16.msra.mxu0 %v579
  %828 = vmatprep.subr.bf16.mxu0 0
  %829 = vmatpush1.bf16.msra.mxu0 %v578
  %830 = vmatprep.subr.bf16.mxu0 0
  %831 = vmatpush1.bf16.msra.mxu0 %v577
  %832 = vmatprep.subr.bf16.mxu0 0
  %833 = vmatpush1.bf16.msra.mxu0 %v576
  %834 = vmatprep.subr.bf16.mxu0 0
  %835 = vmatpush2.bf16.msra.mxu0 0
  %836 = vmatprep.subr.bf16.mxu0 0
  %837 = vmatpush2.bf16.msra.mxu0 0
  %838 = vmatprep.subr.bf16.mxu0 0
  %839 = vmatpush2.bf16.msra.mxu0 0
  %840 = vmatprep.subr.bf16.mxu0 0
  %841 = vmatpush2.bf16.msra.mxu0 0
  %842 = vmatprep.subr.bf16.mxu0 0
  %843 = vmatpush2.bf16.msra.mxu0 0
  %844 = vmatprep.subr.bf16.mxu0 0
  %845 = vmatpush2.bf16.msra.mxu0 0
  %846 = vmatprep.subr.bf16.mxu0 0
  %847 = vmatpush2.bf16.msra.mxu0 0
  %848 = vmatprep.subr.bf16.mxu0 0
  %849 = vmatpush2.bf16.msra.mxu0 0
  %850 = vmatprep.mubr.bf16.mxu0 0
  %851 = vmatmul.mubr.bf16.gmra.mxu0 %v308
  %v852 = vpop.f32.mrf.mxu0
  %v853 = vadd.f32 %v756, %v852
  %v854 = vpop.f32.mrf.mxu0
  %v855 = vpop.f32.mrf.mxu0
  %v856 = vadd.f32 %v759, %v855
  %v857 = vpop.f32.mrf.mxu0
  %858 = vmatprep.mubr.bf16.mxu0 0
  %859 = vmatmul.mubr.bf16.gmra.mxu0 %v313
  %v860 = vpop.f32.mrf.mxu0
  %v861 = vadd.f32 %v764, %v860
  %v862 = vpop.f32.mrf.mxu0
  %v863 = vpop.f32.mrf.mxu0
  %v864 = vadd.f32 %v767, %v863
  %v865 = vpop.f32.mrf.mxu0
  %866 = vmatprep.mubr.bf16.mxu0 0
  %867 = vmatmul.mubr.bf16.gmra.mxu0 %v318
  %v868 = vpop.f32.mrf.mxu0
  %v869 = vadd.f32 %v772, %v868
  %v870 = vpop.f32.mrf.mxu0
  %v871 = vpop.f32.mrf.mxu0
  %v872 = vadd.f32 %v775, %v871
  %v873 = vpop.f32.mrf.mxu0
  %874 = vmatprep.mubr.bf16.mxu0 0
  %875 = vmatmul.mubr.bf16.gmra.mxu0 %v323
  %v876 = vpop.f32.mrf.mxu0
  %v877 = vadd.f32 %v780, %v876
  %v878 = vpop.f32.mrf.mxu0
  %v879 = vpop.f32.mrf.mxu0
  %v880 = vadd.f32 %v783, %v879
  %v881 = vpop.f32.mrf.mxu0
  %882 = vmatprep.mubr.bf16.mxu0 0
  %883 = vmatmul.mubr.bf16.gmra.mxu0 %v328
  %v884 = vpop.f32.mrf.mxu0
  %v885 = vadd.f32 %v788, %v884
  %v886 = vpop.f32.mrf.mxu0
  %v887 = vpop.f32.mrf.mxu0
  %v888 = vadd.f32 %v791, %v887
  %v889 = vpop.f32.mrf.mxu0
  %890 = vmatprep.mubr.bf16.mxu0 0
  %891 = vmatmul.mubr.bf16.gmra.mxu0 %v333
  %v892 = vpop.f32.mrf.mxu0
  %v893 = vadd.f32 %v796, %v892
  %v894 = vpop.f32.mrf.mxu0
  %v895 = vpop.f32.mrf.mxu0
  %v896 = vadd.f32 %v799, %v895
  %v897 = vpop.f32.mrf.mxu0
  %898 = vmatprep.mubr.bf16.mxu0 0
  %899 = vmatmul.mubr.bf16.gmra.mxu0 %v338
  %v900 = vpop.f32.mrf.mxu0
  %v901 = vadd.f32 %v804, %v900
  %v902 = vpop.f32.mrf.mxu0
  %v903 = vpop.f32.mrf.mxu0
  %v904 = vadd.f32 %v807, %v903
  %v905 = vpop.f32.mrf.mxu0
  %906 = vmatprep.mubr.bf16.mxu0 0
  %907 = vmatmul.mubr.bf16.gmra.mxu0 %v343
  %v908 = vpop.f32.mrf.mxu0
  %v909 = vadd.f32 %v812, %v908
  %v910 = vpop.f32.mrf.mxu0
  %v911 = vpop.f32.mrf.mxu0
  %v912 = vadd.f32 %v815, %v911
  %v913 = vpop.f32.mrf.mxu0
  %914 = vdwg.mxu0
  %v915 = vadd.f32 %v32, %v853
  %v916 = vadd.f32 %v33, %v856
  %v917 = vadd.f32 %v34, %v861
  %v918 = vadd.f32 %v35, %v864
  %v919 = vadd.f32 %v36, %v869
  %v920 = vadd.f32 %v37, %v872
  %v921 = vadd.f32 %v38, %v877
  %v922 = vadd.f32 %v39, %v880
  %v923 = vadd.f32 %v40, %v885
  %v924 = vadd.f32 %v41, %v888
  %v925 = vadd.f32 %v42, %v893
  %v926 = vadd.f32 %v43, %v896
  %v927 = vadd.f32 %v44, %v901
  %v928 = vadd.f32 %v45, %v904
  %v929 = vadd.f32 %v46, %v909
  %v930 = vadd.f32 %v47, %v912
  %931 = vst [vmem:[#allocation2] sm:$0xff] %v915
  %932 = vst [vmem:[#allocation2 + $0x8] sm:$0xff] %v916
  %933 = vst [vmem:[#allocation2 + $0x10] sm:$0xff] %v917
  %934 = vst [vmem:[#allocation2 + $0x18] sm:$0xff] %v918
  %935 = vst [vmem:[#allocation2 + $0x20] sm:$0xff] %v919
  %936 = vst [vmem:[#allocation2 + $0x28] sm:$0xff] %v920
  %937 = vst [vmem:[#allocation2 + $0x30] sm:$0xff] %v921
  %938 = vst [vmem:[#allocation2 + $0x38] sm:$0xff] %v922
  %939 = vst [vmem:[#allocation2 + $0x40] sm:$0xff] %v923
  %940 = vst [vmem:[#allocation2 + $0x48] sm:$0xff] %v924
  %941 = vst [vmem:[#allocation2 + $0x50] sm:$0xff] %v925
  %942 = vst [vmem:[#allocation2 + $0x58] sm:$0xff] %v926
  %943 = vst [vmem:[#allocation2 + $0x60] sm:$0xff] %v927
  %944 = vst [vmem:[#allocation2 + $0x68] sm:$0xff] %v928
  %945 = vst [vmem:[#allocation2 + $0x70] sm:$0xff] %v929
  %946 = vst [vmem:[#allocation2 + $0x78] sm:$0xff] %v930
  // Predicated region
  $region14: #{res_encoder_forward.21} parent=0 // pred_check
    %p947 = pneg %p12
  $region15: #{res_encoder_forward.21} parent=0 // pred_check_branch
    %949 = sbr.rel (%p947) target = $region17
  $region16: #{res_encoder_forward.21} parent=0 // pred_region
    %v950 = vld [vmem:[#allocation2] sm:$0xff]
    %v951 = vld [vmem:[#allocation2 + $0x8] sm:$0xff]
    %v952 = vld [vmem:[#allocation2 + $0x10] sm:$0xff]
    %v953 = vld [vmem:[#allocation2 + $0x18] sm:$0xff]
    %v954 = vld [vmem:[#allocation2 + $0x20] sm:$0xff]
    %v955 = vld [vmem:[#allocation2 + $0x28] sm:$0xff]
    %v956 = vld [vmem:[#allocation2 + $0x30] sm:$0xff]
    %v957 = vld [vmem:[#allocation2 + $0x38] sm:$0xff]
    %v958 = vld [vmem:[#allocation2 + $0x40] sm:$0xff]
    %v959 = vld [vmem:[#allocation2 + $0x48] sm:$0xff]
    %v960 = vld [vmem:[#allocation2 + $0x50] sm:$0xff]
    %v961 = vld [vmem:[#allocation2 + $0x58] sm:$0xff]
    %v962 = vld [vmem:[#allocation2 + $0x60] sm:$0xff]
    %v963 = vld [vmem:[#allocation2 + $0x68] sm:$0xff]
    %v964 = vld [vmem:[#allocation2 + $0x70] sm:$0xff]
    %v965 = vld [vmem:[#allocation2 + $0x78] sm:$0xff]
    %966 = vst [vmem:[%s2] sm:$0xff] %v950
    %967 = vst [vmem:[%s2 + $0x8] sm:$0xff] %v951
    %968 = vst [vmem:[%s2 + $0x10] sm:$0xff] %v952
    %969 = vst [vmem:[%s2 + $0x18] sm:$0xff] %v953
    %970 = vst [vmem:[%s2 + $0x20] sm:$0xff] %v954
    %971 = vst [vmem:[%s2 + $0x28] sm:$0xff] %v955
    %972 = vst [vmem:[%s2 + $0x30] sm:$0xff] %v956
    %973 = vst [vmem:[%s2 + $0x38] sm:$0xff] %v957
    %974 = vst [vmem:[%s2 + $0x40] sm:$0xff] %v958
    %975 = vst [vmem:[%s2 + $0x48] sm:$0xff] %v959
    %976 = vst [vmem:[%s2 + $0x50] sm:$0xff] %v960
    %977 = vst [vmem:[%s2 + $0x58] sm:$0xff] %v961
    %978 = vst [vmem:[%s2 + $0x60] sm:$0xff] %v962
    %979 = vst [vmem:[%s2 + $0x68] sm:$0xff] %v963
    %980 = vst [vmem:[%s2 + $0x70] sm:$0xff] %v964
    %981 = vst [vmem:[%s2 + $0x78] sm:$0xff] %v965
  $region17: #{res_encoder_forward.21} parent=0 // pred_fallthru
    _
  // Predicated region
  $region18: #{res_encoder_forward.21} parent=0 // pred_check
    _
  $region19: #{res_encoder_forward.21} parent=0 // pred_check_branch
    %983 = sbr.rel (0) target = $region21
  $region20: #{res_encoder_forward.21} parent=0 // pred_region
    _
  $region21: #{res_encoder_forward.21} parent=0 // pred_fallthru
    _
  // Predicated region
  $region22: #{res_encoder_forward.21} parent=0 // pred_check
    _
  $region23: #{res_encoder_forward.21} parent=0 // pred_check_branch
    %985 = sbr.rel (0) target = $region25
  $region24: #{res_encoder_forward.21} parent=0 // pred_region
    _
  $region25: #{res_encoder_forward.21} parent=0 // pred_fallthru
    _

// kernel: res_encoder_forward.25
$region0: #{res_encoder_forward.25}
  #allocation0 [shape = 'u32[]', space=smem, size = 0x4, offset = 0x4, fixed_abs, tag = 'smem constant byte address 0x4 - core index']
  #allocation1 [shape = 'u32[144,128]{1,0:T(1,128)}', space=vmem, size = 0x12000, scoped, tag = 'internal scratch']
  %s0 = inlined_call_operand.vmem [shape: f32[128,128], index: 0, kind: input, shape index: {}]
  %s1 = inlined_call_operand.vmem [shape: f32[1,128], index: 1, kind: input, shape index: {}]
  %s2 = inlined_call_operand.vmem [shape: f32[1,128], index: 2, kind: input, shape index: {}]
  %s3 = inlined_call_operand.vmem [shape: f32[128,128], index: 3, kind: input, shape index: {}]
  %s4 = inlined_call_operand.vmem [shape: f32[1,128], index: 4, kind: input, shape index: {}]
  %s5 = inlined_call_operand.vmem [shape: f32[1,128], index: 5, kind: input, shape index: {}]
  %s6 = inlined_call_operand.vmem [shape: f32[128,128], index: 6, kind: output, shape index: {}]
  %s7 = sld [smem:[#allocation0]]
  $region34: #{res_encoder_forward.25} parent=0
    _
  %s9 = ssub.s32 1, %s7
  %s10 = scalar_select 0, %s9, %s7
  // Predicated region
  $region2: #{res_encoder_forward.25} parent=0 // pred_check
    _
  $region3: #{res_encoder_forward.25} parent=0 // pred_check_branch
    %12 = sbr.rel (0) target = $region5
  $region4: #{res_encoder_forward.25} parent=0 // pred_region
    _
  $region5: #{res_encoder_forward.25} parent=0 // pred_fallthru
    _
  // Predicated region
  $region6: #{res_encoder_forward.25} parent=0 // pred_check
    _
  $region7: #{res_encoder_forward.25} parent=0 // pred_check_branch
    %14 = sbr.rel (0) target = $region9
  $region8: #{res_encoder_forward.25} parent=0 // pred_region
    _
  $region9: #{res_encoder_forward.25} parent=0 // pred_fallthru
    _
  // Predicated region
  $region10: #{res_encoder_forward.25} parent=0 // pred_check
    _
  $region11: #{res_encoder_forward.25} parent=0 // pred_check_branch
    %16 = sbr.rel (0) target = $region13
  $region12: #{res_encoder_forward.25} parent=0 // pred_region
    _
  $region13: #{res_encoder_forward.25} parent=0 // pred_fallthru
    _
  // Predicated region
  $region14: #{res_encoder_forward.25} parent=0 // pred_check
    _
  $region15: #{res_encoder_forward.25} parent=0 // pred_check_branch
    %18 = sbr.rel (0) target = $region17
  $region16: #{res_encoder_forward.25} parent=0 // pred_region
    _
  $region17: #{res_encoder_forward.25} parent=0 // pred_fallthru
    _
  // Predicated region
  $region18: #{res_encoder_forward.25} parent=0 // pred_check
    _
  $region19: #{res_encoder_forward.25} parent=0 // pred_check_branch
    %20 = sbr.rel (0) target = $region21
  $region20: #{res_encoder_forward.25} parent=0 // pred_region
    _
  $region21: #{res_encoder_forward.25} parent=0 // pred_fallthru
    _
  // Predicated region
  $region22: #{res_encoder_forward.25} parent=0 // pred_check
    _
  $region23: #{res_encoder_forward.25} parent=0 // pred_check_branch
    %22 = sbr.rel (0) target = $region25
  $region24: #{res_encoder_forward.25} parent=0 // pred_region
    _
  $region25: #{res_encoder_forward.25} parent=0 // pred_fallthru
    _
  %v23 = vld [vmem:[%s0] sm:$0xff]
  %v24 = vld [vmem:[%s0 + $0x8] sm:$0xff]
  %v25 = vld [vmem:[%s0 + $0x10] sm:$0xff]
  %v26 = vld [vmem:[%s0 + $0x18] sm:$0xff]
  %v27 = vld [vmem:[%s0 + $0x20] sm:$0xff]
  %v28 = vld [vmem:[%s0 + $0x28] sm:$0xff]
  %v29 = vld [vmem:[%s0 + $0x30] sm:$0xff]
  %v30 = vld [vmem:[%s0 + $0x38] sm:$0xff]
  %v31 = vld [vmem:[%s0 + $0x40] sm:$0xff]
  %v32 = vld [vmem:[%s0 + $0x48] sm:$0xff]
  %v33 = vld [vmem:[%s0 + $0x50] sm:$0xff]
  %v34 = vld [vmem:[%s0 + $0x58] sm:$0xff]
  %v35 = vld [vmem:[%s0 + $0x60] sm:$0xff]
  %v36 = vld [vmem:[%s0 + $0x68] sm:$0xff]
  %v37 = vld [vmem:[%s0 + $0x70] sm:$0xff]
  %v38 = vld [vmem:[%s0 + $0x78] sm:$0xff]
  %v39 = vld [vmem:[%s1] sm:$0x1]
  %v41 = vlaneseq
  %v42 = vshrl.u32 %v41, 7
  %v43 = vsub.s32 0, %v42
  %v44 = vrot.slane %v39, %v43
  %v46 = vmul.f32 %v23, %v44
  %v47 = vmul.f32 %v24, %v44
  %v48 = vmul.f32 %v25, %v44
  %v49 = vmul.f32 %v26, %v44
  %v50 = vmul.f32 %v27, %v44
  %v51 = vmul.f32 %v28, %v44
  %v52 = vmul.f32 %v29, %v44
  %v53 = vmul.f32 %v30, %v44
  %v54 = vmul.f32 %v31, %v44
  %v55 = vmul.f32 %v32, %v44
  %v56 = vmul.f32 %v33, %v44
  %v57 = vmul.f32 %v34, %v44
  %v58 = vmul.f32 %v35, %v44
  %v59 = vmul.f32 %v36, %v44
  %v60 = vmul.f32 %v37, %v44
  %v61 = vmul.f32 %v38, %v44
  %v62 = vld [vmem:[%s2] sm:$0x1]
  %v64 = vlaneseq
  %v65 = vshrl.u32 %v64, 7
  %v66 = vsub.s32 0, %v65
  %v67 = vrot.slane %v62, %v66
  %v69 = vadd.f32 %v46, %v67
  %v70 = vadd.f32 %v47, %v67
  %v71 = vadd.f32 %v48, %v67
  %v72 = vadd.f32 %v49, %v67
  %v73 = vadd.f32 %v50, %v67
  %v74 = vadd.f32 %v51, %v67
  %v75 = vadd.f32 %v52, %v67
  %v76 = vadd.f32 %v53, %v67
  %v77 = vadd.f32 %v54, %v67
  %v78 = vadd.f32 %v55, %v67
  %v79 = vadd.f32 %v56, %v67
  %v80 = vadd.f32 %v57, %v67
  %v81 = vadd.f32 %v58, %v67
  %v82 = vadd.f32 %v59, %v67
  %v83 = vadd.f32 %v60, %v67
  %v84 = vadd.f32 %v61, %v67
  %v85 = vld [vmem:[%s3] sm:$0xff]
  %v86 = vld [vmem:[%s3 + $0x8] sm:$0xff]
  %v87 = vld [vmem:[%s3 + $0x10] sm:$0xff]
  %v88 = vld [vmem:[%s3 + $0x18] sm:$0xff]
  %v89 = vld [vmem:[%s3 + $0x20] sm:$0xff]
  %v90 = vld [vmem:[%s3 + $0x28] sm:$0xff]
  %v91 = vld [vmem:[%s3 + $0x30] sm:$0xff]
  %v92 = vld [vmem:[%s3 + $0x38] sm:$0xff]
  %v93 = vld [vmem:[%s3 + $0x40] sm:$0xff]
  %v94 = vld [vmem:[%s3 + $0x48] sm:$0xff]
  %v95 = vld [vmem:[%s3 + $0x50] sm:$0xff]
  %v96 = vld [vmem:[%s3 + $0x58] sm:$0xff]
  %v97 = vld [vmem:[%s3 + $0x60] sm:$0xff]
  %v98 = vld [vmem:[%s3 + $0x68] sm:$0xff]
  %v99 = vld [vmem:[%s3 + $0x70] sm:$0xff]
  %v100 = vld [vmem:[%s3 + $0x78] sm:$0xff]
  %v101 = vld [vmem:[%s4] sm:$0x1]
  %v103 = vlaneseq
  %v104 = vshrl.u32 %v103, 7
  %v105 = vsub.s32 0, %v104
  %v106 = vrot.slane %v101, %v105
  %v108 = vmul.f32 %v85, %v106
  %v109 = vmul.f32 %v86, %v106
  %v110 = vmul.f32 %v87, %v106
  %v111 = vmul.f32 %v88, %v106
  %v112 = vmul.f32 %v89, %v106
  %v113 = vmul.f32 %v90, %v106
  %v114 = vmul.f32 %v91, %v106
  %v115 = vmul.f32 %v92, %v106
  %v116 = vmul.f32 %v93, %v106
  %v117 = vmul.f32 %v94, %v106
  %v118 = vmul.f32 %v95, %v106
  %v119 = vmul.f32 %v96, %v106
  %v120 = vmul.f32 %v97, %v106
  %v121 = vmul.f32 %v98, %v106
  %v122 = vmul.f32 %v99, %v106
  %v123 = vmul.f32 %v100, %v106
  %v124 = vadd.f32 %v69, %v108
  %v125 = vadd.f32 %v70, %v109
  %v126 = vadd.f32 %v71, %v110
  %v127 = vadd.f32 %v72, %v111
  %v128 = vadd.f32 %v73, %v112
  %v129 = vadd.f32 %v74, %v113
  %v130 = vadd.f32 %v75, %v114
  %v131 = vadd.f32 %v76, %v115
  %v132 = vadd.f32 %v77, %v116
  %v133 = vadd.f32 %v78, %v117
  %v134 = vadd.f32 %v79, %v118
  %v135 = vadd.f32 %v80, %v119
  %v136 = vadd.f32 %v81, %v120
  %v137 = vadd.f32 %v82, %v121
  %v138 = vadd.f32 %v83, %v122
  %v139 = vadd.f32 %v84, %v123
  %v140 = vld [vmem:[%s5] sm:$0x1]
  %v142 = vlaneseq
  %v143 = vshrl.u32 %v142, 7
  %v144 = vsub.s32 0, %v143
  %v145 = vrot.slane %v140, %v144
  %v147 = vadd.f32 %v124, %v145
  %v148 = vadd.f32 %v125, %v145
  %v149 = vadd.f32 %v126, %v145
  %v150 = vadd.f32 %v127, %v145
  %v151 = vadd.f32 %v128, %v145
  %v152 = vadd.f32 %v129, %v145
  %v153 = vadd.f32 %v130, %v145
  %v154 = vadd.f32 %v131, %v145
  %v155 = vadd.f32 %v132, %v145
  %v156 = vadd.f32 %v133, %v145
  %v157 = vadd.f32 %v134, %v145
  %v158 = vadd.f32 %v135, %v145
  %v159 = vadd.f32 %v136, %v145
  %v160 = vadd.f32 %v137, %v145
  %v161 = vadd.f32 %v138, %v145
  %v162 = vadd.f32 %v139, %v145
  %vm163 = vcmp.ge.f32.partialorder %v147, 0.0
  %vm164 = vcmp.ge.f32.partialorder %v148, 0.0
  %vm165 = vcmp.ge.f32.partialorder %v149, 0.0
  %vm166 = vcmp.ge.f32.partialorder %v150, 0.0
  %vm167 = vcmp.ge.f32.partialorder %v151, 0.0
  %vm168 = vcmp.ge.f32.partialorder %v152, 0.0
  %vm169 = vcmp.ge.f32.partialorder %v153, 0.0
  %vm170 = vcmp.ge.f32.partialorder %v154, 0.0
  %vm171 = vcmp.ge.f32.partialorder %v155, 0.0
  %vm172 = vcmp.ge.f32.partialorder %v156, 0.0
  %vm173 = vcmp.ge.f32.partialorder %v157, 0.0
  %vm174 = vcmp.ge.f32.partialorder %v158, 0.0
  %vm175 = vcmp.ge.f32.partialorder %v159, 0.0
  %vm176 = vcmp.ge.f32.partialorder %v160, 0.0
  %vm177 = vcmp.ge.f32.partialorder %v161, 0.0
  %vm178 = vcmp.ge.f32.partialorder %v162, 0.0
  %v179 = vmul.f32 %v147, 0.1
  %v180 = vmul.f32 %v148, 0.1
  %v181 = vmul.f32 %v149, 0.1
  %v182 = vmul.f32 %v150, 0.1
  %v183 = vmul.f32 %v151, 0.1
  %v184 = vmul.f32 %v152, 0.1
  %v185 = vmul.f32 %v153, 0.1
  %v186 = vmul.f32 %v154, 0.1
  %v187 = vmul.f32 %v155, 0.1
  %v188 = vmul.f32 %v156, 0.1
  %v189 = vmul.f32 %v157, 0.1
  %v190 = vmul.f32 %v158, 0.1
  %v191 = vmul.f32 %v159, 0.1
  %v192 = vmul.f32 %v160, 0.1
  %v193 = vmul.f32 %v161, 0.1
  %v194 = vmul.f32 %v162, 0.1
  %v195 = vsel %vm163, %v147, %v179
  %v196 = vsel %vm164, %v148, %v180
  %v197 = vsel %vm165, %v149, %v181
  %v198 = vsel %vm166, %v150, %v182
  %v199 = vsel %vm167, %v151, %v183
  %v200 = vsel %vm168, %v152, %v184
  %v201 = vsel %vm169, %v153, %v185
  %v202 = vsel %vm170, %v154, %v186
  %v203 = vsel %vm171, %v155, %v187
  %v204 = vsel %vm172, %v156, %v188
  %v205 = vsel %vm173, %v157, %v189
  %v206 = vsel %vm174, %v158, %v190
  %v207 = vsel %vm175, %v159, %v191
  %v208 = vsel %vm176, %v160, %v192
  %v209 = vsel %vm177, %v161, %v193
  %v210 = vsel %vm178, %v162, %v194
  %211 = vst [vmem:[%s6] sm:$0xff] %v195
  %212 = vst [vmem:[%s6 + $0x8] sm:$0xff] %v196
  %213 = vst [vmem:[%s6 + $0x10] sm:$0xff] %v197
  %214 = vst [vmem:[%s6 + $0x18] sm:$0xff] %v198
  %215 = vst [vmem:[%s6 + $0x20] sm:$0xff] %v199
  %216 = vst [vmem:[%s6 + $0x28] sm:$0xff] %v200
  %217 = vst [vmem:[%s6 + $0x30] sm:$0xff] %v201
  %218 = vst [vmem:[%s6 + $0x38] sm:$0xff] %v202
  %219 = vst [vmem:[%s6 + $0x40] sm:$0xff] %v203
  %220 = vst [vmem:[%s6 + $0x48] sm:$0xff] %v204
  %221 = vst [vmem:[%s6 + $0x50] sm:$0xff] %v205
  %222 = vst [vmem:[%s6 + $0x58] sm:$0xff] %v206
  %223 = vst [vmem:[%s6 + $0x60] sm:$0xff] %v207
  %224 = vst [vmem:[%s6 + $0x68] sm:$0xff] %v208
  %225 = vst [vmem:[%s6 + $0x70] sm:$0xff] %v209
  %226 = vst [vmem:[%s6 + $0x78] sm:$0xff] %v210
  // Predicated region
  $region26: #{res_encoder_forward.25} parent=0 // pred_check
    _
  $region27: #{res_encoder_forward.25} parent=0 // pred_check_branch
    %228 = sbr.rel (0) target = $region29
  $region28: #{res_encoder_forward.25} parent=0 // pred_region
    _
  $region29: #{res_encoder_forward.25} parent=0 // pred_fallthru
    _
  // Predicated region
  $region30: #{res_encoder_forward.25} parent=0 // pred_check
    _
  $region31: #{res_encoder_forward.25} parent=0 // pred_check_branch
    %230 = sbr.rel (0) target = $region33
  $region32: #{res_encoder_forward.25} parent=0 // pred_region
    _
  $region33: #{res_encoder_forward.25} parent=0 // pred_fallthru
    _

// kernel: res_encoder_forward.29
$region0: #{res_encoder_forward.29}
  #allocation0 [shape = 'u32[]', space=smem, size = 0x4, offset = 0x4, fixed_abs, tag = 'smem constant byte address 0x4 - core index']
  #allocation1 [shape = 'u32[144,128]{1,0:T(1,128)}', space=vmem, size = 0x12000, scoped, tag = 'internal scratch']
  #allocation2 [shape = 'f32[32,256]{1,0:T(8,128)}', space=vmem, size = 0x8000, scoped, tag = 'scratch operand']
  %s0 = inlined_call_operand.vmem [shape: bf16[32,128], index: 0, kind: input, shape index: {}]
  %s1 = inlined_call_operand.vmem [shape: bf16[128,256], index: 1, kind: input, shape index: {}]
  %s2 = inlined_call_operand.vmem [shape: f32[32,256], index: 2, kind: output, shape index: {}]
  %s3 = sld [smem:[#allocation0]]
  $region26: #{res_encoder_forward.29} parent=0
    _
  %s5 = ssub.s32 1, %s3
  %s6 = scalar_select 0, %s5, %s3
  // Predicated region
  $region2: #{res_encoder_forward.29} parent=0 // pred_check
    _
  $region3: #{res_encoder_forward.29} parent=0 // pred_check_branch
    %8 = sbr.rel (0) target = $region5
  $region4: #{res_encoder_forward.29} parent=0 // pred_region
    _
  $region5: #{res_encoder_forward.29} parent=0 // pred_fallthru
    _
  // Predicated region
  $region6: #{res_encoder_forward.29} parent=0 // pred_check
    _
  $region7: #{res_encoder_forward.29} parent=0 // pred_check_branch
    %10 = sbr.rel (0) target = $region9
  $region8: #{res_encoder_forward.29} parent=0 // pred_region
    _
  $region9: #{res_encoder_forward.29} parent=0 // pred_fallthru
    _
  %p12 = scmp.eq.s32.totalorder 0, 0
  // Predicated region
  $region10: #{res_encoder_forward.29} parent=0 // pred_check
    %p13 = pneg %p12
  $region11: #{res_encoder_forward.29} parent=0 // pred_check_branch
    %15 = sbr.rel (%p13) target = $region13
  $region12: #{res_encoder_forward.29} parent=0 // pred_region
    %16 = vst [vmem:[#allocation2] sm:$0xff] 0.0
    %17 = vst [vmem:[#allocation2 + $0x8] sm:$0xff] 0.0
    %18 = vst [vmem:[#allocation2 + $0x10] sm:$0xff] 0.0
    %19 = vst [vmem:[#allocation2 + $0x18] sm:$0xff] 0.0
    %20 = vst [vmem:[#allocation2 + $0x20] sm:$0xff] 0.0
    %21 = vst [vmem:[#allocation2 + $0x28] sm:$0xff] 0.0
    %22 = vst [vmem:[#allocation2 + $0x30] sm:$0xff] 0.0
    %23 = vst [vmem:[#allocation2 + $0x38] sm:$0xff] 0.0
  $region13: #{res_encoder_forward.29} parent=0 // pred_fallthru
    _
  %v24 = vld [vmem:[#allocation2] sm:$0xff]
  %v25 = vld [vmem:[#allocation2 + $0x8] sm:$0xff]
  %v26 = vld [vmem:[#allocation2 + $0x10] sm:$0xff]
  %v27 = vld [vmem:[#allocation2 + $0x18] sm:$0xff]
  %v28 = vld [vmem:[#allocation2 + $0x20] sm:$0xff]
  %v29 = vld [vmem:[#allocation2 + $0x28] sm:$0xff]
  %v30 = vld [vmem:[#allocation2 + $0x30] sm:$0xff]
  %v31 = vld [vmem:[#allocation2 + $0x38] sm:$0xff]
  %v32 = vld [vmem:[%s0] sm:$0xf]
  %v33 = vld [vmem:[%s0 + $0x4] sm:$0xf]
  %v34 = vld [vmem:[%s0 + $0x8] sm:$0xf]
  %v35 = vld [vmem:[%s0 + $0xc] sm:$0xf]
  %v36 = vld [vmem:[%s1] sm:$0xff]
  %v37 = vld [vmem:[%s1 + $0x8] sm:$0xff]
  %v38 = vld [vmem:[%s1 + $0x10] sm:$0xff]
  %v39 = vld [vmem:[%s1 + $0x18] sm:$0xff]
  %v40 = vld [vmem:[%s1 + $0x20] sm:$0xff]
  %v41 = vld [vmem:[%s1 + $0x28] sm:$0xff]
  %v42 = vld [vmem:[%s1 + $0x30] sm:$0xff]
  %v43 = vld [vmem:[%s1 + $0x38] sm:$0xff]
  %v44 = vld [vmem:[%s1 + $0x40] sm:$0xff]
  %v45 = vld [vmem:[%s1 + $0x48] sm:$0xff]
  %v46 = vld [vmem:[%s1 + $0x50] sm:$0xff]
  %v47 = vld [vmem:[%s1 + $0x58] sm:$0xff]
  %v48 = vld [vmem:[%s1 + $0x60] sm:$0xff]
  %v49 = vld [vmem:[%s1 + $0x68] sm:$0xff]
  %v50 = vld [vmem:[%s1 + $0x70] sm:$0xff]
  %v51 = vld [vmem:[%s1 + $0x78] sm:$0xff]
  %v56 = vunpack.c.l.b16 %v32
  %v57 = vunpack.c.l.b16 %v33
  %v58 = vunpack.c.l.b16 %v34
  %v59 = vunpack.c.l.b16 %v35
  %v60 = vpack.c.b16 %v57, %v56
  %v61 = vpack.c.b16 %v59, %v58
  %v80 = vunpack.c.l.b16 %v36
  %v81 = vunpack.c.h.b16 %v36
  %v82 = vunpack.c.l.b16 %v37
  %v83 = vunpack.c.h.b16 %v37
  %v84 = vunpack.c.l.b16 %v38
  %v85 = vunpack.c.h.b16 %v38
  %v86 = vunpack.c.l.b16 %v39
  %v87 = vunpack.c.h.b16 %v39
  %v88 = vunpack.c.l.b16 %v40
  %v89 = vunpack.c.h.b16 %v40
  %v90 = vunpack.c.l.b16 %v41
  %v91 = vunpack.c.h.b16 %v41
  %v92 = vunpack.c.l.b16 %v42
  %v93 = vunpack.c.h.b16 %v42
  %v94 = vunpack.c.l.b16 %v43
  %v95 = vunpack.c.h.b16 %v43
  %v96 = vunpack.c.l.b16 %v44
  %v97 = vunpack.c.h.b16 %v44
  %v98 = vunpack.c.l.b16 %v45
  %v99 = vunpack.c.h.b16 %v45
  %v100 = vunpack.c.l.b16 %v46
  %v101 = vunpack.c.h.b16 %v46
  %v102 = vunpack.c.l.b16 %v47
  %v103 = vunpack.c.h.b16 %v47
  %v104 = vunpack.c.l.b16 %v48
  %v105 = vunpack.c.h.b16 %v48
  %v106 = vunpack.c.l.b16 %v49
  %v107 = vunpack.c.h.b16 %v49
  %v108 = vunpack.c.l.b16 %v50
  %v109 = vunpack.c.h.b16 %v50
  %v110 = vunpack.c.l.b16 %v51
  %v111 = vunpack.c.h.b16 %v51
  %v112 = vpack.c.b16 %v82, %v80
  %v113 = vpack.c.b16 %v83, %v81
  %v114 = vpack.c.b16 %v86, %v84
  %v115 = vpack.c.b16 %v87, %v85
  %v116 = vpack.c.b16 %v90, %v88
  %v117 = vpack.c.b16 %v91, %v89
  %v118 = vpack.c.b16 %v94, %v92
  %v119 = vpack.c.b16 %v95, %v93
  %v120 = vpack.c.b16 %v98, %v96
  %v121 = vpack.c.b16 %v99, %v97
  %v122 = vpack.c.b16 %v102, %v100
  %v123 = vpack.c.b16 %v103, %v101
  %v124 = vpack.c.b16 %v106, %v104
  %v125 = vpack.c.b16 %v107, %v105
  %v126 = vpack.c.b16 %v110, %v108
  %v127 = vpack.c.b16 %v111, %v109
  %144 = vmatprep.subr.bf16.mxu0 %v127
  %145 = vmatpush1.bf16.msra.mxu0 %v126
  %146 = vmatprep.subr.bf16.mxu0 %v125
  %147 = vmatpush1.bf16.msra.mxu0 %v124
  %148 = vmatprep.subr.bf16.mxu0 %v123
  %149 = vmatpush1.bf16.msra.mxu0 %v122
  %150 = vmatprep.subr.bf16.mxu0 %v121
  %151 = vmatpush1.bf16.msra.mxu0 %v120
  %152 = vmatprep.subr.bf16.mxu0 %v119
  %153 = vmatpush1.bf16.msra.mxu0 %v118
  %154 = vmatprep.subr.bf16.mxu0 %v117
  %155 = vmatpush1.bf16.msra.mxu0 %v116
  %156 = vmatprep.subr.bf16.mxu0 %v115
  %157 = vmatpush1.bf16.msra.mxu0 %v114
  %158 = vmatprep.subr.bf16.mxu0 %v113
  %159 = vmatpush1.bf16.msra.mxu0 %v112
  %160 = vmatprep.subr.bf16.mxu0 0
  %161 = vmatpush2.bf16.msra.mxu0 0
  %162 = vmatprep.subr.bf16.mxu0 0
  %163 = vmatpush2.bf16.msra.mxu0 0
  %164 = vmatprep.subr.bf16.mxu0 0
  %165 = vmatpush2.bf16.msra.mxu0 0
  %166 = vmatprep.subr.bf16.mxu0 0
  %167 = vmatpush2.bf16.msra.mxu0 0
  %168 = vmatprep.subr.bf16.mxu0 0
  %169 = vmatpush2.bf16.msra.mxu0 0
  %170 = vmatprep.subr.bf16.mxu0 0
  %171 = vmatpush2.bf16.msra.mxu0 0
  %172 = vmatprep.subr.bf16.mxu0 0
  %173 = vmatpush2.bf16.msra.mxu0 0
  %174 = vmatprep.subr.bf16.mxu0 0
  %175 = vmatpush2.bf16.msra.mxu0 0
  %176 = vmatprep.mubr.bf16.mxu0 0
  %177 = vmatmul.mubr.bf16.gmra.mxu0 %v60
  %v178 = vpop.f32.mrf.mxu0
  %v179 = vadd.f32 0.0, %v178
  %v180 = vpop.f32.mrf.mxu0
  %v181 = vadd.f32 0.0, %v180
  %v182 = vpop.f32.mrf.mxu0
  %v183 = vadd.f32 0.0, %v182
  %v184 = vpop.f32.mrf.mxu0
  %v185 = vadd.f32 0.0, %v184
  %186 = vmatprep.mubr.bf16.mxu0 0
  %187 = vmatmul.mubr.bf16.gmra.mxu0 %v61
  %v188 = vpop.f32.mrf.mxu0
  %v189 = vadd.f32 0.0, %v188
  %v190 = vpop.f32.mrf.mxu0
  %v191 = vadd.f32 0.0, %v190
  %v192 = vpop.f32.mrf.mxu0
  %v193 = vadd.f32 0.0, %v192
  %v194 = vpop.f32.mrf.mxu0
  %v195 = vadd.f32 0.0, %v194
  %196 = vdwg.mxu0
  %v197 = vadd.f32 %v24, %v179
  %v198 = vadd.f32 %v25, %v181
  %v199 = vadd.f32 %v26, %v183
  %v200 = vadd.f32 %v27, %v185
  %v201 = vadd.f32 %v28, %v189
  %v202 = vadd.f32 %v29, %v191
  %v203 = vadd.f32 %v30, %v193
  %v204 = vadd.f32 %v31, %v195
  %205 = vst [vmem:[#allocation2] sm:$0xff] %v197
  %206 = vst [vmem:[#allocation2 + $0x8] sm:$0xff] %v198
  %207 = vst [vmem:[#allocation2 + $0x10] sm:$0xff] %v199
  %208 = vst [vmem:[#allocation2 + $0x18] sm:$0xff] %v200
  %209 = vst [vmem:[#allocation2 + $0x20] sm:$0xff] %v201
  %210 = vst [vmem:[#allocation2 + $0x28] sm:$0xff] %v202
  %211 = vst [vmem:[#allocation2 + $0x30] sm:$0xff] %v203
  %212 = vst [vmem:[#allocation2 + $0x38] sm:$0xff] %v204
  // Predicated region
  $region14: #{res_encoder_forward.29} parent=0 // pred_check
    %p213 = pneg %p12
  $region15: #{res_encoder_forward.29} parent=0 // pred_check_branch
    %215 = sbr.rel (%p213) target = $region17
  $region16: #{res_encoder_forward.29} parent=0 // pred_region
    %v216 = vld [vmem:[#allocation2] sm:$0xff]
    %v217 = vld [vmem:[#allocation2 + $0x8] sm:$0xff]
    %v218 = vld [vmem:[#allocation2 + $0x10] sm:$0xff]
    %v219 = vld [vmem:[#allocation2 + $0x18] sm:$0xff]
    %v220 = vld [vmem:[#allocation2 + $0x20] sm:$0xff]
    %v221 = vld [vmem:[#allocation2 + $0x28] sm:$0xff]
    %v222 = vld [vmem:[#allocation2 + $0x30] sm:$0xff]
    %v223 = vld [vmem:[#allocation2 + $0x38] sm:$0xff]
    %224 = vst [vmem:[%s2] sm:$0xff] %v216
    %225 = vst [vmem:[%s2 + $0x8] sm:$0xff] %v217
    %226 = vst [vmem:[%s2 + $0x10] sm:$0xff] %v218
    %227 = vst [vmem:[%s2 + $0x18] sm:$0xff] %v219
    %228 = vst [vmem:[%s2 + $0x20] sm:$0xff] %v220
    %229 = vst [vmem:[%s2 + $0x28] sm:$0xff] %v221
    %230 = vst [vmem:[%s2 + $0x30] sm:$0xff] %v222
    %231 = vst [vmem:[%s2 + $0x38] sm:$0xff] %v223
  $region17: #{res_encoder_forward.29} parent=0 // pred_fallthru
    _
  // Predicated region
  $region18: #{res_encoder_forward.29} parent=0 // pred_check
    _
  $region19: #{res_encoder_forward.29} parent=0 // pred_check_branch
    %233 = sbr.rel (0) target = $region21
  $region20: #{res_encoder_forward.29} parent=0 // pred_region
    _
  $region21: #{res_encoder_forward.29} parent=0 // pred_fallthru
    _
  // Predicated region
  $region22: #{res_encoder_forward.29} parent=0 // pred_check
    _
  $region23: #{res_encoder_forward.29} parent=0 // pred_check_branch
    %235 = sbr.rel (0) target = $region25
  $region24: #{res_encoder_forward.29} parent=0 // pred_region
    _
  $region25: #{res_encoder_forward.29} parent=0 // pred_fallthru
    _

// kernel: res_encoder_forward.23
$region0: #{res_encoder_forward.23}
  #allocation0 [shape = 'u32[]', space=smem, size = 0x4, offset = 0x4, fixed_abs, tag = 'smem constant byte address 0x4 - core index']
  #allocation1 [shape = 'u32[144,128]{1,0:T(1,128)}', space=vmem, size = 0x12000, scoped, tag = 'internal scratch']
  #allocation2 [shape = 'f32[128,128]{1,0:T(8,128)}', space=vmem, size = 0x10000, scoped, tag = 'scratch operand']
  %s0 = inlined_call_operand.vmem [shape: bf16[128,1152], index: 0, kind: input, shape index: {}]
  %s1 = inlined_call_operand.vmem [shape: bf16[1152,128], index: 1, kind: input, shape index: {}]
  %s2 = inlined_call_operand.vmem [shape: f32[128,128], index: 2, kind: output, shape index: {}]
  %s3 = sld [smem:[#allocation0]]
  $region26: #{res_encoder_forward.23} parent=0
    _
  %s5 = ssub.s32 1, %s3
  %s6 = scalar_select 0, %s5, %s3
  // Predicated region
  $region2: #{res_encoder_forward.23} parent=0 // pred_check
    _
  $region3: #{res_encoder_forward.23} parent=0 // pred_check_branch
    %8 = sbr.rel (0) target = $region5
  $region4: #{res_encoder_forward.23} parent=0 // pred_region
    _
  $region5: #{res_encoder_forward.23} parent=0 // pred_fallthru
    _
  // Predicated region
  $region6: #{res_encoder_forward.23} parent=0 // pred_check
    _
  $region7: #{res_encoder_forward.23} parent=0 // pred_check_branch
    %10 = sbr.rel (0) target = $region9
  $region8: #{res_encoder_forward.23} parent=0 // pred_region
    _
  $region9: #{res_encoder_forward.23} parent=0 // pred_fallthru
    _
  %p12 = scmp.eq.s32.totalorder 0, 0
  // Predicated region
  $region10: #{res_encoder_forward.23} parent=0 // pred_check
    %p13 = pneg %p12
  $region11: #{res_encoder_forward.23} parent=0 // pred_check_branch
    %15 = sbr.rel (%p13) target = $region13
  $region12: #{res_encoder_forward.23} parent=0 // pred_region
    %16 = vst [vmem:[#allocation2] sm:$0xff] 0.0
    %17 = vst [vmem:[#allocation2 + $0x8] sm:$0xff] 0.0
    %18 = vst [vmem:[#allocation2 + $0x10] sm:$0xff] 0.0
    %19 = vst [vmem:[#allocation2 + $0x18] sm:$0xff] 0.0
    %20 = vst [vmem:[#allocation2 + $0x20] sm:$0xff] 0.0
    %21 = vst [vmem:[#allocation2 + $0x28] sm:$0xff] 0.0
    %22 = vst [vmem:[#allocation2 + $0x30] sm:$0xff] 0.0
    %23 = vst [vmem:[#allocation2 + $0x38] sm:$0xff] 0.0
    %24 = vst [vmem:[#allocation2 + $0x40] sm:$0xff] 0.0
    %25 = vst [vmem:[#allocation2 + $0x48] sm:$0xff] 0.0
    %26 = vst [vmem:[#allocation2 + $0x50] sm:$0xff] 0.0
    %27 = vst [vmem:[#allocation2 + $0x58] sm:$0xff] 0.0
    %28 = vst [vmem:[#allocation2 + $0x60] sm:$0xff] 0.0
    %29 = vst [vmem:[#allocation2 + $0x68] sm:$0xff] 0.0
    %30 = vst [vmem:[#allocation2 + $0x70] sm:$0xff] 0.0
    %31 = vst [vmem:[#allocation2 + $0x78] sm:$0xff] 0.0
  $region13: #{res_encoder_forward.23} parent=0 // pred_fallthru
    _
  %v32 = vld [vmem:[#allocation2] sm:$0xff]
  %v33 = vld [vmem:[#allocation2 + $0x8] sm:$0xff]
  %v34 = vld [vmem:[#allocation2 + $0x10] sm:$0xff]
  %v35 = vld [vmem:[#allocation2 + $0x18] sm:$0xff]
  %v36 = vld [vmem:[#allocation2 + $0x20] sm:$0xff]
  %v37 = vld [vmem:[#allocation2 + $0x28] sm:$0xff]
  %v38 = vld [vmem:[#allocation2 + $0x30] sm:$0xff]
  %v39 = vld [vmem:[#allocation2 + $0x38] sm:$0xff]
  %v40 = vld [vmem:[#allocation2 + $0x40] sm:$0xff]
  %v41 = vld [vmem:[#allocation2 + $0x48] sm:$0xff]
  %v42 = vld [vmem:[#allocation2 + $0x50] sm:$0xff]
  %v43 = vld [vmem:[#allocation2 + $0x58] sm:$0xff]
  %v44 = vld [vmem:[#allocation2 + $0x60] sm:$0xff]
  %v45 = vld [vmem:[#allocation2 + $0x68] sm:$0xff]
  %v46 = vld [vmem:[#allocation2 + $0x70] sm:$0xff]
  %v47 = vld [vmem:[#allocation2 + $0x78] sm:$0xff]
  %v48 = vld [vmem:[%s0] sm:$0xff]
  %v49 = vld [vmem:[%s0 + $0x8] sm:$0xff]
  %v50 = vld [vmem:[%s0 + $0x10] sm:$0xff]
  %v51 = vld [vmem:[%s0 + $0x18] sm:$0xff]
  %v52 = vld [vmem:[%s0 + $0x20] sm:$0xf]
  %v53 = vld [vmem:[%s0 + $0x24] sm:$0xff]
  %v54 = vld [vmem:[%s0 + $0x2c] sm:$0xff]
  %v55 = vld [vmem:[%s0 + $0x34] sm:$0xff]
  %v56 = vld [vmem:[%s0 + $0x3c] sm:$0xff]
  %v57 = vld [vmem:[%s0 + $0x44] sm:$0xf]
  %v58 = vld [vmem:[%s0 + $0x48] sm:$0xff]
  %v59 = vld [vmem:[%s0 + $0x50] sm:$0xff]
  %v60 = vld [vmem:[%s0 + $0x58] sm:$0xff]
  %v61 = vld [vmem:[%s0 + $0x60] sm:$0xff]
  %v62 = vld [vmem:[%s0 + $0x68] sm:$0xf]
  %v63 = vld [vmem:[%s0 + $0x6c] sm:$0xff]
  %v64 = vld [vmem:[%s0 + $0x74] sm:$0xff]
  %v65 = vld [vmem:[%s0 + $0x7c] sm:$0xff]
  %v66 = vld [vmem:[%s0 + $0x84] sm:$0xff]
  %v67 = vld [vmem:[%s0 + $0x8c] sm:$0xf]
  %v68 = vld [vmem:[%s0 + $0x90] sm:$0xff]
  %v69 = vld [vmem:[%s0 + $0x98] sm:$0xff]
  %v70 = vld [vmem:[%s0 + $0xa0] sm:$0xff]
  %v71 = vld [vmem:[%s0 + $0xa8] sm:$0xff]
  %v72 = vld [vmem:[%s0 + $0xb0] sm:$0xf]
  %v73 = vld [vmem:[%s0 + $0xb4] sm:$0xff]
  %v74 = vld [vmem:[%s0 + $0xbc] sm:$0xff]
  %v75 = vld [vmem:[%s0 + $0xc4] sm:$0xff]
  %v76 = vld [vmem:[%s0 + $0xcc] sm:$0xff]
  %v77 = vld [vmem:[%s0 + $0xd4] sm:$0xf]
  %v78 = vld [vmem:[%s0 + $0xd8] sm:$0xff]
  %v79 = vld [vmem:[%s0 + $0xe0] sm:$0xff]
  %v80 = vld [vmem:[%s0 + $0xe8] sm:$0xff]
  %v81 = vld [vmem:[%s0 + $0xf0] sm:$0xff]
  %v82 = vld [vmem:[%s0 + $0xf8] sm:$0xf]
  %v83 = vld [vmem:[%s0 + $0xfc] sm:$0xff]
  %v84 = vld [vmem:[%s0 + $0x104] sm:$0xff]
  %v85 = vld [vmem:[%s0 + $0x10c] sm:$0xff]
  %v86 = vld [vmem:[%s0 + $0x114] sm:$0xff]
  %v87 = vld [vmem:[%s0 + $0x11c] sm:$0xf]
  %v88 = vld [vmem:[%s0 + $0x120] sm:$0xff]
  %v89 = vld [vmem:[%s0 + $0x128] sm:$0xff]
  %v90 = vld [vmem:[%s0 + $0x130] sm:$0xff]
  %v91 = vld [vmem:[%s0 + $0x138] sm:$0xff]
  %v92 = vld [vmem:[%s0 + $0x140] sm:$0xf]
  %v93 = vld [vmem:[%s0 + $0x144] sm:$0xff]
  %v94 = vld [vmem:[%s0 + $0x14c] sm:$0xff]
  %v95 = vld [vmem:[%s0 + $0x154] sm:$0xff]
  %v96 = vld [vmem:[%s0 + $0x15c] sm:$0xff]
  %v97 = vld [vmem:[%s0 + $0x164] sm:$0xf]
  %v98 = vld [vmem:[%s0 + $0x168] sm:$0xff]
  %v99 = vld [vmem:[%s0 + $0x170] sm:$0xff]
  %v100 = vld [vmem:[%s0 + $0x178] sm:$0xff]
  %v101 = vld [vmem:[%s0 + $0x180] sm:$0xff]
  %v102 = vld [vmem:[%s0 + $0x188] sm:$0xf]
  %v103 = vld [vmem:[%s0 + $0x18c] sm:$0xff]
  %v104 = vld [vmem:[%s0 + $0x194] sm:$0xff]
  %v105 = vld [vmem:[%s0 + $0x19c] sm:$0xff]
  %v106 = vld [vmem:[%s0 + $0x1a4] sm:$0xff]
  %v107 = vld [vmem:[%s0 + $0x1ac] sm:$0xf]
  %v108 = vld [vmem:[%s0 + $0x1b0] sm:$0xff]
  %v109 = vld [vmem:[%s0 + $0x1b8] sm:$0xff]
  %v110 = vld [vmem:[%s0 + $0x1c0] sm:$0xff]
  %v111 = vld [vmem:[%s0 + $0x1c8] sm:$0xff]
  %v112 = vld [vmem:[%s0 + $0x1d0] sm:$0xf]
  %v113 = vld [vmem:[%s0 + $0x1d4] sm:$0xff]
  %v114 = vld [vmem:[%s0 + $0x1dc] sm:$0xff]
  %v115 = vld [vmem:[%s0 + $0x1e4] sm:$0xff]
  %v116 = vld [vmem:[%s0 + $0x1ec] sm:$0xff]
  %v117 = vld [vmem:[%s0 + $0x1f4] sm:$0xf]
  %v118 = vld [vmem:[%s0 + $0x1f8] sm:$0xff]
  %v119 = vld [vmem:[%s0 + $0x200] sm:$0xff]
  %v120 = vld [vmem:[%s0 + $0x208] sm:$0xff]
  %v121 = vld [vmem:[%s0 + $0x210] sm:$0xff]
  %v122 = vld [vmem:[%s0 + $0x218] sm:$0xf]
  %v123 = vld [vmem:[%s0 + $0x21c] sm:$0xff]
  %v124 = vld [vmem:[%s0 + $0x224] sm:$0xff]
  %v125 = vld [vmem:[%s0 + $0x22c] sm:$0xff]
  %v126 = vld [vmem:[%s0 + $0x234] sm:$0xff]
  %v127 = vld [vmem:[%s0 + $0x23c] sm:$0xf]
  %v128 = vld [vmem:[%s1] sm:$0xf]
  %v129 = vld [vmem:[%s1 + $0x4] sm:$0xf]
  %v130 = vld [vmem:[%s1 + $0x8] sm:$0xf]
  %v131 = vld [vmem:[%s1 + $0xc] sm:$0xf]
  %v132 = vld [vmem:[%s1 + $0x10] sm:$0xf]
  %v133 = vld [vmem:[%s1 + $0x14] sm:$0xf]
  %v134 = vld [vmem:[%s1 + $0x18] sm:$0xf]
  %v135 = vld [vmem:[%s1 + $0x1c] sm:$0xf]
  %v136 = vld [vmem:[%s1 + $0x20] sm:$0xf]
  %v137 = vld [vmem:[%s1 + $0x24] sm:$0xf]
  %v138 = vld [vmem:[%s1 + $0x28] sm:$0xf]
  %v139 = vld [vmem:[%s1 + $0x2c] sm:$0xf]
  %v140 = vld [vmem:[%s1 + $0x30] sm:$0xf]
  %v141 = vld [vmem:[%s1 + $0x34] sm:$0xf]
  %v142 = vld [vmem:[%s1 + $0x38] sm:$0xf]
  %v143 = vld [vmem:[%s1 + $0x3c] sm:$0xf]
  %v144 = vld [vmem:[%s1 + $0x40] sm:$0xf]
  %v145 = vld [vmem:[%s1 + $0x44] sm:$0xf]
  %v146 = vld [vmem:[%s1 + $0x48] sm:$0xf]
  %v147 = vld [vmem:[%s1 + $0x4c] sm:$0xf]
  %v148 = vld [vmem:[%s1 + $0x50] sm:$0xf]
  %v149 = vld [vmem:[%s1 + $0x54] sm:$0xf]
  %v150 = vld [vmem:[%s1 + $0x58] sm:$0xf]
  %v151 = vld [vmem:[%s1 + $0x5c] sm:$0xf]
  %v152 = vld [vmem:[%s1 + $0x60] sm:$0xf]
  %v153 = vld [vmem:[%s1 + $0x64] sm:$0xf]
  %v154 = vld [vmem:[%s1 + $0x68] sm:$0xf]
  %v155 = vld [vmem:[%s1 + $0x6c] sm:$0xf]
  %v156 = vld [vmem:[%s1 + $0x70] sm:$0xf]
  %v157 = vld [vmem:[%s1 + $0x74] sm:$0xf]
  %v158 = vld [vmem:[%s1 + $0x78] sm:$0xf]
  %v159 = vld [vmem:[%s1 + $0x7c] sm:$0xf]
  %v160 = vld [vmem:[%s1 + $0x80] sm:$0xf]
  %v161 = vld [vmem:[%s1 + $0x84] sm:$0xf]
  %v162 = vld [vmem:[%s1 + $0x88] sm:$0xf]
  %v163 = vld [vmem:[%s1 + $0x8c] sm:$0xf]
  %v164 = vld [vmem:[%s1 + $0x90] sm:$0xf]
  %v165 = vld [vmem:[%s1 + $0x94] sm:$0xf]
  %v166 = vld [vmem:[%s1 + $0x98] sm:$0xf]
  %v167 = vld [vmem:[%s1 + $0x9c] sm:$0xf]
  %v168 = vld [vmem:[%s1 + $0xa0] sm:$0xf]
  %v169 = vld [vmem:[%s1 + $0xa4] sm:$0xf]
  %v170 = vld [vmem:[%s1 + $0xa8] sm:$0xf]
  %v171 = vld [vmem:[%s1 + $0xac] sm:$0xf]
  %v172 = vld [vmem:[%s1 + $0xb0] sm:$0xf]
  %v173 = vld [vmem:[%s1 + $0xb4] sm:$0xf]
  %v174 = vld [vmem:[%s1 + $0xb8] sm:$0xf]
  %v175 = vld [vmem:[%s1 + $0xbc] sm:$0xf]
  %v176 = vld [vmem:[%s1 + $0xc0] sm:$0xf]
  %v177 = vld [vmem:[%s1 + $0xc4] sm:$0xf]
  %v178 = vld [vmem:[%s1 + $0xc8] sm:$0xf]
  %v179 = vld [vmem:[%s1 + $0xcc] sm:$0xf]
  %v180 = vld [vmem:[%s1 + $0xd0] sm:$0xf]
  %v181 = vld [vmem:[%s1 + $0xd4] sm:$0xf]
  %v182 = vld [vmem:[%s1 + $0xd8] sm:$0xf]
  %v183 = vld [vmem:[%s1 + $0xdc] sm:$0xf]
  %v184 = vld [vmem:[%s1 + $0xe0] sm:$0xf]
  %v185 = vld [vmem:[%s1 + $0xe4] sm:$0xf]
  %v186 = vld [vmem:[%s1 + $0xe8] sm:$0xf]
  %v187 = vld [vmem:[%s1 + $0xec] sm:$0xf]
  %v188 = vld [vmem:[%s1 + $0xf0] sm:$0xf]
  %v189 = vld [vmem:[%s1 + $0xf4] sm:$0xf]
  %v190 = vld [vmem:[%s1 + $0xf8] sm:$0xf]
  %v191 = vld [vmem:[%s1 + $0xfc] sm:$0xf]
  %v192 = vld [vmem:[%s1 + $0x100] sm:$0xf]
  %v193 = vld [vmem:[%s1 + $0x104] sm:$0xf]
  %v194 = vld [vmem:[%s1 + $0x108] sm:$0xf]
  %v195 = vld [vmem:[%s1 + $0x10c] sm:$0xf]
  %v196 = vld [vmem:[%s1 + $0x110] sm:$0xf]
  %v197 = vld [vmem:[%s1 + $0x114] sm:$0xf]
  %v198 = vld [vmem:[%s1 + $0x118] sm:$0xf]
  %v199 = vld [vmem:[%s1 + $0x11c] sm:$0xf]
  %v200 = vld [vmem:[%s1 + $0x120] sm:$0xf]
  %v201 = vld [vmem:[%s1 + $0x124] sm:$0xf]
  %v202 = vld [vmem:[%s1 + $0x128] sm:$0xf]
  %v203 = vld [vmem:[%s1 + $0x12c] sm:$0xf]
  %v204 = vld [vmem:[%s1 + $0x130] sm:$0xf]
  %v205 = vld [vmem:[%s1 + $0x134] sm:$0xf]
  %v206 = vld [vmem:[%s1 + $0x138] sm:$0xf]
  %v207 = vld [vmem:[%s1 + $0x13c] sm:$0xf]
  %v208 = vld [vmem:[%s1 + $0x140] sm:$0xf]
  %v209 = vld [vmem:[%s1 + $0x144] sm:$0xf]
  %v210 = vld [vmem:[%s1 + $0x148] sm:$0xf]
  %v211 = vld [vmem:[%s1 + $0x14c] sm:$0xf]
  %v212 = vld [vmem:[%s1 + $0x150] sm:$0xf]
  %v213 = vld [vmem:[%s1 + $0x154] sm:$0xf]
  %v214 = vld [vmem:[%s1 + $0x158] sm:$0xf]
  %v215 = vld [vmem:[%s1 + $0x15c] sm:$0xf]
  %v216 = vld [vmem:[%s1 + $0x160] sm:$0xf]
  %v217 = vld [vmem:[%s1 + $0x164] sm:$0xf]
  %v218 = vld [vmem:[%s1 + $0x168] sm:$0xf]
  %v219 = vld [vmem:[%s1 + $0x16c] sm:$0xf]
  %v220 = vld [vmem:[%s1 + $0x170] sm:$0xf]
  %v221 = vld [vmem:[%s1 + $0x174] sm:$0xf]
  %v222 = vld [vmem:[%s1 + $0x178] sm:$0xf]
  %v223 = vld [vmem:[%s1 + $0x17c] sm:$0xf]
  %v224 = vld [vmem:[%s1 + $0x180] sm:$0xf]
  %v225 = vld [vmem:[%s1 + $0x184] sm:$0xf]
  %v226 = vld [vmem:[%s1 + $0x188] sm:$0xf]
  %v227 = vld [vmem:[%s1 + $0x18c] sm:$0xf]
  %v228 = vld [vmem:[%s1 + $0x190] sm:$0xf]
  %v229 = vld [vmem:[%s1 + $0x194] sm:$0xf]
  %v230 = vld [vmem:[%s1 + $0x198] sm:$0xf]
  %v231 = vld [vmem:[%s1 + $0x19c] sm:$0xf]
  %v232 = vld [vmem:[%s1 + $0x1a0] sm:$0xf]
  %v233 = vld [vmem:[%s1 + $0x1a4] sm:$0xf]
  %v234 = vld [vmem:[%s1 + $0x1a8] sm:$0xf]
  %v235 = vld [vmem:[%s1 + $0x1ac] sm:$0xf]
  %v236 = vld [vmem:[%s1 + $0x1b0] sm:$0xf]
  %v237 = vld [vmem:[%s1 + $0x1b4] sm:$0xf]
  %v238 = vld [vmem:[%s1 + $0x1b8] sm:$0xf]
  %v239 = vld [vmem:[%s1 + $0x1bc] sm:$0xf]
  %v240 = vld [vmem:[%s1 + $0x1c0] sm:$0xf]
  %v241 = vld [vmem:[%s1 + $0x1c4] sm:$0xf]
  %v242 = vld [vmem:[%s1 + $0x1c8] sm:$0xf]
  %v243 = vld [vmem:[%s1 + $0x1cc] sm:$0xf]
  %v244 = vld [vmem:[%s1 + $0x1d0] sm:$0xf]
  %v245 = vld [vmem:[%s1 + $0x1d4] sm:$0xf]
  %v246 = vld [vmem:[%s1 + $0x1d8] sm:$0xf]
  %v247 = vld [vmem:[%s1 + $0x1dc] sm:$0xf]
  %v248 = vld [vmem:[%s1 + $0x1e0] sm:$0xf]
  %v249 = vld [vmem:[%s1 + $0x1e4] sm:$0xf]
  %v250 = vld [vmem:[%s1 + $0x1e8] sm:$0xf]
  %v251 = vld [vmem:[%s1 + $0x1ec] sm:$0xf]
  %v252 = vld [vmem:[%s1 + $0x1f0] sm:$0xf]
  %v253 = vld [vmem:[%s1 + $0x1f4] sm:$0xf]
  %v254 = vld [vmem:[%s1 + $0x1f8] sm:$0xf]
  %v255 = vld [vmem:[%s1 + $0x1fc] sm:$0xf]
  %v256 = vld [vmem:[%s1 + $0x200] sm:$0xf]
  %v257 = vld [vmem:[%s1 + $0x204] sm:$0xf]
  %v258 = vld [vmem:[%s1 + $0x208] sm:$0xf]
  %v259 = vld [vmem:[%s1 + $0x20c] sm:$0xf]
  %v260 = vld [vmem:[%s1 + $0x210] sm:$0xf]
  %v261 = vld [vmem:[%s1 + $0x214] sm:$0xf]
  %v262 = vld [vmem:[%s1 + $0x218] sm:$0xf]
  %v263 = vld [vmem:[%s1 + $0x21c] sm:$0xf]
  %v264 = vld [vmem:[%s1 + $0x220] sm:$0xf]
  %v265 = vld [vmem:[%s1 + $0x224] sm:$0xf]
  %v266 = vld [vmem:[%s1 + $0x228] sm:$0xf]
  %v267 = vld [vmem:[%s1 + $0x22c] sm:$0xf]
  %v268 = vld [vmem:[%s1 + $0x230] sm:$0xf]
  %v269 = vld [vmem:[%s1 + $0x234] sm:$0xf]
  %v270 = vld [vmem:[%s1 + $0x238] sm:$0xf]
  %v271 = vld [vmem:[%s1 + $0x23c] sm:$0xf]
  %v352 = vunpack.c.l.b16 %v48
  %v353 = vunpack.c.h.b16 %v48
  %v354 = vunpack.c.l.b16 %v49
  %v355 = vunpack.c.h.b16 %v49
  %v356 = vunpack.c.l.b16 %v50
  %v357 = vunpack.c.h.b16 %v50
  %v358 = vunpack.c.l.b16 %v51
  %v359 = vunpack.c.h.b16 %v51
  %v360 = vunpack.c.l.b16 %v52
  %v361 = vunpack.c.l.b16 %v53
  %v362 = vunpack.c.h.b16 %v53
  %v363 = vunpack.c.l.b16 %v54
  %v364 = vunpack.c.h.b16 %v54
  %v365 = vunpack.c.l.b16 %v55
  %v366 = vunpack.c.h.b16 %v55
  %v367 = vunpack.c.l.b16 %v56
  %v368 = vunpack.c.h.b16 %v56
  %v369 = vunpack.c.l.b16 %v57
  %v370 = vunpack.c.l.b16 %v58
  %v371 = vunpack.c.h.b16 %v58
  %v372 = vunpack.c.l.b16 %v59
  %v373 = vunpack.c.h.b16 %v59
  %v374 = vunpack.c.l.b16 %v60
  %v375 = vunpack.c.h.b16 %v60
  %v376 = vunpack.c.l.b16 %v61
  %v377 = vunpack.c.h.b16 %v61
  %v378 = vunpack.c.l.b16 %v62
  %v379 = vunpack.c.l.b16 %v63
  %v380 = vunpack.c.h.b16 %v63
  %v381 = vunpack.c.l.b16 %v64
  %v382 = vunpack.c.h.b16 %v64
  %v383 = vunpack.c.l.b16 %v65
  %v384 = vunpack.c.h.b16 %v65
  %v385 = vunpack.c.l.b16 %v66
  %v386 = vunpack.c.h.b16 %v66
  %v387 = vunpack.c.l.b16 %v67
  %v388 = vunpack.c.l.b16 %v68
  %v389 = vunpack.c.h.b16 %v68
  %v390 = vunpack.c.l.b16 %v69
  %v391 = vunpack.c.h.b16 %v69
  %v392 = vunpack.c.l.b16 %v70
  %v393 = vunpack.c.h.b16 %v70
  %v394 = vunpack.c.l.b16 %v71
  %v395 = vunpack.c.h.b16 %v71
  %v396 = vunpack.c.l.b16 %v72
  %v397 = vunpack.c.l.b16 %v73
  %v398 = vunpack.c.h.b16 %v73
  %v399 = vunpack.c.l.b16 %v74
  %v400 = vunpack.c.h.b16 %v74
  %v401 = vunpack.c.l.b16 %v75
  %v402 = vunpack.c.h.b16 %v75
  %v403 = vunpack.c.l.b16 %v76
  %v404 = vunpack.c.h.b16 %v76
  %v405 = vunpack.c.l.b16 %v77
  %v406 = vunpack.c.l.b16 %v78
  %v407 = vunpack.c.h.b16 %v78
  %v408 = vunpack.c.l.b16 %v79
  %v409 = vunpack.c.h.b16 %v79
  %v410 = vunpack.c.l.b16 %v80
  %v411 = vunpack.c.h.b16 %v80
  %v412 = vunpack.c.l.b16 %v81
  %v413 = vunpack.c.h.b16 %v81
  %v414 = vunpack.c.l.b16 %v82
  %v415 = vunpack.c.l.b16 %v83
  %v416 = vunpack.c.h.b16 %v83
  %v417 = vunpack.c.l.b16 %v84
  %v418 = vunpack.c.h.b16 %v84
  %v419 = vunpack.c.l.b16 %v85
  %v420 = vunpack.c.h.b16 %v85
  %v421 = vunpack.c.l.b16 %v86
  %v422 = vunpack.c.h.b16 %v86
  %v423 = vunpack.c.l.b16 %v87
  %v424 = vunpack.c.l.b16 %v88
  %v425 = vunpack.c.h.b16 %v88
  %v426 = vunpack.c.l.b16 %v89
  %v427 = vunpack.c.h.b16 %v89
  %v428 = vunpack.c.l.b16 %v90
  %v429 = vunpack.c.h.b16 %v90
  %v430 = vunpack.c.l.b16 %v91
  %v431 = vunpack.c.h.b16 %v91
  %v432 = vunpack.c.l.b16 %v92
  %v433 = vunpack.c.l.b16 %v93
  %v434 = vunpack.c.h.b16 %v93
  %v435 = vunpack.c.l.b16 %v94
  %v436 = vunpack.c.h.b16 %v94
  %v437 = vunpack.c.l.b16 %v95
  %v438 = vunpack.c.h.b16 %v95
  %v439 = vunpack.c.l.b16 %v96
  %v440 = vunpack.c.h.b16 %v96
  %v441 = vunpack.c.l.b16 %v97
  %v442 = vunpack.c.l.b16 %v98
  %v443 = vunpack.c.h.b16 %v98
  %v444 = vunpack.c.l.b16 %v99
  %v445 = vunpack.c.h.b16 %v99
  %v446 = vunpack.c.l.b16 %v100
  %v447 = vunpack.c.h.b16 %v100
  %v448 = vunpack.c.l.b16 %v101
  %v449 = vunpack.c.h.b16 %v101
  %v450 = vunpack.c.l.b16 %v102
  %v451 = vunpack.c.l.b16 %v103
  %v452 = vunpack.c.h.b16 %v103
  %v453 = vunpack.c.l.b16 %v104
  %v454 = vunpack.c.h.b16 %v104
  %v455 = vunpack.c.l.b16 %v105
  %v456 = vunpack.c.h.b16 %v105
  %v457 = vunpack.c.l.b16 %v106
  %v458 = vunpack.c.h.b16 %v106
  %v459 = vunpack.c.l.b16 %v107
  %v460 = vunpack.c.l.b16 %v108
  %v461 = vunpack.c.h.b16 %v108
  %v462 = vunpack.c.l.b16 %v109
  %v463 = vunpack.c.h.b16 %v109
  %v464 = vunpack.c.l.b16 %v110
  %v465 = vunpack.c.h.b16 %v110
  %v466 = vunpack.c.l.b16 %v111
  %v467 = vunpack.c.h.b16 %v111
  %v468 = vunpack.c.l.b16 %v112
  %v469 = vunpack.c.l.b16 %v113
  %v470 = vunpack.c.h.b16 %v113
  %v471 = vunpack.c.l.b16 %v114
  %v472 = vunpack.c.h.b16 %v114
  %v473 = vunpack.c.l.b16 %v115
  %v474 = vunpack.c.h.b16 %v115
  %v475 = vunpack.c.l.b16 %v116
  %v476 = vunpack.c.h.b16 %v116
  %v477 = vunpack.c.l.b16 %v117
  %v478 = vunpack.c.l.b16 %v118
  %v479 = vunpack.c.h.b16 %v118
  %v480 = vunpack.c.l.b16 %v119
  %v481 = vunpack.c.h.b16 %v119
  %v482 = vunpack.c.l.b16 %v120
  %v483 = vunpack.c.h.b16 %v120
  %v484 = vunpack.c.l.b16 %v121
  %v485 = vunpack.c.h.b16 %v121
  %v486 = vunpack.c.l.b16 %v122
  %v487 = vunpack.c.l.b16 %v123
  %v488 = vunpack.c.h.b16 %v123
  %v489 = vunpack.c.l.b16 %v124
  %v490 = vunpack.c.h.b16 %v124
  %v491 = vunpack.c.l.b16 %v125
  %v492 = vunpack.c.h.b16 %v125
  %v493 = vunpack.c.l.b16 %v126
  %v494 = vunpack.c.h.b16 %v126
  %v495 = vunpack.c.l.b16 %v127
  %v496 = vpack.c.b16 %v361, %v352
  %v497 = vpack.c.b16 %v362, %v353
  %v498 = vpack.c.b16 %v363, %v354
  %v499 = vpack.c.b16 %v364, %v355
  %v500 = vpack.c.b16 %v365, %v356
  %v501 = vpack.c.b16 %v366, %v357
  %v502 = vpack.c.b16 %v367, %v358
  %v503 = vpack.c.b16 %v368, %v359
  %v504 = vpack.c.b16 %v369, %v360
  %v505 = vpack.c.b16 %v379, %v370
  %v506 = vpack.c.b16 %v380, %v371
  %v507 = vpack.c.b16 %v381, %v372
  %v508 = vpack.c.b16 %v382, %v373
  %v509 = vpack.c.b16 %v383, %v374
  %v510 = vpack.c.b16 %v384, %v375
  %v511 = vpack.c.b16 %v385, %v376
  %v512 = vpack.c.b16 %v386, %v377
  %v513 = vpack.c.b16 %v387, %v378
  %v514 = vpack.c.b16 %v397, %v388
  %v515 = vpack.c.b16 %v398, %v389
  %v516 = vpack.c.b16 %v399, %v390
  %v517 = vpack.c.b16 %v400, %v391
  %v518 = vpack.c.b16 %v401, %v392
  %v519 = vpack.c.b16 %v402, %v393
  %v520 = vpack.c.b16 %v403, %v394
  %v521 = vpack.c.b16 %v404, %v395
  %v522 = vpack.c.b16 %v405, %v396
  %v523 = vpack.c.b16 %v415, %v406
  %v524 = vpack.c.b16 %v416, %v407
  %v525 = vpack.c.b16 %v417, %v408
  %v526 = vpack.c.b16 %v418, %v409
  %v527 = vpack.c.b16 %v419, %v410
  %v528 = vpack.c.b16 %v420, %v411
  %v529 = vpack.c.b16 %v421, %v412
  %v530 = vpack.c.b16 %v422, %v413
  %v531 = vpack.c.b16 %v423, %v414
  %v532 = vpack.c.b16 %v433, %v424
  %v533 = vpack.c.b16 %v434, %v425
  %v534 = vpack.c.b16 %v435, %v426
  %v535 = vpack.c.b16 %v436, %v427
  %v536 = vpack.c.b16 %v437, %v428
  %v537 = vpack.c.b16 %v438, %v429
  %v538 = vpack.c.b16 %v439, %v430
  %v539 = vpack.c.b16 %v440, %v431
  %v540 = vpack.c.b16 %v441, %v432
  %v541 = vpack.c.b16 %v451, %v442
  %v542 = vpack.c.b16 %v452, %v443
  %v543 = vpack.c.b16 %v453, %v444
  %v544 = vpack.c.b16 %v454, %v445
  %v545 = vpack.c.b16 %v455, %v446
  %v546 = vpack.c.b16 %v456, %v447
  %v547 = vpack.c.b16 %v457, %v448
  %v548 = vpack.c.b16 %v458, %v449
  %v549 = vpack.c.b16 %v459, %v450
  %v550 = vpack.c.b16 %v469, %v460
  %v551 = vpack.c.b16 %v470, %v461
  %v552 = vpack.c.b16 %v471, %v462
  %v553 = vpack.c.b16 %v472, %v463
  %v554 = vpack.c.b16 %v473, %v464
  %v555 = vpack.c.b16 %v474, %v465
  %v556 = vpack.c.b16 %v475, %v466
  %v557 = vpack.c.b16 %v476, %v467
  %v558 = vpack.c.b16 %v477, %v468
  %v559 = vpack.c.b16 %v487, %v478
  %v560 = vpack.c.b16 %v488, %v479
  %v561 = vpack.c.b16 %v489, %v480
  %v562 = vpack.c.b16 %v490, %v481
  %v563 = vpack.c.b16 %v491, %v482
  %v564 = vpack.c.b16 %v492, %v483
  %v565 = vpack.c.b16 %v493, %v484
  %v566 = vpack.c.b16 %v494, %v485
  %v567 = vpack.c.b16 %v495, %v486
  %v784 = vunpack.c.l.b16 %v128
  %v785 = vunpack.c.l.b16 %v129
  %v786 = vunpack.c.l.b16 %v130
  %v787 = vunpack.c.l.b16 %v131
  %v788 = vunpack.c.l.b16 %v132
  %v789 = vunpack.c.l.b16 %v133
  %v790 = vunpack.c.l.b16 %v134
  %v791 = vunpack.c.l.b16 %v135
  %v792 = vunpack.c.l.b16 %v136
  %v793 = vunpack.c.l.b16 %v137
  %v794 = vunpack.c.l.b16 %v138
  %v795 = vunpack.c.l.b16 %v139
  %v796 = vunpack.c.l.b16 %v140
  %v797 = vunpack.c.l.b16 %v141
  %v798 = vunpack.c.l.b16 %v142
  %v799 = vunpack.c.l.b16 %v143
  %v800 = vunpack.c.l.b16 %v144
  %v801 = vunpack.c.l.b16 %v145
  %v802 = vunpack.c.l.b16 %v146
  %v803 = vunpack.c.l.b16 %v147
  %v804 = vunpack.c.l.b16 %v148
  %v805 = vunpack.c.l.b16 %v149
  %v806 = vunpack.c.l.b16 %v150
  %v807 = vunpack.c.l.b16 %v151
  %v808 = vunpack.c.l.b16 %v152
  %v809 = vunpack.c.l.b16 %v153
  %v810 = vunpack.c.l.b16 %v154
  %v811 = vunpack.c.l.b16 %v155
  %v812 = vunpack.c.l.b16 %v156
  %v813 = vunpack.c.l.b16 %v157
  %v814 = vunpack.c.l.b16 %v158
  %v815 = vunpack.c.l.b16 %v159
  %v816 = vunpack.c.l.b16 %v160
  %v817 = vunpack.c.l.b16 %v161
  %v818 = vunpack.c.l.b16 %v162
  %v819 = vunpack.c.l.b16 %v163
  %v820 = vunpack.c.l.b16 %v164
  %v821 = vunpack.c.l.b16 %v165
  %v822 = vunpack.c.l.b16 %v166
  %v823 = vunpack.c.l.b16 %v167
  %v824 = vunpack.c.l.b16 %v168
  %v825 = vunpack.c.l.b16 %v169
  %v826 = vunpack.c.l.b16 %v170
  %v827 = vunpack.c.l.b16 %v171
  %v828 = vunpack.c.l.b16 %v172
  %v829 = vunpack.c.l.b16 %v173
  %v830 = vunpack.c.l.b16 %v174
  %v831 = vunpack.c.l.b16 %v175
  %v832 = vunpack.c.l.b16 %v176
  %v833 = vunpack.c.l.b16 %v177
  %v834 = vunpack.c.l.b16 %v178
  %v835 = vunpack.c.l.b16 %v179
  %v836 = vunpack.c.l.b16 %v180
  %v837 = vunpack.c.l.b16 %v181
  %v838 = vunpack.c.l.b16 %v182
  %v839 = vunpack.c.l.b16 %v183
  %v840 = vunpack.c.l.b16 %v184
  %v841 = vunpack.c.l.b16 %v185
  %v842 = vunpack.c.l.b16 %v186
  %v843 = vunpack.c.l.b16 %v187
  %v844 = vunpack.c.l.b16 %v188
  %v845 = vunpack.c.l.b16 %v189
  %v846 = vunpack.c.l.b16 %v190
  %v847 = vunpack.c.l.b16 %v191
  %v848 = vunpack.c.l.b16 %v192
  %v849 = vunpack.c.l.b16 %v193
  %v850 = vunpack.c.l.b16 %v194
  %v851 = vunpack.c.l.b16 %v195
  %v852 = vunpack.c.l.b16 %v196
  %v853 = vunpack.c.l.b16 %v197
  %v854 = vunpack.c.l.b16 %v198
  %v855 = vunpack.c.l.b16 %v199
  %v856 = vunpack.c.l.b16 %v200
  %v857 = vunpack.c.l.b16 %v201
  %v858 = vunpack.c.l.b16 %v202
  %v859 = vunpack.c.l.b16 %v203
  %v860 = vunpack.c.l.b16 %v204
  %v861 = vunpack.c.l.b16 %v205
  %v862 = vunpack.c.l.b16 %v206
  %v863 = vunpack.c.l.b16 %v207
  %v864 = vunpack.c.l.b16 %v208
  %v865 = vunpack.c.l.b16 %v209
  %v866 = vunpack.c.l.b16 %v210
  %v867 = vunpack.c.l.b16 %v211
  %v868 = vunpack.c.l.b16 %v212
  %v869 = vunpack.c.l.b16 %v213
  %v870 = vunpack.c.l.b16 %v214
  %v871 = vunpack.c.l.b16 %v215
  %v872 = vunpack.c.l.b16 %v216
  %v873 = vunpack.c.l.b16 %v217
  %v874 = vunpack.c.l.b16 %v218
  %v875 = vunpack.c.l.b16 %v219
  %v876 = vunpack.c.l.b16 %v220
  %v877 = vunpack.c.l.b16 %v221
  %v878 = vunpack.c.l.b16 %v222
  %v879 = vunpack.c.l.b16 %v223
  %v880 = vunpack.c.l.b16 %v224
  %v881 = vunpack.c.l.b16 %v225
  %v882 = vunpack.c.l.b16 %v226
  %v883 = vunpack.c.l.b16 %v227
  %v884 = vunpack.c.l.b16 %v228
  %v885 = vunpack.c.l.b16 %v229
  %v886 = vunpack.c.l.b16 %v230
  %v887 = vunpack.c.l.b16 %v231
  %v888 = vunpack.c.l.b16 %v232
  %v889 = vunpack.c.l.b16 %v233
  %v890 = vunpack.c.l.b16 %v234
  %v891 = vunpack.c.l.b16 %v235
  %v892 = vunpack.c.l.b16 %v236
  %v893 = vunpack.c.l.b16 %v237
  %v894 = vunpack.c.l.b16 %v238
  %v895 = vunpack.c.l.b16 %v239
  %v896 = vunpack.c.l.b16 %v240
  %v897 = vunpack.c.l.b16 %v241
  %v898 = vunpack.c.l.b16 %v242
  %v899 = vunpack.c.l.b16 %v243
  %v900 = vunpack.c.l.b16 %v244
  %v901 = vunpack.c.l.b16 %v245
  %v902 = vunpack.c.l.b16 %v246
  %v903 = vunpack.c.l.b16 %v247
  %v904 = vunpack.c.l.b16 %v248
  %v905 = vunpack.c.l.b16 %v249
  %v906 = vunpack.c.l.b16 %v250
  %v907 = vunpack.c.l.b16 %v251
  %v908 = vunpack.c.l.b16 %v252
  %v909 = vunpack.c.l.b16 %v253
  %v910 = vunpack.c.l.b16 %v254
  %v911 = vunpack.c.l.b16 %v255
  %v912 = vunpack.c.l.b16 %v256
  %v913 = vunpack.c.l.b16 %v257
  %v914 = vunpack.c.l.b16 %v258
  %v915 = vunpack.c.l.b16 %v259
  %v916 = vunpack.c.l.b16 %v260
  %v917 = vunpack.c.l.b16 %v261
  %v918 = vunpack.c.l.b16 %v262
  %v919 = vunpack.c.l.b16 %v263
  %v920 = vunpack.c.l.b16 %v264
  %v921 = vunpack.c.l.b16 %v265
  %v922 = vunpack.c.l.b16 %v266
  %v923 = vunpack.c.l.b16 %v267
  %v924 = vunpack.c.l.b16 %v268
  %v925 = vunpack.c.l.b16 %v269
  %v926 = vunpack.c.l.b16 %v270
  %v927 = vunpack.c.l.b16 %v271
  %v928 = vpack.c.b16 %v785, %v784
  %v929 = vpack.c.b16 %v787, %v786
  %v930 = vpack.c.b16 %v789, %v788
  %v931 = vpack.c.b16 %v791, %v790
  %v932 = vpack.c.b16 %v793, %v792
  %v933 = vpack.c.b16 %v795, %v794
  %v934 = vpack.c.b16 %v797, %v796
  %v935 = vpack.c.b16 %v799, %v798
  %v936 = vpack.c.b16 %v801, %v800
  %v937 = vpack.c.b16 %v803, %v802
  %v938 = vpack.c.b16 %v805, %v804
  %v939 = vpack.c.b16 %v807, %v806
  %v940 = vpack.c.b16 %v809, %v808
  %v941 = vpack.c.b16 %v811, %v810
  %v942 = vpack.c.b16 %v813, %v812
  %v943 = vpack.c.b16 %v815, %v814
  %v944 = vpack.c.b16 %v817, %v816
  %v945 = vpack.c.b16 %v819, %v818
  %v946 = vpack.c.b16 %v821, %v820
  %v947 = vpack.c.b16 %v823, %v822
  %v948 = vpack.c.b16 %v825, %v824
  %v949 = vpack.c.b16 %v827, %v826
  %v950 = vpack.c.b16 %v829, %v828
  %v951 = vpack.c.b16 %v831, %v830
  %v952 = vpack.c.b16 %v833, %v832
  %v953 = vpack.c.b16 %v835, %v834
  %v954 = vpack.c.b16 %v837, %v836
  %v955 = vpack.c.b16 %v839, %v838
  %v956 = vpack.c.b16 %v841, %v840
  %v957 = vpack.c.b16 %v843, %v842
  %v958 = vpack.c.b16 %v845, %v844
  %v959 = vpack.c.b16 %v847, %v846
  %v960 = vpack.c.b16 %v849, %v848
  %v961 = vpack.c.b16 %v851, %v850
  %v962 = vpack.c.b16 %v853, %v852
  %v963 = vpack.c.b16 %v855, %v854
  %v964 = vpack.c.b16 %v857, %v856
  %v965 = vpack.c.b16 %v859, %v858
  %v966 = vpack.c.b16 %v861, %v860
  %v967 = vpack.c.b16 %v863, %v862
  %v968 = vpack.c.b16 %v865, %v864
  %v969 = vpack.c.b16 %v867, %v866
  %v970 = vpack.c.b16 %v869, %v868
  %v971 = vpack.c.b16 %v871, %v870
  %v972 = vpack.c.b16 %v873, %v872
  %v973 = vpack.c.b16 %v875, %v874
  %v974 = vpack.c.b16 %v877, %v876
  %v975 = vpack.c.b16 %v879, %v878
  %v976 = vpack.c.b16 %v881, %v880
  %v977 = vpack.c.b16 %v883, %v882
  %v978 = vpack.c.b16 %v885, %v884
  %v979 = vpack.c.b16 %v887, %v886
  %v980 = vpack.c.b16 %v889, %v888
  %v981 = vpack.c.b16 %v891, %v890
  %v982 = vpack.c.b16 %v893, %v892
  %v983 = vpack.c.b16 %v895, %v894
  %v984 = vpack.c.b16 %v897, %v896
  %v985 = vpack.c.b16 %v899, %v898
  %v986 = vpack.c.b16 %v901, %v900
  %v987 = vpack.c.b16 %v903, %v902
  %v988 = vpack.c.b16 %v905, %v904
  %v989 = vpack.c.b16 %v907, %v906
  %v990 = vpack.c.b16 %v909, %v908
  %v991 = vpack.c.b16 %v911, %v910
  %v992 = vpack.c.b16 %v913, %v912
  %v993 = vpack.c.b16 %v915, %v914
  %v994 = vpack.c.b16 %v917, %v916
  %v995 = vpack.c.b16 %v919, %v918
  %v996 = vpack.c.b16 %v921, %v920
  %v997 = vpack.c.b16 %v923, %v922
  %v998 = vpack.c.b16 %v925, %v924
  %v999 = vpack.c.b16 %v927, %v926
  %1072 = vmatprep.subr.bf16.mxu0 0
  %1073 = vmatpush1.bf16.msra.mxu0 %v935
  %1074 = vmatprep.subr.bf16.mxu0 0
  %1075 = vmatpush1.bf16.msra.mxu0 %v934
  %1076 = vmatprep.subr.bf16.mxu0 0
  %1077 = vmatpush1.bf16.msra.mxu0 %v933
  %1078 = vmatprep.subr.bf16.mxu0 0
  %1079 = vmatpush1.bf16.msra.mxu0 %v932
  %1080 = vmatprep.subr.bf16.mxu0 0
  %1081 = vmatpush1.bf16.msra.mxu0 %v931
  %1082 = vmatprep.subr.bf16.mxu0 0
  %1083 = vmatpush1.bf16.msra.mxu0 %v930
  %1084 = vmatprep.subr.bf16.mxu0 0
  %1085 = vmatpush1.bf16.msra.mxu0 %v929
  %1086 = vmatprep.subr.bf16.mxu0 0
  %1087 = vmatpush1.bf16.msra.mxu0 %v928
  %1088 = vmatprep.subr.bf16.mxu0 0
  %1089 = vmatpush2.bf16.msra.mxu0 %v943
  %1090 = vmatprep.subr.bf16.mxu0 0
  %1091 = vmatpush2.bf16.msra.mxu0 %v942
  %1092 = vmatprep.subr.bf16.mxu0 0
  %1093 = vmatpush2.bf16.msra.mxu0 %v941
  %1094 = vmatprep.subr.bf16.mxu0 0
  %1095 = vmatpush2.bf16.msra.mxu0 %v940
  %1096 = vmatprep.subr.bf16.mxu0 0
  %1097 = vmatpush2.bf16.msra.mxu0 %v939
  %1098 = vmatprep.subr.bf16.mxu0 0
  %1099 = vmatpush2.bf16.msra.mxu0 %v938
  %1100 = vmatprep.subr.bf16.mxu0 0
  %1101 = vmatpush2.bf16.msra.mxu0 %v937
  %1102 = vmatprep.subr.bf16.mxu0 0
  %1103 = vmatpush2.bf16.msra.mxu0 %v936
  %1104 = vmatprep.mubr.bf16.mxu0 %v497
  %1105 = vmatmul.mubr.bf16.gmra.mxu0 %v496
  %v1106 = vpop.f32.mrf.mxu0
  %v1107 = vadd.f32 0.0, %v1106
  %v1108 = vpop.f32.mrf.mxu0
  %v1109 = vpop.f32.mrf.mxu0
  %v1110 = vadd.f32 0.0, %v1109
  %v1111 = vpop.f32.mrf.mxu0
  %1112 = vmatprep.mubr.bf16.mxu0 %v506
  %1113 = vmatmul.mubr.bf16.gmra.mxu0 %v505
  %v1114 = vpop.f32.mrf.mxu0
  %v1115 = vadd.f32 0.0, %v1114
  %v1116 = vpop.f32.mrf.mxu0
  %v1117 = vpop.f32.mrf.mxu0
  %v1118 = vadd.f32 0.0, %v1117
  %v1119 = vpop.f32.mrf.mxu0
  %1120 = vmatprep.mubr.bf16.mxu0 %v515
  %1121 = vmatmul.mubr.bf16.gmra.mxu0 %v514
  %v1122 = vpop.f32.mrf.mxu0
  %v1123 = vadd.f32 0.0, %v1122
  %v1124 = vpop.f32.mrf.mxu0
  %v1125 = vpop.f32.mrf.mxu0
  %v1126 = vadd.f32 0.0, %v1125
  %v1127 = vpop.f32.mrf.mxu0
  %1128 = vmatprep.mubr.bf16.mxu0 %v524
  %1129 = vmatmul.mubr.bf16.gmra.mxu0 %v523
  %v1130 = vpop.f32.mrf.mxu0
  %v1131 = vadd.f32 0.0, %v1130
  %v1132 = vpop.f32.mrf.mxu0
  %v1133 = vpop.f32.mrf.mxu0
  %v1134 = vadd.f32 0.0, %v1133
  %v1135 = vpop.f32.mrf.mxu0
  %1136 = vmatprep.mubr.bf16.mxu0 %v533
  %1137 = vmatmul.mubr.bf16.gmra.mxu0 %v532
  %v1138 = vpop.f32.mrf.mxu0
  %v1139 = vadd.f32 0.0, %v1138
  %v1140 = vpop.f32.mrf.mxu0
  %v1141 = vpop.f32.mrf.mxu0
  %v1142 = vadd.f32 0.0, %v1141
  %v1143 = vpop.f32.mrf.mxu0
  %1144 = vmatprep.mubr.bf16.mxu0 %v542
  %1145 = vmatmul.mubr.bf16.gmra.mxu0 %v541
  %v1146 = vpop.f32.mrf.mxu0
  %v1147 = vadd.f32 0.0, %v1146
  %v1148 = vpop.f32.mrf.mxu0
  %v1149 = vpop.f32.mrf.mxu0
  %v1150 = vadd.f32 0.0, %v1149
  %v1151 = vpop.f32.mrf.mxu0
  %1152 = vmatprep.mubr.bf16.mxu0 %v551
  %1153 = vmatmul.mubr.bf16.gmra.mxu0 %v550
  %v1154 = vpop.f32.mrf.mxu0
  %v1155 = vadd.f32 0.0, %v1154
  %v1156 = vpop.f32.mrf.mxu0
  %v1157 = vpop.f32.mrf.mxu0
  %v1158 = vadd.f32 0.0, %v1157
  %v1159 = vpop.f32.mrf.mxu0
  %1160 = vmatprep.mubr.bf16.mxu0 %v560
  %1161 = vmatmul.mubr.bf16.gmra.mxu0 %v559
  %v1162 = vpop.f32.mrf.mxu0
  %v1163 = vadd.f32 0.0, %v1162
  %v1164 = vpop.f32.mrf.mxu0
  %v1165 = vpop.f32.mrf.mxu0
  %v1166 = vadd.f32 0.0, %v1165
  %v1167 = vpop.f32.mrf.mxu0
  %1168 = vdwg.mxu0
  %1169 = vmatprep.subr.bf16.mxu0 0
  %1170 = vmatpush1.bf16.msra.mxu0 %v951
  %1171 = vmatprep.subr.bf16.mxu0 0
  %1172 = vmatpush1.bf16.msra.mxu0 %v950
  %1173 = vmatprep.subr.bf16.mxu0 0
  %1174 = vmatpush1.bf16.msra.mxu0 %v949
  %1175 = vmatprep.subr.bf16.mxu0 0
  %1176 = vmatpush1.bf16.msra.mxu0 %v948
  %1177 = vmatprep.subr.bf16.mxu0 0
  %1178 = vmatpush1.bf16.msra.mxu0 %v947
  %1179 = vmatprep.subr.bf16.mxu0 0
  %1180 = vmatpush1.bf16.msra.mxu0 %v946
  %1181 = vmatprep.subr.bf16.mxu0 0
  %1182 = vmatpush1.bf16.msra.mxu0 %v945
  %1183 = vmatprep.subr.bf16.mxu0 0
  %1184 = vmatpush1.bf16.msra.mxu0 %v944
  %1185 = vmatprep.subr.bf16.mxu0 0
  %1186 = vmatpush2.bf16.msra.mxu0 %v959
  %1187 = vmatprep.subr.bf16.mxu0 0
  %1188 = vmatpush2.bf16.msra.mxu0 %v958
  %1189 = vmatprep.subr.bf16.mxu0 0
  %1190 = vmatpush2.bf16.msra.mxu0 %v957
  %1191 = vmatprep.subr.bf16.mxu0 0
  %1192 = vmatpush2.bf16.msra.mxu0 %v956
  %1193 = vmatprep.subr.bf16.mxu0 0
  %1194 = vmatpush2.bf16.msra.mxu0 %v955
  %1195 = vmatprep.subr.bf16.mxu0 0
  %1196 = vmatpush2.bf16.msra.mxu0 %v954
  %1197 = vmatprep.subr.bf16.mxu0 0
  %1198 = vmatpush2.bf16.msra.mxu0 %v953
  %1199 = vmatprep.subr.bf16.mxu0 0
  %1200 = vmatpush2.bf16.msra.mxu0 %v952
  %1201 = vmatprep.mubr.bf16.mxu0 %v499
  %1202 = vmatmul.mubr.bf16.gmra.mxu0 %v498
  %v1203 = vpop.f32.mrf.mxu0
  %v1204 = vadd.f32 %v1107, %v1203
  %v1205 = vpop.f32.mrf.mxu0
  %v1206 = vpop.f32.mrf.mxu0
  %v1207 = vadd.f32 %v1110, %v1206
  %v1208 = vpop.f32.mrf.mxu0
  %1209 = vmatprep.mubr.bf16.mxu0 %v508
  %1210 = vmatmul.mubr.bf16.gmra.mxu0 %v507
  %v1211 = vpop.f32.mrf.mxu0
  %v1212 = vadd.f32 %v1115, %v1211
  %v1213 = vpop.f32.mrf.mxu0
  %v1214 = vpop.f32.mrf.mxu0
  %v1215 = vadd.f32 %v1118, %v1214
  %v1216 = vpop.f32.mrf.mxu0
  %1217 = vmatprep.mubr.bf16.mxu0 %v517
  %1218 = vmatmul.mubr.bf16.gmra.mxu0 %v516
  %v1219 = vpop.f32.mrf.mxu0
  %v1220 = vadd.f32 %v1123, %v1219
  %v1221 = vpop.f32.mrf.mxu0
  %v1222 = vpop.f32.mrf.mxu0
  %v1223 = vadd.f32 %v1126, %v1222
  %v1224 = vpop.f32.mrf.mxu0
  %1225 = vmatprep.mubr.bf16.mxu0 %v526
  %1226 = vmatmul.mubr.bf16.gmra.mxu0 %v525
  %v1227 = vpop.f32.mrf.mxu0
  %v1228 = vadd.f32 %v1131, %v1227
  %v1229 = vpop.f32.mrf.mxu0
  %v1230 = vpop.f32.mrf.mxu0
  %v1231 = vadd.f32 %v1134, %v1230
  %v1232 = vpop.f32.mrf.mxu0
  %1233 = vmatprep.mubr.bf16.mxu0 %v535
  %1234 = vmatmul.mubr.bf16.gmra.mxu0 %v534
  %v1235 = vpop.f32.mrf.mxu0
  %v1236 = vadd.f32 %v1139, %v1235
  %v1237 = vpop.f32.mrf.mxu0
  %v1238 = vpop.f32.mrf.mxu0
  %v1239 = vadd.f32 %v1142, %v1238
  %v1240 = vpop.f32.mrf.mxu0
  %1241 = vmatprep.mubr.bf16.mxu0 %v544
  %1242 = vmatmul.mubr.bf16.gmra.mxu0 %v543
  %v1243 = vpop.f32.mrf.mxu0
  %v1244 = vadd.f32 %v1147, %v1243
  %v1245 = vpop.f32.mrf.mxu0
  %v1246 = vpop.f32.mrf.mxu0
  %v1247 = vadd.f32 %v1150, %v1246
  %v1248 = vpop.f32.mrf.mxu0
  %1249 = vmatprep.mubr.bf16.mxu0 %v553
  %1250 = vmatmul.mubr.bf16.gmra.mxu0 %v552
  %v1251 = vpop.f32.mrf.mxu0
  %v1252 = vadd.f32 %v1155, %v1251
  %v1253 = vpop.f32.mrf.mxu0
  %v1254 = vpop.f32.mrf.mxu0
  %v1255 = vadd.f32 %v1158, %v1254
  %v1256 = vpop.f32.mrf.mxu0
  %1257 = vmatprep.mubr.bf16.mxu0 %v562
  %1258 = vmatmul.mubr.bf16.gmra.mxu0 %v561
  %v1259 = vpop.f32.mrf.mxu0
  %v1260 = vadd.f32 %v1163, %v1259
  %v1261 = vpop.f32.mrf.mxu0
  %v1262 = vpop.f32.mrf.mxu0
  %v1263 = vadd.f32 %v1166, %v1262
  %v1264 = vpop.f32.mrf.mxu0
  %1265 = vdwg.mxu0
  %1266 = vmatprep.subr.bf16.mxu0 0
  %1267 = vmatpush1.bf16.msra.mxu0 %v967
  %1268 = vmatprep.subr.bf16.mxu0 0
  %1269 = vmatpush1.bf16.msra.mxu0 %v966
  %1270 = vmatprep.subr.bf16.mxu0 0
  %1271 = vmatpush1.bf16.msra.mxu0 %v965
  %1272 = vmatprep.subr.bf16.mxu0 0
  %1273 = vmatpush1.bf16.msra.mxu0 %v964
  %1274 = vmatprep.subr.bf16.mxu0 0
  %1275 = vmatpush1.bf16.msra.mxu0 %v963
  %1276 = vmatprep.subr.bf16.mxu0 0
  %1277 = vmatpush1.bf16.msra.mxu0 %v962
  %1278 = vmatprep.subr.bf16.mxu0 0
  %1279 = vmatpush1.bf16.msra.mxu0 %v961
  %1280 = vmatprep.subr.bf16.mxu0 0
  %1281 = vmatpush1.bf16.msra.mxu0 %v960
  %1282 = vmatprep.subr.bf16.mxu0 0
  %1283 = vmatpush2.bf16.msra.mxu0 %v975
  %1284 = vmatprep.subr.bf16.mxu0 0
  %1285 = vmatpush2.bf16.msra.mxu0 %v974
  %1286 = vmatprep.subr.bf16.mxu0 0
  %1287 = vmatpush2.bf16.msra.mxu0 %v973
  %1288 = vmatprep.subr.bf16.mxu0 0
  %1289 = vmatpush2.bf16.msra.mxu0 %v972
  %1290 = vmatprep.subr.bf16.mxu0 0
  %1291 = vmatpush2.bf16.msra.mxu0 %v971
  %1292 = vmatprep.subr.bf16.mxu0 0
  %1293 = vmatpush2.bf16.msra.mxu0 %v970
  %1294 = vmatprep.subr.bf16.mxu0 0
  %1295 = vmatpush2.bf16.msra.mxu0 %v969
  %1296 = vmatprep.subr.bf16.mxu0 0
  %1297 = vmatpush2.bf16.msra.mxu0 %v968
  %1298 = vmatprep.mubr.bf16.mxu0 %v501
  %1299 = vmatmul.mubr.bf16.gmra.mxu0 %v500
  %v1300 = vpop.f32.mrf.mxu0
  %v1301 = vadd.f32 %v1204, %v1300
  %v1302 = vpop.f32.mrf.mxu0
  %v1303 = vpop.f32.mrf.mxu0
  %v1304 = vadd.f32 %v1207, %v1303
  %v1305 = vpop.f32.mrf.mxu0
  %1306 = vmatprep.mubr.bf16.mxu0 %v510
  %1307 = vmatmul.mubr.bf16.gmra.mxu0 %v509
  %v1308 = vpop.f32.mrf.mxu0
  %v1309 = vadd.f32 %v1212, %v1308
  %v1310 = vpop.f32.mrf.mxu0
  %v1311 = vpop.f32.mrf.mxu0
  %v1312 = vadd.f32 %v1215, %v1311
  %v1313 = vpop.f32.mrf.mxu0
  %1314 = vmatprep.mubr.bf16.mxu0 %v519
  %1315 = vmatmul.mubr.bf16.gmra.mxu0 %v518
  %v1316 = vpop.f32.mrf.mxu0
  %v1317 = vadd.f32 %v1220, %v1316
  %v1318 = vpop.f32.mrf.mxu0
  %v1319 = vpop.f32.mrf.mxu0
  %v1320 = vadd.f32 %v1223, %v1319
  %v1321 = vpop.f32.mrf.mxu0
  %1322 = vmatprep.mubr.bf16.mxu0 %v528
  %1323 = vmatmul.mubr.bf16.gmra.mxu0 %v527
  %v1324 = vpop.f32.mrf.mxu0
  %v1325 = vadd.f32 %v1228, %v1324
  %v1326 = vpop.f32.mrf.mxu0
  %v1327 = vpop.f32.mrf.mxu0
  %v1328 = vadd.f32 %v1231, %v1327
  %v1329 = vpop.f32.mrf.mxu0
  %1330 = vmatprep.mubr.bf16.mxu0 %v537
  %1331 = vmatmul.mubr.bf16.gmra.mxu0 %v536
  %v1332 = vpop.f32.mrf.mxu0
  %v1333 = vadd.f32 %v1236, %v1332
  %v1334 = vpop.f32.mrf.mxu0
  %v1335 = vpop.f32.mrf.mxu0
  %v1336 = vadd.f32 %v1239, %v1335
  %v1337 = vpop.f32.mrf.mxu0
  %1338 = vmatprep.mubr.bf16.mxu0 %v546
  %1339 = vmatmul.mubr.bf16.gmra.mxu0 %v545
  %v1340 = vpop.f32.mrf.mxu0
  %v1341 = vadd.f32 %v1244, %v1340
  %v1342 = vpop.f32.mrf.mxu0
  %v1343 = vpop.f32.mrf.mxu0
  %v1344 = vadd.f32 %v1247, %v1343
  %v1345 = vpop.f32.mrf.mxu0
  %1346 = vmatprep.mubr.bf16.mxu0 %v555
  %1347 = vmatmul.mubr.bf16.gmra.mxu0 %v554
  %v1348 = vpop.f32.mrf.mxu0
  %v1349 = vadd.f32 %v1252, %v1348
  %v1350 = vpop.f32.mrf.mxu0
  %v1351 = vpop.f32.mrf.mxu0
  %v1352 = vadd.f32 %v1255, %v1351
  %v1353 = vpop.f32.mrf.mxu0
  %1354 = vmatprep.mubr.bf16.mxu0 %v564
  %1355 = vmatmul.mubr.bf16.gmra.mxu0 %v563
  %v1356 = vpop.f32.mrf.mxu0
  %v1357 = vadd.f32 %v1260, %v1356
  %v1358 = vpop.f32.mrf.mxu0
  %v1359 = vpop.f32.mrf.mxu0
  %v1360 = vadd.f32 %v1263, %v1359
  %v1361 = vpop.f32.mrf.mxu0
  %1362 = vdwg.mxu0
  %1363 = vmatprep.subr.bf16.mxu0 0
  %1364 = vmatpush1.bf16.msra.mxu0 %v983
  %1365 = vmatprep.subr.bf16.mxu0 0
  %1366 = vmatpush1.bf16.msra.mxu0 %v982
  %1367 = vmatprep.subr.bf16.mxu0 0
  %1368 = vmatpush1.bf16.msra.mxu0 %v981
  %1369 = vmatprep.subr.bf16.mxu0 0
  %1370 = vmatpush1.bf16.msra.mxu0 %v980
  %1371 = vmatprep.subr.bf16.mxu0 0
  %1372 = vmatpush1.bf16.msra.mxu0 %v979
  %1373 = vmatprep.subr.bf16.mxu0 0
  %1374 = vmatpush1.bf16.msra.mxu0 %v978
  %1375 = vmatprep.subr.bf16.mxu0 0
  %1376 = vmatpush1.bf16.msra.mxu0 %v977
  %1377 = vmatprep.subr.bf16.mxu0 0
  %1378 = vmatpush1.bf16.msra.mxu0 %v976
  %1379 = vmatprep.subr.bf16.mxu0 0
  %1380 = vmatpush2.bf16.msra.mxu0 %v991
  %1381 = vmatprep.subr.bf16.mxu0 0
  %1382 = vmatpush2.bf16.msra.mxu0 %v990
  %1383 = vmatprep.subr.bf16.mxu0 0
  %1384 = vmatpush2.bf16.msra.mxu0 %v989
  %1385 = vmatprep.subr.bf16.mxu0 0
  %1386 = vmatpush2.bf16.msra.mxu0 %v988
  %1387 = vmatprep.subr.bf16.mxu0 0
  %1388 = vmatpush2.bf16.msra.mxu0 %v987
  %1389 = vmatprep.subr.bf16.mxu0 0
  %1390 = vmatpush2.bf16.msra.mxu0 %v986
  %1391 = vmatprep.subr.bf16.mxu0 0
  %1392 = vmatpush2.bf16.msra.mxu0 %v985
  %1393 = vmatprep.subr.bf16.mxu0 0
  %1394 = vmatpush2.bf16.msra.mxu0 %v984
  %1395 = vmatprep.mubr.bf16.mxu0 %v503
  %1396 = vmatmul.mubr.bf16.gmra.mxu0 %v502
  %v1397 = vpop.f32.mrf.mxu0
  %v1398 = vadd.f32 %v1301, %v1397
  %v1399 = vpop.f32.mrf.mxu0
  %v1400 = vpop.f32.mrf.mxu0
  %v1401 = vadd.f32 %v1304, %v1400
  %v1402 = vpop.f32.mrf.mxu0
  %1403 = vmatprep.mubr.bf16.mxu0 %v512
  %1404 = vmatmul.mubr.bf16.gmra.mxu0 %v511
  %v1405 = vpop.f32.mrf.mxu0
  %v1406 = vadd.f32 %v1309, %v1405
  %v1407 = vpop.f32.mrf.mxu0
  %v1408 = vpop.f32.mrf.mxu0
  %v1409 = vadd.f32 %v1312, %v1408
  %v1410 = vpop.f32.mrf.mxu0
  %1411 = vmatprep.mubr.bf16.mxu0 %v521
  %1412 = vmatmul.mubr.bf16.gmra.mxu0 %v520
  %v1413 = vpop.f32.mrf.mxu0
  %v1414 = vadd.f32 %v1317, %v1413
  %v1415 = vpop.f32.mrf.mxu0
  %v1416 = vpop.f32.mrf.mxu0
  %v1417 = vadd.f32 %v1320, %v1416
  %v1418 = vpop.f32.mrf.mxu0
  %1419 = vmatprep.mubr.bf16.mxu0 %v530
  %1420 = vmatmul.mubr.bf16.gmra.mxu0 %v529
  %v1421 = vpop.f32.mrf.mxu0
  %v1422 = vadd.f32 %v1325, %v1421
  %v1423 = vpop.f32.mrf.mxu0
  %v1424 = vpop.f32.mrf.mxu0
  %v1425 = vadd.f32 %v1328, %v1424
  %v1426 = vpop.f32.mrf.mxu0
  %1427 = vmatprep.mubr.bf16.mxu0 %v539
  %1428 = vmatmul.mubr.bf16.gmra.mxu0 %v538
  %v1429 = vpop.f32.mrf.mxu0
  %v1430 = vadd.f32 %v1333, %v1429
  %v1431 = vpop.f32.mrf.mxu0
  %v1432 = vpop.f32.mrf.mxu0
  %v1433 = vadd.f32 %v1336, %v1432
  %v1434 = vpop.f32.mrf.mxu0
  %1435 = vmatprep.mubr.bf16.mxu0 %v548
  %1436 = vmatmul.mubr.bf16.gmra.mxu0 %v547
  %v1437 = vpop.f32.mrf.mxu0
  %v1438 = vadd.f32 %v1341, %v1437
  %v1439 = vpop.f32.mrf.mxu0
  %v1440 = vpop.f32.mrf.mxu0
  %v1441 = vadd.f32 %v1344, %v1440
  %v1442 = vpop.f32.mrf.mxu0
  %1443 = vmatprep.mubr.bf16.mxu0 %v557
  %1444 = vmatmul.mubr.bf16.gmra.mxu0 %v556
  %v1445 = vpop.f32.mrf.mxu0
  %v1446 = vadd.f32 %v1349, %v1445
  %v1447 = vpop.f32.mrf.mxu0
  %v1448 = vpop.f32.mrf.mxu0
  %v1449 = vadd.f32 %v1352, %v1448
  %v1450 = vpop.f32.mrf.mxu0
  %1451 = vmatprep.mubr.bf16.mxu0 %v566
  %1452 = vmatmul.mubr.bf16.gmra.mxu0 %v565
  %v1453 = vpop.f32.mrf.mxu0
  %v1454 = vadd.f32 %v1357, %v1453
  %v1455 = vpop.f32.mrf.mxu0
  %v1456 = vpop.f32.mrf.mxu0
  %v1457 = vadd.f32 %v1360, %v1456
  %v1458 = vpop.f32.mrf.mxu0
  %1459 = vdwg.mxu0
  %1460 = vmatprep.subr.bf16.mxu0 0
  %1461 = vmatpush1.bf16.msra.mxu0 %v999
  %1462 = vmatprep.subr.bf16.mxu0 0
  %1463 = vmatpush1.bf16.msra.mxu0 %v998
  %1464 = vmatprep.subr.bf16.mxu0 0
  %1465 = vmatpush1.bf16.msra.mxu0 %v997
  %1466 = vmatprep.subr.bf16.mxu0 0
  %1467 = vmatpush1.bf16.msra.mxu0 %v996
  %1468 = vmatprep.subr.bf16.mxu0 0
  %1469 = vmatpush1.bf16.msra.mxu0 %v995
  %1470 = vmatprep.subr.bf16.mxu0 0
  %1471 = vmatpush1.bf16.msra.mxu0 %v994
  %1472 = vmatprep.subr.bf16.mxu0 0
  %1473 = vmatpush1.bf16.msra.mxu0 %v993
  %1474 = vmatprep.subr.bf16.mxu0 0
  %1475 = vmatpush1.bf16.msra.mxu0 %v992
  %1476 = vmatprep.subr.bf16.mxu0 0
  %1477 = vmatpush2.bf16.msra.mxu0 0
  %1478 = vmatprep.subr.bf16.mxu0 0
  %1479 = vmatpush2.bf16.msra.mxu0 0
  %1480 = vmatprep.subr.bf16.mxu0 0
  %1481 = vmatpush2.bf16.msra.mxu0 0
  %1482 = vmatprep.subr.bf16.mxu0 0
  %1483 = vmatpush2.bf16.msra.mxu0 0
  %1484 = vmatprep.subr.bf16.mxu0 0
  %1485 = vmatpush2.bf16.msra.mxu0 0
  %1486 = vmatprep.subr.bf16.mxu0 0
  %1487 = vmatpush2.bf16.msra.mxu0 0
  %1488 = vmatprep.subr.bf16.mxu0 0
  %1489 = vmatpush2.bf16.msra.mxu0 0
  %1490 = vmatprep.subr.bf16.mxu0 0
  %1491 = vmatpush2.bf16.msra.mxu0 0
  %1492 = vmatprep.mubr.bf16.mxu0 0
  %1493 = vmatmul.mubr.bf16.gmra.mxu0 %v504
  %v1494 = vpop.f32.mrf.mxu0
  %v1495 = vadd.f32 %v1398, %v1494
  %v1496 = vpop.f32.mrf.mxu0
  %v1497 = vpop.f32.mrf.mxu0
  %v1498 = vadd.f32 %v1401, %v1497
  %v1499 = vpop.f32.mrf.mxu0
  %1500 = vmatprep.mubr.bf16.mxu0 0
  %1501 = vmatmul.mubr.bf16.gmra.mxu0 %v513
  %v1502 = vpop.f32.mrf.mxu0
  %v1503 = vadd.f32 %v1406, %v1502
  %v1504 = vpop.f32.mrf.mxu0
  %v1505 = vpop.f32.mrf.mxu0
  %v1506 = vadd.f32 %v1409, %v1505
  %v1507 = vpop.f32.mrf.mxu0
  %1508 = vmatprep.mubr.bf16.mxu0 0
  %1509 = vmatmul.mubr.bf16.gmra.mxu0 %v522
  %v1510 = vpop.f32.mrf.mxu0
  %v1511 = vadd.f32 %v1414, %v1510
  %v1512 = vpop.f32.mrf.mxu0
  %v1513 = vpop.f32.mrf.mxu0
  %v1514 = vadd.f32 %v1417, %v1513
  %v1515 = vpop.f32.mrf.mxu0
  %1516 = vmatprep.mubr.bf16.mxu0 0
  %1517 = vmatmul.mubr.bf16.gmra.mxu0 %v531
  %v1518 = vpop.f32.mrf.mxu0
  %v1519 = vadd.f32 %v1422, %v1518
  %v1520 = vpop.f32.mrf.mxu0
  %v1521 = vpop.f32.mrf.mxu0
  %v1522 = vadd.f32 %v1425, %v1521
  %v1523 = vpop.f32.mrf.mxu0
  %1524 = vmatprep.mubr.bf16.mxu0 0
  %1525 = vmatmul.mubr.bf16.gmra.mxu0 %v540
  %v1526 = vpop.f32.mrf.mxu0
  %v1527 = vadd.f32 %v1430, %v1526
  %v1528 = vpop.f32.mrf.mxu0
  %v1529 = vpop.f32.mrf.mxu0
  %v1530 = vadd.f32 %v1433, %v1529
  %v1531 = vpop.f32.mrf.mxu0
  %1532 = vmatprep.mubr.bf16.mxu0 0
  %1533 = vmatmul.mubr.bf16.gmra.mxu0 %v549
  %v1534 = vpop.f32.mrf.mxu0
  %v1535 = vadd.f32 %v1438, %v1534
  %v1536 = vpop.f32.mrf.mxu0
  %v1537 = vpop.f32.mrf.mxu0
  %v1538 = vadd.f32 %v1441, %v1537
  %v1539 = vpop.f32.mrf.mxu0
  %1540 = vmatprep.mubr.bf16.mxu0 0
  %1541 = vmatmul.mubr.bf16.gmra.mxu0 %v558
  %v1542 = vpop.f32.mrf.mxu0
  %v1543 = vadd.f32 %v1446, %v1542
  %v1544 = vpop.f32.mrf.mxu0
  %v1545 = vpop.f32.mrf.mxu0
  %v1546 = vadd.f32 %v1449, %v1545
  %v1547 = vpop.f32.mrf.mxu0
  %1548 = vmatprep.mubr.bf16.mxu0 0
  %1549 = vmatmul.mubr.bf16.gmra.mxu0 %v567
  %v1550 = vpop.f32.mrf.mxu0
  %v1551 = vadd.f32 %v1454, %v1550
  %v1552 = vpop.f32.mrf.mxu0
  %v1553 = vpop.f32.mrf.mxu0
  %v1554 = vadd.f32 %v1457, %v1553
  %v1555 = vpop.f32.mrf.mxu0
  %1556 = vdwg.mxu0
  %v1557 = vadd.f32 %v32, %v1495
  %v1558 = vadd.f32 %v33, %v1498
  %v1559 = vadd.f32 %v34, %v1503
  %v1560 = vadd.f32 %v35, %v1506
  %v1561 = vadd.f32 %v36, %v1511
  %v1562 = vadd.f32 %v37, %v1514
  %v1563 = vadd.f32 %v38, %v1519
  %v1564 = vadd.f32 %v39, %v1522
  %v1565 = vadd.f32 %v40, %v1527
  %v1566 = vadd.f32 %v41, %v1530
  %v1567 = vadd.f32 %v42, %v1535
  %v1568 = vadd.f32 %v43, %v1538
  %v1569 = vadd.f32 %v44, %v1543
  %v1570 = vadd.f32 %v45, %v1546
  %v1571 = vadd.f32 %v46, %v1551
  %v1572 = vadd.f32 %v47, %v1554
  %1573 = vst [vmem:[#allocation2] sm:$0xff] %v1557
  %1574 = vst [vmem:[#allocation2 + $0x8] sm:$0xff] %v1558
  %1575 = vst [vmem:[#allocation2 + $0x10] sm:$0xff] %v1559
  %1576 = vst [vmem:[#allocation2 + $0x18] sm:$0xff] %v1560
  %1577 = vst [vmem:[#allocation2 + $0x20] sm:$0xff] %v1561
  %1578 = vst [vmem:[#allocation2 + $0x28] sm:$0xff] %v1562
  %1579 = vst [vmem:[#allocation2 + $0x30] sm:$0xff] %v1563
  %1580 = vst [vmem:[#allocation2 + $0x38] sm:$0xff] %v1564
  %1581 = vst [vmem:[#allocation2 + $0x40] sm:$0xff] %v1565
  %1582 = vst [vmem:[#allocation2 + $0x48] sm:$0xff] %v1566
  %1583 = vst [vmem:[#allocation2 + $0x50] sm:$0xff] %v1567
  %1584 = vst [vmem:[#allocation2 + $0x58] sm:$0xff] %v1568
  %1585 = vst [vmem:[#allocation2 + $0x60] sm:$0xff] %v1569
  %1586 = vst [vmem:[#allocation2 + $0x68] sm:$0xff] %v1570
  %1587 = vst [vmem:[#allocation2 + $0x70] sm:$0xff] %v1571
  %1588 = vst [vmem:[#allocation2 + $0x78] sm:$0xff] %v1572
  // Predicated region
  $region14: #{res_encoder_forward.23} parent=0 // pred_check
    %p1589 = pneg %p12
  $region15: #{res_encoder_forward.23} parent=0 // pred_check_branch
    %1591 = sbr.rel (%p1589) target = $region17
  $region16: #{res_encoder_forward.23} parent=0 // pred_region
    %v1592 = vld [vmem:[#allocation2] sm:$0xff]
    %v1593 = vld [vmem:[#allocation2 + $0x8] sm:$0xff]
    %v1594 = vld [vmem:[#allocation2 + $0x10] sm:$0xff]
    %v1595 = vld [vmem:[#allocation2 + $0x18] sm:$0xff]
    %v1596 = vld [vmem:[#allocation2 + $0x20] sm:$0xff]
    %v1597 = vld [vmem:[#allocation2 + $0x28] sm:$0xff]
    %v1598 = vld [vmem:[#allocation2 + $0x30] sm:$0xff]
    %v1599 = vld [vmem:[#allocation2 + $0x38] sm:$0xff]
    %v1600 = vld [vmem:[#allocation2 + $0x40] sm:$0xff]
    %v1601 = vld [vmem:[#allocation2 + $0x48] sm:$0xff]
    %v1602 = vld [vmem:[#allocation2 + $0x50] sm:$0xff]
    %v1603 = vld [vmem:[#allocation2 + $0x58] sm:$0xff]
    %v1604 = vld [vmem:[#allocation2 + $0x60] sm:$0xff]
    %v1605 = vld [vmem:[#allocation2 + $0x68] sm:$0xff]
    %v1606 = vld [vmem:[#allocation2 + $0x70] sm:$0xff]
    %v1607 = vld [vmem:[#allocation2 + $0x78] sm:$0xff]
    %1608 = vst [vmem:[%s2] sm:$0xff] %v1592
    %1609 = vst [vmem:[%s2 + $0x8] sm:$0xff] %v1593
    %1610 = vst [vmem:[%s2 + $0x10] sm:$0xff] %v1594
    %1611 = vst [vmem:[%s2 + $0x18] sm:$0xff] %v1595
    %1612 = vst [vmem:[%s2 + $0x20] sm:$0xff] %v1596
    %1613 = vst [vmem:[%s2 + $0x28] sm:$0xff] %v1597
    %1614 = vst [vmem:[%s2 + $0x30] sm:$0xff] %v1598
    %1615 = vst [vmem:[%s2 + $0x38] sm:$0xff] %v1599
    %1616 = vst [vmem:[%s2 + $0x40] sm:$0xff] %v1600
    %1617 = vst [vmem:[%s2 + $0x48] sm:$0xff] %v1601
    %1618 = vst [vmem:[%s2 + $0x50] sm:$0xff] %v1602
    %1619 = vst [vmem:[%s2 + $0x58] sm:$0xff] %v1603
    %1620 = vst [vmem:[%s2 + $0x60] sm:$0xff] %v1604
    %1621 = vst [vmem:[%s2 + $0x68] sm:$0xff] %v1605
    %1622 = vst [vmem:[%s2 + $0x70] sm:$0xff] %v1606
    %1623 = vst [vmem:[%s2 + $0x78] sm:$0xff] %v1607
  $region17: #{res_encoder_forward.23} parent=0 // pred_fallthru
    _
  // Predicated region
  $region18: #{res_encoder_forward.23} parent=0 // pred_check
    _
  $region19: #{res_encoder_forward.23} parent=0 // pred_check_branch
    %1625 = sbr.rel (0) target = $region21
  $region20: #{res_encoder_forward.23} parent=0 // pred_region
    _
  $region21: #{res_encoder_forward.23} parent=0 // pred_fallthru
    _
  // Predicated region
  $region22: #{res_encoder_forward.23} parent=0 // pred_check
    _
  $region23: #{res_encoder_forward.23} parent=0 // pred_check_branch
    %1627 = sbr.rel (0) target = $region25
  $region24: #{res_encoder_forward.23} parent=0 // pred_region
    _
  $region25: #{res_encoder_forward.23} parent=0 // pred_fallthru
    _

// kernel: res_encoder_forward.27
$region0: #{res_encoder_forward.27}
  #allocation0 [shape = 'u32[]', space=smem, size = 0x4, offset = 0x4, fixed_abs, tag = 'smem constant byte address 0x4 - core index']
  #allocation1 [shape = 'u32[144,128]{1,0:T(1,128)}', space=vmem, size = 0x12000, scoped, tag = 'internal scratch']
  %s0 = inlined_call_operand.vmem [shape: f32[32,256], index: 0, kind: input, shape index: {}]
  %s1 = inlined_call_operand.vmem [shape: f32[1,256], index: 1, kind: input, shape index: {}]
  %s2 = inlined_call_operand.vmem [shape: f32[1,256], index: 2, kind: input, shape index: {}]
  %s3 = inlined_call_operand.vmem [shape: f32[32,256], index: 3, kind: output, shape index: {}]
  %s4 = sld [smem:[#allocation0]]
  $region22: #{res_encoder_forward.27} parent=0
    _
  %s6 = ssub.s32 1, %s4
  %s7 = scalar_select 0, %s6, %s4
  // Predicated region
  $region2: #{res_encoder_forward.27} parent=0 // pred_check
    _
  $region3: #{res_encoder_forward.27} parent=0 // pred_check_branch
    %9 = sbr.rel (0) target = $region5
  $region4: #{res_encoder_forward.27} parent=0 // pred_region
    _
  $region5: #{res_encoder_forward.27} parent=0 // pred_fallthru
    _
  // Predicated region
  $region6: #{res_encoder_forward.27} parent=0 // pred_check
    _
  $region7: #{res_encoder_forward.27} parent=0 // pred_check_branch
    %11 = sbr.rel (0) target = $region9
  $region8: #{res_encoder_forward.27} parent=0 // pred_region
    _
  $region9: #{res_encoder_forward.27} parent=0 // pred_fallthru
    _
  // Predicated region
  $region10: #{res_encoder_forward.27} parent=0 // pred_check
    _
  $region11: #{res_encoder_forward.27} parent=0 // pred_check_branch
    %13 = sbr.rel (0) target = $region13
  $region12: #{res_encoder_forward.27} parent=0 // pred_region
    _
  $region13: #{res_encoder_forward.27} parent=0 // pred_fallthru
    _
  %v14 = vld [vmem:[%s0] sm:$0xff]
  %v15 = vld [vmem:[%s0 + $0x8] sm:$0xff]
  %v16 = vld [vmem:[%s0 + $0x10] sm:$0xff]
  %v17 = vld [vmem:[%s0 + $0x18] sm:$0xff]
  %v18 = vld [vmem:[%s0 + $0x20] sm:$0xff]
  %v19 = vld [vmem:[%s0 + $0x28] sm:$0xff]
  %v20 = vld [vmem:[%s0 + $0x30] sm:$0xff]
  %v21 = vld [vmem:[%s0 + $0x38] sm:$0xff]
  %v22 = vld [vmem:[%s1] sm:$0x3]
  %v24 = vlaneseq
  %v25 = vshrl.u32 %v24, 7
  %v26 = vsub.s32 0, %v25
  %v27 = vrot.slane %v22, %v26
  %v28 = vlaneseq
  %v29 = vshrl.u32 %v28, 7
  %v30 = vsub.s32 1, %v29
  %v31 = vrot.slane %v22, %v30
  %v34 = vmul.f32 %v14, %v27
  %v35 = vmul.f32 %v15, %v31
  %v36 = vmul.f32 %v16, %v27
  %v37 = vmul.f32 %v17, %v31
  %v38 = vmul.f32 %v18, %v27
  %v39 = vmul.f32 %v19, %v31
  %v40 = vmul.f32 %v20, %v27
  %v41 = vmul.f32 %v21, %v31
  %v42 = vld [vmem:[%s2] sm:$0x3]
  %v44 = vlaneseq
  %v45 = vshrl.u32 %v44, 7
  %v46 = vsub.s32 0, %v45
  %v47 = vrot.slane %v42, %v46
  %v48 = vlaneseq
  %v49 = vshrl.u32 %v48, 7
  %v50 = vsub.s32 1, %v49
  %v51 = vrot.slane %v42, %v50
  %v54 = vadd.f32 %v34, %v47
  %v55 = vadd.f32 %v35, %v51
  %v56 = vadd.f32 %v36, %v47
  %v57 = vadd.f32 %v37, %v51
  %v58 = vadd.f32 %v38, %v47
  %v59 = vadd.f32 %v39, %v51
  %v60 = vadd.f32 %v40, %v47
  %v61 = vadd.f32 %v41, %v51
  %vm62 = vcmp.ge.f32.partialorder %v54, 0.0
  %vm63 = vcmp.ge.f32.partialorder %v55, 0.0
  %vm64 = vcmp.ge.f32.partialorder %v56, 0.0
  %vm65 = vcmp.ge.f32.partialorder %v57, 0.0
  %vm66 = vcmp.ge.f32.partialorder %v58, 0.0
  %vm67 = vcmp.ge.f32.partialorder %v59, 0.0
  %vm68 = vcmp.ge.f32.partialorder %v60, 0.0
  %vm69 = vcmp.ge.f32.partialorder %v61, 0.0
  %v70 = vmul.f32 %v54, 0.1
  %v71 = vmul.f32 %v55, 0.1
  %v72 = vmul.f32 %v56, 0.1
  %v73 = vmul.f32 %v57, 0.1
  %v74 = vmul.f32 %v58, 0.1
  %v75 = vmul.f32 %v59, 0.1
  %v76 = vmul.f32 %v60, 0.1
  %v77 = vmul.f32 %v61, 0.1
  %v78 = vsel %vm62, %v54, %v70
  %v79 = vsel %vm63, %v55, %v71
  %v80 = vsel %vm64, %v56, %v72
  %v81 = vsel %vm65, %v57, %v73
  %v82 = vsel %vm66, %v58, %v74
  %v83 = vsel %vm67, %v59, %v75
  %v84 = vsel %vm68, %v60, %v76
  %v85 = vsel %vm69, %v61, %v77
  %86 = vst [vmem:[%s3] sm:$0xff] %v78
  %87 = vst [vmem:[%s3 + $0x8] sm:$0xff] %v79
  %88 = vst [vmem:[%s3 + $0x10] sm:$0xff] %v80
  %89 = vst [vmem:[%s3 + $0x18] sm:$0xff] %v81
  %90 = vst [vmem:[%s3 + $0x20] sm:$0xff] %v82
  %91 = vst [vmem:[%s3 + $0x28] sm:$0xff] %v83
  %92 = vst [vmem:[%s3 + $0x30] sm:$0xff] %v84
  %93 = vst [vmem:[%s3 + $0x38] sm:$0xff] %v85
  // Predicated region
  $region14: #{res_encoder_forward.27} parent=0 // pred_check
    _
  $region15: #{res_encoder_forward.27} parent=0 // pred_check_branch
    %95 = sbr.rel (0) target = $region17
  $region16: #{res_encoder_forward.27} parent=0 // pred_region
    _
  $region17: #{res_encoder_forward.27} parent=0 // pred_fallthru
    _
  // Predicated region
  $region18: #{res_encoder_forward.27} parent=0 // pred_check
    _
  $region19: #{res_encoder_forward.27} parent=0 // pred_check_branch
    %97 = sbr.rel (0) target = $region21
  $region20: #{res_encoder_forward.27} parent=0 // pred_region
    _
  $region21: #{res_encoder_forward.27} parent=0 // pred_fallthru
    _

// kernel: res_encoder_forward.30
$region0: #{res_encoder_forward.30}
  #allocation0 [shape = 'u32[]', space=smem, size = 0x4, offset = 0x4, fixed_abs, tag = 'smem constant byte address 0x4 - core index']
  #allocation1 [shape = 'u32[144,128]{1,0:T(1,128)}', space=vmem, size = 0x12000, scoped, tag = 'internal scratch']
  %s0 = inlined_call_operand.vmem [shape: f32[32,256], index: 0, kind: input, shape index: {}]
  %s1 = inlined_call_operand.vmem [shape: f32[1,256], index: 1, kind: input, shape index: {}]
  %s2 = inlined_call_operand.vmem [shape: f32[1,256], index: 2, kind: input, shape index: {}]
  %s3 = inlined_call_operand.vmem [shape: f32[32,256], index: 3, kind: input, shape index: {}]
  %s4 = inlined_call_operand.vmem [shape: f32[1,256], index: 4, kind: input, shape index: {}]
  %s5 = inlined_call_operand.vmem [shape: f32[1,256], index: 5, kind: input, shape index: {}]
  %s6 = inlined_call_operand.vmem [shape: f32[32,256], index: 6, kind: output, shape index: {}]
  %s7 = sld [smem:[#allocation0]]
  $region34: #{res_encoder_forward.30} parent=0
    _
  %s9 = ssub.s32 1, %s7
  %s10 = scalar_select 0, %s9, %s7
  // Predicated region
  $region2: #{res_encoder_forward.30} parent=0 // pred_check
    _
  $region3: #{res_encoder_forward.30} parent=0 // pred_check_branch
    %12 = sbr.rel (0) target = $region5
  $region4: #{res_encoder_forward.30} parent=0 // pred_region
    _
  $region5: #{res_encoder_forward.30} parent=0 // pred_fallthru
    _
  // Predicated region
  $region6: #{res_encoder_forward.30} parent=0 // pred_check
    _
  $region7: #{res_encoder_forward.30} parent=0 // pred_check_branch
    %14 = sbr.rel (0) target = $region9
  $region8: #{res_encoder_forward.30} parent=0 // pred_region
    _
  $region9: #{res_encoder_forward.30} parent=0 // pred_fallthru
    _
  // Predicated region
  $region10: #{res_encoder_forward.30} parent=0 // pred_check
    _
  $region11: #{res_encoder_forward.30} parent=0 // pred_check_branch
    %16 = sbr.rel (0) target = $region13
  $region12: #{res_encoder_forward.30} parent=0 // pred_region
    _
  $region13: #{res_encoder_forward.30} parent=0 // pred_fallthru
    _
  // Predicated region
  $region14: #{res_encoder_forward.30} parent=0 // pred_check
    _
  $region15: #{res_encoder_forward.30} parent=0 // pred_check_branch
    %18 = sbr.rel (0) target = $region17
  $region16: #{res_encoder_forward.30} parent=0 // pred_region
    _
  $region17: #{res_encoder_forward.30} parent=0 // pred_fallthru
    _
  // Predicated region
  $region18: #{res_encoder_forward.30} parent=0 // pred_check
    _
  $region19: #{res_encoder_forward.30} parent=0 // pred_check_branch
    %20 = sbr.rel (0) target = $region21
  $region20: #{res_encoder_forward.30} parent=0 // pred_region
    _
  $region21: #{res_encoder_forward.30} parent=0 // pred_fallthru
    _
  // Predicated region
  $region22: #{res_encoder_forward.30} parent=0 // pred_check
    _
  $region23: #{res_encoder_forward.30} parent=0 // pred_check_branch
    %22 = sbr.rel (0) target = $region25
  $region24: #{res_encoder_forward.30} parent=0 // pred_region
    _
  $region25: #{res_encoder_forward.30} parent=0 // pred_fallthru
    _
  %v23 = vld [vmem:[%s0] sm:$0xff]
  %v24 = vld [vmem:[%s0 + $0x8] sm:$0xff]
  %v25 = vld [vmem:[%s0 + $0x10] sm:$0xff]
  %v26 = vld [vmem:[%s0 + $0x18] sm:$0xff]
  %v27 = vld [vmem:[%s0 + $0x20] sm:$0xff]
  %v28 = vld [vmem:[%s0 + $0x28] sm:$0xff]
  %v29 = vld [vmem:[%s0 + $0x30] sm:$0xff]
  %v30 = vld [vmem:[%s0 + $0x38] sm:$0xff]
  %v31 = vld [vmem:[%s1] sm:$0x3]
  %v33 = vlaneseq
  %v34 = vshrl.u32 %v33, 7
  %v35 = vsub.s32 0, %v34
  %v36 = vrot.slane %v31, %v35
  %v37 = vlaneseq
  %v38 = vshrl.u32 %v37, 7
  %v39 = vsub.s32 1, %v38
  %v40 = vrot.slane %v31, %v39
  %v43 = vmul.f32 %v23, %v36
  %v44 = vmul.f32 %v24, %v40
  %v45 = vmul.f32 %v25, %v36
  %v46 = vmul.f32 %v26, %v40
  %v47 = vmul.f32 %v27, %v36
  %v48 = vmul.f32 %v28, %v40
  %v49 = vmul.f32 %v29, %v36
  %v50 = vmul.f32 %v30, %v40
  %v51 = vld [vmem:[%s2] sm:$0x3]
  %v53 = vlaneseq
  %v54 = vshrl.u32 %v53, 7
  %v55 = vsub.s32 0, %v54
  %v56 = vrot.slane %v51, %v55
  %v57 = vlaneseq
  %v58 = vshrl.u32 %v57, 7
  %v59 = vsub.s32 1, %v58
  %v60 = vrot.slane %v51, %v59
  %v63 = vadd.f32 %v43, %v56
  %v64 = vadd.f32 %v44, %v60
  %v65 = vadd.f32 %v45, %v56
  %v66 = vadd.f32 %v46, %v60
  %v67 = vadd.f32 %v47, %v56
  %v68 = vadd.f32 %v48, %v60
  %v69 = vadd.f32 %v49, %v56
  %v70 = vadd.f32 %v50, %v60
  %v71 = vld [vmem:[%s3] sm:$0xff]
  %v72 = vld [vmem:[%s3 + $0x8] sm:$0xff]
  %v73 = vld [vmem:[%s3 + $0x10] sm:$0xff]
  %v74 = vld [vmem:[%s3 + $0x18] sm:$0xff]
  %v75 = vld [vmem:[%s3 + $0x20] sm:$0xff]
  %v76 = vld [vmem:[%s3 + $0x28] sm:$0xff]
  %v77 = vld [vmem:[%s3 + $0x30] sm:$0xff]
  %v78 = vld [vmem:[%s3 + $0x38] sm:$0xff]
  %v79 = vld [vmem:[%s4] sm:$0x3]
  %v81 = vlaneseq
  %v82 = vshrl.u32 %v81, 7
  %v83 = vsub.s32 0, %v82
  %v84 = vrot.slane %v79, %v83
  %v85 = vlaneseq
  %v86 = vshrl.u32 %v85, 7
  %v87 = vsub.s32 1, %v86
  %v88 = vrot.slane %v79, %v87
  %v91 = vmul.f32 %v71, %v84
  %v92 = vmul.f32 %v72, %v88
  %v93 = vmul.f32 %v73, %v84
  %v94 = vmul.f32 %v74, %v88
  %v95 = vmul.f32 %v75, %v84
  %v96 = vmul.f32 %v76, %v88
  %v97 = vmul.f32 %v77, %v84
  %v98 = vmul.f32 %v78, %v88
  %v99 = vadd.f32 %v63, %v91
  %v100 = vadd.f32 %v64, %v92
  %v101 = vadd.f32 %v65, %v93
  %v102 = vadd.f32 %v66, %v94
  %v103 = vadd.f32 %v67, %v95
  %v104 = vadd.f32 %v68, %v96
  %v105 = vadd.f32 %v69, %v97
  %v106 = vadd.f32 %v70, %v98
  %v107 = vld [vmem:[%s5] sm:$0x3]
  %v109 = vlaneseq
  %v110 = vshrl.u32 %v109, 7
  %v111 = vsub.s32 0, %v110
  %v112 = vrot.slane %v107, %v111
  %v113 = vlaneseq
  %v114 = vshrl.u32 %v113, 7
  %v115 = vsub.s32 1, %v114
  %v116 = vrot.slane %v107, %v115
  %v119 = vadd.f32 %v99, %v112
  %v120 = vadd.f32 %v100, %v116
  %v121 = vadd.f32 %v101, %v112
  %v122 = vadd.f32 %v102, %v116
  %v123 = vadd.f32 %v103, %v112
  %v124 = vadd.f32 %v104, %v116
  %v125 = vadd.f32 %v105, %v112
  %v126 = vadd.f32 %v106, %v116
  %vm127 = vcmp.ge.f32.partialorder %v119, 0.0
  %vm128 = vcmp.ge.f32.partialorder %v120, 0.0
  %vm129 = vcmp.ge.f32.partialorder %v121, 0.0
  %vm130 = vcmp.ge.f32.partialorder %v122, 0.0
  %vm131 = vcmp.ge.f32.partialorder %v123, 0.0
  %vm132 = vcmp.ge.f32.partialorder %v124, 0.0
  %vm133 = vcmp.ge.f32.partialorder %v125, 0.0
  %vm134 = vcmp.ge.f32.partialorder %v126, 0.0
  %v135 = vmul.f32 %v119, 0.1
  %v136 = vmul.f32 %v120, 0.1
  %v137 = vmul.f32 %v121, 0.1
  %v138 = vmul.f32 %v122, 0.1
  %v139 = vmul.f32 %v123, 0.1
  %v140 = vmul.f32 %v124, 0.1
  %v141 = vmul.f32 %v125, 0.1
  %v142 = vmul.f32 %v126, 0.1
  %v143 = vsel %vm127, %v119, %v135
  %v144 = vsel %vm128, %v120, %v136
  %v145 = vsel %vm129, %v121, %v137
  %v146 = vsel %vm130, %v122, %v138
  %v147 = vsel %vm131, %v123, %v139
  %v148 = vsel %vm132, %v124, %v140
  %v149 = vsel %vm133, %v125, %v141
  %v150 = vsel %vm134, %v126, %v142
  %151 = vst [vmem:[%s6] sm:$0xff] %v143
  %152 = vst [vmem:[%s6 + $0x8] sm:$0xff] %v144
  %153 = vst [vmem:[%s6 + $0x10] sm:$0xff] %v145
  %154 = vst [vmem:[%s6 + $0x18] sm:$0xff] %v146
  %155 = vst [vmem:[%s6 + $0x20] sm:$0xff] %v147
  %156 = vst [vmem:[%s6 + $0x28] sm:$0xff] %v148
  %157 = vst [vmem:[%s6 + $0x30] sm:$0xff] %v149
  %158 = vst [vmem:[%s6 + $0x38] sm:$0xff] %v150
  // Predicated region
  $region26: #{res_encoder_forward.30} parent=0 // pred_check
    _
  $region27: #{res_encoder_forward.30} parent=0 // pred_check_branch
    %160 = sbr.rel (0) target = $region29
  $region28: #{res_encoder_forward.30} parent=0 // pred_region
    _
  $region29: #{res_encoder_forward.30} parent=0 // pred_fallthru
    _
  // Predicated region
  $region30: #{res_encoder_forward.30} parent=0 // pred_check
    _
  $region31: #{res_encoder_forward.30} parent=0 // pred_check_branch
    %162 = sbr.rel (0) target = $region33
  $region32: #{res_encoder_forward.30} parent=0 // pred_region
    _
  $region33: #{res_encoder_forward.30} parent=0 // pred_fallthru
    _

// kernel: res_encoder_forward.26
$region0: #{res_encoder_forward.26}
  #allocation0 [shape = 'u32[]', space=smem, size = 0x4, offset = 0x4, fixed_abs, tag = 'smem constant byte address 0x4 - core index']
  #allocation1 [shape = 'u32[144,128]{1,0:T(1,128)}', space=vmem, size = 0x12000, scoped, tag = 'internal scratch']
  #allocation2 [shape = 'f32[32,256]{1,0:T(8,128)}', space=vmem, size = 0x8000, scoped, tag = 'scratch operand']
  %s0 = inlined_call_operand.vmem [shape: bf16[32,1152], index: 0, kind: input, shape index: {}]
  %s1 = inlined_call_operand.vmem [shape: bf16[1152,256], index: 1, kind: input, shape index: {}]
  %s2 = inlined_call_operand.vmem [shape: f32[32,256], index: 2, kind: output, shape index: {}]
  %s3 = sld [smem:[#allocation0]]
  $region26: #{res_encoder_forward.26} parent=0
    _
  %s5 = ssub.s32 1, %s3
  %s6 = scalar_select 0, %s5, %s3
  // Predicated region
  $region2: #{res_encoder_forward.26} parent=0 // pred_check
    _
  $region3: #{res_encoder_forward.26} parent=0 // pred_check_branch
    %8 = sbr.rel (0) target = $region5
  $region4: #{res_encoder_forward.26} parent=0 // pred_region
    _
  $region5: #{res_encoder_forward.26} parent=0 // pred_fallthru
    _
  // Predicated region
  $region6: #{res_encoder_forward.26} parent=0 // pred_check
    _
  $region7: #{res_encoder_forward.26} parent=0 // pred_check_branch
    %10 = sbr.rel (0) target = $region9
  $region8: #{res_encoder_forward.26} parent=0 // pred_region
    _
  $region9: #{res_encoder_forward.26} parent=0 // pred_fallthru
    _
  %p12 = scmp.eq.s32.totalorder 0, 0
  // Predicated region
  $region10: #{res_encoder_forward.26} parent=0 // pred_check
    %p13 = pneg %p12
  $region11: #{res_encoder_forward.26} parent=0 // pred_check_branch
    %15 = sbr.rel (%p13) target = $region13
  $region12: #{res_encoder_forward.26} parent=0 // pred_region
    %16 = vst [vmem:[#allocation2] sm:$0xff] 0.0
    %17 = vst [vmem:[#allocation2 + $0x8] sm:$0xff] 0.0
    %18 = vst [vmem:[#allocation2 + $0x10] sm:$0xff] 0.0
    %19 = vst [vmem:[#allocation2 + $0x18] sm:$0xff] 0.0
    %20 = vst [vmem:[#allocation2 + $0x20] sm:$0xff] 0.0
    %21 = vst [vmem:[#allocation2 + $0x28] sm:$0xff] 0.0
    %22 = vst [vmem:[#allocation2 + $0x30] sm:$0xff] 0.0
    %23 = vst [vmem:[#allocation2 + $0x38] sm:$0xff] 0.0
  $region13: #{res_encoder_forward.26} parent=0 // pred_fallthru
    _
  %v24 = vld [vmem:[#allocation2] sm:$0xff]
  %v25 = vld [vmem:[#allocation2 + $0x8] sm:$0xff]
  %v26 = vld [vmem:[#allocation2 + $0x10] sm:$0xff]
  %v27 = vld [vmem:[#allocation2 + $0x18] sm:$0xff]
  %v28 = vld [vmem:[#allocation2 + $0x20] sm:$0xff]
  %v29 = vld [vmem:[#allocation2 + $0x28] sm:$0xff]
  %v30 = vld [vmem:[#allocation2 + $0x30] sm:$0xff]
  %v31 = vld [vmem:[#allocation2 + $0x38] sm:$0xff]
  %v32 = vld [vmem:[%s0] sm:$0xff]
  %v33 = vld [vmem:[%s0 + $0x8] sm:$0xff]
  %v34 = vld [vmem:[%s0 + $0x10] sm:$0xff]
  %v35 = vld [vmem:[%s0 + $0x18] sm:$0xff]
  %v36 = vld [vmem:[%s0 + $0x20] sm:$0xf]
  %v37 = vld [vmem:[%s0 + $0x24] sm:$0xff]
  %v38 = vld [vmem:[%s0 + $0x2c] sm:$0xff]
  %v39 = vld [vmem:[%s0 + $0x34] sm:$0xff]
  %v40 = vld [vmem:[%s0 + $0x3c] sm:$0xff]
  %v41 = vld [vmem:[%s0 + $0x44] sm:$0xf]
  %v42 = vld [vmem:[%s0 + $0x48] sm:$0xff]
  %v43 = vld [vmem:[%s0 + $0x50] sm:$0xff]
  %v44 = vld [vmem:[%s0 + $0x58] sm:$0xff]
  %v45 = vld [vmem:[%s0 + $0x60] sm:$0xff]
  %v46 = vld [vmem:[%s0 + $0x68] sm:$0xf]
  %v47 = vld [vmem:[%s0 + $0x6c] sm:$0xff]
  %v48 = vld [vmem:[%s0 + $0x74] sm:$0xff]
  %v49 = vld [vmem:[%s0 + $0x7c] sm:$0xff]
  %v50 = vld [vmem:[%s0 + $0x84] sm:$0xff]
  %v51 = vld [vmem:[%s0 + $0x8c] sm:$0xf]
  %v52 = vld [vmem:[%s1] sm:$0xff]
  %v53 = vld [vmem:[%s1 + $0x8] sm:$0xff]
  %v54 = vld [vmem:[%s1 + $0x10] sm:$0xff]
  %v55 = vld [vmem:[%s1 + $0x18] sm:$0xff]
  %v56 = vld [vmem:[%s1 + $0x20] sm:$0xff]
  %v57 = vld [vmem:[%s1 + $0x28] sm:$0xff]
  %v58 = vld [vmem:[%s1 + $0x30] sm:$0xff]
  %v59 = vld [vmem:[%s1 + $0x38] sm:$0xff]
  %v60 = vld [vmem:[%s1 + $0x40] sm:$0xff]
  %v61 = vld [vmem:[%s1 + $0x48] sm:$0xff]
  %v62 = vld [vmem:[%s1 + $0x50] sm:$0xff]
  %v63 = vld [vmem:[%s1 + $0x58] sm:$0xff]
  %v64 = vld [vmem:[%s1 + $0x60] sm:$0xff]
  %v65 = vld [vmem:[%s1 + $0x68] sm:$0xff]
  %v66 = vld [vmem:[%s1 + $0x70] sm:$0xff]
  %v67 = vld [vmem:[%s1 + $0x78] sm:$0xff]
  %v68 = vld [vmem:[%s1 + $0x80] sm:$0xff]
  %v69 = vld [vmem:[%s1 + $0x88] sm:$0xff]
  %v70 = vld [vmem:[%s1 + $0x90] sm:$0xff]
  %v71 = vld [vmem:[%s1 + $0x98] sm:$0xff]
  %v72 = vld [vmem:[%s1 + $0xa0] sm:$0xff]
  %v73 = vld [vmem:[%s1 + $0xa8] sm:$0xff]
  %v74 = vld [vmem:[%s1 + $0xb0] sm:$0xff]
  %v75 = vld [vmem:[%s1 + $0xb8] sm:$0xff]
  %v76 = vld [vmem:[%s1 + $0xc0] sm:$0xff]
  %v77 = vld [vmem:[%s1 + $0xc8] sm:$0xff]
  %v78 = vld [vmem:[%s1 + $0xd0] sm:$0xff]
  %v79 = vld [vmem:[%s1 + $0xd8] sm:$0xff]
  %v80 = vld [vmem:[%s1 + $0xe0] sm:$0xff]
  %v81 = vld [vmem:[%s1 + $0xe8] sm:$0xff]
  %v82 = vld [vmem:[%s1 + $0xf0] sm:$0xff]
  %v83 = vld [vmem:[%s1 + $0xf8] sm:$0xff]
  %v84 = vld [vmem:[%s1 + $0x100] sm:$0xff]
  %v85 = vld [vmem:[%s1 + $0x108] sm:$0xff]
  %v86 = vld [vmem:[%s1 + $0x110] sm:$0xff]
  %v87 = vld [vmem:[%s1 + $0x118] sm:$0xff]
  %v88 = vld [vmem:[%s1 + $0x120] sm:$0xff]
  %v89 = vld [vmem:[%s1 + $0x128] sm:$0xff]
  %v90 = vld [vmem:[%s1 + $0x130] sm:$0xff]
  %v91 = vld [vmem:[%s1 + $0x138] sm:$0xff]
  %v92 = vld [vmem:[%s1 + $0x140] sm:$0xff]
  %v93 = vld [vmem:[%s1 + $0x148] sm:$0xff]
  %v94 = vld [vmem:[%s1 + $0x150] sm:$0xff]
  %v95 = vld [vmem:[%s1 + $0x158] sm:$0xff]
  %v96 = vld [vmem:[%s1 + $0x160] sm:$0xff]
  %v97 = vld [vmem:[%s1 + $0x168] sm:$0xff]
  %v98 = vld [vmem:[%s1 + $0x170] sm:$0xff]
  %v99 = vld [vmem:[%s1 + $0x178] sm:$0xff]
  %v100 = vld [vmem:[%s1 + $0x180] sm:$0xff]
  %v101 = vld [vmem:[%s1 + $0x188] sm:$0xff]
  %v102 = vld [vmem:[%s1 + $0x190] sm:$0xff]
  %v103 = vld [vmem:[%s1 + $0x198] sm:$0xff]
  %v104 = vld [vmem:[%s1 + $0x1a0] sm:$0xff]
  %v105 = vld [vmem:[%s1 + $0x1a8] sm:$0xff]
  %v106 = vld [vmem:[%s1 + $0x1b0] sm:$0xff]
  %v107 = vld [vmem:[%s1 + $0x1b8] sm:$0xff]
  %v108 = vld [vmem:[%s1 + $0x1c0] sm:$0xff]
  %v109 = vld [vmem:[%s1 + $0x1c8] sm:$0xff]
  %v110 = vld [vmem:[%s1 + $0x1d0] sm:$0xff]
  %v111 = vld [vmem:[%s1 + $0x1d8] sm:$0xff]
  %v112 = vld [vmem:[%s1 + $0x1e0] sm:$0xff]
  %v113 = vld [vmem:[%s1 + $0x1e8] sm:$0xff]
  %v114 = vld [vmem:[%s1 + $0x1f0] sm:$0xff]
  %v115 = vld [vmem:[%s1 + $0x1f8] sm:$0xff]
  %v116 = vld [vmem:[%s1 + $0x200] sm:$0xff]
  %v117 = vld [vmem:[%s1 + $0x208] sm:$0xff]
  %v118 = vld [vmem:[%s1 + $0x210] sm:$0xff]
  %v119 = vld [vmem:[%s1 + $0x218] sm:$0xff]
  %v120 = vld [vmem:[%s1 + $0x220] sm:$0xff]
  %v121 = vld [vmem:[%s1 + $0x228] sm:$0xff]
  %v122 = vld [vmem:[%s1 + $0x230] sm:$0xff]
  %v123 = vld [vmem:[%s1 + $0x238] sm:$0xff]
  %v124 = vld [vmem:[%s1 + $0x240] sm:$0xff]
  %v125 = vld [vmem:[%s1 + $0x248] sm:$0xff]
  %v126 = vld [vmem:[%s1 + $0x250] sm:$0xff]
  %v127 = vld [vmem:[%s1 + $0x258] sm:$0xff]
  %v128 = vld [vmem:[%s1 + $0x260] sm:$0xff]
  %v129 = vld [vmem:[%s1 + $0x268] sm:$0xff]
  %v130 = vld [vmem:[%s1 + $0x270] sm:$0xff]
  %v131 = vld [vmem:[%s1 + $0x278] sm:$0xff]
  %v132 = vld [vmem:[%s1 + $0x280] sm:$0xff]
  %v133 = vld [vmem:[%s1 + $0x288] sm:$0xff]
  %v134 = vld [vmem:[%s1 + $0x290] sm:$0xff]
  %v135 = vld [vmem:[%s1 + $0x298] sm:$0xff]
  %v136 = vld [vmem:[%s1 + $0x2a0] sm:$0xff]
  %v137 = vld [vmem:[%s1 + $0x2a8] sm:$0xff]
  %v138 = vld [vmem:[%s1 + $0x2b0] sm:$0xff]
  %v139 = vld [vmem:[%s1 + $0x2b8] sm:$0xff]
  %v140 = vld [vmem:[%s1 + $0x2c0] sm:$0xff]
  %v141 = vld [vmem:[%s1 + $0x2c8] sm:$0xff]
  %v142 = vld [vmem:[%s1 + $0x2d0] sm:$0xff]
  %v143 = vld [vmem:[%s1 + $0x2d8] sm:$0xff]
  %v144 = vld [vmem:[%s1 + $0x2e0] sm:$0xff]
  %v145 = vld [vmem:[%s1 + $0x2e8] sm:$0xff]
  %v146 = vld [vmem:[%s1 + $0x2f0] sm:$0xff]
  %v147 = vld [vmem:[%s1 + $0x2f8] sm:$0xff]
  %v148 = vld [vmem:[%s1 + $0x300] sm:$0xff]
  %v149 = vld [vmem:[%s1 + $0x308] sm:$0xff]
  %v150 = vld [vmem:[%s1 + $0x310] sm:$0xff]
  %v151 = vld [vmem:[%s1 + $0x318] sm:$0xff]
  %v152 = vld [vmem:[%s1 + $0x320] sm:$0xff]
  %v153 = vld [vmem:[%s1 + $0x328] sm:$0xff]
  %v154 = vld [vmem:[%s1 + $0x330] sm:$0xff]
  %v155 = vld [vmem:[%s1 + $0x338] sm:$0xff]
  %v156 = vld [vmem:[%s1 + $0x340] sm:$0xff]
  %v157 = vld [vmem:[%s1 + $0x348] sm:$0xff]
  %v158 = vld [vmem:[%s1 + $0x350] sm:$0xff]
  %v159 = vld [vmem:[%s1 + $0x358] sm:$0xff]
  %v160 = vld [vmem:[%s1 + $0x360] sm:$0xff]
  %v161 = vld [vmem:[%s1 + $0x368] sm:$0xff]
  %v162 = vld [vmem:[%s1 + $0x370] sm:$0xff]
  %v163 = vld [vmem:[%s1 + $0x378] sm:$0xff]
  %v164 = vld [vmem:[%s1 + $0x380] sm:$0xff]
  %v165 = vld [vmem:[%s1 + $0x388] sm:$0xff]
  %v166 = vld [vmem:[%s1 + $0x390] sm:$0xff]
  %v167 = vld [vmem:[%s1 + $0x398] sm:$0xff]
  %v168 = vld [vmem:[%s1 + $0x3a0] sm:$0xff]
  %v169 = vld [vmem:[%s1 + $0x3a8] sm:$0xff]
  %v170 = vld [vmem:[%s1 + $0x3b0] sm:$0xff]
  %v171 = vld [vmem:[%s1 + $0x3b8] sm:$0xff]
  %v172 = vld [vmem:[%s1 + $0x3c0] sm:$0xff]
  %v173 = vld [vmem:[%s1 + $0x3c8] sm:$0xff]
  %v174 = vld [vmem:[%s1 + $0x3d0] sm:$0xff]
  %v175 = vld [vmem:[%s1 + $0x3d8] sm:$0xff]
  %v176 = vld [vmem:[%s1 + $0x3e0] sm:$0xff]
  %v177 = vld [vmem:[%s1 + $0x3e8] sm:$0xff]
  %v178 = vld [vmem:[%s1 + $0x3f0] sm:$0xff]
  %v179 = vld [vmem:[%s1 + $0x3f8] sm:$0xff]
  %v180 = vld [vmem:[%s1 + $0x400] sm:$0xff]
  %v181 = vld [vmem:[%s1 + $0x408] sm:$0xff]
  %v182 = vld [vmem:[%s1 + $0x410] sm:$0xff]
  %v183 = vld [vmem:[%s1 + $0x418] sm:$0xff]
  %v184 = vld [vmem:[%s1 + $0x420] sm:$0xff]
  %v185 = vld [vmem:[%s1 + $0x428] sm:$0xff]
  %v186 = vld [vmem:[%s1 + $0x430] sm:$0xff]
  %v187 = vld [vmem:[%s1 + $0x438] sm:$0xff]
  %v188 = vld [vmem:[%s1 + $0x440] sm:$0xff]
  %v189 = vld [vmem:[%s1 + $0x448] sm:$0xff]
  %v190 = vld [vmem:[%s1 + $0x450] sm:$0xff]
  %v191 = vld [vmem:[%s1 + $0x458] sm:$0xff]
  %v192 = vld [vmem:[%s1 + $0x460] sm:$0xff]
  %v193 = vld [vmem:[%s1 + $0x468] sm:$0xff]
  %v194 = vld [vmem:[%s1 + $0x470] sm:$0xff]
  %v195 = vld [vmem:[%s1 + $0x478] sm:$0xff]
  %v216 = vunpack.c.l.b16 %v32
  %v217 = vunpack.c.h.b16 %v32
  %v218 = vunpack.c.l.b16 %v33
  %v219 = vunpack.c.h.b16 %v33
  %v220 = vunpack.c.l.b16 %v34
  %v221 = vunpack.c.h.b16 %v34
  %v222 = vunpack.c.l.b16 %v35
  %v223 = vunpack.c.h.b16 %v35
  %v224 = vunpack.c.l.b16 %v36
  %v225 = vunpack.c.l.b16 %v37
  %v226 = vunpack.c.h.b16 %v37
  %v227 = vunpack.c.l.b16 %v38
  %v228 = vunpack.c.h.b16 %v38
  %v229 = vunpack.c.l.b16 %v39
  %v230 = vunpack.c.h.b16 %v39
  %v231 = vunpack.c.l.b16 %v40
  %v232 = vunpack.c.h.b16 %v40
  %v233 = vunpack.c.l.b16 %v41
  %v234 = vunpack.c.l.b16 %v42
  %v235 = vunpack.c.h.b16 %v42
  %v236 = vunpack.c.l.b16 %v43
  %v237 = vunpack.c.h.b16 %v43
  %v238 = vunpack.c.l.b16 %v44
  %v239 = vunpack.c.h.b16 %v44
  %v240 = vunpack.c.l.b16 %v45
  %v241 = vunpack.c.h.b16 %v45
  %v242 = vunpack.c.l.b16 %v46
  %v243 = vunpack.c.l.b16 %v47
  %v244 = vunpack.c.h.b16 %v47
  %v245 = vunpack.c.l.b16 %v48
  %v246 = vunpack.c.h.b16 %v48
  %v247 = vunpack.c.l.b16 %v49
  %v248 = vunpack.c.h.b16 %v49
  %v249 = vunpack.c.l.b16 %v50
  %v250 = vunpack.c.h.b16 %v50
  %v251 = vunpack.c.l.b16 %v51
  %v252 = vpack.c.b16 %v225, %v216
  %v253 = vpack.c.b16 %v226, %v217
  %v254 = vpack.c.b16 %v227, %v218
  %v255 = vpack.c.b16 %v228, %v219
  %v256 = vpack.c.b16 %v229, %v220
  %v257 = vpack.c.b16 %v230, %v221
  %v258 = vpack.c.b16 %v231, %v222
  %v259 = vpack.c.b16 %v232, %v223
  %v260 = vpack.c.b16 %v233, %v224
  %v261 = vpack.c.b16 %v243, %v234
  %v262 = vpack.c.b16 %v244, %v235
  %v263 = vpack.c.b16 %v245, %v236
  %v264 = vpack.c.b16 %v246, %v237
  %v265 = vpack.c.b16 %v247, %v238
  %v266 = vpack.c.b16 %v248, %v239
  %v267 = vpack.c.b16 %v249, %v240
  %v268 = vpack.c.b16 %v250, %v241
  %v269 = vpack.c.b16 %v251, %v242
  %v432 = vunpack.c.l.b16 %v52
  %v433 = vunpack.c.h.b16 %v52
  %v434 = vunpack.c.l.b16 %v53
  %v435 = vunpack.c.h.b16 %v53
  %v436 = vunpack.c.l.b16 %v54
  %v437 = vunpack.c.h.b16 %v54
  %v438 = vunpack.c.l.b16 %v55
  %v439 = vunpack.c.h.b16 %v55
  %v440 = vunpack.c.l.b16 %v56
  %v441 = vunpack.c.h.b16 %v56
  %v442 = vunpack.c.l.b16 %v57
  %v443 = vunpack.c.h.b16 %v57
  %v444 = vunpack.c.l.b16 %v58
  %v445 = vunpack.c.h.b16 %v58
  %v446 = vunpack.c.l.b16 %v59
  %v447 = vunpack.c.h.b16 %v59
  %v448 = vunpack.c.l.b16 %v60
  %v449 = vunpack.c.h.b16 %v60
  %v450 = vunpack.c.l.b16 %v61
  %v451 = vunpack.c.h.b16 %v61
  %v452 = vunpack.c.l.b16 %v62
  %v453 = vunpack.c.h.b16 %v62
  %v454 = vunpack.c.l.b16 %v63
  %v455 = vunpack.c.h.b16 %v63
  %v456 = vunpack.c.l.b16 %v64
  %v457 = vunpack.c.h.b16 %v64
  %v458 = vunpack.c.l.b16 %v65
  %v459 = vunpack.c.h.b16 %v65
  %v460 = vunpack.c.l.b16 %v66
  %v461 = vunpack.c.h.b16 %v66
  %v462 = vunpack.c.l.b16 %v67
  %v463 = vunpack.c.h.b16 %v67
  %v464 = vunpack.c.l.b16 %v68
  %v465 = vunpack.c.h.b16 %v68
  %v466 = vunpack.c.l.b16 %v69
  %v467 = vunpack.c.h.b16 %v69
  %v468 = vunpack.c.l.b16 %v70
  %v469 = vunpack.c.h.b16 %v70
  %v470 = vunpack.c.l.b16 %v71
  %v471 = vunpack.c.h.b16 %v71
  %v472 = vunpack.c.l.b16 %v72
  %v473 = vunpack.c.h.b16 %v72
  %v474 = vunpack.c.l.b16 %v73
  %v475 = vunpack.c.h.b16 %v73
  %v476 = vunpack.c.l.b16 %v74
  %v477 = vunpack.c.h.b16 %v74
  %v478 = vunpack.c.l.b16 %v75
  %v479 = vunpack.c.h.b16 %v75
  %v480 = vunpack.c.l.b16 %v76
  %v481 = vunpack.c.h.b16 %v76
  %v482 = vunpack.c.l.b16 %v77
  %v483 = vunpack.c.h.b16 %v77
  %v484 = vunpack.c.l.b16 %v78
  %v485 = vunpack.c.h.b16 %v78
  %v486 = vunpack.c.l.b16 %v79
  %v487 = vunpack.c.h.b16 %v79
  %v488 = vunpack.c.l.b16 %v80
  %v489 = vunpack.c.h.b16 %v80
  %v490 = vunpack.c.l.b16 %v81
  %v491 = vunpack.c.h.b16 %v81
  %v492 = vunpack.c.l.b16 %v82
  %v493 = vunpack.c.h.b16 %v82
  %v494 = vunpack.c.l.b16 %v83
  %v495 = vunpack.c.h.b16 %v83
  %v496 = vunpack.c.l.b16 %v84
  %v497 = vunpack.c.h.b16 %v84
  %v498 = vunpack.c.l.b16 %v85
  %v499 = vunpack.c.h.b16 %v85
  %v500 = vunpack.c.l.b16 %v86
  %v501 = vunpack.c.h.b16 %v86
  %v502 = vunpack.c.l.b16 %v87
  %v503 = vunpack.c.h.b16 %v87
  %v504 = vunpack.c.l.b16 %v88
  %v505 = vunpack.c.h.b16 %v88
  %v506 = vunpack.c.l.b16 %v89
  %v507 = vunpack.c.h.b16 %v89
  %v508 = vunpack.c.l.b16 %v90
  %v509 = vunpack.c.h.b16 %v90
  %v510 = vunpack.c.l.b16 %v91
  %v511 = vunpack.c.h.b16 %v91
  %v512 = vunpack.c.l.b16 %v92
  %v513 = vunpack.c.h.b16 %v92
  %v514 = vunpack.c.l.b16 %v93
  %v515 = vunpack.c.h.b16 %v93
  %v516 = vunpack.c.l.b16 %v94
  %v517 = vunpack.c.h.b16 %v94
  %v518 = vunpack.c.l.b16 %v95
  %v519 = vunpack.c.h.b16 %v95
  %v520 = vunpack.c.l.b16 %v96
  %v521 = vunpack.c.h.b16 %v96
  %v522 = vunpack.c.l.b16 %v97
  %v523 = vunpack.c.h.b16 %v97
  %v524 = vunpack.c.l.b16 %v98
  %v525 = vunpack.c.h.b16 %v98
  %v526 = vunpack.c.l.b16 %v99
  %v527 = vunpack.c.h.b16 %v99
  %v528 = vunpack.c.l.b16 %v100
  %v529 = vunpack.c.h.b16 %v100
  %v530 = vunpack.c.l.b16 %v101
  %v531 = vunpack.c.h.b16 %v101
  %v532 = vunpack.c.l.b16 %v102
  %v533 = vunpack.c.h.b16 %v102
  %v534 = vunpack.c.l.b16 %v103
  %v535 = vunpack.c.h.b16 %v103
  %v536 = vunpack.c.l.b16 %v104
  %v537 = vunpack.c.h.b16 %v104
  %v538 = vunpack.c.l.b16 %v105
  %v539 = vunpack.c.h.b16 %v105
  %v540 = vunpack.c.l.b16 %v106
  %v541 = vunpack.c.h.b16 %v106
  %v542 = vunpack.c.l.b16 %v107
  %v543 = vunpack.c.h.b16 %v107
  %v544 = vunpack.c.l.b16 %v108
  %v545 = vunpack.c.h.b16 %v108
  %v546 = vunpack.c.l.b16 %v109
  %v547 = vunpack.c.h.b16 %v109
  %v548 = vunpack.c.l.b16 %v110
  %v549 = vunpack.c.h.b16 %v110
  %v550 = vunpack.c.l.b16 %v111
  %v551 = vunpack.c.h.b16 %v111
  %v552 = vunpack.c.l.b16 %v112
  %v553 = vunpack.c.h.b16 %v112
  %v554 = vunpack.c.l.b16 %v113
  %v555 = vunpack.c.h.b16 %v113
  %v556 = vunpack.c.l.b16 %v114
  %v557 = vunpack.c.h.b16 %v114
  %v558 = vunpack.c.l.b16 %v115
  %v559 = vunpack.c.h.b16 %v115
  %v560 = vunpack.c.l.b16 %v116
  %v561 = vunpack.c.h.b16 %v116
  %v562 = vunpack.c.l.b16 %v117
  %v563 = vunpack.c.h.b16 %v117
  %v564 = vunpack.c.l.b16 %v118
  %v565 = vunpack.c.h.b16 %v118
  %v566 = vunpack.c.l.b16 %v119
  %v567 = vunpack.c.h.b16 %v119
  %v568 = vunpack.c.l.b16 %v120
  %v569 = vunpack.c.h.b16 %v120
  %v570 = vunpack.c.l.b16 %v121
  %v571 = vunpack.c.h.b16 %v121
  %v572 = vunpack.c.l.b16 %v122
  %v573 = vunpack.c.h.b16 %v122
  %v574 = vunpack.c.l.b16 %v123
  %v575 = vunpack.c.h.b16 %v123
  %v576 = vunpack.c.l.b16 %v124
  %v577 = vunpack.c.h.b16 %v124
  %v578 = vunpack.c.l.b16 %v125
  %v579 = vunpack.c.h.b16 %v125
  %v580 = vunpack.c.l.b16 %v126
  %v581 = vunpack.c.h.b16 %v126
  %v582 = vunpack.c.l.b16 %v127
  %v583 = vunpack.c.h.b16 %v127
  %v584 = vunpack.c.l.b16 %v128
  %v585 = vunpack.c.h.b16 %v128
  %v586 = vunpack.c.l.b16 %v129
  %v587 = vunpack.c.h.b16 %v129
  %v588 = vunpack.c.l.b16 %v130
  %v589 = vunpack.c.h.b16 %v130
  %v590 = vunpack.c.l.b16 %v131
  %v591 = vunpack.c.h.b16 %v131
  %v592 = vunpack.c.l.b16 %v132
  %v593 = vunpack.c.h.b16 %v132
  %v594 = vunpack.c.l.b16 %v133
  %v595 = vunpack.c.h.b16 %v133
  %v596 = vunpack.c.l.b16 %v134
  %v597 = vunpack.c.h.b16 %v134
  %v598 = vunpack.c.l.b16 %v135
  %v599 = vunpack.c.h.b16 %v135
  %v600 = vunpack.c.l.b16 %v136
  %v601 = vunpack.c.h.b16 %v136
  %v602 = vunpack.c.l.b16 %v137
  %v603 = vunpack.c.h.b16 %v137
  %v604 = vunpack.c.l.b16 %v138
  %v605 = vunpack.c.h.b16 %v138
  %v606 = vunpack.c.l.b16 %v139
  %v607 = vunpack.c.h.b16 %v139
  %v608 = vunpack.c.l.b16 %v140
  %v609 = vunpack.c.h.b16 %v140
  %v610 = vunpack.c.l.b16 %v141
  %v611 = vunpack.c.h.b16 %v141
  %v612 = vunpack.c.l.b16 %v142
  %v613 = vunpack.c.h.b16 %v142
  %v614 = vunpack.c.l.b16 %v143
  %v615 = vunpack.c.h.b16 %v143
  %v616 = vunpack.c.l.b16 %v144
  %v617 = vunpack.c.h.b16 %v144
  %v618 = vunpack.c.l.b16 %v145
  %v619 = vunpack.c.h.b16 %v145
  %v620 = vunpack.c.l.b16 %v146
  %v621 = vunpack.c.h.b16 %v146
  %v622 = vunpack.c.l.b16 %v147
  %v623 = vunpack.c.h.b16 %v147
  %v624 = vunpack.c.l.b16 %v148
  %v625 = vunpack.c.h.b16 %v148
  %v626 = vunpack.c.l.b16 %v149
  %v627 = vunpack.c.h.b16 %v149
  %v628 = vunpack.c.l.b16 %v150
  %v629 = vunpack.c.h.b16 %v150
  %v630 = vunpack.c.l.b16 %v151
  %v631 = vunpack.c.h.b16 %v151
  %v632 = vunpack.c.l.b16 %v152
  %v633 = vunpack.c.h.b16 %v152
  %v634 = vunpack.c.l.b16 %v153
  %v635 = vunpack.c.h.b16 %v153
  %v636 = vunpack.c.l.b16 %v154
  %v637 = vunpack.c.h.b16 %v154
  %v638 = vunpack.c.l.b16 %v155
  %v639 = vunpack.c.h.b16 %v155
  %v640 = vunpack.c.l.b16 %v156
  %v641 = vunpack.c.h.b16 %v156
  %v642 = vunpack.c.l.b16 %v157
  %v643 = vunpack.c.h.b16 %v157
  %v644 = vunpack.c.l.b16 %v158
  %v645 = vunpack.c.h.b16 %v158
  %v646 = vunpack.c.l.b16 %v159
  %v647 = vunpack.c.h.b16 %v159
  %v648 = vunpack.c.l.b16 %v160
  %v649 = vunpack.c.h.b16 %v160
  %v650 = vunpack.c.l.b16 %v161
  %v651 = vunpack.c.h.b16 %v161
  %v652 = vunpack.c.l.b16 %v162
  %v653 = vunpack.c.h.b16 %v162
  %v654 = vunpack.c.l.b16 %v163
  %v655 = vunpack.c.h.b16 %v163
  %v656 = vunpack.c.l.b16 %v164
  %v657 = vunpack.c.h.b16 %v164
  %v658 = vunpack.c.l.b16 %v165
  %v659 = vunpack.c.h.b16 %v165
  %v660 = vunpack.c.l.b16 %v166
  %v661 = vunpack.c.h.b16 %v166
  %v662 = vunpack.c.l.b16 %v167
  %v663 = vunpack.c.h.b16 %v167
  %v664 = vunpack.c.l.b16 %v168
  %v665 = vunpack.c.h.b16 %v168
  %v666 = vunpack.c.l.b16 %v169
  %v667 = vunpack.c.h.b16 %v169
  %v668 = vunpack.c.l.b16 %v170
  %v669 = vunpack.c.h.b16 %v170
  %v670 = vunpack.c.l.b16 %v171
  %v671 = vunpack.c.h.b16 %v171
  %v672 = vunpack.c.l.b16 %v172
  %v673 = vunpack.c.h.b16 %v172
  %v674 = vunpack.c.l.b16 %v173
  %v675 = vunpack.c.h.b16 %v173
  %v676 = vunpack.c.l.b16 %v174
  %v677 = vunpack.c.h.b16 %v174
  %v678 = vunpack.c.l.b16 %v175
  %v679 = vunpack.c.h.b16 %v175
  %v680 = vunpack.c.l.b16 %v176
  %v681 = vunpack.c.h.b16 %v176
  %v682 = vunpack.c.l.b16 %v177
  %v683 = vunpack.c.h.b16 %v177
  %v684 = vunpack.c.l.b16 %v178
  %v685 = vunpack.c.h.b16 %v178
  %v686 = vunpack.c.l.b16 %v179
  %v687 = vunpack.c.h.b16 %v179
  %v688 = vunpack.c.l.b16 %v180
  %v689 = vunpack.c.h.b16 %v180
  %v690 = vunpack.c.l.b16 %v181
  %v691 = vunpack.c.h.b16 %v181
  %v692 = vunpack.c.l.b16 %v182
  %v693 = vunpack.c.h.b16 %v182
  %v694 = vunpack.c.l.b16 %v183
  %v695 = vunpack.c.h.b16 %v183
  %v696 = vunpack.c.l.b16 %v184
  %v697 = vunpack.c.h.b16 %v184
  %v698 = vunpack.c.l.b16 %v185
  %v699 = vunpack.c.h.b16 %v185
  %v700 = vunpack.c.l.b16 %v186
  %v701 = vunpack.c.h.b16 %v186
  %v702 = vunpack.c.l.b16 %v187
  %v703 = vunpack.c.h.b16 %v187
  %v704 = vunpack.c.l.b16 %v188
  %v705 = vunpack.c.h.b16 %v188
  %v706 = vunpack.c.l.b16 %v189
  %v707 = vunpack.c.h.b16 %v189
  %v708 = vunpack.c.l.b16 %v190
  %v709 = vunpack.c.h.b16 %v190
  %v710 = vunpack.c.l.b16 %v191
  %v711 = vunpack.c.h.b16 %v191
  %v712 = vunpack.c.l.b16 %v192
  %v713 = vunpack.c.h.b16 %v192
  %v714 = vunpack.c.l.b16 %v193
  %v715 = vunpack.c.h.b16 %v193
  %v716 = vunpack.c.l.b16 %v194
  %v717 = vunpack.c.h.b16 %v194
  %v718 = vunpack.c.l.b16 %v195
  %v719 = vunpack.c.h.b16 %v195
  %v720 = vpack.c.b16 %v434, %v432
  %v721 = vpack.c.b16 %v435, %v433
  %v722 = vpack.c.b16 %v438, %v436
  %v723 = vpack.c.b16 %v439, %v437
  %v724 = vpack.c.b16 %v442, %v440
  %v725 = vpack.c.b16 %v443, %v441
  %v726 = vpack.c.b16 %v446, %v444
  %v727 = vpack.c.b16 %v447, %v445
  %v728 = vpack.c.b16 %v450, %v448
  %v729 = vpack.c.b16 %v451, %v449
  %v730 = vpack.c.b16 %v454, %v452
  %v731 = vpack.c.b16 %v455, %v453
  %v732 = vpack.c.b16 %v458, %v456
  %v733 = vpack.c.b16 %v459, %v457
  %v734 = vpack.c.b16 %v462, %v460
  %v735 = vpack.c.b16 %v463, %v461
  %v736 = vpack.c.b16 %v466, %v464
  %v737 = vpack.c.b16 %v467, %v465
  %v738 = vpack.c.b16 %v470, %v468
  %v739 = vpack.c.b16 %v471, %v469
  %v740 = vpack.c.b16 %v474, %v472
  %v741 = vpack.c.b16 %v475, %v473
  %v742 = vpack.c.b16 %v478, %v476
  %v743 = vpack.c.b16 %v479, %v477
  %v744 = vpack.c.b16 %v482, %v480
  %v745 = vpack.c.b16 %v483, %v481
  %v746 = vpack.c.b16 %v486, %v484
  %v747 = vpack.c.b16 %v487, %v485
  %v748 = vpack.c.b16 %v490, %v488
  %v749 = vpack.c.b16 %v491, %v489
  %v750 = vpack.c.b16 %v494, %v492
  %v751 = vpack.c.b16 %v495, %v493
  %v752 = vpack.c.b16 %v498, %v496
  %v753 = vpack.c.b16 %v499, %v497
  %v754 = vpack.c.b16 %v502, %v500
  %v755 = vpack.c.b16 %v503, %v501
  %v756 = vpack.c.b16 %v506, %v504
  %v757 = vpack.c.b16 %v507, %v505
  %v758 = vpack.c.b16 %v510, %v508
  %v759 = vpack.c.b16 %v511, %v509
  %v760 = vpack.c.b16 %v514, %v512
  %v761 = vpack.c.b16 %v515, %v513
  %v762 = vpack.c.b16 %v518, %v516
  %v763 = vpack.c.b16 %v519, %v517
  %v764 = vpack.c.b16 %v522, %v520
  %v765 = vpack.c.b16 %v523, %v521
  %v766 = vpack.c.b16 %v526, %v524
  %v767 = vpack.c.b16 %v527, %v525
  %v768 = vpack.c.b16 %v530, %v528
  %v769 = vpack.c.b16 %v531, %v529
  %v770 = vpack.c.b16 %v534, %v532
  %v771 = vpack.c.b16 %v535, %v533
  %v772 = vpack.c.b16 %v538, %v536
  %v773 = vpack.c.b16 %v539, %v537
  %v774 = vpack.c.b16 %v542, %v540
  %v775 = vpack.c.b16 %v543, %v541
  %v776 = vpack.c.b16 %v546, %v544
  %v777 = vpack.c.b16 %v547, %v545
  %v778 = vpack.c.b16 %v550, %v548
  %v779 = vpack.c.b16 %v551, %v549
  %v780 = vpack.c.b16 %v554, %v552
  %v781 = vpack.c.b16 %v555, %v553
  %v782 = vpack.c.b16 %v558, %v556
  %v783 = vpack.c.b16 %v559, %v557
  %v784 = vpack.c.b16 %v562, %v560
  %v785 = vpack.c.b16 %v563, %v561
  %v786 = vpack.c.b16 %v566, %v564
  %v787 = vpack.c.b16 %v567, %v565
  %v788 = vpack.c.b16 %v570, %v568
  %v789 = vpack.c.b16 %v571, %v569
  %v790 = vpack.c.b16 %v574, %v572
  %v791 = vpack.c.b16 %v575, %v573
  %v792 = vpack.c.b16 %v578, %v576
  %v793 = vpack.c.b16 %v579, %v577
  %v794 = vpack.c.b16 %v582, %v580
  %v795 = vpack.c.b16 %v583, %v581
  %v796 = vpack.c.b16 %v586, %v584
  %v797 = vpack.c.b16 %v587, %v585
  %v798 = vpack.c.b16 %v590, %v588
  %v799 = vpack.c.b16 %v591, %v589
  %v800 = vpack.c.b16 %v594, %v592
  %v801 = vpack.c.b16 %v595, %v593
  %v802 = vpack.c.b16 %v598, %v596
  %v803 = vpack.c.b16 %v599, %v597
  %v804 = vpack.c.b16 %v602, %v600
  %v805 = vpack.c.b16 %v603, %v601
  %v806 = vpack.c.b16 %v606, %v604
  %v807 = vpack.c.b16 %v607, %v605
  %v808 = vpack.c.b16 %v610, %v608
  %v809 = vpack.c.b16 %v611, %v609
  %v810 = vpack.c.b16 %v614, %v612
  %v811 = vpack.c.b16 %v615, %v613
  %v812 = vpack.c.b16 %v618, %v616
  %v813 = vpack.c.b16 %v619, %v617
  %v814 = vpack.c.b16 %v622, %v620
  %v815 = vpack.c.b16 %v623, %v621
  %v816 = vpack.c.b16 %v626, %v624
  %v817 = vpack.c.b16 %v627, %v625
  %v818 = vpack.c.b16 %v630, %v628
  %v819 = vpack.c.b16 %v631, %v629
  %v820 = vpack.c.b16 %v634, %v632
  %v821 = vpack.c.b16 %v635, %v633
  %v822 = vpack.c.b16 %v638, %v636
  %v823 = vpack.c.b16 %v639, %v637
  %v824 = vpack.c.b16 %v642, %v640
  %v825 = vpack.c.b16 %v643, %v641
  %v826 = vpack.c.b16 %v646, %v644
  %v827 = vpack.c.b16 %v647, %v645
  %v828 = vpack.c.b16 %v650, %v648
  %v829 = vpack.c.b16 %v651, %v649
  %v830 = vpack.c.b16 %v654, %v652
  %v831 = vpack.c.b16 %v655, %v653
  %v832 = vpack.c.b16 %v658, %v656
  %v833 = vpack.c.b16 %v659, %v657
  %v834 = vpack.c.b16 %v662, %v660
  %v835 = vpack.c.b16 %v663, %v661
  %v836 = vpack.c.b16 %v666, %v664
  %v837 = vpack.c.b16 %v667, %v665
  %v838 = vpack.c.b16 %v670, %v668
  %v839 = vpack.c.b16 %v671, %v669
  %v840 = vpack.c.b16 %v674, %v672
  %v841 = vpack.c.b16 %v675, %v673
  %v842 = vpack.c.b16 %v678, %v676
  %v843 = vpack.c.b16 %v679, %v677
  %v844 = vpack.c.b16 %v682, %v680
  %v845 = vpack.c.b16 %v683, %v681
  %v846 = vpack.c.b16 %v686, %v684
  %v847 = vpack.c.b16 %v687, %v685
  %v848 = vpack.c.b16 %v690, %v688
  %v849 = vpack.c.b16 %v691, %v689
  %v850 = vpack.c.b16 %v694, %v692
  %v851 = vpack.c.b16 %v695, %v693
  %v852 = vpack.c.b16 %v698, %v696
  %v853 = vpack.c.b16 %v699, %v697
  %v854 = vpack.c.b16 %v702, %v700
  %v855 = vpack.c.b16 %v703, %v701
  %v856 = vpack.c.b16 %v706, %v704
  %v857 = vpack.c.b16 %v707, %v705
  %v858 = vpack.c.b16 %v710, %v708
  %v859 = vpack.c.b16 %v711, %v709
  %v860 = vpack.c.b16 %v714, %v712
  %v861 = vpack.c.b16 %v715, %v713
  %v862 = vpack.c.b16 %v718, %v716
  %v863 = vpack.c.b16 %v719, %v717
  %1008 = vmatprep.subr.bf16.mxu0 %v735
  %1009 = vmatpush1.bf16.msra.mxu0 %v734
  %1010 = vmatprep.subr.bf16.mxu0 %v733
  %1011 = vmatpush1.bf16.msra.mxu0 %v732
  %1012 = vmatprep.subr.bf16.mxu0 %v731
  %1013 = vmatpush1.bf16.msra.mxu0 %v730
  %1014 = vmatprep.subr.bf16.mxu0 %v729
  %1015 = vmatpush1.bf16.msra.mxu0 %v728
  %1016 = vmatprep.subr.bf16.mxu0 %v727
  %1017 = vmatpush1.bf16.msra.mxu0 %v726
  %1018 = vmatprep.subr.bf16.mxu0 %v725
  %1019 = vmatpush1.bf16.msra.mxu0 %v724
  %1020 = vmatprep.subr.bf16.mxu0 %v723
  %1021 = vmatpush1.bf16.msra.mxu0 %v722
  %1022 = vmatprep.subr.bf16.mxu0 %v721
  %1023 = vmatpush1.bf16.msra.mxu0 %v720
  %1024 = vmatprep.subr.bf16.mxu0 %v751
  %1025 = vmatpush2.bf16.msra.mxu0 %v750
  %1026 = vmatprep.subr.bf16.mxu0 %v749
  %1027 = vmatpush2.bf16.msra.mxu0 %v748
  %1028 = vmatprep.subr.bf16.mxu0 %v747
  %1029 = vmatpush2.bf16.msra.mxu0 %v746
  %1030 = vmatprep.subr.bf16.mxu0 %v745
  %1031 = vmatpush2.bf16.msra.mxu0 %v744
  %1032 = vmatprep.subr.bf16.mxu0 %v743
  %1033 = vmatpush2.bf16.msra.mxu0 %v742
  %1034 = vmatprep.subr.bf16.mxu0 %v741
  %1035 = vmatpush2.bf16.msra.mxu0 %v740
  %1036 = vmatprep.subr.bf16.mxu0 %v739
  %1037 = vmatpush2.bf16.msra.mxu0 %v738
  %1038 = vmatprep.subr.bf16.mxu0 %v737
  %1039 = vmatpush2.bf16.msra.mxu0 %v736
  %1040 = vmatprep.mubr.bf16.mxu0 %v253
  %1041 = vmatmul.mubr.bf16.gmra.mxu0 %v252
  %v1042 = vpop.f32.mrf.mxu0
  %v1043 = vadd.f32 0.0, %v1042
  %v1044 = vpop.f32.mrf.mxu0
  %v1045 = vadd.f32 0.0, %v1044
  %v1046 = vpop.f32.mrf.mxu0
  %v1047 = vadd.f32 0.0, %v1046
  %v1048 = vpop.f32.mrf.mxu0
  %v1049 = vadd.f32 0.0, %v1048
  %1050 = vmatprep.mubr.bf16.mxu0 %v262
  %1051 = vmatmul.mubr.bf16.gmra.mxu0 %v261
  %v1052 = vpop.f32.mrf.mxu0
  %v1053 = vadd.f32 0.0, %v1052
  %v1054 = vpop.f32.mrf.mxu0
  %v1055 = vadd.f32 0.0, %v1054
  %v1056 = vpop.f32.mrf.mxu0
  %v1057 = vadd.f32 0.0, %v1056
  %v1058 = vpop.f32.mrf.mxu0
  %v1059 = vadd.f32 0.0, %v1058
  %1060 = vdwg.mxu0
  %1061 = vmatprep.subr.bf16.mxu0 %v767
  %1062 = vmatpush1.bf16.msra.mxu0 %v766
  %1063 = vmatprep.subr.bf16.mxu0 %v765
  %1064 = vmatpush1.bf16.msra.mxu0 %v764
  %1065 = vmatprep.subr.bf16.mxu0 %v763
  %1066 = vmatpush1.bf16.msra.mxu0 %v762
  %1067 = vmatprep.subr.bf16.mxu0 %v761
  %1068 = vmatpush1.bf16.msra.mxu0 %v760
  %1069 = vmatprep.subr.bf16.mxu0 %v759
  %1070 = vmatpush1.bf16.msra.mxu0 %v758
  %1071 = vmatprep.subr.bf16.mxu0 %v757
  %1072 = vmatpush1.bf16.msra.mxu0 %v756
  %1073 = vmatprep.subr.bf16.mxu0 %v755
  %1074 = vmatpush1.bf16.msra.mxu0 %v754
  %1075 = vmatprep.subr.bf16.mxu0 %v753
  %1076 = vmatpush1.bf16.msra.mxu0 %v752
  %1077 = vmatprep.subr.bf16.mxu0 %v783
  %1078 = vmatpush2.bf16.msra.mxu0 %v782
  %1079 = vmatprep.subr.bf16.mxu0 %v781
  %1080 = vmatpush2.bf16.msra.mxu0 %v780
  %1081 = vmatprep.subr.bf16.mxu0 %v779
  %1082 = vmatpush2.bf16.msra.mxu0 %v778
  %1083 = vmatprep.subr.bf16.mxu0 %v777
  %1084 = vmatpush2.bf16.msra.mxu0 %v776
  %1085 = vmatprep.subr.bf16.mxu0 %v775
  %1086 = vmatpush2.bf16.msra.mxu0 %v774
  %1087 = vmatprep.subr.bf16.mxu0 %v773
  %1088 = vmatpush2.bf16.msra.mxu0 %v772
  %1089 = vmatprep.subr.bf16.mxu0 %v771
  %1090 = vmatpush2.bf16.msra.mxu0 %v770
  %1091 = vmatprep.subr.bf16.mxu0 %v769
  %1092 = vmatpush2.bf16.msra.mxu0 %v768
  %1093 = vmatprep.mubr.bf16.mxu0 %v255
  %1094 = vmatmul.mubr.bf16.gmra.mxu0 %v254
  %v1095 = vpop.f32.mrf.mxu0
  %v1096 = vadd.f32 %v1043, %v1095
  %v1097 = vpop.f32.mrf.mxu0
  %v1098 = vadd.f32 %v1045, %v1097
  %v1099 = vpop.f32.mrf.mxu0
  %v1100 = vadd.f32 %v1047, %v1099
  %v1101 = vpop.f32.mrf.mxu0
  %v1102 = vadd.f32 %v1049, %v1101
  %1103 = vmatprep.mubr.bf16.mxu0 %v264
  %1104 = vmatmul.mubr.bf16.gmra.mxu0 %v263
  %v1105 = vpop.f32.mrf.mxu0
  %v1106 = vadd.f32 %v1053, %v1105
  %v1107 = vpop.f32.mrf.mxu0
  %v1108 = vadd.f32 %v1055, %v1107
  %v1109 = vpop.f32.mrf.mxu0
  %v1110 = vadd.f32 %v1057, %v1109
  %v1111 = vpop.f32.mrf.mxu0
  %v1112 = vadd.f32 %v1059, %v1111
  %1113 = vdwg.mxu0
  %1114 = vmatprep.subr.bf16.mxu0 %v799
  %1115 = vmatpush1.bf16.msra.mxu0 %v798
  %1116 = vmatprep.subr.bf16.mxu0 %v797
  %1117 = vmatpush1.bf16.msra.mxu0 %v796
  %1118 = vmatprep.subr.bf16.mxu0 %v795
  %1119 = vmatpush1.bf16.msra.mxu0 %v794
  %1120 = vmatprep.subr.bf16.mxu0 %v793
  %1121 = vmatpush1.bf16.msra.mxu0 %v792
  %1122 = vmatprep.subr.bf16.mxu0 %v791
  %1123 = vmatpush1.bf16.msra.mxu0 %v790
  %1124 = vmatprep.subr.bf16.mxu0 %v789
  %1125 = vmatpush1.bf16.msra.mxu0 %v788
  %1126 = vmatprep.subr.bf16.mxu0 %v787
  %1127 = vmatpush1.bf16.msra.mxu0 %v786
  %1128 = vmatprep.subr.bf16.mxu0 %v785
  %1129 = vmatpush1.bf16.msra.mxu0 %v784
  %1130 = vmatprep.subr.bf16.mxu0 %v815
  %1131 = vmatpush2.bf16.msra.mxu0 %v814
  %1132 = vmatprep.subr.bf16.mxu0 %v813
  %1133 = vmatpush2.bf16.msra.mxu0 %v812
  %1134 = vmatprep.subr.bf16.mxu0 %v811
  %1135 = vmatpush2.bf16.msra.mxu0 %v810
  %1136 = vmatprep.subr.bf16.mxu0 %v809
  %1137 = vmatpush2.bf16.msra.mxu0 %v808
  %1138 = vmatprep.subr.bf16.mxu0 %v807
  %1139 = vmatpush2.bf16.msra.mxu0 %v806
  %1140 = vmatprep.subr.bf16.mxu0 %v805
  %1141 = vmatpush2.bf16.msra.mxu0 %v804
  %1142 = vmatprep.subr.bf16.mxu0 %v803
  %1143 = vmatpush2.bf16.msra.mxu0 %v802
  %1144 = vmatprep.subr.bf16.mxu0 %v801
  %1145 = vmatpush2.bf16.msra.mxu0 %v800
  %1146 = vmatprep.mubr.bf16.mxu0 %v257
  %1147 = vmatmul.mubr.bf16.gmra.mxu0 %v256
  %v1148 = vpop.f32.mrf.mxu0
  %v1149 = vadd.f32 %v1096, %v1148
  %v1150 = vpop.f32.mrf.mxu0
  %v1151 = vadd.f32 %v1098, %v1150
  %v1152 = vpop.f32.mrf.mxu0
  %v1153 = vadd.f32 %v1100, %v1152
  %v1154 = vpop.f32.mrf.mxu0
  %v1155 = vadd.f32 %v1102, %v1154
  %1156 = vmatprep.mubr.bf16.mxu0 %v266
  %1157 = vmatmul.mubr.bf16.gmra.mxu0 %v265
  %v1158 = vpop.f32.mrf.mxu0
  %v1159 = vadd.f32 %v1106, %v1158
  %v1160 = vpop.f32.mrf.mxu0
  %v1161 = vadd.f32 %v1108, %v1160
  %v1162 = vpop.f32.mrf.mxu0
  %v1163 = vadd.f32 %v1110, %v1162
  %v1164 = vpop.f32.mrf.mxu0
  %v1165 = vadd.f32 %v1112, %v1164
  %1166 = vdwg.mxu0
  %1167 = vmatprep.subr.bf16.mxu0 %v831
  %1168 = vmatpush1.bf16.msra.mxu0 %v830
  %1169 = vmatprep.subr.bf16.mxu0 %v829
  %1170 = vmatpush1.bf16.msra.mxu0 %v828
  %1171 = vmatprep.subr.bf16.mxu0 %v827
  %1172 = vmatpush1.bf16.msra.mxu0 %v826
  %1173 = vmatprep.subr.bf16.mxu0 %v825
  %1174 = vmatpush1.bf16.msra.mxu0 %v824
  %1175 = vmatprep.subr.bf16.mxu0 %v823
  %1176 = vmatpush1.bf16.msra.mxu0 %v822
  %1177 = vmatprep.subr.bf16.mxu0 %v821
  %1178 = vmatpush1.bf16.msra.mxu0 %v820
  %1179 = vmatprep.subr.bf16.mxu0 %v819
  %1180 = vmatpush1.bf16.msra.mxu0 %v818
  %1181 = vmatprep.subr.bf16.mxu0 %v817
  %1182 = vmatpush1.bf16.msra.mxu0 %v816
  %1183 = vmatprep.subr.bf16.mxu0 %v847
  %1184 = vmatpush2.bf16.msra.mxu0 %v846
  %1185 = vmatprep.subr.bf16.mxu0 %v845
  %1186 = vmatpush2.bf16.msra.mxu0 %v844
  %1187 = vmatprep.subr.bf16.mxu0 %v843
  %1188 = vmatpush2.bf16.msra.mxu0 %v842
  %1189 = vmatprep.subr.bf16.mxu0 %v841
  %1190 = vmatpush2.bf16.msra.mxu0 %v840
  %1191 = vmatprep.subr.bf16.mxu0 %v839
  %1192 = vmatpush2.bf16.msra.mxu0 %v838
  %1193 = vmatprep.subr.bf16.mxu0 %v837
  %1194 = vmatpush2.bf16.msra.mxu0 %v836
  %1195 = vmatprep.subr.bf16.mxu0 %v835
  %1196 = vmatpush2.bf16.msra.mxu0 %v834
  %1197 = vmatprep.subr.bf16.mxu0 %v833
  %1198 = vmatpush2.bf16.msra.mxu0 %v832
  %1199 = vmatprep.mubr.bf16.mxu0 %v259
  %1200 = vmatmul.mubr.bf16.gmra.mxu0 %v258
  %v1201 = vpop.f32.mrf.mxu0
  %v1202 = vadd.f32 %v1149, %v1201
  %v1203 = vpop.f32.mrf.mxu0
  %v1204 = vadd.f32 %v1151, %v1203
  %v1205 = vpop.f32.mrf.mxu0
  %v1206 = vadd.f32 %v1153, %v1205
  %v1207 = vpop.f32.mrf.mxu0
  %v1208 = vadd.f32 %v1155, %v1207
  %1209 = vmatprep.mubr.bf16.mxu0 %v268
  %1210 = vmatmul.mubr.bf16.gmra.mxu0 %v267
  %v1211 = vpop.f32.mrf.mxu0
  %v1212 = vadd.f32 %v1159, %v1211
  %v1213 = vpop.f32.mrf.mxu0
  %v1214 = vadd.f32 %v1161, %v1213
  %v1215 = vpop.f32.mrf.mxu0
  %v1216 = vadd.f32 %v1163, %v1215
  %v1217 = vpop.f32.mrf.mxu0
  %v1218 = vadd.f32 %v1165, %v1217
  %1219 = vdwg.mxu0
  %1220 = vmatprep.subr.bf16.mxu0 %v863
  %1221 = vmatpush1.bf16.msra.mxu0 %v862
  %1222 = vmatprep.subr.bf16.mxu0 %v861
  %1223 = vmatpush1.bf16.msra.mxu0 %v860
  %1224 = vmatprep.subr.bf16.mxu0 %v859
  %1225 = vmatpush1.bf16.msra.mxu0 %v858
  %1226 = vmatprep.subr.bf16.mxu0 %v857
  %1227 = vmatpush1.bf16.msra.mxu0 %v856
  %1228 = vmatprep.subr.bf16.mxu0 %v855
  %1229 = vmatpush1.bf16.msra.mxu0 %v854
  %1230 = vmatprep.subr.bf16.mxu0 %v853
  %1231 = vmatpush1.bf16.msra.mxu0 %v852
  %1232 = vmatprep.subr.bf16.mxu0 %v851
  %1233 = vmatpush1.bf16.msra.mxu0 %v850
  %1234 = vmatprep.subr.bf16.mxu0 %v849
  %1235 = vmatpush1.bf16.msra.mxu0 %v848
  %1236 = vmatprep.subr.bf16.mxu0 0
  %1237 = vmatpush2.bf16.msra.mxu0 0
  %1238 = vmatprep.subr.bf16.mxu0 0
  %1239 = vmatpush2.bf16.msra.mxu0 0
  %1240 = vmatprep.subr.bf16.mxu0 0
  %1241 = vmatpush2.bf16.msra.mxu0 0
  %1242 = vmatprep.subr.bf16.mxu0 0
  %1243 = vmatpush2.bf16.msra.mxu0 0
  %1244 = vmatprep.subr.bf16.mxu0 0
  %1245 = vmatpush2.bf16.msra.mxu0 0
  %1246 = vmatprep.subr.bf16.mxu0 0
  %1247 = vmatpush2.bf16.msra.mxu0 0
  %1248 = vmatprep.subr.bf16.mxu0 0
  %1249 = vmatpush2.bf16.msra.mxu0 0
  %1250 = vmatprep.subr.bf16.mxu0 0
  %1251 = vmatpush2.bf16.msra.mxu0 0
  %1252 = vmatprep.mubr.bf16.mxu0 0
  %1253 = vmatmul.mubr.bf16.gmra.mxu0 %v260
  %v1254 = vpop.f32.mrf.mxu0
  %v1255 = vadd.f32 %v1202, %v1254
  %v1256 = vpop.f32.mrf.mxu0
  %v1257 = vadd.f32 %v1204, %v1256
  %v1258 = vpop.f32.mrf.mxu0
  %v1259 = vadd.f32 %v1206, %v1258
  %v1260 = vpop.f32.mrf.mxu0
  %v1261 = vadd.f32 %v1208, %v1260
  %1262 = vmatprep.mubr.bf16.mxu0 0
  %1263 = vmatmul.mubr.bf16.gmra.mxu0 %v269
  %v1264 = vpop.f32.mrf.mxu0
  %v1265 = vadd.f32 %v1212, %v1264
  %v1266 = vpop.f32.mrf.mxu0
  %v1267 = vadd.f32 %v1214, %v1266
  %v1268 = vpop.f32.mrf.mxu0
  %v1269 = vadd.f32 %v1216, %v1268
  %v1270 = vpop.f32.mrf.mxu0
  %v1271 = vadd.f32 %v1218, %v1270
  %1272 = vdwg.mxu0
  %v1273 = vadd.f32 %v24, %v1255
  %v1274 = vadd.f32 %v25, %v1257
  %v1275 = vadd.f32 %v26, %v1259
  %v1276 = vadd.f32 %v27, %v1261
  %v1277 = vadd.f32 %v28, %v1265
  %v1278 = vadd.f32 %v29, %v1267
  %v1279 = vadd.f32 %v30, %v1269
  %v1280 = vadd.f32 %v31, %v1271
  %1281 = vst [vmem:[#allocation2] sm:$0xff] %v1273
  %1282 = vst [vmem:[#allocation2 + $0x8] sm:$0xff] %v1274
  %1283 = vst [vmem:[#allocation2 + $0x10] sm:$0xff] %v1275
  %1284 = vst [vmem:[#allocation2 + $0x18] sm:$0xff] %v1276
  %1285 = vst [vmem:[#allocation2 + $0x20] sm:$0xff] %v1277
  %1286 = vst [vmem:[#allocation2 + $0x28] sm:$0xff] %v1278
  %1287 = vst [vmem:[#allocation2 + $0x30] sm:$0xff] %v1279
  %1288 = vst [vmem:[#allocation2 + $0x38] sm:$0xff] %v1280
  // Predicated region
  $region14: #{res_encoder_forward.26} parent=0 // pred_check
    %p1289 = pneg %p12
  $region15: #{res_encoder_forward.26} parent=0 // pred_check_branch
    %1291 = sbr.rel (%p1289) target = $region17
  $region16: #{res_encoder_forward.26} parent=0 // pred_region
    %v1292 = vld [vmem:[#allocation2] sm:$0xff]
    %v1293 = vld [vmem:[#allocation2 + $0x8] sm:$0xff]
    %v1294 = vld [vmem:[#allocation2 + $0x10] sm:$0xff]
    %v1295 = vld [vmem:[#allocation2 + $0x18] sm:$0xff]
    %v1296 = vld [vmem:[#allocation2 + $0x20] sm:$0xff]
    %v1297 = vld [vmem:[#allocation2 + $0x28] sm:$0xff]
    %v1298 = vld [vmem:[#allocation2 + $0x30] sm:$0xff]
    %v1299 = vld [vmem:[#allocation2 + $0x38] sm:$0xff]
    %1300 = vst [vmem:[%s2] sm:$0xff] %v1292
    %1301 = vst [vmem:[%s2 + $0x8] sm:$0xff] %v1293
    %1302 = vst [vmem:[%s2 + $0x10] sm:$0xff] %v1294
    %1303 = vst [vmem:[%s2 + $0x18] sm:$0xff] %v1295
    %1304 = vst [vmem:[%s2 + $0x20] sm:$0xff] %v1296
    %1305 = vst [vmem:[%s2 + $0x28] sm:$0xff] %v1297
    %1306 = vst [vmem:[%s2 + $0x30] sm:$0xff] %v1298
    %1307 = vst [vmem:[%s2 + $0x38] sm:$0xff] %v1299
  $region17: #{res_encoder_forward.26} parent=0 // pred_fallthru
    _
  // Predicated region
  $region18: #{res_encoder_forward.26} parent=0 // pred_check
    _
  $region19: #{res_encoder_forward.26} parent=0 // pred_check_branch
    %1309 = sbr.rel (0) target = $region21
  $region20: #{res_encoder_forward.26} parent=0 // pred_region
    _
  $region21: #{res_encoder_forward.26} parent=0 // pred_fallthru
    _
  // Predicated region
  $region22: #{res_encoder_forward.26} parent=0 // pred_check
    _
  $region23: #{res_encoder_forward.26} parent=0 // pred_check_branch
    %1311 = sbr.rel (0) target = $region25
  $region24: #{res_encoder_forward.26} parent=0 // pred_region
    _
  $region25: #{res_encoder_forward.26} parent=0 // pred_fallthru
    _

// kernel: res_encoder_forward.28
$region0: #{res_encoder_forward.28}
  #allocation0 [shape = 'u32[]', space=smem, size = 0x4, offset = 0x4, fixed_abs, tag = 'smem constant byte address 0x4 - core index']
  #allocation1 [shape = 'u32[144,128]{1,0:T(1,128)}', space=vmem, size = 0x12000, scoped, tag = 'internal scratch']
  #allocation2 [shape = 'f32[32,256]{1,0:T(8,128)}', space=vmem, size = 0x8000, scoped, tag = 'scratch operand']
  %s0 = inlined_call_operand.vmem [shape: bf16[32,2304], index: 0, kind: input, shape index: {}]
  %s1 = inlined_call_operand.vmem [shape: bf16[2304,256], index: 1, kind: input, shape index: {}]
  %s2 = inlined_call_operand.vmem [shape: f32[32,256], index: 2, kind: output, shape index: {}]
  %s3 = sld [smem:[#allocation0]]
  $region75: #{res_encoder_forward.28} parent=0
    _
  %s5 = ssub.s32 1, %s3
  %s6 = scalar_select 0, %s5, %s3
  $region1: #{res_encoder_forward.28} parent=0
    #allocation3 [shape = 'u8[147456]{0}', space=vmem, size = 0x24000, scoped, tag = 'input window, operand 0']
    loop: start=0, step=1, limit=4
    $region2: #{res_encoder_forward.28} parent=1 // loop_pre_header
      _
    $region3: #{res_encoder_forward.28} parent=1 // loop_header
      %s8 = sphi 0, %s12
      %p9 = scmp.ge.s32.totalorder %s8, 4
      %s15 = sphi 0, %s27
      %s16 = sphi 0, %s23
      %s17 = sphi 0, %s15
      %s18 = sphi 0, %s16
      %s19 = sphi 0, %s17
      %s20 = sphi 0, %s18
      %s32 = sphi 0, %s34
      %s35 = sphi 0, %s32
      %s36 = sphi 0, %s35
      %s52 = sphi 0, %s36
      %s58 = sphi 0, %s60
      %s61 = sphi 0, %s58
      %s62 = sphi 0, %s61
      %s78 = sphi 0, %s62
      %s84 = sphi 0, %s86
      %s87 = sphi 0, %s84
      %s88 = sphi 0, %s87
      %s104 = sphi 0, %s88
    $region4: #{res_encoder_forward.28} parent=1 // loop_header_branch
      %11 = sbr.rel (%p9) target = $region8
    $region5: #{res_encoder_forward.28} parent=1 // loop_body
      %s13 = ssub.s32 %s8, 1
      %s14 = ssub.s32 %s8, 2
      %s21 = sadd.s32 1, %s16
      %p22 = scmp.ge.s32.totalorder %s21, 2
      %s23 = scalar_select %p22, 0, %s21
      %s24 = sadd.s32 1, %s15
      %s25 = scalar_select %p22, %s24, %s15
      %p26 = scmp.ge.s32.totalorder %s25, 1
      %s27 = scalar_select %p26, 0, %s25
      %s28 = ssub.s32 %s15, %s27
      %s29 = ssub.s32 %s16, %s23
      %s30 = sor.u32 %s28, %s29
      %p31 = scmp.eq.s32.totalorder %s30, 0
      %s33 = sadd.s32 %s32, 1
      %s34 = scalar_select %p31, %s32, %s33
      %p37 = pneg %p31
      %p38 = scmp.eq.s32.totalorder %s8, 1
      %p39 = por %p37, %p38
      %p40 = scmp.ne.s32.totalorder %s32, %s35
      %p41 = scmp.eq.s32.totalorder %s8, 0
      %p42 = por %p40, %p41
      %p43 = scmp.ne.s32.totalorder %s32, %s35
      %p44 = scmp.eq.s32.totalorder %s13, 1
      %p45 = por %p43, %p44
      %p46 = scmp.ne.s32.totalorder %s35, %s36
      %p47 = scmp.eq.s32.totalorder %s13, 0
      %p48 = por %p46, %p47
      %p49 = scmp.ne.s32.totalorder %s35, %s36
      %p50 = scmp.eq.s32.totalorder %s14, 1
      %p51 = por %p49, %p50
      %p53 = scmp.ne.s32.totalorder %s36, %s52
      %p54 = scmp.eq.s32.totalorder %s14, 0
      %p55 = por %p53, %p54
      %s56 = ssub.s32 %s16, %s23
      %p57 = scmp.eq.s32.totalorder %s56, 0
      %s59 = sadd.s32 %s58, 1
      %s60 = scalar_select %p57, %s58, %s59
      %p63 = pneg %p57
      %p64 = scmp.eq.s32.totalorder %s8, 1
      %p65 = por %p63, %p64
      %p66 = scmp.ne.s32.totalorder %s58, %s61
      %p67 = scmp.eq.s32.totalorder %s8, 0
      %p68 = por %p66, %p67
      %p69 = scmp.ne.s32.totalorder %s58, %s61
      %p70 = scmp.eq.s32.totalorder %s13, 1
      %p71 = por %p69, %p70
      %p72 = scmp.ne.s32.totalorder %s61, %s62
      %p73 = scmp.eq.s32.totalorder %s13, 0
      %p74 = por %p72, %p73
      %p75 = scmp.ne.s32.totalorder %s61, %s62
      %p76 = scmp.eq.s32.totalorder %s14, 1
      %p77 = por %p75, %p76
      %p79 = scmp.ne.s32.totalorder %s62, %s78
      %p80 = scmp.eq.s32.totalorder %s14, 0
      %p81 = por %p79, %p80
      %s82 = ssub.s32 %s15, %s27
      %p83 = scmp.eq.s32.totalorder %s82, 0
      %s85 = sadd.s32 %s84, 1
      %s86 = scalar_select %p83, %s84, %s85
      %p89 = pneg %p83
      %p90 = scmp.eq.s32.totalorder %s8, 1
      %p91 = por %p89, %p90
      %p92 = scmp.ne.s32.totalorder %s84, %s87
      %p93 = scmp.eq.s32.totalorder %s8, 0
      %p94 = por %p92, %p93
      %p95 = scmp.ne.s32.totalorder %s84, %s87
      %p96 = scmp.eq.s32.totalorder %s13, 1
      %p97 = por %p95, %p96
      %p98 = scmp.ne.s32.totalorder %s87, %s88
      %p99 = scmp.eq.s32.totalorder %s13, 0
      %p100 = por %p98, %p99
      %p101 = scmp.ne.s32.totalorder %s87, %s88
      %p102 = scmp.eq.s32.totalorder %s14, 1
      %p103 = por %p101, %p102
      %p105 = scmp.ne.s32.totalorder %s88, %s104
      %p106 = scmp.eq.s32.totalorder %s14, 0
      %p107 = por %p105, %p106
      %p108 = scmp.le.s32.totalorder 1, %s8
      %p109 = scmp.lt.s32.totalorder %s8, 3
      %p110 = pnand %p108, %p109
      %p111 = pneg %p110
      // Predicated region
      $region9: #{res_encoder_forward.28} parent=5 // pred_check
        _
      $region10: #{res_encoder_forward.28} parent=5 // pred_check_branch
        %113 = sbr.rel (%p110) target = $region12
      $region11: #{res_encoder_forward.28} parent=5 // pred_region
        %s114 = ssub.s32 %s8, 1
      $region12: #{res_encoder_forward.28} parent=5 // pred_fallthru
        _
      %p115 = scmp.lt.s32.totalorder %s8, 2
      // Predicated region
      $region13: #{res_encoder_forward.28} parent=5 // pred_check
        %p116 = pneg %p115
      $region14: #{res_encoder_forward.28} parent=5 // pred_check_branch
        %118 = sbr.rel (%p116) target = $region16
      $region15: #{res_encoder_forward.28} parent=5 // pred_region
        // Predicated region
        $region17: #{res_encoder_forward.28} parent=15 // pred_check
          %p119 = pneg %p42
        $region18: #{res_encoder_forward.28} parent=15 // pred_check_branch
          %121 = sbr.rel (%p119) target = $region20
        $region19: #{res_encoder_forward.28} parent=15 // pred_region
          %s122 = sand.u32 %s32, 1
          %s123 = sand.u32 %s32, 1
          %s124 = smul.addr %s123, 144
          %s125 = scalar_lea.vmem [#allocation3], %s124
          %s126 = smul.u32 4, %s15
          %s127 = smul.u32 9, %s16
          %s128 = smul.addr %s126, 18
          %s129 = sadd.s32 %s127, %s128
          %s130 = smul.addr %s129, 4
          %s131 = scalar_lea.vmem %s0, %s130
          // Predicated region
          $region21: #{res_encoder_forward.28} parent=19 // pred_check
            _
          $region22: #{res_encoder_forward.28} parent=19 // pred_check_branch
            %133 = sbr.rel (0) target = $region24
          $region23: #{res_encoder_forward.28} parent=19 // pred_region
            // Predicated region
            $region25: #{res_encoder_forward.28} parent=23 // pred_check
              _
            $region26: #{res_encoder_forward.28} parent=23 // pred_check_branch
              %135 = sbr.rel (0) target = $region28
            $region27: #{res_encoder_forward.28} parent=23 // pred_region
              %s136 = scalar_lea.vmem %s131, 32
              %s137 = scalar_lea.vmem %s125, 32 [#allocation3]
              loop: start=0, step=1, limit=1
              $region29: #{res_encoder_forward.28} parent=27 // loop_pre_header
                _
              $region30: #{res_encoder_forward.28} parent=27 // loop_header
                %s139 = sphi 0, %s143
                %p140 = scmp.ge.s32.totalorder %s139, 1
                %s144 = sphi %s131, %s131
                %s145 = sphi %s125, %s125
              $region31: #{res_encoder_forward.28} parent=27 // loop_header_branch
                %142 = sbr.rel (%p140) target = $region35
              $region32: #{res_encoder_forward.28} parent=27 // loop_body
                %v146 = vld [vmem:[%s144] sm:$0xff]
                %147 = vst [vmem:[%s145] sm:$0xff] %v146
                %v148 = vld [vmem:[%s144 + $0x8] sm:$0xff]
                %149 = vst [vmem:[%s145 + $0x8] sm:$0xff] %v148
                %v150 = vld [vmem:[%s144 + $0x10] sm:$0xff]
                %151 = vst [vmem:[%s145 + $0x10] sm:$0xff] %v150
                %v152 = vld [vmem:[%s144 + $0x18] sm:$0xff]
                %153 = vst [vmem:[%s145 + $0x18] sm:$0xff] %v152
                %v154 = vld [vmem:[%s144 + $0x48] sm:$0xff]
                %155 = vst [vmem:[%s145 + $0x24] sm:$0xff] %v154
                %v156 = vld [vmem:[%s144 + $0x50] sm:$0xff]
                %157 = vst [vmem:[%s145 + $0x2c] sm:$0xff] %v156
                %v158 = vld [vmem:[%s144 + $0x58] sm:$0xff]
                %159 = vst [vmem:[%s145 + $0x34] sm:$0xff] %v158
                %v160 = vld [vmem:[%s144 + $0x60] sm:$0xff]
                %161 = vst [vmem:[%s145 + $0x3c] sm:$0xff] %v160
                %v162 = vld [vmem:[%s144 + $0x90] sm:$0xff]
                %163 = vst [vmem:[%s145 + $0x48] sm:$0xff] %v162
                %v164 = vld [vmem:[%s144 + $0x98] sm:$0xff]
                %165 = vst [vmem:[%s145 + $0x50] sm:$0xff] %v164
                %v166 = vld [vmem:[%s144 + $0xa0] sm:$0xff]
                %167 = vst [vmem:[%s145 + $0x58] sm:$0xff] %v166
                %v168 = vld [vmem:[%s144 + $0xa8] sm:$0xff]
                %169 = vst [vmem:[%s145 + $0x60] sm:$0xff] %v168
                %v170 = vld [vmem:[%s144 + $0xd8] sm:$0xff]
                %171 = vst [vmem:[%s145 + $0x6c] sm:$0xff] %v170
                %v172 = vld [vmem:[%s144 + $0xe0] sm:$0xff]
                %173 = vst [vmem:[%s145 + $0x74] sm:$0xff] %v172
                %v174 = vld [vmem:[%s144 + $0xe8] sm:$0xff]
                %175 = vst [vmem:[%s145 + $0x7c] sm:$0xff] %v174
                %v176 = vld [vmem:[%s144 + $0xf0] sm:$0xff]
                %177 = vst [vmem:[%s145 + $0x84] sm:$0xff] %v176
              $region33: #{res_encoder_forward.28} parent=27 // loop_footer
                %s143 = sadd.s32 1, %s139
              $region34: #{res_encoder_forward.28} parent=27 // loop_footer_branch
                %138 = sbr.rel target = $region30
              $region35: #{res_encoder_forward.28} parent=27 // loop_exit
                _
              %s179 = ssub.s32 16, 1
              loop: start=0, step=1, limit=1
              $region36: #{res_encoder_forward.28} parent=27 // loop_pre_header
                _
              $region37: #{res_encoder_forward.28} parent=27 // loop_header
                %s181 = sphi 0, %s185
                %p182 = scmp.ge.s32.totalorder %s181, 1
                %s186 = sphi %s136, %s136
                %s187 = sphi %s137, %s137
              $region38: #{res_encoder_forward.28} parent=27 // loop_header_branch
                %184 = sbr.rel (%p182) target = $region42
              $region39: #{res_encoder_forward.28} parent=27 // loop_body
                %v188 = vld [vmem:[%s186] sm:%s179]
                %189 = vst [vmem:[%s187] sm:%s179] %v188
                %v190 = vld [vmem:[%s186 + $0x48] sm:%s179]
                %191 = vst [vmem:[%s187 + $0x24] sm:%s179] %v190
                %v192 = vld [vmem:[%s186 + $0x90] sm:%s179]
                %193 = vst [vmem:[%s187 + $0x48] sm:%s179] %v192
                %v194 = vld [vmem:[%s186 + $0xd8] sm:%s179]
                %195 = vst [vmem:[%s187 + $0x6c] sm:%s179] %v194
              $region40: #{res_encoder_forward.28} parent=27 // loop_footer
                %s185 = sadd.s32 1, %s181
              $region41: #{res_encoder_forward.28} parent=27 // loop_footer_branch
                %180 = sbr.rel target = $region37
              $region42: #{res_encoder_forward.28} parent=27 // loop_exit
                _
            $region28: #{res_encoder_forward.28} parent=23 // pred_fallthru
              _
          $region24: #{res_encoder_forward.28} parent=19 // pred_fallthru
            _
          %196 = vnop
        $region20: #{res_encoder_forward.28} parent=15 // pred_fallthru
          _
        // Predicated region
        $region43: #{res_encoder_forward.28} parent=15 // pred_check
          %p197 = pneg %p68
        $region44: #{res_encoder_forward.28} parent=15 // pred_check_branch
          %199 = sbr.rel (%p197) target = $region46
        $region45: #{res_encoder_forward.28} parent=15 // pred_region
          %s200 = smul.u32 144, %s16
          %p201 = scmp.lt.s32.totalorder %s200, 287
          %s202 = scalar_select %p201, %s200, 287
          %s203 = smul.addr %s202, 2
          %s204 = smul.addr %s203, 4
          %s205 = scalar_lea.vmem %s1, %s204
          %s206 = smul.u32 144, %s16
        $region46: #{res_encoder_forward.28} parent=15 // pred_fallthru
          _
      $region16: #{res_encoder_forward.28} parent=5 // pred_fallthru
        _
      %p207 = scmp.le.s32.totalorder 1, %s8
      %p208 = scmp.lt.s32.totalorder %s8, 3
      %p209 = pnand %p207, %p208
      %p210 = pneg %p209
      // Predicated region
      $region47: #{res_encoder_forward.28} parent=5 // pred_check
        _
      $region48: #{res_encoder_forward.28} parent=5 // pred_check_branch
        %212 = sbr.rel (%p209) target = $region50
      $region49: #{res_encoder_forward.28} parent=5 // pred_region
        %s213 = ssub.s32 %s8, 1
        %s214 = sand.u32 %s35, 1
        %s215 = sand.u32 %s35, 1
        %s216 = smul.addr %s215, 144
        %s217 = scalar_lea.vmem [#allocation3], %s216
        // Predicated region
        $region51: #{res_encoder_forward.28} parent=49 // pred_check
          %p218 = pneg %p48
        $region52: #{res_encoder_forward.28} parent=49 // pred_check_branch
          %220 = sbr.rel (%p218) target = $region54
        $region53: #{res_encoder_forward.28} parent=49 // pred_region
          _
        $region54: #{res_encoder_forward.28} parent=49 // pred_fallthru
          _
        %s221 = sand.u32 %s35, 1
        %s222 = sand.u32 %s35, 1
        %s223 = smul.addr %s222, 144
        %s224 = scalar_lea.vmem [#allocation3], %s223
        %p225 = pneg %p48
        %p226 = pneg %p45
        %s227 = smul.u32 144, %s18
        %p228 = scmp.lt.s32.totalorder %s227, 287
        %s229 = scalar_select %p228, %s227, 287
        %s230 = smul.addr %s229, 2
        %s231 = smul.addr %s230, 4
        %s232 = scalar_lea.vmem %s1, %s231
        %p233 = pneg %p74
        %p234 = pneg %p71
        %p235 = pneg %p100
        %p236 = pneg %p97
        %s237 = smul.u32 4, %s17
        %p238 = scmp.lt.s32.totalorder %s237, 3
        %s239 = scalar_select %p238, %s237, 3
        %s240 = smul.addr %s239, 2
        %s241 = smul.addr %s240, 8
        %s242 = scalar_lea.vmem %s2, %s241
        %s243 = smul.u32 4, %s17
        %s244 = smul.u32 9, %s18
        %s245 = smul.u32 144, %s18
        %p246 = scmp.lt.s32.totalorder %s245, 287
        %s247 = scalar_select %p246, %s245, 287
        %s248 = smul.addr %s247, 2
        %s249 = smul.addr %s248, 4
        %s250 = scalar_lea.vmem %s1, %s249
        %s251 = smul.u32 144, %s18
        %s252 = smul.u32 4, %s17
        %p253 = scmp.lt.s32.totalorder %s252, 3
        %s254 = scalar_select %p253, %s252, 3
        %s255 = smul.addr %s254, 2
        %s256 = smul.addr %s255, 8
        %s257 = scalar_lea.vmem %s2, %s256
        %s258 = smul.u32 4, %s17
        %p260 = scmp.eq.s32.totalorder %s18, 0
        // Predicated region
        $region55: #{res_encoder_forward.28} parent=49 // pred_check
          %p261 = pneg %p260
        $region56: #{res_encoder_forward.28} parent=49 // pred_check_branch
          %263 = sbr.rel (%p261) target = $region58
        $region57: #{res_encoder_forward.28} parent=49 // pred_region
          %264 = vst [vmem:[#allocation2] sm:$0xff] 0.0
          %265 = vst [vmem:[#allocation2 + $0x8] sm:$0xff] 0.0
          %266 = vst [vmem:[#allocation2 + $0x10] sm:$0xff] 0.0
          %267 = vst [vmem:[#allocation2 + $0x18] sm:$0xff] 0.0
          %268 = vst [vmem:[#allocation2 + $0x20] sm:$0xff] 0.0
          %269 = vst [vmem:[#allocation2 + $0x28] sm:$0xff] 0.0
          %270 = vst [vmem:[#allocation2 + $0x30] sm:$0xff] 0.0
          %271 = vst [vmem:[#allocation2 + $0x38] sm:$0xff] 0.0
        $region58: #{res_encoder_forward.28} parent=49 // pred_fallthru
          _
        %v272 = vld [vmem:[#allocation2] sm:$0xff]
        %v273 = vld [vmem:[#allocation2 + $0x8] sm:$0xff]
        %v274 = vld [vmem:[#allocation2 + $0x10] sm:$0xff]
        %v275 = vld [vmem:[#allocation2 + $0x18] sm:$0xff]
        %v276 = vld [vmem:[#allocation2 + $0x20] sm:$0xff]
        %v277 = vld [vmem:[#allocation2 + $0x28] sm:$0xff]
        %v278 = vld [vmem:[#allocation2 + $0x30] sm:$0xff]
        %v279 = vld [vmem:[#allocation2 + $0x38] sm:$0xff]
        %v280 = vld [vmem:[%s217] sm:$0xff]
        %v281 = vld [vmem:[%s217 + $0x8] sm:$0xff]
        %v282 = vld [vmem:[%s217 + $0x10] sm:$0xff]
        %v283 = vld [vmem:[%s217 + $0x18] sm:$0xff]
        %v284 = vld [vmem:[%s217 + $0x20] sm:$0xf]
        %v285 = vld [vmem:[%s217 + $0x24] sm:$0xff]
        %v286 = vld [vmem:[%s217 + $0x2c] sm:$0xff]
        %v287 = vld [vmem:[%s217 + $0x34] sm:$0xff]
        %v288 = vld [vmem:[%s217 + $0x3c] sm:$0xff]
        %v289 = vld [vmem:[%s217 + $0x44] sm:$0xf]
        %v290 = vld [vmem:[%s217 + $0x48] sm:$0xff]
        %v291 = vld [vmem:[%s217 + $0x50] sm:$0xff]
        %v292 = vld [vmem:[%s217 + $0x58] sm:$0xff]
        %v293 = vld [vmem:[%s217 + $0x60] sm:$0xff]
        %v294 = vld [vmem:[%s217 + $0x68] sm:$0xf]
        %v295 = vld [vmem:[%s217 + $0x6c] sm:$0xff]
        %v296 = vld [vmem:[%s217 + $0x74] sm:$0xff]
        %v297 = vld [vmem:[%s217 + $0x7c] sm:$0xff]
        %v298 = vld [vmem:[%s217 + $0x84] sm:$0xff]
        %v299 = vld [vmem:[%s217 + $0x8c] sm:$0xf]
        %v300 = vld [vmem:[%s250] sm:$0xff]
        %v301 = vld [vmem:[%s250 + $0x8] sm:$0xff]
        %v302 = vld [vmem:[%s250 + $0x10] sm:$0xff]
        %v303 = vld [vmem:[%s250 + $0x18] sm:$0xff]
        %v304 = vld [vmem:[%s250 + $0x20] sm:$0xff]
        %v305 = vld [vmem:[%s250 + $0x28] sm:$0xff]
        %v306 = vld [vmem:[%s250 + $0x30] sm:$0xff]
        %v307 = vld [vmem:[%s250 + $0x38] sm:$0xff]
        %v308 = vld [vmem:[%s250 + $0x40] sm:$0xff]
        %v309 = vld [vmem:[%s250 + $0x48] sm:$0xff]
        %v310 = vld [vmem:[%s250 + $0x50] sm:$0xff]
        %v311 = vld [vmem:[%s250 + $0x58] sm:$0xff]
        %v312 = vld [vmem:[%s250 + $0x60] sm:$0xff]
        %v313 = vld [vmem:[%s250 + $0x68] sm:$0xff]
        %v314 = vld [vmem:[%s250 + $0x70] sm:$0xff]
        %v315 = vld [vmem:[%s250 + $0x78] sm:$0xff]
        %v316 = vld [vmem:[%s250 + $0x80] sm:$0xff]
        %v317 = vld [vmem:[%s250 + $0x88] sm:$0xff]
        %v318 = vld [vmem:[%s250 + $0x90] sm:$0xff]
        %v319 = vld [vmem:[%s250 + $0x98] sm:$0xff]
        %v320 = vld [vmem:[%s250 + $0xa0] sm:$0xff]
        %v321 = vld [vmem:[%s250 + $0xa8] sm:$0xff]
        %v322 = vld [vmem:[%s250 + $0xb0] sm:$0xff]
        %v323 = vld [vmem:[%s250 + $0xb8] sm:$0xff]
        %v324 = vld [vmem:[%s250 + $0xc0] sm:$0xff]
        %v325 = vld [vmem:[%s250 + $0xc8] sm:$0xff]
        %v326 = vld [vmem:[%s250 + $0xd0] sm:$0xff]
        %v327 = vld [vmem:[%s250 + $0xd8] sm:$0xff]
        %v328 = vld [vmem:[%s250 + $0xe0] sm:$0xff]
        %v329 = vld [vmem:[%s250 + $0xe8] sm:$0xff]
        %v330 = vld [vmem:[%s250 + $0xf0] sm:$0xff]
        %v331 = vld [vmem:[%s250 + $0xf8] sm:$0xff]
        %v332 = vld [vmem:[%s250 + $0x100] sm:$0xff]
        %v333 = vld [vmem:[%s250 + $0x108] sm:$0xff]
        %v334 = vld [vmem:[%s250 + $0x110] sm:$0xff]
        %v335 = vld [vmem:[%s250 + $0x118] sm:$0xff]
        %v336 = vld [vmem:[%s250 + $0x120] sm:$0xff]
        %v337 = vld [vmem:[%s250 + $0x128] sm:$0xff]
        %v338 = vld [vmem:[%s250 + $0x130] sm:$0xff]
        %v339 = vld [vmem:[%s250 + $0x138] sm:$0xff]
        %v340 = vld [vmem:[%s250 + $0x140] sm:$0xff]
        %v341 = vld [vmem:[%s250 + $0x148] sm:$0xff]
        %v342 = vld [vmem:[%s250 + $0x150] sm:$0xff]
        %v343 = vld [vmem:[%s250 + $0x158] sm:$0xff]
        %v344 = vld [vmem:[%s250 + $0x160] sm:$0xff]
        %v345 = vld [vmem:[%s250 + $0x168] sm:$0xff]
        %v346 = vld [vmem:[%s250 + $0x170] sm:$0xff]
        %v347 = vld [vmem:[%s250 + $0x178] sm:$0xff]
        %v348 = vld [vmem:[%s250 + $0x180] sm:$0xff]
        %v349 = vld [vmem:[%s250 + $0x188] sm:$0xff]
        %v350 = vld [vmem:[%s250 + $0x190] sm:$0xff]
        %v351 = vld [vmem:[%s250 + $0x198] sm:$0xff]
        %v352 = vld [vmem:[%s250 + $0x1a0] sm:$0xff]
        %v353 = vld [vmem:[%s250 + $0x1a8] sm:$0xff]
        %v354 = vld [vmem:[%s250 + $0x1b0] sm:$0xff]
        %v355 = vld [vmem:[%s250 + $0x1b8] sm:$0xff]
        %v356 = vld [vmem:[%s250 + $0x1c0] sm:$0xff]
        %v357 = vld [vmem:[%s250 + $0x1c8] sm:$0xff]
        %v358 = vld [vmem:[%s250 + $0x1d0] sm:$0xff]
        %v359 = vld [vmem:[%s250 + $0x1d8] sm:$0xff]
        %v360 = vld [vmem:[%s250 + $0x1e0] sm:$0xff]
        %v361 = vld [vmem:[%s250 + $0x1e8] sm:$0xff]
        %v362 = vld [vmem:[%s250 + $0x1f0] sm:$0xff]
        %v363 = vld [vmem:[%s250 + $0x1f8] sm:$0xff]
        %v364 = vld [vmem:[%s250 + $0x200] sm:$0xff]
        %v365 = vld [vmem:[%s250 + $0x208] sm:$0xff]
        %v366 = vld [vmem:[%s250 + $0x210] sm:$0xff]
        %v367 = vld [vmem:[%s250 + $0x218] sm:$0xff]
        %v368 = vld [vmem:[%s250 + $0x220] sm:$0xff]
        %v369 = vld [vmem:[%s250 + $0x228] sm:$0xff]
        %v370 = vld [vmem:[%s250 + $0x230] sm:$0xff]
        %v371 = vld [vmem:[%s250 + $0x238] sm:$0xff]
        %v372 = vld [vmem:[%s250 + $0x240] sm:$0xff]
        %v373 = vld [vmem:[%s250 + $0x248] sm:$0xff]
        %v374 = vld [vmem:[%s250 + $0x250] sm:$0xff]
        %v375 = vld [vmem:[%s250 + $0x258] sm:$0xff]
        %v376 = vld [vmem:[%s250 + $0x260] sm:$0xff]
        %v377 = vld [vmem:[%s250 + $0x268] sm:$0xff]
        %v378 = vld [vmem:[%s250 + $0x270] sm:$0xff]
        %v379 = vld [vmem:[%s250 + $0x278] sm:$0xff]
        %v380 = vld [vmem:[%s250 + $0x280] sm:$0xff]
        %v381 = vld [vmem:[%s250 + $0x288] sm:$0xff]
        %v382 = vld [vmem:[%s250 + $0x290] sm:$0xff]
        %v383 = vld [vmem:[%s250 + $0x298] sm:$0xff]
        %v384 = vld [vmem:[%s250 + $0x2a0] sm:$0xff]
        %v385 = vld [vmem:[%s250 + $0x2a8] sm:$0xff]
        %v386 = vld [vmem:[%s250 + $0x2b0] sm:$0xff]
        %v387 = vld [vmem:[%s250 + $0x2b8] sm:$0xff]
        %v388 = vld [vmem:[%s250 + $0x2c0] sm:$0xff]
        %v389 = vld [vmem:[%s250 + $0x2c8] sm:$0xff]
        %v390 = vld [vmem:[%s250 + $0x2d0] sm:$0xff]
        %v391 = vld [vmem:[%s250 + $0x2d8] sm:$0xff]
        %v392 = vld [vmem:[%s250 + $0x2e0] sm:$0xff]
        %v393 = vld [vmem:[%s250 + $0x2e8] sm:$0xff]
        %v394 = vld [vmem:[%s250 + $0x2f0] sm:$0xff]
        %v395 = vld [vmem:[%s250 + $0x2f8] sm:$0xff]
        %v396 = vld [vmem:[%s250 + $0x300] sm:$0xff]
        %v397 = vld [vmem:[%s250 + $0x308] sm:$0xff]
        %v398 = vld [vmem:[%s250 + $0x310] sm:$0xff]
        %v399 = vld [vmem:[%s250 + $0x318] sm:$0xff]
        %v400 = vld [vmem:[%s250 + $0x320] sm:$0xff]
        %v401 = vld [vmem:[%s250 + $0x328] sm:$0xff]
        %v402 = vld [vmem:[%s250 + $0x330] sm:$0xff]
        %v403 = vld [vmem:[%s250 + $0x338] sm:$0xff]
        %v404 = vld [vmem:[%s250 + $0x340] sm:$0xff]
        %v405 = vld [vmem:[%s250 + $0x348] sm:$0xff]
        %v406 = vld [vmem:[%s250 + $0x350] sm:$0xff]
        %v407 = vld [vmem:[%s250 + $0x358] sm:$0xff]
        %v408 = vld [vmem:[%s250 + $0x360] sm:$0xff]
        %v409 = vld [vmem:[%s250 + $0x368] sm:$0xff]
        %v410 = vld [vmem:[%s250 + $0x370] sm:$0xff]
        %v411 = vld [vmem:[%s250 + $0x378] sm:$0xff]
        %v412 = vld [vmem:[%s250 + $0x380] sm:$0xff]
        %v413 = vld [vmem:[%s250 + $0x388] sm:$0xff]
        %v414 = vld [vmem:[%s250 + $0x390] sm:$0xff]
        %v415 = vld [vmem:[%s250 + $0x398] sm:$0xff]
        %v416 = vld [vmem:[%s250 + $0x3a0] sm:$0xff]
        %v417 = vld [vmem:[%s250 + $0x3a8] sm:$0xff]
        %v418 = vld [vmem:[%s250 + $0x3b0] sm:$0xff]
        %v419 = vld [vmem:[%s250 + $0x3b8] sm:$0xff]
        %v420 = vld [vmem:[%s250 + $0x3c0] sm:$0xff]
        %v421 = vld [vmem:[%s250 + $0x3c8] sm:$0xff]
        %v422 = vld [vmem:[%s250 + $0x3d0] sm:$0xff]
        %v423 = vld [vmem:[%s250 + $0x3d8] sm:$0xff]
        %v424 = vld [vmem:[%s250 + $0x3e0] sm:$0xff]
        %v425 = vld [vmem:[%s250 + $0x3e8] sm:$0xff]
        %v426 = vld [vmem:[%s250 + $0x3f0] sm:$0xff]
        %v427 = vld [vmem:[%s250 + $0x3f8] sm:$0xff]
        %v428 = vld [vmem:[%s250 + $0x400] sm:$0xff]
        %v429 = vld [vmem:[%s250 + $0x408] sm:$0xff]
        %v430 = vld [vmem:[%s250 + $0x410] sm:$0xff]
        %v431 = vld [vmem:[%s250 + $0x418] sm:$0xff]
        %v432 = vld [vmem:[%s250 + $0x420] sm:$0xff]
        %v433 = vld [vmem:[%s250 + $0x428] sm:$0xff]
        %v434 = vld [vmem:[%s250 + $0x430] sm:$0xff]
        %v435 = vld [vmem:[%s250 + $0x438] sm:$0xff]
        %v436 = vld [vmem:[%s250 + $0x440] sm:$0xff]
        %v437 = vld [vmem:[%s250 + $0x448] sm:$0xff]
        %v438 = vld [vmem:[%s250 + $0x450] sm:$0xff]
        %v439 = vld [vmem:[%s250 + $0x458] sm:$0xff]
        %v440 = vld [vmem:[%s250 + $0x460] sm:$0xff]
        %v441 = vld [vmem:[%s250 + $0x468] sm:$0xff]
        %v442 = vld [vmem:[%s250 + $0x470] sm:$0xff]
        %v443 = vld [vmem:[%s250 + $0x478] sm:$0xff]
        %v464 = vunpack.c.l.b16 %v280
        %v465 = vunpack.c.h.b16 %v280
        %v466 = vunpack.c.l.b16 %v281
        %v467 = vunpack.c.h.b16 %v281
        %v468 = vunpack.c.l.b16 %v282
        %v469 = vunpack.c.h.b16 %v282
        %v470 = vunpack.c.l.b16 %v283
        %v471 = vunpack.c.h.b16 %v283
        %v472 = vunpack.c.l.b16 %v284
        %v473 = vunpack.c.l.b16 %v285
        %v474 = vunpack.c.h.b16 %v285
        %v475 = vunpack.c.l.b16 %v286
        %v476 = vunpack.c.h.b16 %v286
        %v477 = vunpack.c.l.b16 %v287
        %v478 = vunpack.c.h.b16 %v287
        %v479 = vunpack.c.l.b16 %v288
        %v480 = vunpack.c.h.b16 %v288
        %v481 = vunpack.c.l.b16 %v289
        %v482 = vunpack.c.l.b16 %v290
        %v483 = vunpack.c.h.b16 %v290
        %v484 = vunpack.c.l.b16 %v291
        %v485 = vunpack.c.h.b16 %v291
        %v486 = vunpack.c.l.b16 %v292
        %v487 = vunpack.c.h.b16 %v292
        %v488 = vunpack.c.l.b16 %v293
        %v489 = vunpack.c.h.b16 %v293
        %v490 = vunpack.c.l.b16 %v294
        %v491 = vunpack.c.l.b16 %v295
        %v492 = vunpack.c.h.b16 %v295
        %v493 = vunpack.c.l.b16 %v296
        %v494 = vunpack.c.h.b16 %v296
        %v495 = vunpack.c.l.b16 %v297
        %v496 = vunpack.c.h.b16 %v297
        %v497 = vunpack.c.l.b16 %v298
        %v498 = vunpack.c.h.b16 %v298
        %v499 = vunpack.c.l.b16 %v299
        %v500 = vpack.c.b16 %v473, %v464
        %v501 = vpack.c.b16 %v474, %v465
        %v502 = vpack.c.b16 %v475, %v466
        %v503 = vpack.c.b16 %v476, %v467
        %v504 = vpack.c.b16 %v477, %v468
        %v505 = vpack.c.b16 %v478, %v469
        %v506 = vpack.c.b16 %v479, %v470
        %v507 = vpack.c.b16 %v480, %v471
        %v508 = vpack.c.b16 %v481, %v472
        %v509 = vpack.c.b16 %v491, %v482
        %v510 = vpack.c.b16 %v492, %v483
        %v511 = vpack.c.b16 %v493, %v484
        %v512 = vpack.c.b16 %v494, %v485
        %v513 = vpack.c.b16 %v495, %v486
        %v514 = vpack.c.b16 %v496, %v487
        %v515 = vpack.c.b16 %v497, %v488
        %v516 = vpack.c.b16 %v498, %v489
        %v517 = vpack.c.b16 %v499, %v490
        %v680 = vunpack.c.l.b16 %v300
        %v681 = vunpack.c.h.b16 %v300
        %v682 = vunpack.c.l.b16 %v301
        %v683 = vunpack.c.h.b16 %v301
        %v684 = vunpack.c.l.b16 %v302
        %v685 = vunpack.c.h.b16 %v302
        %v686 = vunpack.c.l.b16 %v303
        %v687 = vunpack.c.h.b16 %v303
        %v688 = vunpack.c.l.b16 %v304
        %v689 = vunpack.c.h.b16 %v304
        %v690 = vunpack.c.l.b16 %v305
        %v691 = vunpack.c.h.b16 %v305
        %v692 = vunpack.c.l.b16 %v306
        %v693 = vunpack.c.h.b16 %v306
        %v694 = vunpack.c.l.b16 %v307
        %v695 = vunpack.c.h.b16 %v307
        %v696 = vunpack.c.l.b16 %v308
        %v697 = vunpack.c.h.b16 %v308
        %v698 = vunpack.c.l.b16 %v309
        %v699 = vunpack.c.h.b16 %v309
        %v700 = vunpack.c.l.b16 %v310
        %v701 = vunpack.c.h.b16 %v310
        %v702 = vunpack.c.l.b16 %v311
        %v703 = vunpack.c.h.b16 %v311
        %v704 = vunpack.c.l.b16 %v312
        %v705 = vunpack.c.h.b16 %v312
        %v706 = vunpack.c.l.b16 %v313
        %v707 = vunpack.c.h.b16 %v313
        %v708 = vunpack.c.l.b16 %v314
        %v709 = vunpack.c.h.b16 %v314
        %v710 = vunpack.c.l.b16 %v315
        %v711 = vunpack.c.h.b16 %v315
        %v712 = vunpack.c.l.b16 %v316
        %v713 = vunpack.c.h.b16 %v316
        %v714 = vunpack.c.l.b16 %v317
        %v715 = vunpack.c.h.b16 %v317
        %v716 = vunpack.c.l.b16 %v318
        %v717 = vunpack.c.h.b16 %v318
        %v718 = vunpack.c.l.b16 %v319
        %v719 = vunpack.c.h.b16 %v319
        %v720 = vunpack.c.l.b16 %v320
        %v721 = vunpack.c.h.b16 %v320
        %v722 = vunpack.c.l.b16 %v321
        %v723 = vunpack.c.h.b16 %v321
        %v724 = vunpack.c.l.b16 %v322
        %v725 = vunpack.c.h.b16 %v322
        %v726 = vunpack.c.l.b16 %v323
        %v727 = vunpack.c.h.b16 %v323
        %v728 = vunpack.c.l.b16 %v324
        %v729 = vunpack.c.h.b16 %v324
        %v730 = vunpack.c.l.b16 %v325
        %v731 = vunpack.c.h.b16 %v325
        %v732 = vunpack.c.l.b16 %v326
        %v733 = vunpack.c.h.b16 %v326
        %v734 = vunpack.c.l.b16 %v327
        %v735 = vunpack.c.h.b16 %v327
        %v736 = vunpack.c.l.b16 %v328
        %v737 = vunpack.c.h.b16 %v328
        %v738 = vunpack.c.l.b16 %v329
        %v739 = vunpack.c.h.b16 %v329
        %v740 = vunpack.c.l.b16 %v330
        %v741 = vunpack.c.h.b16 %v330
        %v742 = vunpack.c.l.b16 %v331
        %v743 = vunpack.c.h.b16 %v331
        %v744 = vunpack.c.l.b16 %v332
        %v745 = vunpack.c.h.b16 %v332
        %v746 = vunpack.c.l.b16 %v333
        %v747 = vunpack.c.h.b16 %v333
        %v748 = vunpack.c.l.b16 %v334
        %v749 = vunpack.c.h.b16 %v334
        %v750 = vunpack.c.l.b16 %v335
        %v751 = vunpack.c.h.b16 %v335
        %v752 = vunpack.c.l.b16 %v336
        %v753 = vunpack.c.h.b16 %v336
        %v754 = vunpack.c.l.b16 %v337
        %v755 = vunpack.c.h.b16 %v337
        %v756 = vunpack.c.l.b16 %v338
        %v757 = vunpack.c.h.b16 %v338
        %v758 = vunpack.c.l.b16 %v339
        %v759 = vunpack.c.h.b16 %v339
        %v760 = vunpack.c.l.b16 %v340
        %v761 = vunpack.c.h.b16 %v340
        %v762 = vunpack.c.l.b16 %v341
        %v763 = vunpack.c.h.b16 %v341
        %v764 = vunpack.c.l.b16 %v342
        %v765 = vunpack.c.h.b16 %v342
        %v766 = vunpack.c.l.b16 %v343
        %v767 = vunpack.c.h.b16 %v343
        %v768 = vunpack.c.l.b16 %v344
        %v769 = vunpack.c.h.b16 %v344
        %v770 = vunpack.c.l.b16 %v345
        %v771 = vunpack.c.h.b16 %v345
        %v772 = vunpack.c.l.b16 %v346
        %v773 = vunpack.c.h.b16 %v346
        %v774 = vunpack.c.l.b16 %v347
        %v775 = vunpack.c.h.b16 %v347
        %v776 = vunpack.c.l.b16 %v348
        %v777 = vunpack.c.h.b16 %v348
        %v778 = vunpack.c.l.b16 %v349
        %v779 = vunpack.c.h.b16 %v349
        %v780 = vunpack.c.l.b16 %v350
        %v781 = vunpack.c.h.b16 %v350
        %v782 = vunpack.c.l.b16 %v351
        %v783 = vunpack.c.h.b16 %v351
        %v784 = vunpack.c.l.b16 %v352
        %v785 = vunpack.c.h.b16 %v352
        %v786 = vunpack.c.l.b16 %v353
        %v787 = vunpack.c.h.b16 %v353
        %v788 = vunpack.c.l.b16 %v354
        %v789 = vunpack.c.h.b16 %v354
        %v790 = vunpack.c.l.b16 %v355
        %v791 = vunpack.c.h.b16 %v355
        %v792 = vunpack.c.l.b16 %v356
        %v793 = vunpack.c.h.b16 %v356
        %v794 = vunpack.c.l.b16 %v357
        %v795 = vunpack.c.h.b16 %v357
        %v796 = vunpack.c.l.b16 %v358
        %v797 = vunpack.c.h.b16 %v358
        %v798 = vunpack.c.l.b16 %v359
        %v799 = vunpack.c.h.b16 %v359
        %v800 = vunpack.c.l.b16 %v360
        %v801 = vunpack.c.h.b16 %v360
        %v802 = vunpack.c.l.b16 %v361
        %v803 = vunpack.c.h.b16 %v361
        %v804 = vunpack.c.l.b16 %v362
        %v805 = vunpack.c.h.b16 %v362
        %v806 = vunpack.c.l.b16 %v363
        %v807 = vunpack.c.h.b16 %v363
        %v808 = vunpack.c.l.b16 %v364
        %v809 = vunpack.c.h.b16 %v364
        %v810 = vunpack.c.l.b16 %v365
        %v811 = vunpack.c.h.b16 %v365
        %v812 = vunpack.c.l.b16 %v366
        %v813 = vunpack.c.h.b16 %v366
        %v814 = vunpack.c.l.b16 %v367
        %v815 = vunpack.c.h.b16 %v367
        %v816 = vunpack.c.l.b16 %v368
        %v817 = vunpack.c.h.b16 %v368
        %v818 = vunpack.c.l.b16 %v369
        %v819 = vunpack.c.h.b16 %v369
        %v820 = vunpack.c.l.b16 %v370
        %v821 = vunpack.c.h.b16 %v370
        %v822 = vunpack.c.l.b16 %v371
        %v823 = vunpack.c.h.b16 %v371
        %v824 = vunpack.c.l.b16 %v372
        %v825 = vunpack.c.h.b16 %v372
        %v826 = vunpack.c.l.b16 %v373
        %v827 = vunpack.c.h.b16 %v373
        %v828 = vunpack.c.l.b16 %v374
        %v829 = vunpack.c.h.b16 %v374
        %v830 = vunpack.c.l.b16 %v375
        %v831 = vunpack.c.h.b16 %v375
        %v832 = vunpack.c.l.b16 %v376
        %v833 = vunpack.c.h.b16 %v376
        %v834 = vunpack.c.l.b16 %v377
        %v835 = vunpack.c.h.b16 %v377
        %v836 = vunpack.c.l.b16 %v378
        %v837 = vunpack.c.h.b16 %v378
        %v838 = vunpack.c.l.b16 %v379
        %v839 = vunpack.c.h.b16 %v379
        %v840 = vunpack.c.l.b16 %v380
        %v841 = vunpack.c.h.b16 %v380
        %v842 = vunpack.c.l.b16 %v381
        %v843 = vunpack.c.h.b16 %v381
        %v844 = vunpack.c.l.b16 %v382
        %v845 = vunpack.c.h.b16 %v382
        %v846 = vunpack.c.l.b16 %v383
        %v847 = vunpack.c.h.b16 %v383
        %v848 = vunpack.c.l.b16 %v384
        %v849 = vunpack.c.h.b16 %v384
        %v850 = vunpack.c.l.b16 %v385
        %v851 = vunpack.c.h.b16 %v385
        %v852 = vunpack.c.l.b16 %v386
        %v853 = vunpack.c.h.b16 %v386
        %v854 = vunpack.c.l.b16 %v387
        %v855 = vunpack.c.h.b16 %v387
        %v856 = vunpack.c.l.b16 %v388
        %v857 = vunpack.c.h.b16 %v388
        %v858 = vunpack.c.l.b16 %v389
        %v859 = vunpack.c.h.b16 %v389
        %v860 = vunpack.c.l.b16 %v390
        %v861 = vunpack.c.h.b16 %v390
        %v862 = vunpack.c.l.b16 %v391
        %v863 = vunpack.c.h.b16 %v391
        %v864 = vunpack.c.l.b16 %v392
        %v865 = vunpack.c.h.b16 %v392
        %v866 = vunpack.c.l.b16 %v393
        %v867 = vunpack.c.h.b16 %v393
        %v868 = vunpack.c.l.b16 %v394
        %v869 = vunpack.c.h.b16 %v394
        %v870 = vunpack.c.l.b16 %v395
        %v871 = vunpack.c.h.b16 %v395
        %v872 = vunpack.c.l.b16 %v396
        %v873 = vunpack.c.h.b16 %v396
        %v874 = vunpack.c.l.b16 %v397
        %v875 = vunpack.c.h.b16 %v397
        %v876 = vunpack.c.l.b16 %v398
        %v877 = vunpack.c.h.b16 %v398
        %v878 = vunpack.c.l.b16 %v399
        %v879 = vunpack.c.h.b16 %v399
        %v880 = vunpack.c.l.b16 %v400
        %v881 = vunpack.c.h.b16 %v400
        %v882 = vunpack.c.l.b16 %v401
        %v883 = vunpack.c.h.b16 %v401
        %v884 = vunpack.c.l.b16 %v402
        %v885 = vunpack.c.h.b16 %v402
        %v886 = vunpack.c.l.b16 %v403
        %v887 = vunpack.c.h.b16 %v403
        %v888 = vunpack.c.l.b16 %v404
        %v889 = vunpack.c.h.b16 %v404
        %v890 = vunpack.c.l.b16 %v405
        %v891 = vunpack.c.h.b16 %v405
        %v892 = vunpack.c.l.b16 %v406
        %v893 = vunpack.c.h.b16 %v406
        %v894 = vunpack.c.l.b16 %v407
        %v895 = vunpack.c.h.b16 %v407
        %v896 = vunpack.c.l.b16 %v408
        %v897 = vunpack.c.h.b16 %v408
        %v898 = vunpack.c.l.b16 %v409
        %v899 = vunpack.c.h.b16 %v409
        %v900 = vunpack.c.l.b16 %v410
        %v901 = vunpack.c.h.b16 %v410
        %v902 = vunpack.c.l.b16 %v411
        %v903 = vunpack.c.h.b16 %v411
        %v904 = vunpack.c.l.b16 %v412
        %v905 = vunpack.c.h.b16 %v412
        %v906 = vunpack.c.l.b16 %v413
        %v907 = vunpack.c.h.b16 %v413
        %v908 = vunpack.c.l.b16 %v414
        %v909 = vunpack.c.h.b16 %v414
        %v910 = vunpack.c.l.b16 %v415
        %v911 = vunpack.c.h.b16 %v415
        %v912 = vunpack.c.l.b16 %v416
        %v913 = vunpack.c.h.b16 %v416
        %v914 = vunpack.c.l.b16 %v417
        %v915 = vunpack.c.h.b16 %v417
        %v916 = vunpack.c.l.b16 %v418
        %v917 = vunpack.c.h.b16 %v418
        %v918 = vunpack.c.l.b16 %v419
        %v919 = vunpack.c.h.b16 %v419
        %v920 = vunpack.c.l.b16 %v420
        %v921 = vunpack.c.h.b16 %v420
        %v922 = vunpack.c.l.b16 %v421
        %v923 = vunpack.c.h.b16 %v421
        %v924 = vunpack.c.l.b16 %v422
        %v925 = vunpack.c.h.b16 %v422
        %v926 = vunpack.c.l.b16 %v423
        %v927 = vunpack.c.h.b16 %v423
        %v928 = vunpack.c.l.b16 %v424
        %v929 = vunpack.c.h.b16 %v424
        %v930 = vunpack.c.l.b16 %v425
        %v931 = vunpack.c.h.b16 %v425
        %v932 = vunpack.c.l.b16 %v426
        %v933 = vunpack.c.h.b16 %v426
        %v934 = vunpack.c.l.b16 %v427
        %v935 = vunpack.c.h.b16 %v427
        %v936 = vunpack.c.l.b16 %v428
        %v937 = vunpack.c.h.b16 %v428
        %v938 = vunpack.c.l.b16 %v429
        %v939 = vunpack.c.h.b16 %v429
        %v940 = vunpack.c.l.b16 %v430
        %v941 = vunpack.c.h.b16 %v430
        %v942 = vunpack.c.l.b16 %v431
        %v943 = vunpack.c.h.b16 %v431
        %v944 = vunpack.c.l.b16 %v432
        %v945 = vunpack.c.h.b16 %v432
        %v946 = vunpack.c.l.b16 %v433
        %v947 = vunpack.c.h.b16 %v433
        %v948 = vunpack.c.l.b16 %v434
        %v949 = vunpack.c.h.b16 %v434
        %v950 = vunpack.c.l.b16 %v435
        %v951 = vunpack.c.h.b16 %v435
        %v952 = vunpack.c.l.b16 %v436
        %v953 = vunpack.c.h.b16 %v436
        %v954 = vunpack.c.l.b16 %v437
        %v955 = vunpack.c.h.b16 %v437
        %v956 = vunpack.c.l.b16 %v438
        %v957 = vunpack.c.h.b16 %v438
        %v958 = vunpack.c.l.b16 %v439
        %v959 = vunpack.c.h.b16 %v439
        %v960 = vunpack.c.l.b16 %v440
        %v961 = vunpack.c.h.b16 %v440
        %v962 = vunpack.c.l.b16 %v441
        %v963 = vunpack.c.h.b16 %v441
        %v964 = vunpack.c.l.b16 %v442
        %v965 = vunpack.c.h.b16 %v442
        %v966 = vunpack.c.l.b16 %v443
        %v967 = vunpack.c.h.b16 %v443
        %v968 = vpack.c.b16 %v682, %v680
        %v969 = vpack.c.b16 %v683, %v681
        %v970 = vpack.c.b16 %v686, %v684
        %v971 = vpack.c.b16 %v687, %v685
        %v972 = vpack.c.b16 %v690, %v688
        %v973 = vpack.c.b16 %v691, %v689
        %v974 = vpack.c.b16 %v694, %v692
        %v975 = vpack.c.b16 %v695, %v693
        %v976 = vpack.c.b16 %v698, %v696
        %v977 = vpack.c.b16 %v699, %v697
        %v978 = vpack.c.b16 %v702, %v700
        %v979 = vpack.c.b16 %v703, %v701
        %v980 = vpack.c.b16 %v706, %v704
        %v981 = vpack.c.b16 %v707, %v705
        %v982 = vpack.c.b16 %v710, %v708
        %v983 = vpack.c.b16 %v711, %v709
        %v984 = vpack.c.b16 %v714, %v712
        %v985 = vpack.c.b16 %v715, %v713
        %v986 = vpack.c.b16 %v718, %v716
        %v987 = vpack.c.b16 %v719, %v717
        %v988 = vpack.c.b16 %v722, %v720
        %v989 = vpack.c.b16 %v723, %v721
        %v990 = vpack.c.b16 %v726, %v724
        %v991 = vpack.c.b16 %v727, %v725
        %v992 = vpack.c.b16 %v730, %v728
        %v993 = vpack.c.b16 %v731, %v729
        %v994 = vpack.c.b16 %v734, %v732
        %v995 = vpack.c.b16 %v735, %v733
        %v996 = vpack.c.b16 %v738, %v736
        %v997 = vpack.c.b16 %v739, %v737
        %v998 = vpack.c.b16 %v742, %v740
        %v999 = vpack.c.b16 %v743, %v741
        %v1000 = vpack.c.b16 %v746, %v744
        %v1001 = vpack.c.b16 %v747, %v745
        %v1002 = vpack.c.b16 %v750, %v748
        %v1003 = vpack.c.b16 %v751, %v749
        %v1004 = vpack.c.b16 %v754, %v752
        %v1005 = vpack.c.b16 %v755, %v753
        %v1006 = vpack.c.b16 %v758, %v756
        %v1007 = vpack.c.b16 %v759, %v757
        %v1008 = vpack.c.b16 %v762, %v760
        %v1009 = vpack.c.b16 %v763, %v761
        %v1010 = vpack.c.b16 %v766, %v764
        %v1011 = vpack.c.b16 %v767, %v765
        %v1012 = vpack.c.b16 %v770, %v768
        %v1013 = vpack.c.b16 %v771, %v769
        %v1014 = vpack.c.b16 %v774, %v772
        %v1015 = vpack.c.b16 %v775, %v773
        %v1016 = vpack.c.b16 %v778, %v776
        %v1017 = vpack.c.b16 %v779, %v777
        %v1018 = vpack.c.b16 %v782, %v780
        %v1019 = vpack.c.b16 %v783, %v781
        %v1020 = vpack.c.b16 %v786, %v784
        %v1021 = vpack.c.b16 %v787, %v785
        %v1022 = vpack.c.b16 %v790, %v788
        %v1023 = vpack.c.b16 %v791, %v789
        %v1024 = vpack.c.b16 %v794, %v792
        %v1025 = vpack.c.b16 %v795, %v793
        %v1026 = vpack.c.b16 %v798, %v796
        %v1027 = vpack.c.b16 %v799, %v797
        %v1028 = vpack.c.b16 %v802, %v800
        %v1029 = vpack.c.b16 %v803, %v801
        %v1030 = vpack.c.b16 %v806, %v804
        %v1031 = vpack.c.b16 %v807, %v805
        %v1032 = vpack.c.b16 %v810, %v808
        %v1033 = vpack.c.b16 %v811, %v809
        %v1034 = vpack.c.b16 %v814, %v812
        %v1035 = vpack.c.b16 %v815, %v813
        %v1036 = vpack.c.b16 %v818, %v816
        %v1037 = vpack.c.b16 %v819, %v817
        %v1038 = vpack.c.b16 %v822, %v820
        %v1039 = vpack.c.b16 %v823, %v821
        %v1040 = vpack.c.b16 %v826, %v824
        %v1041 = vpack.c.b16 %v827, %v825
        %v1042 = vpack.c.b16 %v830, %v828
        %v1043 = vpack.c.b16 %v831, %v829
        %v1044 = vpack.c.b16 %v834, %v832
        %v1045 = vpack.c.b16 %v835, %v833
        %v1046 = vpack.c.b16 %v838, %v836
        %v1047 = vpack.c.b16 %v839, %v837
        %v1048 = vpack.c.b16 %v842, %v840
        %v1049 = vpack.c.b16 %v843, %v841
        %v1050 = vpack.c.b16 %v846, %v844
        %v1051 = vpack.c.b16 %v847, %v845
        %v1052 = vpack.c.b16 %v850, %v848
        %v1053 = vpack.c.b16 %v851, %v849
        %v1054 = vpack.c.b16 %v854, %v852
        %v1055 = vpack.c.b16 %v855, %v853
        %v1056 = vpack.c.b16 %v858, %v856
        %v1057 = vpack.c.b16 %v859, %v857
        %v1058 = vpack.c.b16 %v862, %v860
        %v1059 = vpack.c.b16 %v863, %v861
        %v1060 = vpack.c.b16 %v866, %v864
        %v1061 = vpack.c.b16 %v867, %v865
        %v1062 = vpack.c.b16 %v870, %v868
        %v1063 = vpack.c.b16 %v871, %v869
        %v1064 = vpack.c.b16 %v874, %v872
        %v1065 = vpack.c.b16 %v875, %v873
        %v1066 = vpack.c.b16 %v878, %v876
        %v1067 = vpack.c.b16 %v879, %v877
        %v1068 = vpack.c.b16 %v882, %v880
        %v1069 = vpack.c.b16 %v883, %v881
        %v1070 = vpack.c.b16 %v886, %v884
        %v1071 = vpack.c.b16 %v887, %v885
        %v1072 = vpack.c.b16 %v890, %v888
        %v1073 = vpack.c.b16 %v891, %v889
        %v1074 = vpack.c.b16 %v894, %v892
        %v1075 = vpack.c.b16 %v895, %v893
        %v1076 = vpack.c.b16 %v898, %v896
        %v1077 = vpack.c.b16 %v899, %v897
        %v1078 = vpack.c.b16 %v902, %v900
        %v1079 = vpack.c.b16 %v903, %v901
        %v1080 = vpack.c.b16 %v906, %v904
        %v1081 = vpack.c.b16 %v907, %v905
        %v1082 = vpack.c.b16 %v910, %v908
        %v1083 = vpack.c.b16 %v911, %v909
        %v1084 = vpack.c.b16 %v914, %v912
        %v1085 = vpack.c.b16 %v915, %v913
        %v1086 = vpack.c.b16 %v918, %v916
        %v1087 = vpack.c.b16 %v919, %v917
        %v1088 = vpack.c.b16 %v922, %v920
        %v1089 = vpack.c.b16 %v923, %v921
        %v1090 = vpack.c.b16 %v926, %v924
        %v1091 = vpack.c.b16 %v927, %v925
        %v1092 = vpack.c.b16 %v930, %v928
        %v1093 = vpack.c.b16 %v931, %v929
        %v1094 = vpack.c.b16 %v934, %v932
        %v1095 = vpack.c.b16 %v935, %v933
        %v1096 = vpack.c.b16 %v938, %v936
        %v1097 = vpack.c.b16 %v939, %v937
        %v1098 = vpack.c.b16 %v942, %v940
        %v1099 = vpack.c.b16 %v943, %v941
        %v1100 = vpack.c.b16 %v946, %v944
        %v1101 = vpack.c.b16 %v947, %v945
        %v1102 = vpack.c.b16 %v950, %v948
        %v1103 = vpack.c.b16 %v951, %v949
        %v1104 = vpack.c.b16 %v954, %v952
        %v1105 = vpack.c.b16 %v955, %v953
        %v1106 = vpack.c.b16 %v958, %v956
        %v1107 = vpack.c.b16 %v959, %v957
        %v1108 = vpack.c.b16 %v962, %v960
        %v1109 = vpack.c.b16 %v963, %v961
        %v1110 = vpack.c.b16 %v966, %v964
        %v1111 = vpack.c.b16 %v967, %v965
        %1256 = vmatprep.subr.bf16.mxu0 %v983
        %1257 = vmatpush1.bf16.msra.mxu0 %v982
        %1258 = vmatprep.subr.bf16.mxu0 %v981
        %1259 = vmatpush1.bf16.msra.mxu0 %v980
        %1260 = vmatprep.subr.bf16.mxu0 %v979
        %1261 = vmatpush1.bf16.msra.mxu0 %v978
        %1262 = vmatprep.subr.bf16.mxu0 %v977
        %1263 = vmatpush1.bf16.msra.mxu0 %v976
        %1264 = vmatprep.subr.bf16.mxu0 %v975
        %1265 = vmatpush1.bf16.msra.mxu0 %v974
        %1266 = vmatprep.subr.bf16.mxu0 %v973
        %1267 = vmatpush1.bf16.msra.mxu0 %v972
        %1268 = vmatprep.subr.bf16.mxu0 %v971
        %1269 = vmatpush1.bf16.msra.mxu0 %v970
        %1270 = vmatprep.subr.bf16.mxu0 %v969
        %1271 = vmatpush1.bf16.msra.mxu0 %v968
        %1272 = vmatprep.subr.bf16.mxu0 %v999
        %1273 = vmatpush2.bf16.msra.mxu0 %v998
        %1274 = vmatprep.subr.bf16.mxu0 %v997
        %1275 = vmatpush2.bf16.msra.mxu0 %v996
        %1276 = vmatprep.subr.bf16.mxu0 %v995
        %1277 = vmatpush2.bf16.msra.mxu0 %v994
        %1278 = vmatprep.subr.bf16.mxu0 %v993
        %1279 = vmatpush2.bf16.msra.mxu0 %v992
        %1280 = vmatprep.subr.bf16.mxu0 %v991
        %1281 = vmatpush2.bf16.msra.mxu0 %v990
        %1282 = vmatprep.subr.bf16.mxu0 %v989
        %1283 = vmatpush2.bf16.msra.mxu0 %v988
        %1284 = vmatprep.subr.bf16.mxu0 %v987
        %1285 = vmatpush2.bf16.msra.mxu0 %v986
        %1286 = vmatprep.subr.bf16.mxu0 %v985
        %1287 = vmatpush2.bf16.msra.mxu0 %v984
        %1288 = vmatprep.mubr.bf16.mxu0 %v501
        %1289 = vmatmul.mubr.bf16.gmra.mxu0 %v500
        %v1290 = vpop.f32.mrf.mxu0
        %v1291 = vadd.f32 0.0, %v1290
        %v1292 = vpop.f32.mrf.mxu0
        %v1293 = vadd.f32 0.0, %v1292
        %v1294 = vpop.f32.mrf.mxu0
        %v1295 = vadd.f32 0.0, %v1294
        %v1296 = vpop.f32.mrf.mxu0
        %v1297 = vadd.f32 0.0, %v1296
        %1298 = vmatprep.mubr.bf16.mxu0 %v510
        %1299 = vmatmul.mubr.bf16.gmra.mxu0 %v509
        %v1300 = vpop.f32.mrf.mxu0
        %v1301 = vadd.f32 0.0, %v1300
        %v1302 = vpop.f32.mrf.mxu0
        %v1303 = vadd.f32 0.0, %v1302
        %v1304 = vpop.f32.mrf.mxu0
        %v1305 = vadd.f32 0.0, %v1304
        %v1306 = vpop.f32.mrf.mxu0
        %v1307 = vadd.f32 0.0, %v1306
        %1308 = vdwg.mxu0
        %1309 = vmatprep.subr.bf16.mxu0 %v1015
        %1310 = vmatpush1.bf16.msra.mxu0 %v1014
        %1311 = vmatprep.subr.bf16.mxu0 %v1013
        %1312 = vmatpush1.bf16.msra.mxu0 %v1012
        %1313 = vmatprep.subr.bf16.mxu0 %v1011
        %1314 = vmatpush1.bf16.msra.mxu0 %v1010
        %1315 = vmatprep.subr.bf16.mxu0 %v1009
        %1316 = vmatpush1.bf16.msra.mxu0 %v1008
        %1317 = vmatprep.subr.bf16.mxu0 %v1007
        %1318 = vmatpush1.bf16.msra.mxu0 %v1006
        %1319 = vmatprep.subr.bf16.mxu0 %v1005
        %1320 = vmatpush1.bf16.msra.mxu0 %v1004
        %1321 = vmatprep.subr.bf16.mxu0 %v1003
        %1322 = vmatpush1.bf16.msra.mxu0 %v1002
        %1323 = vmatprep.subr.bf16.mxu0 %v1001
        %1324 = vmatpush1.bf16.msra.mxu0 %v1000
        %1325 = vmatprep.subr.bf16.mxu0 %v1031
        %1326 = vmatpush2.bf16.msra.mxu0 %v1030
        %1327 = vmatprep.subr.bf16.mxu0 %v1029
        %1328 = vmatpush2.bf16.msra.mxu0 %v1028
        %1329 = vmatprep.subr.bf16.mxu0 %v1027
        %1330 = vmatpush2.bf16.msra.mxu0 %v1026
        %1331 = vmatprep.subr.bf16.mxu0 %v1025
        %1332 = vmatpush2.bf16.msra.mxu0 %v1024
        %1333 = vmatprep.subr.bf16.mxu0 %v1023
        %1334 = vmatpush2.bf16.msra.mxu0 %v1022
        %1335 = vmatprep.subr.bf16.mxu0 %v1021
        %1336 = vmatpush2.bf16.msra.mxu0 %v1020
        %1337 = vmatprep.subr.bf16.mxu0 %v1019
        %1338 = vmatpush2.bf16.msra.mxu0 %v1018
        %1339 = vmatprep.subr.bf16.mxu0 %v1017
        %1340 = vmatpush2.bf16.msra.mxu0 %v1016
        %1341 = vmatprep.mubr.bf16.mxu0 %v503
        %1342 = vmatmul.mubr.bf16.gmra.mxu0 %v502
        %v1343 = vpop.f32.mrf.mxu0
        %v1344 = vadd.f32 %v1291, %v1343
        %v1345 = vpop.f32.mrf.mxu0
        %v1346 = vadd.f32 %v1293, %v1345
        %v1347 = vpop.f32.mrf.mxu0
        %v1348 = vadd.f32 %v1295, %v1347
        %v1349 = vpop.f32.mrf.mxu0
        %v1350 = vadd.f32 %v1297, %v1349
        %1351 = vmatprep.mubr.bf16.mxu0 %v512
        %1352 = vmatmul.mubr.bf16.gmra.mxu0 %v511
        %v1353 = vpop.f32.mrf.mxu0
        %v1354 = vadd.f32 %v1301, %v1353
        %v1355 = vpop.f32.mrf.mxu0
        %v1356 = vadd.f32 %v1303, %v1355
        %v1357 = vpop.f32.mrf.mxu0
        %v1358 = vadd.f32 %v1305, %v1357
        %v1359 = vpop.f32.mrf.mxu0
        %v1360 = vadd.f32 %v1307, %v1359
        %1361 = vdwg.mxu0
        %1362 = vmatprep.subr.bf16.mxu0 %v1047
        %1363 = vmatpush1.bf16.msra.mxu0 %v1046
        %1364 = vmatprep.subr.bf16.mxu0 %v1045
        %1365 = vmatpush1.bf16.msra.mxu0 %v1044
        %1366 = vmatprep.subr.bf16.mxu0 %v1043
        %1367 = vmatpush1.bf16.msra.mxu0 %v1042
        %1368 = vmatprep.subr.bf16.mxu0 %v1041
        %1369 = vmatpush1.bf16.msra.mxu0 %v1040
        %1370 = vmatprep.subr.bf16.mxu0 %v1039
        %1371 = vmatpush1.bf16.msra.mxu0 %v1038
        %1372 = vmatprep.subr.bf16.mxu0 %v1037
        %1373 = vmatpush1.bf16.msra.mxu0 %v1036
        %1374 = vmatprep.subr.bf16.mxu0 %v1035
        %1375 = vmatpush1.bf16.msra.mxu0 %v1034
        %1376 = vmatprep.subr.bf16.mxu0 %v1033
        %1377 = vmatpush1.bf16.msra.mxu0 %v1032
        %1378 = vmatprep.subr.bf16.mxu0 %v1063
        %1379 = vmatpush2.bf16.msra.mxu0 %v1062
        %1380 = vmatprep.subr.bf16.mxu0 %v1061
        %1381 = vmatpush2.bf16.msra.mxu0 %v1060
        %1382 = vmatprep.subr.bf16.mxu0 %v1059
        %1383 = vmatpush2.bf16.msra.mxu0 %v1058
        %1384 = vmatprep.subr.bf16.mxu0 %v1057
        %1385 = vmatpush2.bf16.msra.mxu0 %v1056
        %1386 = vmatprep.subr.bf16.mxu0 %v1055
        %1387 = vmatpush2.bf16.msra.mxu0 %v1054
        %1388 = vmatprep.subr.bf16.mxu0 %v1053
        %1389 = vmatpush2.bf16.msra.mxu0 %v1052
        %1390 = vmatprep.subr.bf16.mxu0 %v1051
        %1391 = vmatpush2.bf16.msra.mxu0 %v1050
        %1392 = vmatprep.subr.bf16.mxu0 %v1049
        %1393 = vmatpush2.bf16.msra.mxu0 %v1048
        %1394 = vmatprep.mubr.bf16.mxu0 %v505
        %1395 = vmatmul.mubr.bf16.gmra.mxu0 %v504
        %v1396 = vpop.f32.mrf.mxu0
        %v1397 = vadd.f32 %v1344, %v1396
        %v1398 = vpop.f32.mrf.mxu0
        %v1399 = vadd.f32 %v1346, %v1398
        %v1400 = vpop.f32.mrf.mxu0
        %v1401 = vadd.f32 %v1348, %v1400
        %v1402 = vpop.f32.mrf.mxu0
        %v1403 = vadd.f32 %v1350, %v1402
        %1404 = vmatprep.mubr.bf16.mxu0 %v514
        %1405 = vmatmul.mubr.bf16.gmra.mxu0 %v513
        %v1406 = vpop.f32.mrf.mxu0
        %v1407 = vadd.f32 %v1354, %v1406
        %v1408 = vpop.f32.mrf.mxu0
        %v1409 = vadd.f32 %v1356, %v1408
        %v1410 = vpop.f32.mrf.mxu0
        %v1411 = vadd.f32 %v1358, %v1410
        %v1412 = vpop.f32.mrf.mxu0
        %v1413 = vadd.f32 %v1360, %v1412
        %1414 = vdwg.mxu0
        %1415 = vmatprep.subr.bf16.mxu0 %v1079
        %1416 = vmatpush1.bf16.msra.mxu0 %v1078
        %1417 = vmatprep.subr.bf16.mxu0 %v1077
        %1418 = vmatpush1.bf16.msra.mxu0 %v1076
        %1419 = vmatprep.subr.bf16.mxu0 %v1075
        %1420 = vmatpush1.bf16.msra.mxu0 %v1074
        %1421 = vmatprep.subr.bf16.mxu0 %v1073
        %1422 = vmatpush1.bf16.msra.mxu0 %v1072
        %1423 = vmatprep.subr.bf16.mxu0 %v1071
        %1424 = vmatpush1.bf16.msra.mxu0 %v1070
        %1425 = vmatprep.subr.bf16.mxu0 %v1069
        %1426 = vmatpush1.bf16.msra.mxu0 %v1068
        %1427 = vmatprep.subr.bf16.mxu0 %v1067
        %1428 = vmatpush1.bf16.msra.mxu0 %v1066
        %1429 = vmatprep.subr.bf16.mxu0 %v1065
        %1430 = vmatpush1.bf16.msra.mxu0 %v1064
        %1431 = vmatprep.subr.bf16.mxu0 %v1095
        %1432 = vmatpush2.bf16.msra.mxu0 %v1094
        %1433 = vmatprep.subr.bf16.mxu0 %v1093
        %1434 = vmatpush2.bf16.msra.mxu0 %v1092
        %1435 = vmatprep.subr.bf16.mxu0 %v1091
        %1436 = vmatpush2.bf16.msra.mxu0 %v1090
        %1437 = vmatprep.subr.bf16.mxu0 %v1089
        %1438 = vmatpush2.bf16.msra.mxu0 %v1088
        %1439 = vmatprep.subr.bf16.mxu0 %v1087
        %1440 = vmatpush2.bf16.msra.mxu0 %v1086
        %1441 = vmatprep.subr.bf16.mxu0 %v1085
        %1442 = vmatpush2.bf16.msra.mxu0 %v1084
        %1443 = vmatprep.subr.bf16.mxu0 %v1083
        %1444 = vmatpush2.bf16.msra.mxu0 %v1082
        %1445 = vmatprep.subr.bf16.mxu0 %v1081
        %1446 = vmatpush2.bf16.msra.mxu0 %v1080
        %1447 = vmatprep.mubr.bf16.mxu0 %v507
        %1448 = vmatmul.mubr.bf16.gmra.mxu0 %v506
        %v1449 = vpop.f32.mrf.mxu0
        %v1450 = vadd.f32 %v1397, %v1449
        %v1451 = vpop.f32.mrf.mxu0
        %v1452 = vadd.f32 %v1399, %v1451
        %v1453 = vpop.f32.mrf.mxu0
        %v1454 = vadd.f32 %v1401, %v1453
        %v1455 = vpop.f32.mrf.mxu0
        %v1456 = vadd.f32 %v1403, %v1455
        %1457 = vmatprep.mubr.bf16.mxu0 %v516
        %1458 = vmatmul.mubr.bf16.gmra.mxu0 %v515
        %v1459 = vpop.f32.mrf.mxu0
        %v1460 = vadd.f32 %v1407, %v1459
        %v1461 = vpop.f32.mrf.mxu0
        %v1462 = vadd.f32 %v1409, %v1461
        %v1463 = vpop.f32.mrf.mxu0
        %v1464 = vadd.f32 %v1411, %v1463
        %v1465 = vpop.f32.mrf.mxu0
        %v1466 = vadd.f32 %v1413, %v1465
        %1467 = vdwg.mxu0
        %1468 = vmatprep.subr.bf16.mxu0 %v1111
        %1469 = vmatpush1.bf16.msra.mxu0 %v1110
        %1470 = vmatprep.subr.bf16.mxu0 %v1109
        %1471 = vmatpush1.bf16.msra.mxu0 %v1108
        %1472 = vmatprep.subr.bf16.mxu0 %v1107
        %1473 = vmatpush1.bf16.msra.mxu0 %v1106
        %1474 = vmatprep.subr.bf16.mxu0 %v1105
        %1475 = vmatpush1.bf16.msra.mxu0 %v1104
        %1476 = vmatprep.subr.bf16.mxu0 %v1103
        %1477 = vmatpush1.bf16.msra.mxu0 %v1102
        %1478 = vmatprep.subr.bf16.mxu0 %v1101
        %1479 = vmatpush1.bf16.msra.mxu0 %v1100
        %1480 = vmatprep.subr.bf16.mxu0 %v1099
        %1481 = vmatpush1.bf16.msra.mxu0 %v1098
        %1482 = vmatprep.subr.bf16.mxu0 %v1097
        %1483 = vmatpush1.bf16.msra.mxu0 %v1096
        %1484 = vmatprep.subr.bf16.mxu0 0
        %1485 = vmatpush2.bf16.msra.mxu0 0
        %1486 = vmatprep.subr.bf16.mxu0 0
        %1487 = vmatpush2.bf16.msra.mxu0 0
        %1488 = vmatprep.subr.bf16.mxu0 0
        %1489 = vmatpush2.bf16.msra.mxu0 0
        %1490 = vmatprep.subr.bf16.mxu0 0
        %1491 = vmatpush2.bf16.msra.mxu0 0
        %1492 = vmatprep.subr.bf16.mxu0 0
        %1493 = vmatpush2.bf16.msra.mxu0 0
        %1494 = vmatprep.subr.bf16.mxu0 0
        %1495 = vmatpush2.bf16.msra.mxu0 0
        %1496 = vmatprep.subr.bf16.mxu0 0
        %1497 = vmatpush2.bf16.msra.mxu0 0
        %1498 = vmatprep.subr.bf16.mxu0 0
        %1499 = vmatpush2.bf16.msra.mxu0 0
        %1500 = vmatprep.mubr.bf16.mxu0 0
        %1501 = vmatmul.mubr.bf16.gmra.mxu0 %v508
        %v1502 = vpop.f32.mrf.mxu0
        %v1503 = vadd.f32 %v1450, %v1502
        %v1504 = vpop.f32.mrf.mxu0
        %v1505 = vadd.f32 %v1452, %v1504
        %v1506 = vpop.f32.mrf.mxu0
        %v1507 = vadd.f32 %v1454, %v1506
        %v1508 = vpop.f32.mrf.mxu0
        %v1509 = vadd.f32 %v1456, %v1508
        %1510 = vmatprep.mubr.bf16.mxu0 0
        %1511 = vmatmul.mubr.bf16.gmra.mxu0 %v517
        %v1512 = vpop.f32.mrf.mxu0
        %v1513 = vadd.f32 %v1460, %v1512
        %v1514 = vpop.f32.mrf.mxu0
        %v1515 = vadd.f32 %v1462, %v1514
        %v1516 = vpop.f32.mrf.mxu0
        %v1517 = vadd.f32 %v1464, %v1516
        %v1518 = vpop.f32.mrf.mxu0
        %v1519 = vadd.f32 %v1466, %v1518
        %1520 = vdwg.mxu0
        %v1521 = vadd.f32 %v272, %v1503
        %v1522 = vadd.f32 %v273, %v1505
        %v1523 = vadd.f32 %v274, %v1507
        %v1524 = vadd.f32 %v275, %v1509
        %v1525 = vadd.f32 %v276, %v1513
        %v1526 = vadd.f32 %v277, %v1515
        %v1527 = vadd.f32 %v278, %v1517
        %v1528 = vadd.f32 %v279, %v1519
        %1529 = vst [vmem:[#allocation2] sm:$0xff] %v1521
        %1530 = vst [vmem:[#allocation2 + $0x8] sm:$0xff] %v1522
        %1531 = vst [vmem:[#allocation2 + $0x10] sm:$0xff] %v1523
        %1532 = vst [vmem:[#allocation2 + $0x18] sm:$0xff] %v1524
        %1533 = vst [vmem:[#allocation2 + $0x20] sm:$0xff] %v1525
        %1534 = vst [vmem:[#allocation2 + $0x28] sm:$0xff] %v1526
        %1535 = vst [vmem:[#allocation2 + $0x30] sm:$0xff] %v1527
        %1536 = vst [vmem:[#allocation2 + $0x38] sm:$0xff] %v1528
        %p1537 = scmp.eq.s32.totalorder %s18, 1
        // Predicated region
        $region59: #{res_encoder_forward.28} parent=49 // pred_check
          %p1538 = pneg %p1537
        $region60: #{res_encoder_forward.28} parent=49 // pred_check_branch
          %1540 = sbr.rel (%p1538) target = $region62
        $region61: #{res_encoder_forward.28} parent=49 // pred_region
          %v1541 = vld [vmem:[#allocation2] sm:$0xff]
          %v1542 = vld [vmem:[#allocation2 + $0x8] sm:$0xff]
          %v1543 = vld [vmem:[#allocation2 + $0x10] sm:$0xff]
          %v1544 = vld [vmem:[#allocation2 + $0x18] sm:$0xff]
          %v1545 = vld [vmem:[#allocation2 + $0x20] sm:$0xff]
          %v1546 = vld [vmem:[#allocation2 + $0x28] sm:$0xff]
          %v1547 = vld [vmem:[#allocation2 + $0x30] sm:$0xff]
          %v1548 = vld [vmem:[#allocation2 + $0x38] sm:$0xff]
          %1549 = vst [vmem:[%s257] sm:$0xff] %v1541
          %1550 = vst [vmem:[%s257 + $0x8] sm:$0xff] %v1542
          %1551 = vst [vmem:[%s257 + $0x10] sm:$0xff] %v1543
          %1552 = vst [vmem:[%s257 + $0x18] sm:$0xff] %v1544
          %1553 = vst [vmem:[%s257 + $0x20] sm:$0xff] %v1545
          %1554 = vst [vmem:[%s257 + $0x28] sm:$0xff] %v1546
          %1555 = vst [vmem:[%s257 + $0x30] sm:$0xff] %v1547
          %1556 = vst [vmem:[%s257 + $0x38] sm:$0xff] %v1548
        $region62: #{res_encoder_forward.28} parent=49 // pred_fallthru
          _
        %s1557 = smul.u32 4, %s17
        %p1558 = scmp.lt.s32.totalorder %s1557, 3
        %s1559 = scalar_select %p1558, %s1557, 3
        %s1560 = smul.addr %s1559, 2
        %s1561 = smul.addr %s1560, 8
        %s1562 = scalar_lea.vmem %s2, %s1561
        // Predicated region
        $region63: #{res_encoder_forward.28} parent=49 // pred_check
          %p1563 = pneg %p97
        $region64: #{res_encoder_forward.28} parent=49 // pred_check_branch
          %1565 = sbr.rel (%p1563) target = $region66
        $region65: #{res_encoder_forward.28} parent=49 // pred_region
          %s1566 = smul.u32 4, %s17
        $region66: #{res_encoder_forward.28} parent=49 // pred_fallthru
          _
        // Predicated region
        $region67: #{res_encoder_forward.28} parent=49 // pred_check
          %p1567 = pneg %p97
        $region68: #{res_encoder_forward.28} parent=49 // pred_check_branch
          %1569 = sbr.rel (%p1567) target = $region70
        $region69: #{res_encoder_forward.28} parent=49 // pred_region
          %s1570 = smul.u32 4, %s17
          %p1571 = scmp.lt.s32.totalorder %s1570, 3
          %s1572 = scalar_select %p1571, %s1570, 3
          %s1573 = smul.addr %s1572, 2
          %s1574 = smul.addr %s1573, 8
          %s1575 = scalar_lea.vmem %s2, %s1574
        $region70: #{res_encoder_forward.28} parent=49 // pred_fallthru
          _
      $region50: #{res_encoder_forward.28} parent=5 // pred_fallthru
        _
      %p1576 = scmp.le.s32.totalorder 2, %s8
      // Predicated region
      $region71: #{res_encoder_forward.28} parent=5 // pred_check
        %p1577 = pneg %p1576
      $region72: #{res_encoder_forward.28} parent=5 // pred_check_branch
        %1579 = sbr.rel (%p1577) target = $region74
      $region73: #{res_encoder_forward.28} parent=5 // pred_region
        %s1580 = ssub.s32 %s8, 2
      $region74: #{res_encoder_forward.28} parent=5 // pred_fallthru
        _
    $region6: #{res_encoder_forward.28} parent=1 // loop_footer
      %s12 = sadd.s32 1, %s8
    $region7: #{res_encoder_forward.28} parent=1 // loop_footer_branch
      %7 = sbr.rel target = $region3
    $region8: #{res_encoder_forward.28} parent=1 // loop_exit
      _

// kernel: res_encoder_forward.31
$region0: #{res_encoder_forward.31}
  #allocation0 [shape = 'u32[]', space=smem, size = 0x4, offset = 0x4, fixed_abs, tag = 'smem constant byte address 0x4 - core index']
  #allocation1 [shape = 'u32[144,128]{1,0:T(1,128)}', space=vmem, size = 0x12000, scoped, tag = 'internal scratch']
  %s0 = inlined_call_operand.vmem [shape: bf16[8,256], index: 0, kind: input, shape index: {}]
  %s1 = inlined_call_operand.vmem [shape: bf16[256,256], index: 1, kind: input, shape index: {}]
  %s2 = inlined_call_operand.vmem [shape: f32[1,256], index: 2, kind: input, shape index: {}]
  %s3 = inlined_call_operand.vmem [shape: bf16[256,256], index: 3, kind: input, shape index: {}]
  %s4 = inlined_call_operand.vmem [shape: f32[1,256], index: 4, kind: input, shape index: {}]
  %s5 = inlined_call_operand.vmem [shape: f32[8,256], index: 5, kind: output, shape index: {}]
  %s6 = sld [smem:[#allocation0]]
  $region30: #{res_encoder_forward.31} parent=0
    _
  %s8 = ssub.s32 1, %s6
  %s9 = scalar_select 0, %s8, %s6
  // Predicated region
  $region2: #{res_encoder_forward.31} parent=0 // pred_check
    _
  $region3: #{res_encoder_forward.31} parent=0 // pred_check_branch
    %11 = sbr.rel (0) target = $region5
  $region4: #{res_encoder_forward.31} parent=0 // pred_region
    _
  $region5: #{res_encoder_forward.31} parent=0 // pred_fallthru
    _
  // Predicated region
  $region6: #{res_encoder_forward.31} parent=0 // pred_check
    _
  $region7: #{res_encoder_forward.31} parent=0 // pred_check_branch
    %13 = sbr.rel (0) target = $region9
  $region8: #{res_encoder_forward.31} parent=0 // pred_region
    _
  $region9: #{res_encoder_forward.31} parent=0 // pred_fallthru
    _
  // Predicated region
  $region10: #{res_encoder_forward.31} parent=0 // pred_check
    _
  $region11: #{res_encoder_forward.31} parent=0 // pred_check_branch
    %15 = sbr.rel (0) target = $region13
  $region12: #{res_encoder_forward.31} parent=0 // pred_region
    _
  $region13: #{res_encoder_forward.31} parent=0 // pred_fallthru
    _
  // Predicated region
  $region14: #{res_encoder_forward.31} parent=0 // pred_check
    _
  $region15: #{res_encoder_forward.31} parent=0 // pred_check_branch
    %17 = sbr.rel (0) target = $region17
  $region16: #{res_encoder_forward.31} parent=0 // pred_region
    _
  $region17: #{res_encoder_forward.31} parent=0 // pred_fallthru
    _
  // Predicated region
  $region18: #{res_encoder_forward.31} parent=0 // pred_check
    _
  $region19: #{res_encoder_forward.31} parent=0 // pred_check_branch
    %19 = sbr.rel (0) target = $region21
  $region20: #{res_encoder_forward.31} parent=0 // pred_region
    _
  $region21: #{res_encoder_forward.31} parent=0 // pred_fallthru
    _
  %v20 = vld [vmem:[%s0] sm:$0xff]
  %v21 = vld [vmem:[%s1] sm:$0xff]
  %v22 = vld [vmem:[%s1 + $0x8] sm:$0xff]
  %v23 = vld [vmem:[%s1 + $0x10] sm:$0xff]
  %v24 = vld [vmem:[%s1 + $0x18] sm:$0xff]
  %v25 = vld [vmem:[%s1 + $0x20] sm:$0xff]
  %v26 = vld [vmem:[%s1 + $0x28] sm:$0xff]
  %v27 = vld [vmem:[%s1 + $0x30] sm:$0xff]
  %v28 = vld [vmem:[%s1 + $0x38] sm:$0xff]
  %v29 = vld [vmem:[%s1 + $0x40] sm:$0xff]
  %v30 = vld [vmem:[%s1 + $0x48] sm:$0xff]
  %v31 = vld [vmem:[%s1 + $0x50] sm:$0xff]
  %v32 = vld [vmem:[%s1 + $0x58] sm:$0xff]
  %v33 = vld [vmem:[%s1 + $0x60] sm:$0xff]
  %v34 = vld [vmem:[%s1 + $0x68] sm:$0xff]
  %v35 = vld [vmem:[%s1 + $0x70] sm:$0xff]
  %v36 = vld [vmem:[%s1 + $0x78] sm:$0xff]
  %v37 = vld [vmem:[%s1 + $0x80] sm:$0xff]
  %v38 = vld [vmem:[%s1 + $0x88] sm:$0xff]
  %v39 = vld [vmem:[%s1 + $0x90] sm:$0xff]
  %v40 = vld [vmem:[%s1 + $0x98] sm:$0xff]
  %v41 = vld [vmem:[%s1 + $0xa0] sm:$0xff]
  %v42 = vld [vmem:[%s1 + $0xa8] sm:$0xff]
  %v43 = vld [vmem:[%s1 + $0xb0] sm:$0xff]
  %v44 = vld [vmem:[%s1 + $0xb8] sm:$0xff]
  %v45 = vld [vmem:[%s1 + $0xc0] sm:$0xff]
  %v46 = vld [vmem:[%s1 + $0xc8] sm:$0xff]
  %v47 = vld [vmem:[%s1 + $0xd0] sm:$0xff]
  %v48 = vld [vmem:[%s1 + $0xd8] sm:$0xff]
  %v49 = vld [vmem:[%s1 + $0xe0] sm:$0xff]
  %v50 = vld [vmem:[%s1 + $0xe8] sm:$0xff]
  %v51 = vld [vmem:[%s1 + $0xf0] sm:$0xff]
  %v52 = vld [vmem:[%s1 + $0xf8] sm:$0xff]
  %v53 = vld [vmem:[%s2] sm:$0x3]
  %v55 = vlaneseq
  %v56 = vshrl.u32 %v55, 7
  %v57 = vsub.s32 0, %v56
  %v58 = vrot.slane %v53, %v57
  %v59 = vlaneseq
  %v60 = vshrl.u32 %v59, 7
  %v61 = vsub.s32 1, %v60
  %v62 = vrot.slane %v53, %v61
  %v66 = vunpack.c.l.b16 %v20
  %v67 = vunpack.c.h.b16 %v20
  %v68 = vpack.c.b16 %v66, %v66
  %v69 = vpack.c.b16 %v67, %v67
  %v104 = vunpack.c.l.b16 %v21
  %v105 = vunpack.c.h.b16 %v21
  %v106 = vunpack.c.l.b16 %v22
  %v107 = vunpack.c.h.b16 %v22
  %v108 = vunpack.c.l.b16 %v23
  %v109 = vunpack.c.h.b16 %v23
  %v110 = vunpack.c.l.b16 %v24
  %v111 = vunpack.c.h.b16 %v24
  %v112 = vunpack.c.l.b16 %v25
  %v113 = vunpack.c.h.b16 %v25
  %v114 = vunpack.c.l.b16 %v26
  %v115 = vunpack.c.h.b16 %v26
  %v116 = vunpack.c.l.b16 %v27
  %v117 = vunpack.c.h.b16 %v27
  %v118 = vunpack.c.l.b16 %v28
  %v119 = vunpack.c.h.b16 %v28
  %v120 = vunpack.c.l.b16 %v29
  %v121 = vunpack.c.h.b16 %v29
  %v122 = vunpack.c.l.b16 %v30
  %v123 = vunpack.c.h.b16 %v30
  %v124 = vunpack.c.l.b16 %v31
  %v125 = vunpack.c.h.b16 %v31
  %v126 = vunpack.c.l.b16 %v32
  %v127 = vunpack.c.h.b16 %v32
  %v128 = vunpack.c.l.b16 %v33
  %v129 = vunpack.c.h.b16 %v33
  %v130 = vunpack.c.l.b16 %v34
  %v131 = vunpack.c.h.b16 %v34
  %v132 = vunpack.c.l.b16 %v35
  %v133 = vunpack.c.h.b16 %v35
  %v134 = vunpack.c.l.b16 %v36
  %v135 = vunpack.c.h.b16 %v36
  %v136 = vunpack.c.l.b16 %v37
  %v137 = vunpack.c.h.b16 %v37
  %v138 = vunpack.c.l.b16 %v38
  %v139 = vunpack.c.h.b16 %v38
  %v140 = vunpack.c.l.b16 %v39
  %v141 = vunpack.c.h.b16 %v39
  %v142 = vunpack.c.l.b16 %v40
  %v143 = vunpack.c.h.b16 %v40
  %v144 = vunpack.c.l.b16 %v41
  %v145 = vunpack.c.h.b16 %v41
  %v146 = vunpack.c.l.b16 %v42
  %v147 = vunpack.c.h.b16 %v42
  %v148 = vunpack.c.l.b16 %v43
  %v149 = vunpack.c.h.b16 %v43
  %v150 = vunpack.c.l.b16 %v44
  %v151 = vunpack.c.h.b16 %v44
  %v152 = vunpack.c.l.b16 %v45
  %v153 = vunpack.c.h.b16 %v45
  %v154 = vunpack.c.l.b16 %v46
  %v155 = vunpack.c.h.b16 %v46
  %v156 = vunpack.c.l.b16 %v47
  %v157 = vunpack.c.h.b16 %v47
  %v158 = vunpack.c.l.b16 %v48
  %v159 = vunpack.c.h.b16 %v48
  %v160 = vunpack.c.l.b16 %v49
  %v161 = vunpack.c.h.b16 %v49
  %v162 = vunpack.c.l.b16 %v50
  %v163 = vunpack.c.h.b16 %v50
  %v164 = vunpack.c.l.b16 %v51
  %v165 = vunpack.c.h.b16 %v51
  %v166 = vunpack.c.l.b16 %v52
  %v167 = vunpack.c.h.b16 %v52
  %v168 = vpack.c.b16 %v106, %v104
  %v169 = vpack.c.b16 %v107, %v105
  %v170 = vpack.c.b16 %v110, %v108
  %v171 = vpack.c.b16 %v111, %v109
  %v172 = vpack.c.b16 %v114, %v112
  %v173 = vpack.c.b16 %v115, %v113
  %v174 = vpack.c.b16 %v118, %v116
  %v175 = vpack.c.b16 %v119, %v117
  %v176 = vpack.c.b16 %v122, %v120
  %v177 = vpack.c.b16 %v123, %v121
  %v178 = vpack.c.b16 %v126, %v124
  %v179 = vpack.c.b16 %v127, %v125
  %v180 = vpack.c.b16 %v130, %v128
  %v181 = vpack.c.b16 %v131, %v129
  %v182 = vpack.c.b16 %v134, %v132
  %v183 = vpack.c.b16 %v135, %v133
  %v184 = vpack.c.b16 %v138, %v136
  %v185 = vpack.c.b16 %v139, %v137
  %v186 = vpack.c.b16 %v142, %v140
  %v187 = vpack.c.b16 %v143, %v141
  %v188 = vpack.c.b16 %v146, %v144
  %v189 = vpack.c.b16 %v147, %v145
  %v190 = vpack.c.b16 %v150, %v148
  %v191 = vpack.c.b16 %v151, %v149
  %v192 = vpack.c.b16 %v154, %v152
  %v193 = vpack.c.b16 %v155, %v153
  %v194 = vpack.c.b16 %v158, %v156
  %v195 = vpack.c.b16 %v159, %v157
  %v196 = vpack.c.b16 %v162, %v160
  %v197 = vpack.c.b16 %v163, %v161
  %v198 = vpack.c.b16 %v166, %v164
  %v199 = vpack.c.b16 %v167, %v165
  %232 = vmatprep.subr.bf16.mxu0 %v183
  %233 = vmatpush1.bf16.msra.mxu0 %v182
  %234 = vmatprep.subr.bf16.mxu0 %v181
  %235 = vmatpush1.bf16.msra.mxu0 %v180
  %236 = vmatprep.subr.bf16.mxu0 %v179
  %237 = vmatpush1.bf16.msra.mxu0 %v178
  %238 = vmatprep.subr.bf16.mxu0 %v177
  %239 = vmatpush1.bf16.msra.mxu0 %v176
  %240 = vmatprep.subr.bf16.mxu0 %v175
  %241 = vmatpush1.bf16.msra.mxu0 %v174
  %242 = vmatprep.subr.bf16.mxu0 %v173
  %243 = vmatpush1.bf16.msra.mxu0 %v172
  %244 = vmatprep.subr.bf16.mxu0 %v171
  %245 = vmatpush1.bf16.msra.mxu0 %v170
  %246 = vmatprep.subr.bf16.mxu0 %v169
  %247 = vmatpush1.bf16.msra.mxu0 %v168
  %248 = vmatprep.subr.bf16.mxu0 %v199
  %249 = vmatpush2.bf16.msra.mxu0 %v198
  %250 = vmatprep.subr.bf16.mxu0 %v197
  %251 = vmatpush2.bf16.msra.mxu0 %v196
  %252 = vmatprep.subr.bf16.mxu0 %v195
  %253 = vmatpush2.bf16.msra.mxu0 %v194
  %254 = vmatprep.subr.bf16.mxu0 %v193
  %255 = vmatpush2.bf16.msra.mxu0 %v192
  %256 = vmatprep.subr.bf16.mxu0 %v191
  %257 = vmatpush2.bf16.msra.mxu0 %v190
  %258 = vmatprep.subr.bf16.mxu0 %v189
  %259 = vmatpush2.bf16.msra.mxu0 %v188
  %260 = vmatprep.subr.bf16.mxu0 %v187
  %261 = vmatpush2.bf16.msra.mxu0 %v186
  %262 = vmatprep.subr.bf16.mxu0 %v185
  %263 = vmatpush2.bf16.msra.mxu0 %v184
  %264 = vmatprep.mubr.bf16.mxu0 %v69
  %265 = vmatmul.mubr.bf16.gmra.mxu0 %v68
  %v266 = vpop.f32.mrf.mxu0
  %v267 = vadd.f32 %v58, %v266
  %v268 = vpop.f32.mrf.mxu0
  %v269 = vadd.f32 %v62, %v268
  %v270 = vpop.f32.mrf.mxu0
  %v271 = vpop.f32.mrf.mxu0
  %272 = vdwg.mxu0
  %vm273 = vcmp.ge.f32.partialorder %v267, 0.0
  %vm274 = vcmp.ge.f32.partialorder %v269, 0.0
  %v275 = vmul.f32 %v267, 0.1
  %v276 = vmul.f32 %v269, 0.1
  %v277 = vsel %vm273, %v267, %v275
  %v278 = vsel %vm274, %v269, %v276
  %v279 = vpack.c.bf16 %v277, %v277
  %v280 = vpack.c.bf16 %v278, %v278
  %v281 = vld [vmem:[%s3] sm:$0xff]
  %v282 = vld [vmem:[%s3 + $0x8] sm:$0xff]
  %v283 = vld [vmem:[%s3 + $0x10] sm:$0xff]
  %v284 = vld [vmem:[%s3 + $0x18] sm:$0xff]
  %v285 = vld [vmem:[%s3 + $0x20] sm:$0xff]
  %v286 = vld [vmem:[%s3 + $0x28] sm:$0xff]
  %v287 = vld [vmem:[%s3 + $0x30] sm:$0xff]
  %v288 = vld [vmem:[%s3 + $0x38] sm:$0xff]
  %v289 = vld [vmem:[%s3 + $0x40] sm:$0xff]
  %v290 = vld [vmem:[%s3 + $0x48] sm:$0xff]
  %v291 = vld [vmem:[%s3 + $0x50] sm:$0xff]
  %v292 = vld [vmem:[%s3 + $0x58] sm:$0xff]
  %v293 = vld [vmem:[%s3 + $0x60] sm:$0xff]
  %v294 = vld [vmem:[%s3 + $0x68] sm:$0xff]
  %v295 = vld [vmem:[%s3 + $0x70] sm:$0xff]
  %v296 = vld [vmem:[%s3 + $0x78] sm:$0xff]
  %v297 = vld [vmem:[%s3 + $0x80] sm:$0xff]
  %v298 = vld [vmem:[%s3 + $0x88] sm:$0xff]
  %v299 = vld [vmem:[%s3 + $0x90] sm:$0xff]
  %v300 = vld [vmem:[%s3 + $0x98] sm:$0xff]
  %v301 = vld [vmem:[%s3 + $0xa0] sm:$0xff]
  %v302 = vld [vmem:[%s3 + $0xa8] sm:$0xff]
  %v303 = vld [vmem:[%s3 + $0xb0] sm:$0xff]
  %v304 = vld [vmem:[%s3 + $0xb8] sm:$0xff]
  %v305 = vld [vmem:[%s3 + $0xc0] sm:$0xff]
  %v306 = vld [vmem:[%s3 + $0xc8] sm:$0xff]
  %v307 = vld [vmem:[%s3 + $0xd0] sm:$0xff]
  %v308 = vld [vmem:[%s3 + $0xd8] sm:$0xff]
  %v309 = vld [vmem:[%s3 + $0xe0] sm:$0xff]
  %v310 = vld [vmem:[%s3 + $0xe8] sm:$0xff]
  %v311 = vld [vmem:[%s3 + $0xf0] sm:$0xff]
  %v312 = vld [vmem:[%s3 + $0xf8] sm:$0xff]
  %v313 = vld [vmem:[%s4] sm:$0x3]
  %v315 = vlaneseq
  %v316 = vshrl.u32 %v315, 7
  %v317 = vsub.s32 0, %v316
  %v318 = vrot.slane %v313, %v317
  %v319 = vlaneseq
  %v320 = vshrl.u32 %v319, 7
  %v321 = vsub.s32 1, %v320
  %v322 = vrot.slane %v313, %v321
  %v357 = vunpack.c.l.b16 %v281
  %v358 = vunpack.c.h.b16 %v281
  %v359 = vunpack.c.l.b16 %v282
  %v360 = vunpack.c.h.b16 %v282
  %v361 = vunpack.c.l.b16 %v283
  %v362 = vunpack.c.h.b16 %v283
  %v363 = vunpack.c.l.b16 %v284
  %v364 = vunpack.c.h.b16 %v284
  %v365 = vunpack.c.l.b16 %v285
  %v366 = vunpack.c.h.b16 %v285
  %v367 = vunpack.c.l.b16 %v286
  %v368 = vunpack.c.h.b16 %v286
  %v369 = vunpack.c.l.b16 %v287
  %v370 = vunpack.c.h.b16 %v287
  %v371 = vunpack.c.l.b16 %v288
  %v372 = vunpack.c.h.b16 %v288
  %v373 = vunpack.c.l.b16 %v289
  %v374 = vunpack.c.h.b16 %v289
  %v375 = vunpack.c.l.b16 %v290
  %v376 = vunpack.c.h.b16 %v290
  %v377 = vunpack.c.l.b16 %v291
  %v378 = vunpack.c.h.b16 %v291
  %v379 = vunpack.c.l.b16 %v292
  %v380 = vunpack.c.h.b16 %v292
  %v381 = vunpack.c.l.b16 %v293
  %v382 = vunpack.c.h.b16 %v293
  %v383 = vunpack.c.l.b16 %v294
  %v384 = vunpack.c.h.b16 %v294
  %v385 = vunpack.c.l.b16 %v295
  %v386 = vunpack.c.h.b16 %v295
  %v387 = vunpack.c.l.b16 %v296
  %v388 = vunpack.c.h.b16 %v296
  %v389 = vunpack.c.l.b16 %v297
  %v390 = vunpack.c.h.b16 %v297
  %v391 = vunpack.c.l.b16 %v298
  %v392 = vunpack.c.h.b16 %v298
  %v393 = vunpack.c.l.b16 %v299
  %v394 = vunpack.c.h.b16 %v299
  %v395 = vunpack.c.l.b16 %v300
  %v396 = vunpack.c.h.b16 %v300
  %v397 = vunpack.c.l.b16 %v301
  %v398 = vunpack.c.h.b16 %v301
  %v399 = vunpack.c.l.b16 %v302
  %v400 = vunpack.c.h.b16 %v302
  %v401 = vunpack.c.l.b16 %v303
  %v402 = vunpack.c.h.b16 %v303
  %v403 = vunpack.c.l.b16 %v304
  %v404 = vunpack.c.h.b16 %v304
  %v405 = vunpack.c.l.b16 %v305
  %v406 = vunpack.c.h.b16 %v305
  %v407 = vunpack.c.l.b16 %v306
  %v408 = vunpack.c.h.b16 %v306
  %v409 = vunpack.c.l.b16 %v307
  %v410 = vunpack.c.h.b16 %v307
  %v411 = vunpack.c.l.b16 %v308
  %v412 = vunpack.c.h.b16 %v308
  %v413 = vunpack.c.l.b16 %v309
  %v414 = vunpack.c.h.b16 %v309
  %v415 = vunpack.c.l.b16 %v310
  %v416 = vunpack.c.h.b16 %v310
  %v417 = vunpack.c.l.b16 %v311
  %v418 = vunpack.c.h.b16 %v311
  %v419 = vunpack.c.l.b16 %v312
  %v420 = vunpack.c.h.b16 %v312
  %v421 = vpack.c.b16 %v359, %v357
  %v422 = vpack.c.b16 %v360, %v358
  %v423 = vpack.c.b16 %v363, %v361
  %v424 = vpack.c.b16 %v364, %v362
  %v425 = vpack.c.b16 %v367, %v365
  %v426 = vpack.c.b16 %v368, %v366
  %v427 = vpack.c.b16 %v371, %v369
  %v428 = vpack.c.b16 %v372, %v370
  %v429 = vpack.c.b16 %v375, %v373
  %v430 = vpack.c.b16 %v376, %v374
  %v431 = vpack.c.b16 %v379, %v377
  %v432 = vpack.c.b16 %v380, %v378
  %v433 = vpack.c.b16 %v383, %v381
  %v434 = vpack.c.b16 %v384, %v382
  %v435 = vpack.c.b16 %v387, %v385
  %v436 = vpack.c.b16 %v388, %v386
  %v437 = vpack.c.b16 %v391, %v389
  %v438 = vpack.c.b16 %v392, %v390
  %v439 = vpack.c.b16 %v395, %v393
  %v440 = vpack.c.b16 %v396, %v394
  %v441 = vpack.c.b16 %v399, %v397
  %v442 = vpack.c.b16 %v400, %v398
  %v443 = vpack.c.b16 %v403, %v401
  %v444 = vpack.c.b16 %v404, %v402
  %v445 = vpack.c.b16 %v407, %v405
  %v446 = vpack.c.b16 %v408, %v406
  %v447 = vpack.c.b16 %v411, %v409
  %v448 = vpack.c.b16 %v412, %v410
  %v449 = vpack.c.b16 %v415, %v413
  %v450 = vpack.c.b16 %v416, %v414
  %v451 = vpack.c.b16 %v419, %v417
  %v452 = vpack.c.b16 %v420, %v418
  %485 = vmatprep.subr.bf16.mxu0 %v436
  %486 = vmatpush1.bf16.msra.mxu0 %v435
  %487 = vmatprep.subr.bf16.mxu0 %v434
  %488 = vmatpush1.bf16.msra.mxu0 %v433
  %489 = vmatprep.subr.bf16.mxu0 %v432
  %490 = vmatpush1.bf16.msra.mxu0 %v431
  %491 = vmatprep.subr.bf16.mxu0 %v430
  %492 = vmatpush1.bf16.msra.mxu0 %v429
  %493 = vmatprep.subr.bf16.mxu0 %v428
  %494 = vmatpush1.bf16.msra.mxu0 %v427
  %495 = vmatprep.subr.bf16.mxu0 %v426
  %496 = vmatpush1.bf16.msra.mxu0 %v425
  %497 = vmatprep.subr.bf16.mxu0 %v424
  %498 = vmatpush1.bf16.msra.mxu0 %v423
  %499 = vmatprep.subr.bf16.mxu0 %v422
  %500 = vmatpush1.bf16.msra.mxu0 %v421
  %501 = vmatprep.subr.bf16.mxu0 %v452
  %502 = vmatpush2.bf16.msra.mxu0 %v451
  %503 = vmatprep.subr.bf16.mxu0 %v450
  %504 = vmatpush2.bf16.msra.mxu0 %v449
  %505 = vmatprep.subr.bf16.mxu0 %v448
  %506 = vmatpush2.bf16.msra.mxu0 %v447
  %507 = vmatprep.subr.bf16.mxu0 %v446
  %508 = vmatpush2.bf16.msra.mxu0 %v445
  %509 = vmatprep.subr.bf16.mxu0 %v444
  %510 = vmatpush2.bf16.msra.mxu0 %v443
  %511 = vmatprep.subr.bf16.mxu0 %v442
  %512 = vmatpush2.bf16.msra.mxu0 %v441
  %513 = vmatprep.subr.bf16.mxu0 %v440
  %514 = vmatpush2.bf16.msra.mxu0 %v439
  %515 = vmatprep.subr.bf16.mxu0 %v438
  %516 = vmatpush2.bf16.msra.mxu0 %v437
  %517 = vmatprep.mubr.bf16.mxu0 %v280
  %518 = vmatmul.mubr.bf16.gmra.mxu0 %v279
  %v519 = vpop.f32.mrf.mxu0
  %v520 = vadd.f32 %v318, %v519
  %v521 = vpop.f32.mrf.mxu0
  %v522 = vadd.f32 %v322, %v521
  %v523 = vpop.f32.mrf.mxu0
  %v524 = vpop.f32.mrf.mxu0
  %525 = vdwg.mxu0
  %526 = vst [vmem:[%s5] sm:$0xff] %v520
  %527 = vst [vmem:[%s5 + $0x8] sm:$0xff] %v522
  // Predicated region
  $region22: #{res_encoder_forward.31} parent=0 // pred_check
    _
  $region23: #{res_encoder_forward.31} parent=0 // pred_check_branch
    %529 = sbr.rel (0) target = $region25
  $region24: #{res_encoder_forward.31} parent=0 // pred_region
    _
  $region25: #{res_encoder_forward.31} parent=0 // pred_fallthru
    _
  // Predicated region
  $region26: #{res_encoder_forward.31} parent=0 // pred_check
    _
  $region27: #{res_encoder_forward.31} parent=0 // pred_check_branch
    %531 = sbr.rel (0) target = $region29
  $region28: #{res_encoder_forward.31} parent=0 // pred_region
    _
  $region29: #{res_encoder_forward.31} parent=0 // pred_fallthru
    _

</llo_original>
